<compile_context>
chip_gen: v7x
topology: tpu7x:2x2x1
jax: 0.10.0
libtpu: 0.0.40
codegen_flags: <defaults>
</compile_context>

<pallas_src>
import functools

import jax
import jax.numpy as jnp
from jax import lax
from jax.experimental import pallas as pl
from jax.experimental.pallas import tpu as pltpu


# --------------------------------------------------------------------------- kernels


def _conv3x3_stats_kernel(x_ref, w_ref, b_ref, mask_ref, y_ref, sum_ref, ssq_ref, *, Wp):
    """3x3 'same' conv as 9 flat-shifted matmuls + bias, plus BN partial statistics.

    x_ref   : (1, Lp, Cin)   bf16  row-major flattened, zero-padded image
    w_ref   : (9, Cin, Cpad) bf16  conv taps, (ky, kx)-major, resident across grid
    b_ref   : (1, Cpad)      f32   bias, resident
    mask_ref: (L, 1)         f32   1.0 on real pixels, 0.0 on padded-width columns
    y_ref   : (1, L, Cpad)   f32   pre-BN conv output ("wide": padded-width cols kept)
    sum_ref : (1, Cpad)      f32   per-channel sum accumulator (same block all grid)
    ssq_ref : (1, Cpad)      f32   per-channel sum-of-squares accumulator
    """
    L = y_ref.shape[1]
    Cpad = y_ref.shape[2]

    x = x_ref[0]                                        # (Lp, Cin) bf16
    acc = jnp.zeros((L, Cpad), jnp.float32)
    for ky in range(3):                                 # static 9-tap unroll
        for kx in range(3):
            off = ky * Wp + kx                          # static flat row shift
            acc = acc + jnp.dot(x[off:off + L, :], w_ref[3 * ky + kx],
                                preferred_element_type=jnp.float32)
    y = acc + b_ref[...]                                # bias broadcast once per block
    y_ref[0] = y

    @pl.when(pl.program_id(0) == 0)
    def _init():
        sum_ref[...] = jnp.zeros_like(sum_ref)
        ssq_ref[...] = jnp.zeros_like(ssq_ref)

    yv = y * mask_ref[...]                              # zero out the fake columns
    sum_ref[...] = sum_ref[...] + jnp.sum(yv, axis=0, keepdims=True)
    ssq_ref[...] = ssq_ref[...] + jnp.sum(yv * yv, axis=0, keepdims=True)


def _bn_relu_kernel(y_ref, scale_ref, shift_ref, o_ref):
    """Folded BatchNorm (y*scale + shift) + ReLU; drops the padded-width columns.

    y_ref    : (TR, Wp, Cpad) f32
    scale_ref: (1, Cpad)      f32   gamma * rsqrt(var + eps)
    shift_ref: (1, Cpad)      f32   beta - mean * scale
    o_ref    : (TR, W, Cpad)  out_dtype
    """
    W = o_ref.shape[1]
    y = y_ref[...][:, :W, :]
    o_ref[...] = jnp.maximum(y * scale_ref[...] + shift_ref[...], 0.0).astype(o_ref.dtype)


# --------------------------------------------------------------------------- wrappers


def conv_bn_relu_stage(x_nhwc, weight, bias, gamma, beta, out_dtype, eps=1e-5):
    """One Conv2d(3x3, pad=1, bias) -> BatchNorm2d(train) -> ReLU stage.

    x_nhwc: (N, H, W, Cin) float.  weight: (Cout, Cin, 3, 3) (PyTorch OIHW layout).
    Returns (N, H, W, Cpad) where Cpad = round_up(Cout, 128); channels >= Cout are 0.
    """
    N, H, W, Cin = x_nhwc.shape
    Cout = weight.shape[0]
    Cpad = ((Cout + 127) // 128) * 128
    Wp = W + 2                       # padded width
    L = H * Wp                       # "wide" conv-output rows per image
    Lp = (H + 3) * Wp                # flattened padded rows per image (1 top, 2 bottom)

    # ---- glue: layout only (pad + flatten + weight repack); nothing is im2col'd ----
    xp = jnp.pad(x_nhwc, ((0, 0), (1, 2), (1, 1), (0, 0)))
    x_flat = xp.reshape(N, Lp, Cin).astype(jnp.bfloat16)

    w = weight.transpose(2, 3, 1, 0).reshape(9, Cin, Cout)          # (ky,kx)-major taps
    w = jnp.pad(w, ((0, 0), (0, 0), (0, Cpad - Cout))).astype(jnp.bfloat16)
    b = jnp.pad(bias, (0, Cpad - Cout)).reshape(1, Cpad).astype(jnp.float32)
    # validity mask for the flat-shift trick: wide row t is a real pixel iff t % Wp < W
    mask = ((jnp.arange(L) % Wp) < W).astype(jnp.float32).reshape(L, 1)

    # ---- pass 1: conv + bias + per-channel sum / sumsq (grid over images) ----------
    conv_kernel = functools.partial(_conv3x3_stats_kernel, Wp=Wp)
    y_wide, s, ss = pl.pallas_call(
        conv_kernel,
        out_shape=(jax.ShapeDtypeStruct((N, L, Cpad), jnp.float32),
                   jax.ShapeDtypeStruct((1, Cpad), jnp.float32),
                   jax.ShapeDtypeStruct((1, Cpad), jnp.float32)),
        grid=(N,),
        in_specs=[pl.BlockSpec((1, Lp, Cin), lambda n: (n, 0, 0)),
                  pl.BlockSpec((9, Cin, Cpad), lambda n: (0, 0, 0)),
                  pl.BlockSpec((1, Cpad), lambda n: (0, 0)),
                  pl.BlockSpec((L, 1), lambda n: (0, 0))],
        out_specs=(pl.BlockSpec((1, L, Cpad), lambda n: (n, 0, 0)),
                   pl.BlockSpec((1, Cpad), lambda n: (0, 0)),
                   pl.BlockSpec((1, Cpad), lambda n: (0, 0))),
        compiler_params=pltpu.CompilerParams(
            dimension_semantics=("arbitrary",),          # stats accumulate across grid
            vmem_limit_bytes=48 * 1024 * 1024),
    )(x_flat, w, b, mask)

    # ---- fold BN (training-mode, biased batch stats) into one scale/shift ----------
    cnt = jnp.float32(N * H * W)
    mean = s[0, :Cout] / cnt
    var = ss[0, :Cout] / cnt - mean * mean
    inv = lax.rsqrt(var + eps)
    scale = gamma.astype(jnp.float32) * inv
    shift = beta.astype(jnp.float32) - mean * scale
    scale = jnp.pad(scale, (0, Cpad - Cout)).reshape(1, Cpad)   # padded chans -> 0
    shift = jnp.pad(shift, (0, Cpad - Cout)).reshape(1, Cpad)

    # ---- pass 2: apply folded scale/shift + ReLU on lane-dense row tiles ------------
    NH = N * H
    TR = 8 if NH % 8 == 0 else NH    # production: ~hundreds of rows, halved for v7x
    y3 = y_wide.reshape(NH, Wp, Cpad)
    h = pl.pallas_call(
        _bn_relu_kernel,
        out_shape=jax.ShapeDtypeStruct((NH, W, Cpad), out_dtype),
        grid=(pl.cdiv(NH, TR),),
        in_specs=[pl.BlockSpec((TR, Wp, Cpad), lambda i: (i, 0, 0)),
                  pl.BlockSpec((1, Cpad), lambda i: (0, 0)),
                  pl.BlockSpec((1, Cpad), lambda i: (0, 0))],
        out_specs=pl.BlockSpec((TR, W, Cpad), lambda i: (i, 0, 0)),
        compiler_params=pltpu.CompilerParams(
            dimension_semantics=("parallel",),
            vmem_limit_bytes=48 * 1024 * 1024),
    )(y3, scale, shift)
    return h.reshape(N, H, W, Cpad)


def conv_block_forward(x, w1, b1, g1, be1, w2, b2, g2, be2):
    """PyTorch conv_block.forward: (conv+BN+ReLU) x 2.  x is NCHW, returns NCHW."""
    N, Cin, H, W = x.shape
    Cout = w1.shape[0]
    x_nhwc = jnp.transpose(x, (0, 2, 3, 1))

    # stage 1: keep intermediate activation in bf16 to halve HBM traffic into conv2
    h1 = conv_bn_relu_stage(x_nhwc, w1, b1, g1, be1, out_dtype=jnp.bfloat16)
    Cpad = h1.shape[-1]

    # stage 2 consumes the channel-padded activation (extra channels are exactly 0);
    # pad conv2's input channels with zeros to match.
    w2p = jnp.pad(w2, ((0, 0), (0, Cpad - w2.shape[1]), (0, 0), (0, 0)))
    h2 = conv_bn_relu_stage(h1, w2p, b2, g2, be2, out_dtype=jnp.float32)

    return jnp.transpose(h2[..., :Cout], (0, 3, 1, 2))


# --------------------------------------------------------------------------- reference


def reference_forward(x, w1, b1, g1, be1, w2, b2, g2, be2, eps=1e-5):
    """Plain-JAX reference matching PyTorch conv_block.forward in training mode.

    Mirrors the kernel's bf16 matmul inputs (f32 accumulation) so the comparison is
    apples-to-apples.
    """
    def stage(h, w, b, g, be):
        y = lax.conv_general_dilated(
            h.astype(jnp.bfloat16), w.astype(jnp.bfloat16),
            window_strides=(1, 1), padding=((1, 1), (1, 1)),
            dimension_numbers=("NCHW", "OIHW", "NCHW"),
            preferred_element_type=jnp.float32)
        y = y + b.reshape(1, -1, 1, 1)
        mean = jnp.mean(y, axis=(0, 2, 3), keepdims=True)
        var = jnp.mean((y - mean) ** 2, axis=(0, 2, 3), keepdims=True)
        yn = (y - mean) * lax.rsqrt(var + eps)
        yn = yn * g.reshape(1, -1, 1, 1) + be.reshape(1, -1, 1, 1)
        return jnp.maximum(yn, 0.0)

    return stage(stage(x, w1, b1, g1, be1), w2, b2, g2, be2)


# --------------------------------------------------------------------------- main


if __name__ == "__main__":
    key = jax.random.PRNGKey(0)
    ks = jax.random.split(key, 9)
    N, C_in, C_out, H, W = 2, 4, 8, 16, 16

    x = jax.random.normal(ks[0], (N, C_in, H, W), dtype=jnp.float32)
    # synthetic parameters with nn.Conv2d / nn.BatchNorm2d shapes
    w1 = 0.2 * jax.random.normal(ks[1], (C_out, C_in, 3, 3), dtype=jnp.float32)
    b1 = 0.1 * jax.random.normal(ks[2], (C_out,), dtype=jnp.float32)
    g1 = 1.0 + 0.1 * jax.random.normal(ks[3], (C_out,), dtype=jnp.float32)
    be1 = 0.1 * jax.random.normal(ks[4], (C_out,), dtype=jnp.float32)
    w2 = 0.2 * jax.random.normal(ks[5], (C_out, C_out, 3, 3), dtype=jnp.float32)
    b2 = 0.1 * jax.random.normal(ks[6], (C_out,), dtype=jnp.float32)
    g2 = 1.0 + 0.1 * jax.random.normal(ks[7], (C_out,), dtype=jnp.float32)
    be2 = 0.1 * jax.random.normal(ks[8], (C_out,), dtype=jnp.float32)

    fwd = jax.jit(conv_block_forward)
    out = jax.block_until_ready(fwd(x, w1, b1, g1, be1, w2, b2, g2, be2))

    ref = reference_forward(x, w1, b1, g1, be1, w2, b2, g2, be2)
    assert out.shape == (N, C_out, H, W), out.shape
    max_err = float(jnp.max(jnp.abs(out - ref)))
    assert jnp.allclose(out, ref, atol=2e-2, rtol=2e-2), max_err

    print("KERNEL_OK")
</pallas_src>

<mosaic_0001>
module attributes {stable_mosaic.version = 11 : i64} {
  func.func @_conv3x3_stats_kernel(%arg0: i32, %arg1: memref<1x342x4xbf16, #tpu.memory_space<vmem>>, %arg2: memref<9x4x128xbf16, #tpu.memory_space<vmem>>, %arg3: memref<1x128xf32, #tpu.memory_space<vmem>>, %arg4: memref<288x1xf32, #tpu.memory_space<vmem>>, %arg5: memref<1x288x128xf32, #tpu.memory_space<vmem>>, %arg6: memref<1x128xf32, #tpu.memory_space<vmem>>, %arg7: memref<1x128xf32, #tpu.memory_space<vmem>>) attributes {dimension_semantics = [#tpu.dimension_semantics<arbitrary>], iteration_bounds = array<i64: 2>, scalar_prefetch = 0 : i64, scratch_operands = 0 : i64, tpu.core_type = #tpu.core_type<tc>, window_params = [{transform_indices = @transform_0, window_bounds = array<i64: 1, 342, 4>}, {pipeline_mode = #tpu.pipeline_mode<synchronous>, transform_indices = @transform_1, window_bounds = array<i64: 9, 4, 128>}, {pipeline_mode = #tpu.pipeline_mode<synchronous>, transform_indices = @transform_2, window_bounds = array<i64: 1, 128>}, {pipeline_mode = #tpu.pipeline_mode<synchronous>, transform_indices = @transform_3, window_bounds = array<i64: 288, 1>}, {transform_indices = @transform_4, window_bounds = array<i64: 1, 288, 128>}, {pipeline_mode = #tpu.pipeline_mode<synchronous>, transform_indices = @transform_5, window_bounds = array<i64: 1, 128>}, {pipeline_mode = #tpu.pipeline_mode<synchronous>, transform_indices = @transform_6, window_bounds = array<i64: 1, 128>}]} {
    %c0 = arith.constant 0 : index
    %c0_0 = arith.constant 0 : index
    %c0_1 = arith.constant 0 : index
    %0 = vector.load %arg1[%c0, %c0_0, %c0_1] : memref<1x342x4xbf16, #tpu.memory_space<vmem>>, vector<1x342x4xbf16>
    %1 = vector.shape_cast %0 : vector<1x342x4xbf16> to vector<342x4xbf16>
    %cst = arith.constant 0.000000e+00 : f32
    %2 = vector.broadcast %cst : f32 to vector<288x128xf32>
    %3 = vector.extract_strided_slice %1 {offsets = [0, 0], sizes = [288, 4], strides = [1, 1]} : vector<342x4xbf16> to vector<288x4xbf16>
    %c0_2 = arith.constant 0 : index
    %c0_3 = arith.constant 0 : index
    %c0_4 = arith.constant 0 : index
    %4 = vector.load %arg2[%c0_2, %c0_3, %c0_4] : memref<9x4x128xbf16, #tpu.memory_space<vmem>>, vector<1x4x128xbf16>
    %5 = vector.shape_cast %4 : vector<1x4x128xbf16> to vector<4x128xbf16>
    %cst_5 = arith.constant dense<0.000000e+00> : vector<288x128xf32>
    %6 = tpu.matmul %3, %5, %cst_5 {dimension_numbers = #tpu.dot_dimension_numbers<[1], [0], [0], [1], [0, 0, 1, 1], [], []>} : vector<288x4xbf16>, vector<4x128xbf16>, vector<288x128xf32> -> vector<288x128xf32>
    %7 = arith.addf %2, %6 : vector<288x128xf32>
    %8 = vector.extract_strided_slice %1 {offsets = [1, 0], sizes = [288, 4], strides = [1, 1]} : vector<342x4xbf16> to vector<288x4xbf16>
    %c1 = arith.constant 1 : index
    %c0_6 = arith.constant 0 : index
    %c0_7 = arith.constant 0 : index
    %9 = vector.load %arg2[%c1, %c0_6, %c0_7] : memref<9x4x128xbf16, #tpu.memory_space<vmem>>, vector<1x4x128xbf16>
    %10 = vector.shape_cast %9 : vector<1x4x128xbf16> to vector<4x128xbf16>
    %cst_8 = arith.constant dense<0.000000e+00> : vector<288x128xf32>
    %11 = tpu.matmul %8, %10, %cst_8 {dimension_numbers = #tpu.dot_dimension_numbers<[1], [0], [0], [1], [0, 0, 1, 1], [], []>} : vector<288x4xbf16>, vector<4x128xbf16>, vector<288x128xf32> -> vector<288x128xf32>
    %12 = arith.addf %7, %11 : vector<288x128xf32>
    %13 = vector.extract_strided_slice %1 {offsets = [2, 0], sizes = [288, 4], strides = [1, 1]} : vector<342x4xbf16> to vector<288x4xbf16>
    %c2 = arith.constant 2 : index
    %c0_9 = arith.constant 0 : index
    %c0_10 = arith.constant 0 : index
    %14 = vector.load %arg2[%c2, %c0_9, %c0_10] : memref<9x4x128xbf16, #tpu.memory_space<vmem>>, vector<1x4x128xbf16>
    %15 = vector.shape_cast %14 : vector<1x4x128xbf16> to vector<4x128xbf16>
    %cst_11 = arith.constant dense<0.000000e+00> : vector<288x128xf32>
    %16 = tpu.matmul %13, %15, %cst_11 {dimension_numbers = #tpu.dot_dimension_numbers<[1], [0], [0], [1], [0, 0, 1, 1], [], []>} : vector<288x4xbf16>, vector<4x128xbf16>, vector<288x128xf32> -> vector<288x128xf32>
    %17 = arith.addf %12, %16 : vector<288x128xf32>
    %18 = vector.extract_strided_slice %1 {offsets = [18, 0], sizes = [288, 4], strides = [1, 1]} : vector<342x4xbf16> to vector<288x4xbf16>
    %c3 = arith.constant 3 : index
    %c0_12 = arith.constant 0 : index
    %c0_13 = arith.constant 0 : index
    %19 = vector.load %arg2[%c3, %c0_12, %c0_13] : memref<9x4x128xbf16, #tpu.memory_space<vmem>>, vector<1x4x128xbf16>
    %20 = vector.shape_cast %19 : vector<1x4x128xbf16> to vector<4x128xbf16>
    %cst_14 = arith.constant dense<0.000000e+00> : vector<288x128xf32>
    %21 = tpu.matmul %18, %20, %cst_14 {dimension_numbers = #tpu.dot_dimension_numbers<[1], [0], [0], [1], [0, 0, 1, 1], [], []>} : vector<288x4xbf16>, vector<4x128xbf16>, vector<288x128xf32> -> vector<288x128xf32>
    %22 = arith.addf %17, %21 : vector<288x128xf32>
    %23 = vector.extract_strided_slice %1 {offsets = [19, 0], sizes = [288, 4], strides = [1, 1]} : vector<342x4xbf16> to vector<288x4xbf16>
    %c4 = arith.constant 4 : index
    %c0_15 = arith.constant 0 : index
    %c0_16 = arith.constant 0 : index
    %24 = vector.load %arg2[%c4, %c0_15, %c0_16] : memref<9x4x128xbf16, #tpu.memory_space<vmem>>, vector<1x4x128xbf16>
    %25 = vector.shape_cast %24 : vector<1x4x128xbf16> to vector<4x128xbf16>
    %cst_17 = arith.constant dense<0.000000e+00> : vector<288x128xf32>
    %26 = tpu.matmul %23, %25, %cst_17 {dimension_numbers = #tpu.dot_dimension_numbers<[1], [0], [0], [1], [0, 0, 1, 1], [], []>} : vector<288x4xbf16>, vector<4x128xbf16>, vector<288x128xf32> -> vector<288x128xf32>
    %27 = arith.addf %22, %26 : vector<288x128xf32>
    %28 = vector.extract_strided_slice %1 {offsets = [20, 0], sizes = [288, 4], strides = [1, 1]} : vector<342x4xbf16> to vector<288x4xbf16>
    %c5 = arith.constant 5 : index
    %c0_18 = arith.constant 0 : index
    %c0_19 = arith.constant 0 : index
    %29 = vector.load %arg2[%c5, %c0_18, %c0_19] : memref<9x4x128xbf16, #tpu.memory_space<vmem>>, vector<1x4x128xbf16>
    %30 = vector.shape_cast %29 : vector<1x4x128xbf16> to vector<4x128xbf16>
    %cst_20 = arith.constant dense<0.000000e+00> : vector<288x128xf32>
    %31 = tpu.matmul %28, %30, %cst_20 {dimension_numbers = #tpu.dot_dimension_numbers<[1], [0], [0], [1], [0, 0, 1, 1], [], []>} : vector<288x4xbf16>, vector<4x128xbf16>, vector<288x128xf32> -> vector<288x128xf32>
    %32 = arith.addf %27, %31 : vector<288x128xf32>
    %33 = vector.extract_strided_slice %1 {offsets = [36, 0], sizes = [288, 4], strides = [1, 1]} : vector<342x4xbf16> to vector<288x4xbf16>
    %c6 = arith.constant 6 : index
    %c0_21 = arith.constant 0 : index
    %c0_22 = arith.constant 0 : index
    %34 = vector.load %arg2[%c6, %c0_21, %c0_22] : memref<9x4x128xbf16, #tpu.memory_space<vmem>>, vector<1x4x128xbf16>
    %35 = vector.shape_cast %34 : vector<1x4x128xbf16> to vector<4x128xbf16>
    %cst_23 = arith.constant dense<0.000000e+00> : vector<288x128xf32>
    %36 = tpu.matmul %33, %35, %cst_23 {dimension_numbers = #tpu.dot_dimension_numbers<[1], [0], [0], [1], [0, 0, 1, 1], [], []>} : vector<288x4xbf16>, vector<4x128xbf16>, vector<288x128xf32> -> vector<288x128xf32>
    %37 = arith.addf %32, %36 : vector<288x128xf32>
    %38 = vector.extract_strided_slice %1 {offsets = [37, 0], sizes = [288, 4], strides = [1, 1]} : vector<342x4xbf16> to vector<288x4xbf16>
    %c7 = arith.constant 7 : index
    %c0_24 = arith.constant 0 : index
    %c0_25 = arith.constant 0 : index
    %39 = vector.load %arg2[%c7, %c0_24, %c0_25] : memref<9x4x128xbf16, #tpu.memory_space<vmem>>, vector<1x4x128xbf16>
    %40 = vector.shape_cast %39 : vector<1x4x128xbf16> to vector<4x128xbf16>
    %cst_26 = arith.constant dense<0.000000e+00> : vector<288x128xf32>
    %41 = tpu.matmul %38, %40, %cst_26 {dimension_numbers = #tpu.dot_dimension_numbers<[1], [0], [0], [1], [0, 0, 1, 1], [], []>} : vector<288x4xbf16>, vector<4x128xbf16>, vector<288x128xf32> -> vector<288x128xf32>
    %42 = arith.addf %37, %41 : vector<288x128xf32>
    %43 = vector.extract_strided_slice %1 {offsets = [38, 0], sizes = [288, 4], strides = [1, 1]} : vector<342x4xbf16> to vector<288x4xbf16>
    %c8 = arith.constant 8 : index
    %c0_27 = arith.constant 0 : index
    %c0_28 = arith.constant 0 : index
    %44 = vector.load %arg2[%c8, %c0_27, %c0_28] : memref<9x4x128xbf16, #tpu.memory_space<vmem>>, vector<1x4x128xbf16>
    %45 = vector.shape_cast %44 : vector<1x4x128xbf16> to vector<4x128xbf16>
    %cst_29 = arith.constant dense<0.000000e+00> : vector<288x128xf32>
    %46 = tpu.matmul %43, %45, %cst_29 {dimension_numbers = #tpu.dot_dimension_numbers<[1], [0], [0], [1], [0, 0, 1, 1], [], []>} : vector<288x4xbf16>, vector<4x128xbf16>, vector<288x128xf32> -> vector<288x128xf32>
    %47 = arith.addf %42, %46 : vector<288x128xf32>
    %c0_30 = arith.constant 0 : index
    %c0_31 = arith.constant 0 : index
    %48 = vector.load %arg3[%c0_30, %c0_31] : memref<1x128xf32, #tpu.memory_space<vmem>>, vector<1x128xf32>
    %49 = vector.broadcast %48 : vector<1x128xf32> to vector<288x128xf32>
    %50 = arith.addf %47, %49 : vector<288x128xf32>
    %c0_32 = arith.constant 0 : index
    %c0_33 = arith.constant 0 : index
    %c0_34 = arith.constant 0 : index
    %51 = vector.load %arg5[%c0_32, %c0_33, %c0_34] : memref<1x288x128xf32, #tpu.memory_space<vmem>>, vector<1x288x128xf32>
    %52 = vector.shape_cast %51 : vector<1x288x128xf32> to vector<288x128xf32>
    %53 = vector.shape_cast %50 : vector<288x128xf32> to vector<1x288x128xf32>
    tpu.vector_store %arg5[%c0_32, %c0_33, %c0_34], %53 {strides = array<i32>} : memref<1x288x128xf32, #tpu.memory_space<vmem>>, vector<1x288x128xf32>,
    %c0_i32 = arith.constant 0 : i32
    %54 = arith.cmpi eq, %arg0, %c0_i32 : i32
    %55 = arith.extui %54 : i1 to i32
    %c0_i32_35 = arith.constant 0 : i32
    %56 = arith.cmpi ne, %55, %c0_i32_35 : i32
    scf.if %56 {
      %cst_48 = arith.constant 0.000000e+00 : f32
      %71 = vector.broadcast %cst_48 : f32 to vector<1x128xf32>
      %c0_49 = arith.constant 0 : index
      %c0_50 = arith.constant 0 : index
      %72 = vector.load %arg6[%c0_49, %c0_50] : memref<1x128xf32, #tpu.memory_space<vmem>>, vector<1x128xf32>
      tpu.vector_store %arg6[%c0_49, %c0_50], %71 {strides = array<i32>} : memref<1x128xf32, #tpu.memory_space<vmem>>, vector<1x128xf32>,
      %cst_51 = arith.constant 0.000000e+00 : f32
      %73 = vector.broadcast %cst_51 : f32 to vector<1x128xf32>
      %c0_52 = arith.constant 0 : index
      %c0_53 = arith.constant 0 : index
      %74 = vector.load %arg7[%c0_52, %c0_53] : memref<1x128xf32, #tpu.memory_space<vmem>>, vector<1x128xf32>
      tpu.vector_store %arg7[%c0_52, %c0_53], %73 {strides = array<i32>} : memref<1x128xf32, #tpu.memory_space<vmem>>, vector<1x128xf32>,
    } else {
    }
    %c0_36 = arith.constant 0 : index
    %c0_37 = arith.constant 0 : index
    %57 = vector.load %arg4[%c0_36, %c0_37] : memref<288x1xf32, #tpu.memory_space<vmem>>, vector<288x1xf32>
    %58 = vector.broadcast %57 : vector<288x1xf32> to vector<288x128xf32>
    %59 = arith.mulf %50, %58 : vector<288x128xf32>
    %c0_38 = arith.constant 0 : index
    %c0_39 = arith.constant 0 : index
    %60 = vector.load %arg6[%c0_38, %c0_39] : memref<1x128xf32, #tpu.memory_space<vmem>>, vector<1x128xf32>
    %cst_40 = arith.constant dense<0.000000e+00> : vector<128xf32>
    %61 = vector.multi_reduction <add>, %59, %cst_40 [0] : vector<288x128xf32> to vector<128xf32>
    %62 = vector.shape_cast %61 : vector<128xf32> to vector<1x128xf32>
    %63 = arith.addf %60, %62 : vector<1x128xf32>
    %c0_41 = arith.constant 0 : index
    %c0_42 = arith.constant 0 : index
    %64 = vector.load %arg6[%c0_41, %c0_42] : memref<1x128xf32, #tpu.memory_space<vmem>>, vector<1x128xf32>
    tpu.vector_store %arg6[%c0_41, %c0_42], %63 {strides = array<i32>} : memref<1x128xf32, #tpu.memory_space<vmem>>, vector<1x128xf32>,
    %c0_43 = arith.constant 0 : index
    %c0_44 = arith.constant 0 : index
    %65 = vector.load %arg7[%c0_43, %c0_44] : memref<1x128xf32, #tpu.memory_space<vmem>>, vector<1x128xf32>
    %66 = arith.mulf %59, %59 : vector<288x128xf32>
    %cst_45 = arith.constant dense<0.000000e+00> : vector<128xf32>
    %67 = vector.multi_reduction <add>, %66, %cst_45 [0] : vector<288x128xf32> to vector<128xf32>
    %68 = vector.shape_cast %67 : vector<128xf32> to vector<1x128xf32>
    %69 = arith.addf %65, %68 : vector<1x128xf32>
    %c0_46 = arith.constant 0 : index
    %c0_47 = arith.constant 0 : index
    %70 = vector.load %arg7[%c0_46, %c0_47] : memref<1x128xf32, #tpu.memory_space<vmem>>, vector<1x128xf32>
    tpu.vector_store %arg7[%c0_46, %c0_47], %69 {strides = array<i32>} : memref<1x128xf32, #tpu.memory_space<vmem>>, vector<1x128xf32>,
    return
  }
  func.func @transform_0(%arg0: i32) -> (i32, i32, i32) {
    %c0_i32 = arith.constant 0 : i32
    %c0_i32_0 = arith.constant 0 : i32
    %c0_i32_1 = arith.constant 0 : i32
    return %arg0, %c0_i32, %c0_i32_0 : i32, i32, i32
  }
  func.func @transform_1(%arg0: i32) -> (i32, i32, i32) {
    %c0_i32 = arith.constant 0 : i32
    %c0_i32_0 = arith.constant 0 : i32
    %c0_i32_1 = arith.constant 0 : i32
    %c0_i32_2 = arith.constant 0 : i32
    return %c0_i32, %c0_i32_0, %c0_i32_1 : i32, i32, i32
  }
  func.func @transform_2(%arg0: i32) -> (i32, i32) {
    %c0_i32 = arith.constant 0 : i32
    %c0_i32_0 = arith.constant 0 : i32
    %c0_i32_1 = arith.constant 0 : i32
    return %c0_i32, %c0_i32_0 : i32, i32
  }
  func.func @transform_3(%arg0: i32) -> (i32, i32) {
    %c0_i32 = arith.constant 0 : i32
    %c0_i32_0 = arith.constant 0 : i32
    %c0_i32_1 = arith.constant 0 : i32
    return %c0_i32, %c0_i32_0 : i32, i32
  }
  func.func @transform_4(%arg0: i32) -> (i32, i32, i32) {
    %c0_i32 = arith.constant 0 : i32
    %c0_i32_0 = arith.constant 0 : i32
    %c0_i32_1 = arith.constant 0 : i32
    return %arg0, %c0_i32, %c0_i32_0 : i32, i32, i32
  }
  func.func @transform_5(%arg0: i32) -> (i32, i32) {
    %c0_i32 = arith.constant 0 : i32
    %c0_i32_0 = arith.constant 0 : i32
    %c0_i32_1 = arith.constant 0 : i32
    return %c0_i32, %c0_i32_0 : i32, i32
  }
  func.func @transform_6(%arg0: i32) -> (i32, i32) {
    %c0_i32 = arith.constant 0 : i32
    %c0_i32_0 = arith.constant 0 : i32
    %c0_i32_1 = arith.constant 0 : i32
    return %c0_i32, %c0_i32_0 : i32, i32
  }
}

module attributes {stable_mosaic.version = 11 : i64} {
  func.func @_bn_relu_kernel(%arg0: i32, %arg1: memref<8x18x128xf32, #tpu.memory_space<vmem>>, %arg2: memref<1x128xf32, #tpu.memory_space<vmem>>, %arg3: memref<1x128xf32, #tpu.memory_space<vmem>>, %arg4: memref<8x16x128xbf16, #tpu.memory_space<vmem>>) attributes {dimension_semantics = [#tpu.dimension_semantics<parallel>], iteration_bounds = array<i64: 4>, scalar_prefetch = 0 : i64, scratch_operands = 0 : i64, tpu.core_type = #tpu.core_type<tc>, window_params = [{transform_indices = @transform_0, window_bounds = array<i64: 8, 18, 128>}, {pipeline_mode = #tpu.pipeline_mode<synchronous>, transform_indices = @transform_1, window_bounds = array<i64: 1, 128>}, {pipeline_mode = #tpu.pipeline_mode<synchronous>, transform_indices = @transform_2, window_bounds = array<i64: 1, 128>}, {transform_indices = @transform_3, window_bounds = array<i64: 8, 16, 128>}]} {
    %c0 = arith.constant 0 : index
    %c0_0 = arith.constant 0 : index
    %c0_1 = arith.constant 0 : index
    %0 = vector.load %arg1[%c0, %c0_0, %c0_1] : memref<8x18x128xf32, #tpu.memory_space<vmem>>, vector<8x18x128xf32>
    %1 = vector.extract_strided_slice %0 {offsets = [0, 0, 0], sizes = [8, 16, 128], strides = [1, 1, 1]} : vector<8x18x128xf32> to vector<8x16x128xf32>
    %c0_2 = arith.constant 0 : index
    %c0_3 = arith.constant 0 : index
    %2 = vector.load %arg2[%c0_2, %c0_3] : memref<1x128xf32, #tpu.memory_space<vmem>>, vector<1x128xf32>
    %3 = vector.shape_cast %2 : vector<1x128xf32> to vector<1x1x128xf32>
    %4 = vector.broadcast %3 : vector<1x1x128xf32> to vector<8x16x128xf32>
    %5 = arith.mulf %1, %4 : vector<8x16x128xf32>
    %c0_4 = arith.constant 0 : index
    %c0_5 = arith.constant 0 : index
    %6 = vector.load %arg3[%c0_4, %c0_5] : memref<1x128xf32, #tpu.memory_space<vmem>>, vector<1x128xf32>
    %7 = vector.shape_cast %6 : vector<1x128xf32> to vector<1x1x128xf32>
    %8 = vector.broadcast %7 : vector<1x1x128xf32> to vector<8x16x128xf32>
    %9 = arith.addf %5, %8 : vector<8x16x128xf32>
    %cst = arith.constant 0.000000e+00 : f32
    %10 = vector.broadcast %cst : f32 to vector<8x16x128xf32>
    %11 = arith.maximumf %9, %10 : vector<8x16x128xf32>
    %12 = arith.truncf %11 : vector<8x16x128xf32> to vector<8x16x128xbf16>
    %c0_6 = arith.constant 0 : index
    %c0_7 = arith.constant 0 : index
    %c0_8 = arith.constant 0 : index
    %13 = vector.load %arg4[%c0_6, %c0_7, %c0_8] : memref<8x16x128xbf16, #tpu.memory_space<vmem>>, vector<8x16x128xbf16>
    tpu.vector_store %arg4[%c0_6, %c0_7, %c0_8], %12 {strides = array<i32>} : memref<8x16x128xbf16, #tpu.memory_space<vmem>>, vector<8x16x128xbf16>,
    return
  }
  func.func @transform_0(%arg0: i32) -> (i32, i32, i32) {
    %c0_i32 = arith.constant 0 : i32
    %c0_i32_0 = arith.constant 0 : i32
    %c0_i32_1 = arith.constant 0 : i32
    return %arg0, %c0_i32, %c0_i32_0 : i32, i32, i32
  }
  func.func @transform_1(%arg0: i32) -> (i32, i32) {
    %c0_i32 = arith.constant 0 : i32
    %c0_i32_0 = arith.constant 0 : i32
    %c0_i32_1 = arith.constant 0 : i32
    return %c0_i32, %c0_i32_0 : i32, i32
  }
  func.func @transform_2(%arg0: i32) -> (i32, i32) {
    %c0_i32 = arith.constant 0 : i32
    %c0_i32_0 = arith.constant 0 : i32
    %c0_i32_1 = arith.constant 0 : i32
    return %c0_i32, %c0_i32_0 : i32, i32
  }
  func.func @transform_3(%arg0: i32) -> (i32, i32, i32) {
    %c0_i32 = arith.constant 0 : i32
    %c0_i32_0 = arith.constant 0 : i32
    %c0_i32_1 = arith.constant 0 : i32
    return %arg0, %c0_i32, %c0_i32_0 : i32, i32, i32
  }
}

module attributes {stable_mosaic.version = 11 : i64} {
  func.func @_conv3x3_stats_kernel(%arg0: i32, %arg1: memref<1x342x128xbf16, #tpu.memory_space<vmem>>, %arg2: memref<9x128x128xbf16, #tpu.memory_space<vmem>>, %arg3: memref<1x128xf32, #tpu.memory_space<vmem>>, %arg4: memref<288x1xf32, #tpu.memory_space<vmem>>, %arg5: memref<1x288x128xf32, #tpu.memory_space<vmem>>, %arg6: memref<1x128xf32, #tpu.memory_space<vmem>>, %arg7: memref<1x128xf32, #tpu.memory_space<vmem>>) attributes {dimension_semantics = [#tpu.dimension_semantics<arbitrary>], iteration_bounds = array<i64: 2>, scalar_prefetch = 0 : i64, scratch_operands = 0 : i64, tpu.core_type = #tpu.core_type<tc>, window_params = [{transform_indices = @transform_0, window_bounds = array<i64: 1, 342, 128>}, {pipeline_mode = #tpu.pipeline_mode<synchronous>, transform_indices = @transform_1, window_bounds = array<i64: 9, 128, 128>}, {pipeline_mode = #tpu.pipeline_mode<synchronous>, transform_indices = @transform_2, window_bounds = array<i64: 1, 128>}, {pipeline_mode = #tpu.pipeline_mode<synchronous>, transform_indices = @transform_3, window_bounds = array<i64: 288, 1>}, {transform_indices = @transform_4, window_bounds = array<i64: 1, 288, 128>}, {pipeline_mode = #tpu.pipeline_mode<synchronous>, transform_indices = @transform_5, window_bounds = array<i64: 1, 128>}, {pipeline_mode = #tpu.pipeline_mode<synchronous>, transform_indices = @transform_6, window_bounds = array<i64: 1, 128>}]} {
    %c0 = arith.constant 0 : index
    %c0_0 = arith.constant 0 : index
    %c0_1 = arith.constant 0 : index
    %0 = vector.load %arg1[%c0, %c0_0, %c0_1] : memref<1x342x128xbf16, #tpu.memory_space<vmem>>, vector<1x342x128xbf16>
    %1 = vector.shape_cast %0 : vector<1x342x128xbf16> to vector<342x128xbf16>
    %cst = arith.constant 0.000000e+00 : f32
    %2 = vector.broadcast %cst : f32 to vector<288x128xf32>
    %3 = vector.extract_strided_slice %1 {offsets = [0, 0], sizes = [288, 128], strides = [1, 1]} : vector<342x128xbf16> to vector<288x128xbf16>
    %c0_2 = arith.constant 0 : index
    %c0_3 = arith.constant 0 : index
    %c0_4 = arith.constant 0 : index
    %4 = vector.load %arg2[%c0_2, %c0_3, %c0_4] : memref<9x128x128xbf16, #tpu.memory_space<vmem>>, vector<1x128x128xbf16>
    %5 = vector.shape_cast %4 : vector<1x128x128xbf16> to vector<128x128xbf16>
    %cst_5 = arith.constant dense<0.000000e+00> : vector<288x128xf32>
    %6 = tpu.matmul %3, %5, %cst_5 {dimension_numbers = #tpu.dot_dimension_numbers<[1], [0], [0], [1], [0, 0, 1, 1], [], []>} : vector<288x128xbf16>, vector<128x128xbf16>, vector<288x128xf32> -> vector<288x128xf32>
    %7 = arith.addf %2, %6 : vector<288x128xf32>
    %8 = vector.extract_strided_slice %1 {offsets = [1, 0], sizes = [288, 128], strides = [1, 1]} : vector<342x128xbf16> to vector<288x128xbf16>
    %c1 = arith.constant 1 : index
    %c0_6 = arith.constant 0 : index
    %c0_7 = arith.constant 0 : index
    %9 = vector.load %arg2[%c1, %c0_6, %c0_7] : memref<9x128x128xbf16, #tpu.memory_space<vmem>>, vector<1x128x128xbf16>
    %10 = vector.shape_cast %9 : vector<1x128x128xbf16> to vector<128x128xbf16>
    %cst_8 = arith.constant dense<0.000000e+00> : vector<288x128xf32>
    %11 = tpu.matmul %8, %10, %cst_8 {dimension_numbers = #tpu.dot_dimension_numbers<[1], [0], [0], [1], [0, 0, 1, 1], [], []>} : vector<288x128xbf16>, vector<128x128xbf16>, vector<288x128xf32> -> vector<288x128xf32>
    %12 = arith.addf %7, %11 : vector<288x128xf32>
    %13 = vector.extract_strided_slice %1 {offsets = [2, 0], sizes = [288, 128], strides = [1, 1]} : vector<342x128xbf16> to vector<288x128xbf16>
    %c2 = arith.constant 2 : index
    %c0_9 = arith.constant 0 : index
    %c0_10 = arith.constant 0 : index
    %14 = vector.load %arg2[%c2, %c0_9, %c0_10] : memref<9x128x128xbf16, #tpu.memory_space<vmem>>, vector<1x128x128xbf16>
    %15 = vector.shape_cast %14 : vector<1x128x128xbf16> to vector<128x128xbf16>
    %cst_11 = arith.constant dense<0.000000e+00> : vector<288x128xf32>
    %16 = tpu.matmul %13, %15, %cst_11 {dimension_numbers = #tpu.dot_dimension_numbers<[1], [0], [0], [1], [0, 0, 1, 1], [], []>} : vector<288x128xbf16>, vector<128x128xbf16>, vector<288x128xf32> -> vector<288x128xf32>
    %17 = arith.addf %12, %16 : vector<288x128xf32>
    %18 = vector.extract_strided_slice %1 {offsets = [18, 0], sizes = [288, 128], strides = [1, 1]} : vector<342x128xbf16> to vector<288x128xbf16>
    %c3 = arith.constant 3 : index
    %c0_12 = arith.constant 0 : index
    %c0_13 = arith.constant 0 : index
    %19 = vector.load %arg2[%c3, %c0_12, %c0_13] : memref<9x128x128xbf16, #tpu.memory_space<vmem>>, vector<1x128x128xbf16>
    %20 = vector.shape_cast %19 : vector<1x128x128xbf16> to vector<128x128xbf16>
    %cst_14 = arith.constant dense<0.000000e+00> : vector<288x128xf32>
    %21 = tpu.matmul %18, %20, %cst_14 {dimension_numbers = #tpu.dot_dimension_numbers<[1], [0], [0], [1], [0, 0, 1, 1], [], []>} : vector<288x128xbf16>, vector<128x128xbf16>, vector<288x128xf32> -> vector<288x128xf32>
    %22 = arith.addf %17, %21 : vector<288x128xf32>
    %23 = vector.extract_strided_slice %1 {offsets = [19, 0], sizes = [288, 128], strides = [1, 1]} : vector<342x128xbf16> to vector<288x128xbf16>
    %c4 = arith.constant 4 : index
    %c0_15 = arith.constant 0 : index
    %c0_16 = arith.constant 0 : index
    %24 = vector.load %arg2[%c4, %c0_15, %c0_16] : memref<9x128x128xbf16, #tpu.memory_space<vmem>>, vector<1x128x128xbf16>
    %25 = vector.shape_cast %24 : vector<1x128x128xbf16> to vector<128x128xbf16>
    %cst_17 = arith.constant dense<0.000000e+00> : vector<288x128xf32>
    %26 = tpu.matmul %23, %25, %cst_17 {dimension_numbers = #tpu.dot_dimension_numbers<[1], [0], [0], [1], [0, 0, 1, 1], [], []>} : vector<288x128xbf16>, vector<128x128xbf16>, vector<288x128xf32> -> vector<288x128xf32>
    %27 = arith.addf %22, %26 : vector<288x128xf32>
    %28 = vector.extract_strided_slice %1 {offsets = [20, 0], sizes = [288, 128], strides = [1, 1]} : vector<342x128xbf16> to vector<288x128xbf16>
    %c5 = arith.constant 5 : index
    %c0_18 = arith.constant 0 : index
    %c0_19 = arith.constant 0 : index
    %29 = vector.load %arg2[%c5, %c0_18, %c0_19] : memref<9x128x128xbf16, #tpu.memory_space<vmem>>, vector<1x128x128xbf16>
    %30 = vector.shape_cast %29 : vector<1x128x128xbf16> to vector<128x128xbf16>
    %cst_20 = arith.constant dense<0.000000e+00> : vector<288x128xf32>
    %31 = tpu.matmul %28, %30, %cst_20 {dimension_numbers = #tpu.dot_dimension_numbers<[1], [0], [0], [1], [0, 0, 1, 1], [], []>} : vector<288x128xbf16>, vector<128x128xbf16>, vector<288x128xf32> -> vector<288x128xf32>
    %32 = arith.addf %27, %31 : vector<288x128xf32>
    %33 = vector.extract_strided_slice %1 {offsets = [36, 0], sizes = [288, 128], strides = [1, 1]} : vector<342x128xbf16> to vector<288x128xbf16>
    %c6 = arith.constant 6 : index
    %c0_21 = arith.constant 0 : index
    %c0_22 = arith.constant 0 : index
    %34 = vector.load %arg2[%c6, %c0_21, %c0_22] : memref<9x128x128xbf16, #tpu.memory_space<vmem>>, vector<1x128x128xbf16>
    %35 = vector.shape_cast %34 : vector<1x128x128xbf16> to vector<128x128xbf16>
    %cst_23 = arith.constant dense<0.000000e+00> : vector<288x128xf32>
    %36 = tpu.matmul %33, %35, %cst_23 {dimension_numbers = #tpu.dot_dimension_numbers<[1], [0], [0], [1], [0, 0, 1, 1], [], []>} : vector<288x128xbf16>, vector<128x128xbf16>, vector<288x128xf32> -> vector<288x128xf32>
    %37 = arith.addf %32, %36 : vector<288x128xf32>
    %38 = vector.extract_strided_slice %1 {offsets = [37, 0], sizes = [288, 128], strides = [1, 1]} : vector<342x128xbf16> to vector<288x128xbf16>
    %c7 = arith.constant 7 : index
    %c0_24 = arith.constant 0 : index
    %c0_25 = arith.constant 0 : index
    %39 = vector.load %arg2[%c7, %c0_24, %c0_25] : memref<9x128x128xbf16, #tpu.memory_space<vmem>>, vector<1x128x128xbf16>
    %40 = vector.shape_cast %39 : vector<1x128x128xbf16> to vector<128x128xbf16>
    %cst_26 = arith.constant dense<0.000000e+00> : vector<288x128xf32>
    %41 = tpu.matmul %38, %40, %cst_26 {dimension_numbers = #tpu.dot_dimension_numbers<[1], [0], [0], [1], [0, 0, 1, 1], [], []>} : vector<288x128xbf16>, vector<128x128xbf16>, vector<288x128xf32> -> vector<288x128xf32>
    %42 = arith.addf %37, %41 : vector<288x128xf32>
    %43 = vector.extract_strided_slice %1 {offsets = [38, 0], sizes = [288, 128], strides = [1, 1]} : vector<342x128xbf16> to vector<288x128xbf16>
    %c8 = arith.constant 8 : index
    %c0_27 = arith.constant 0 : index
    %c0_28 = arith.constant 0 : index
    %44 = vector.load %arg2[%c8, %c0_27, %c0_28] : memref<9x128x128xbf16, #tpu.memory_space<vmem>>, vector<1x128x128xbf16>
    %45 = vector.shape_cast %44 : vector<1x128x128xbf16> to vector<128x128xbf16>
    %cst_29 = arith.constant dense<0.000000e+00> : vector<288x128xf32>
    %46 = tpu.matmul %43, %45, %cst_29 {dimension_numbers = #tpu.dot_dimension_numbers<[1], [0], [0], [1], [0, 0, 1, 1], [], []>} : vector<288x128xbf16>, vector<128x128xbf16>, vector<288x128xf32> -> vector<288x128xf32>
    %47 = arith.addf %42, %46 : vector<288x128xf32>
    %c0_30 = arith.constant 0 : index
    %c0_31 = arith.constant 0 : index
    %48 = vector.load %arg3[%c0_30, %c0_31] : memref<1x128xf32, #tpu.memory_space<vmem>>, vector<1x128xf32>
    %49 = vector.broadcast %48 : vector<1x128xf32> to vector<288x128xf32>
    %50 = arith.addf %47, %49 : vector<288x128xf32>
    %c0_32 = arith.constant 0 : index
    %c0_33 = arith.constant 0 : index
    %c0_34 = arith.constant 0 : index
    %51 = vector.load %arg5[%c0_32, %c0_33, %c0_34] : memref<1x288x128xf32, #tpu.memory_space<vmem>>, vector<1x288x128xf32>
    %52 = vector.shape_cast %51 : vector<1x288x128xf32> to vector<288x128xf32>
    %53 = vector.shape_cast %50 : vector<288x128xf32> to vector<1x288x128xf32>
    tpu.vector_store %arg5[%c0_32, %c0_33, %c0_34], %53 {strides = array<i32>} : memref<1x288x128xf32, #tpu.memory_space<vmem>>, vector<1x288x128xf32>,
    %c0_i32 = arith.constant 0 : i32
    %54 = arith.cmpi eq, %arg0, %c0_i32 : i32
    %55 = arith.extui %54 : i1 to i32
    %c0_i32_35 = arith.constant 0 : i32
    %56 = arith.cmpi ne, %55, %c0_i32_35 : i32
    scf.if %56 {
      %cst_48 = arith.constant 0.000000e+00 : f32
      %71 = vector.broadcast %cst_48 : f32 to vector<1x128xf32>
      %c0_49 = arith.constant 0 : index
      %c0_50 = arith.constant 0 : index
      %72 = vector.load %arg6[%c0_49, %c0_50] : memref<1x128xf32, #tpu.memory_space<vmem>>, vector<1x128xf32>
      tpu.vector_store %arg6[%c0_49, %c0_50], %71 {strides = array<i32>} : memref<1x128xf32, #tpu.memory_space<vmem>>, vector<1x128xf32>,
      %cst_51 = arith.constant 0.000000e+00 : f32
      %73 = vector.broadcast %cst_51 : f32 to vector<1x128xf32>
      %c0_52 = arith.constant 0 : index
      %c0_53 = arith.constant 0 : index
      %74 = vector.load %arg7[%c0_52, %c0_53] : memref<1x128xf32, #tpu.memory_space<vmem>>, vector<1x128xf32>
      tpu.vector_store %arg7[%c0_52, %c0_53], %73 {strides = array<i32>} : memref<1x128xf32, #tpu.memory_space<vmem>>, vector<1x128xf32>,
    } else {
    }
    %c0_36 = arith.constant 0 : index
    %c0_37 = arith.constant 0 : index
    %57 = vector.load %arg4[%c0_36, %c0_37] : memref<288x1xf32, #tpu.memory_space<vmem>>, vector<288x1xf32>
    %58 = vector.broadcast %57 : vector<288x1xf32> to vector<288x128xf32>
    %59 = arith.mulf %50, %58 : vector<288x128xf32>
    %c0_38 = arith.constant 0 : index
    %c0_39 = arith.constant 0 : index
    %60 = vector.load %arg6[%c0_38, %c0_39] : memref<1x128xf32, #tpu.memory_space<vmem>>, vector<1x128xf32>
    %cst_40 = arith.constant dense<0.000000e+00> : vector<128xf32>
    %61 = vector.multi_reduction <add>, %59, %cst_40 [0] : vector<288x128xf32> to vector<128xf32>
    %62 = vector.shape_cast %61 : vector<128xf32> to vector<1x128xf32>
    %63 = arith.addf %60, %62 : vector<1x128xf32>
    %c0_41 = arith.constant 0 : index
    %c0_42 = arith.constant 0 : index
    %64 = vector.load %arg6[%c0_41, %c0_42] : memref<1x128xf32, #tpu.memory_space<vmem>>, vector<1x128xf32>
    tpu.vector_store %arg6[%c0_41, %c0_42], %63 {strides = array<i32>} : memref<1x128xf32, #tpu.memory_space<vmem>>, vector<1x128xf32>,
    %c0_43 = arith.constant 0 : index
    %c0_44 = arith.constant 0 : index
    %65 = vector.load %arg7[%c0_43, %c0_44] : memref<1x128xf32, #tpu.memory_space<vmem>>, vector<1x128xf32>
    %66 = arith.mulf %59, %59 : vector<288x128xf32>
    %cst_45 = arith.constant dense<0.000000e+00> : vector<128xf32>
    %67 = vector.multi_reduction <add>, %66, %cst_45 [0] : vector<288x128xf32> to vector<128xf32>
    %68 = vector.shape_cast %67 : vector<128xf32> to vector<1x128xf32>
    %69 = arith.addf %65, %68 : vector<1x128xf32>
    %c0_46 = arith.constant 0 : index
    %c0_47 = arith.constant 0 : index
    %70 = vector.load %arg7[%c0_46, %c0_47] : memref<1x128xf32, #tpu.memory_space<vmem>>, vector<1x128xf32>
    tpu.vector_store %arg7[%c0_46, %c0_47], %69 {strides = array<i32>} : memref<1x128xf32, #tpu.memory_space<vmem>>, vector<1x128xf32>,
    return
  }
  func.func @transform_0(%arg0: i32) -> (i32, i32, i32) {
    %c0_i32 = arith.constant 0 : i32
    %c0_i32_0 = arith.constant 0 : i32
    %c0_i32_1 = arith.constant 0 : i32
    return %arg0, %c0_i32, %c0_i32_0 : i32, i32, i32
  }
  func.func @transform_1(%arg0: i32) -> (i32, i32, i32) {
    %c0_i32 = arith.constant 0 : i32
    %c0_i32_0 = arith.constant 0 : i32
    %c0_i32_1 = arith.constant 0 : i32
    %c0_i32_2 = arith.constant 0 : i32
    return %c0_i32, %c0_i32_0, %c0_i32_1 : i32, i32, i32
  }
  func.func @transform_2(%arg0: i32) -> (i32, i32) {
    %c0_i32 = arith.constant 0 : i32
    %c0_i32_0 = arith.constant 0 : i32
    %c0_i32_1 = arith.constant 0 : i32
    return %c0_i32, %c0_i32_0 : i32, i32
  }
  func.func @transform_3(%arg0: i32) -> (i32, i32) {
    %c0_i32 = arith.constant 0 : i32
    %c0_i32_0 = arith.constant 0 : i32
    %c0_i32_1 = arith.constant 0 : i32
    return %c0_i32, %c0_i32_0 : i32, i32
  }
  func.func @transform_4(%arg0: i32) -> (i32, i32, i32) {
    %c0_i32 = arith.constant 0 : i32
    %c0_i32_0 = arith.constant 0 : i32
    %c0_i32_1 = arith.constant 0 : i32
    return %arg0, %c0_i32, %c0_i32_0 : i32, i32, i32
  }
  func.func @transform_5(%arg0: i32) -> (i32, i32) {
    %c0_i32 = arith.constant 0 : i32
    %c0_i32_0 = arith.constant 0 : i32
    %c0_i32_1 = arith.constant 0 : i32
    return %c0_i32, %c0_i32_0 : i32, i32
  }
  func.func @transform_6(%arg0: i32) -> (i32, i32) {
    %c0_i32 = arith.constant 0 : i32
    %c0_i32_0 = arith.constant 0 : i32
    %c0_i32_1 = arith.constant 0 : i32
    return %c0_i32, %c0_i32_0 : i32, i32
  }
}

module attributes {stable_mosaic.version = 11 : i64} {
  func.func @_bn_relu_kernel(%arg0: i32, %arg1: memref<8x18x128xf32, #tpu.memory_space<vmem>>, %arg2: memref<1x128xf32, #tpu.memory_space<vmem>>, %arg3: memref<1x128xf32, #tpu.memory_space<vmem>>, %arg4: memref<8x16x128xf32, #tpu.memory_space<vmem>>) attributes {dimension_semantics = [#tpu.dimension_semantics<parallel>], iteration_bounds = array<i64: 4>, scalar_prefetch = 0 : i64, scratch_operands = 0 : i64, tpu.core_type = #tpu.core_type<tc>, window_params = [{transform_indices = @transform_0, window_bounds = array<i64: 8, 18, 128>}, {pipeline_mode = #tpu.pipeline_mode<synchronous>, transform_indices = @transform_1, window_bounds = array<i64: 1, 128>}, {pipeline_mode = #tpu.pipeline_mode<synchronous>, transform_indices = @transform_2, window_bounds = array<i64: 1, 128>}, {transform_indices = @transform_3, window_bounds = array<i64: 8, 16, 128>}]} {
    %c0 = arith.constant 0 : index
    %c0_0 = arith.constant 0 : index
    %c0_1 = arith.constant 0 : index
    %0 = vector.load %arg1[%c0, %c0_0, %c0_1] : memref<8x18x128xf32, #tpu.memory_space<vmem>>, vector<8x18x128xf32>
    %1 = vector.extract_strided_slice %0 {offsets = [0, 0, 0], sizes = [8, 16, 128], strides = [1, 1, 1]} : vector<8x18x128xf32> to vector<8x16x128xf32>
    %c0_2 = arith.constant 0 : index
    %c0_3 = arith.constant 0 : index
    %2 = vector.load %arg2[%c0_2, %c0_3] : memref<1x128xf32, #tpu.memory_space<vmem>>, vector<1x128xf32>
    %3 = vector.shape_cast %2 : vector<1x128xf32> to vector<1x1x128xf32>
    %4 = vector.broadcast %3 : vector<1x1x128xf32> to vector<8x16x128xf32>
    %5 = arith.mulf %1, %4 : vector<8x16x128xf32>
    %c0_4 = arith.constant 0 : index
    %c0_5 = arith.constant 0 : index
    %6 = vector.load %arg3[%c0_4, %c0_5] : memref<1x128xf32, #tpu.memory_space<vmem>>, vector<1x128xf32>
    %7 = vector.shape_cast %6 : vector<1x128xf32> to vector<1x1x128xf32>
    %8 = vector.broadcast %7 : vector<1x1x128xf32> to vector<8x16x128xf32>
    %9 = arith.addf %5, %8 : vector<8x16x128xf32>
    %cst = arith.constant 0.000000e+00 : f32
    %10 = vector.broadcast %cst : f32 to vector<8x16x128xf32>
    %11 = arith.maximumf %9, %10 : vector<8x16x128xf32>
    %c0_6 = arith.constant 0 : index
    %c0_7 = arith.constant 0 : index
    %c0_8 = arith.constant 0 : index
    %12 = vector.load %arg4[%c0_6, %c0_7, %c0_8] : memref<8x16x128xf32, #tpu.memory_space<vmem>>, vector<8x16x128xf32>
    tpu.vector_store %arg4[%c0_6, %c0_7, %c0_8], %11 {strides = array<i32>} : memref<8x16x128xf32, #tpu.memory_space<vmem>>, vector<8x16x128xf32>,
    return
  }
  func.func @transform_0(%arg0: i32) -> (i32, i32, i32) {
    %c0_i32 = arith.constant 0 : i32
    %c0_i32_0 = arith.constant 0 : i32
    %c0_i32_1 = arith.constant 0 : i32
    return %arg0, %c0_i32, %c0_i32_0 : i32, i32, i32
  }
  func.func @transform_1(%arg0: i32) -> (i32, i32) {
    %c0_i32 = arith.constant 0 : i32
    %c0_i32_0 = arith.constant 0 : i32
    %c0_i32_1 = arith.constant 0 : i32
    return %c0_i32, %c0_i32_0 : i32, i32
  }
  func.func @transform_2(%arg0: i32) -> (i32, i32) {
    %c0_i32 = arith.constant 0 : i32
    %c0_i32_0 = arith.constant 0 : i32
    %c0_i32_1 = arith.constant 0 : i32
    return %c0_i32, %c0_i32_0 : i32, i32
  }
  func.func @transform_3(%arg0: i32) -> (i32, i32, i32) {
    %c0_i32 = arith.constant 0 : i32
    %c0_i32_0 = arith.constant 0 : i32
    %c0_i32_1 = arith.constant 0 : i32
    return %arg0, %c0_i32, %c0_i32_0 : i32, i32, i32
  }
}

</mosaic_0001>

<llo_original>
// kernel: conv_block_forward.5
$region0: #{conv_block_forward.5}
  #allocation0 [shape = 'u32[]', space=smem, size = 0x4, offset = 0x4, fixed_abs, tag = 'smem constant byte address 0x4 - core index']
  #allocation1 [shape = 'u32[144,128]{1,0:T(1,128)}', space=vmem, size = 0x12000, scoped, tag = 'internal scratch']
  %s0 = inlined_call_operand.vmem [shape: f32[32,18,128], index: 0, kind: input, shape index: {}]
  %s1 = inlined_call_operand.vmem [shape: f32[1,128], index: 1, kind: input, shape index: {}]
  %s2 = inlined_call_operand.vmem [shape: f32[1,128], index: 2, kind: input, shape index: {}]
  %s3 = inlined_call_operand.vmem [shape: bf16[32,16,128], index: 3, kind: output, shape index: {}]
  %s4 = sld [smem:[#allocation0]]
  $region45: #{conv_block_forward.5} parent=0
    _
  %s6 = ssub.s32 1, %s4
  %s7 = scalar_select 0, %s6, %s4
  loop: start=0, step=1, limit=6
  $region2: #{conv_block_forward.5} parent=0 // loop_pre_header
    _
  $region3: #{conv_block_forward.5} parent=0 // loop_header
    %s9 = sphi 0, %s13
    %p10 = scmp.ge.s32.totalorder %s9, 6
    %s19 = sphi 0, %s21
    %s22 = sphi 0, %s19
    %s23 = sphi 0, %s22
    %s39 = sphi 0, %s23
    %s43 = sphi 0, %s43
    %s45 = sphi 0, %s43
    %s46 = sphi 0, %s45
    %s60 = sphi 0, %s46
    %s64 = sphi 0, %s64
    %s66 = sphi 0, %s64
    %s67 = sphi 0, %s66
    %s81 = sphi 0, %s67
    %s87 = sphi 0, %s89
    %s90 = sphi 0, %s87
    %s91 = sphi 0, %s90
    %s107 = sphi 0, %s91
  $region4: #{conv_block_forward.5} parent=0 // loop_header_branch
    %12 = sbr.rel (%p10) target = $region8
  $region5: #{conv_block_forward.5} parent=0 // loop_body
    %s14 = ssub.s32 %s9, 1
    %s15 = ssub.s32 %s9, 2
    %s16 = sadd.s32 %s9, 1
    %s17 = ssub.s32 %s9, %s16
    %p18 = scmp.eq.s32.totalorder %s17, 0
    %s20 = sadd.s32 %s19, 1
    %s21 = scalar_select %p18, %s19, %s20
    %p24 = pneg %p18
    %p25 = scmp.eq.s32.totalorder %s9, 3
    %p26 = por %p24, %p25
    %p27 = scmp.ne.s32.totalorder %s19, %s22
    %p28 = scmp.eq.s32.totalorder %s9, 0
    %p29 = por %p27, %p28
    %p30 = scmp.ne.s32.totalorder %s19, %s22
    %p31 = scmp.eq.s32.totalorder %s14, 3
    %p32 = por %p30, %p31
    %p33 = scmp.ne.s32.totalorder %s22, %s23
    %p34 = scmp.eq.s32.totalorder %s14, 0
    %p35 = por %p33, %p34
    %p36 = scmp.ne.s32.totalorder %s22, %s23
    %p37 = scmp.eq.s32.totalorder %s15, 3
    %p38 = por %p36, %p37
    %p40 = scmp.ne.s32.totalorder %s23, %s39
    %p41 = scmp.eq.s32.totalorder %s15, 0
    %p42 = por %p40, %p41
    %s44 = sadd.s32 %s43, 1
    %p47 = scmp.eq.s32.totalorder %s9, 3
    %p48 = scmp.ne.s32.totalorder %s43, %s45
    %p49 = scmp.eq.s32.totalorder %s9, 0
    %p50 = por %p48, %p49
    %p51 = scmp.ne.s32.totalorder %s43, %s45
    %p52 = scmp.eq.s32.totalorder %s14, 3
    %p53 = por %p51, %p52
    %p54 = scmp.ne.s32.totalorder %s45, %s46
    %p55 = scmp.eq.s32.totalorder %s14, 0
    %p56 = por %p54, %p55
    %p57 = scmp.ne.s32.totalorder %s45, %s46
    %p58 = scmp.eq.s32.totalorder %s15, 3
    %p59 = por %p57, %p58
    %p61 = scmp.ne.s32.totalorder %s46, %s60
    %p62 = scmp.eq.s32.totalorder %s15, 0
    %p63 = por %p61, %p62
    %s65 = sadd.s32 %s64, 1
    %p68 = scmp.eq.s32.totalorder %s9, 3
    %p69 = scmp.ne.s32.totalorder %s64, %s66
    %p70 = scmp.eq.s32.totalorder %s9, 0
    %p71 = por %p69, %p70
    %p72 = scmp.ne.s32.totalorder %s64, %s66
    %p73 = scmp.eq.s32.totalorder %s14, 3
    %p74 = por %p72, %p73
    %p75 = scmp.ne.s32.totalorder %s66, %s67
    %p76 = scmp.eq.s32.totalorder %s14, 0
    %p77 = por %p75, %p76
    %p78 = scmp.ne.s32.totalorder %s66, %s67
    %p79 = scmp.eq.s32.totalorder %s15, 3
    %p80 = por %p78, %p79
    %p82 = scmp.ne.s32.totalorder %s67, %s81
    %p83 = scmp.eq.s32.totalorder %s15, 0
    %p84 = por %p82, %p83
    %s85 = ssub.s32 %s9, %s16
    %p86 = scmp.eq.s32.totalorder %s85, 0
    %s88 = sadd.s32 %s87, 1
    %s89 = scalar_select %p86, %s87, %s88
    %p92 = pneg %p86
    %p93 = scmp.eq.s32.totalorder %s9, 3
    %p94 = por %p92, %p93
    %p95 = scmp.ne.s32.totalorder %s87, %s90
    %p96 = scmp.eq.s32.totalorder %s9, 0
    %p97 = por %p95, %p96
    %p98 = scmp.ne.s32.totalorder %s87, %s90
    %p99 = scmp.eq.s32.totalorder %s14, 3
    %p100 = por %p98, %p99
    %p101 = scmp.ne.s32.totalorder %s90, %s91
    %p102 = scmp.eq.s32.totalorder %s14, 0
    %p103 = por %p101, %p102
    %p104 = scmp.ne.s32.totalorder %s90, %s91
    %p105 = scmp.eq.s32.totalorder %s15, 3
    %p106 = por %p104, %p105
    %p108 = scmp.ne.s32.totalorder %s91, %s107
    %p109 = scmp.eq.s32.totalorder %s15, 0
    %p110 = por %p108, %p109
    %p111 = scmp.le.s32.totalorder 1, %s9
    %p112 = scmp.lt.s32.totalorder %s9, 5
    %p113 = pnand %p111, %p112
    %p114 = pneg %p113
    // Predicated region
    $region9: #{conv_block_forward.5} parent=5 // pred_check
      _
    $region10: #{conv_block_forward.5} parent=5 // pred_check_branch
      %116 = sbr.rel (%p113) target = $region12
    $region11: #{conv_block_forward.5} parent=5 // pred_region
      %s117 = ssub.s32 %s9, 1
      // Predicated region
      $region13: #{conv_block_forward.5} parent=11 // pred_check
        %p118 = pneg %p56
      $region14: #{conv_block_forward.5} parent=11 // pred_check_branch
        %120 = sbr.rel (%p118) target = $region16
      $region15: #{conv_block_forward.5} parent=11 // pred_region
        _
      $region16: #{conv_block_forward.5} parent=11 // pred_fallthru
        _
      // Predicated region
      $region17: #{conv_block_forward.5} parent=11 // pred_check
        %p121 = pneg %p77
      $region18: #{conv_block_forward.5} parent=11 // pred_check_branch
        %123 = sbr.rel (%p121) target = $region20
      $region19: #{conv_block_forward.5} parent=11 // pred_region
        _
      $region20: #{conv_block_forward.5} parent=11 // pred_fallthru
        _
    $region12: #{conv_block_forward.5} parent=5 // pred_fallthru
      _
    %p124 = scmp.lt.s32.totalorder %s9, 4
    // Predicated region
    $region21: #{conv_block_forward.5} parent=5 // pred_check
      %p125 = pneg %p124
    $region22: #{conv_block_forward.5} parent=5 // pred_check_branch
      %127 = sbr.rel (%p125) target = $region24
    $region23: #{conv_block_forward.5} parent=5 // pred_region
      // Predicated region
      $region25: #{conv_block_forward.5} parent=23 // pred_check
        %p128 = pneg %p29
      $region26: #{conv_block_forward.5} parent=23 // pred_check_branch
        %130 = sbr.rel (%p128) target = $region28
      $region27: #{conv_block_forward.5} parent=23 // pred_region
        %s131 = smul.u32 8, %s9
        %p132 = scmp.lt.s32.totalorder %s131, 31
        %s133 = scalar_select %p132, %s131, 31
        %s134 = smul.addr %s133, 3
        %s135 = smul.addr %s134, 8
        %s136 = scalar_lea.vmem %s0, %s135
        %s137 = smul.u32 8, %s9
      $region28: #{conv_block_forward.5} parent=23 // pred_fallthru
        _
    $region24: #{conv_block_forward.5} parent=5 // pred_fallthru
      _
    %p138 = scmp.le.s32.totalorder 1, %s9
    %p139 = scmp.lt.s32.totalorder %s9, 5
    %p140 = pnand %p138, %p139
    %p141 = pneg %p140
    // Predicated region
    $region29: #{conv_block_forward.5} parent=5 // pred_check
      _
    $region30: #{conv_block_forward.5} parent=5 // pred_check_branch
      %143 = sbr.rel (%p140) target = $region32
    $region31: #{conv_block_forward.5} parent=5 // pred_region
      %s144 = ssub.s32 %s9, 1
      %s145 = smul.u32 8, %s14
      %p146 = scmp.lt.s32.totalorder %s145, 31
      %s147 = scalar_select %p146, %s145, 31
      %s148 = smul.addr %s147, 3
      %s149 = smul.addr %s148, 8
      %s150 = scalar_lea.vmem %s0, %s149
      %p151 = pneg %p35
      %p152 = pneg %p32
      %p153 = pneg %p56
      %p154 = pneg %p53
      %p155 = pneg %p77
      %p156 = pneg %p74
      %p157 = pneg %p103
      %p158 = pneg %p100
      %s159 = smul.u32 8, %s14
      %p160 = scmp.lt.s32.totalorder %s159, 31
      %s161 = scalar_select %p160, %s159, 31
      %s162 = smul.addr %s161, 2
      %s163 = smul.addr %s162, 4
      %s164 = scalar_lea.vmem %s3, %s163
      %s165 = smul.u32 8, %s14
      %p166 = scmp.lt.s32.totalorder %s165, 31
      %s167 = scalar_select %p166, %s165, 31
      %s168 = smul.addr %s167, 3
      %s169 = smul.addr %s168, 8
      %s170 = scalar_lea.vmem %s0, %s169
      %s171 = smul.u32 8, %s14
      %s172 = smul.u32 8, %s14
      %p173 = scmp.lt.s32.totalorder %s172, 31
      %s174 = scalar_select %p173, %s172, 31
      %s175 = smul.addr %s174, 2
      %s176 = smul.addr %s175, 4
      %s177 = scalar_lea.vmem %s3, %s176
      %s178 = smul.u32 8, %s14
      %v179 = vld [vmem:[%s170] sm:$0xff]
      %v180 = vld [vmem:[%s170 + $0x8] sm:$0xff]
      %v181 = vld [vmem:[%s170 + $0x18] sm:$0xff]
      %v182 = vld [vmem:[%s170 + $0x20] sm:$0xff]
      %v183 = vld [vmem:[%s170 + $0x30] sm:$0xff]
      %v184 = vld [vmem:[%s170 + $0x38] sm:$0xff]
      %v185 = vld [vmem:[%s170 + $0x48] sm:$0xff]
      %v186 = vld [vmem:[%s170 + $0x50] sm:$0xff]
      %v187 = vld [vmem:[%s170 + $0x60] sm:$0xff]
      %v188 = vld [vmem:[%s170 + $0x68] sm:$0xff]
      %v189 = vld [vmem:[%s170 + $0x78] sm:$0xff]
      %v190 = vld [vmem:[%s170 + $0x80] sm:$0xff]
      %v191 = vld [vmem:[%s170 + $0x90] sm:$0xff]
      %v192 = vld [vmem:[%s170 + $0x98] sm:$0xff]
      %v193 = vld [vmem:[%s170 + $0xa8] sm:$0xff]
      %v194 = vld [vmem:[%s170 + $0xb0] sm:$0xff]
      %v195 = vld [vmem:[%s1] sm:$0x1]
      %v197 = vlaneseq
      %v198 = vshrl.u32 %v197, 7
      %v199 = vsub.s32 0, %v198
      %v200 = vrot.slane %v195, %v199
      %v202 = vmul.f32 %v179, %v200
      %v203 = vmul.f32 %v180, %v200
      %v204 = vmul.f32 %v181, %v200
      %v205 = vmul.f32 %v182, %v200
      %v206 = vmul.f32 %v183, %v200
      %v207 = vmul.f32 %v184, %v200
      %v208 = vmul.f32 %v185, %v200
      %v209 = vmul.f32 %v186, %v200
      %v210 = vmul.f32 %v187, %v200
      %v211 = vmul.f32 %v188, %v200
      %v212 = vmul.f32 %v189, %v200
      %v213 = vmul.f32 %v190, %v200
      %v214 = vmul.f32 %v191, %v200
      %v215 = vmul.f32 %v192, %v200
      %v216 = vmul.f32 %v193, %v200
      %v217 = vmul.f32 %v194, %v200
      %v218 = vld [vmem:[%s2] sm:$0x1]
      %v220 = vlaneseq
      %v221 = vshrl.u32 %v220, 7
      %v222 = vsub.s32 0, %v221
      %v223 = vrot.slane %v218, %v222
      %v225 = vadd.f32 %v202, %v223
      %v226 = vadd.f32 %v203, %v223
      %v227 = vadd.f32 %v204, %v223
      %v228 = vadd.f32 %v205, %v223
      %v229 = vadd.f32 %v206, %v223
      %v230 = vadd.f32 %v207, %v223
      %v231 = vadd.f32 %v208, %v223
      %v232 = vadd.f32 %v209, %v223
      %v233 = vadd.f32 %v210, %v223
      %v234 = vadd.f32 %v211, %v223
      %v235 = vadd.f32 %v212, %v223
      %v236 = vadd.f32 %v213, %v223
      %v237 = vadd.f32 %v214, %v223
      %v238 = vadd.f32 %v215, %v223
      %v239 = vadd.f32 %v216, %v223
      %v240 = vadd.f32 %v217, %v223
      %v241 = vmax.f32 %v225, 0.0
      %v242 = vmax.f32 %v226, 0.0
      %v243 = vmax.f32 %v227, 0.0
      %v244 = vmax.f32 %v228, 0.0
      %v245 = vmax.f32 %v229, 0.0
      %v246 = vmax.f32 %v230, 0.0
      %v247 = vmax.f32 %v231, 0.0
      %v248 = vmax.f32 %v232, 0.0
      %v249 = vmax.f32 %v233, 0.0
      %v250 = vmax.f32 %v234, 0.0
      %v251 = vmax.f32 %v235, 0.0
      %v252 = vmax.f32 %v236, 0.0
      %v253 = vmax.f32 %v237, 0.0
      %v254 = vmax.f32 %v238, 0.0
      %v255 = vmax.f32 %v239, 0.0
      %v256 = vmax.f32 %v240, 0.0
      %v257 = vpack.c.bf16 %v242, %v241
      %v258 = vpack.c.bf16 %v244, %v243
      %v259 = vpack.c.bf16 %v246, %v245
      %v260 = vpack.c.bf16 %v248, %v247
      %v261 = vpack.c.bf16 %v250, %v249
      %v262 = vpack.c.bf16 %v252, %v251
      %v263 = vpack.c.bf16 %v254, %v253
      %v264 = vpack.c.bf16 %v256, %v255
      %v273 = vunpack.c.l.b16 %v257
      %v274 = vunpack.c.h.b16 %v257
      %v275 = vunpack.c.l.b16 %v258
      %v276 = vunpack.c.h.b16 %v258
      %v277 = vunpack.c.l.b16 %v259
      %v278 = vunpack.c.h.b16 %v259
      %v279 = vunpack.c.l.b16 %v260
      %v280 = vunpack.c.h.b16 %v260
      %v281 = vunpack.c.l.b16 %v261
      %v282 = vunpack.c.h.b16 %v261
      %v283 = vunpack.c.l.b16 %v262
      %v284 = vunpack.c.h.b16 %v262
      %v285 = vunpack.c.l.b16 %v263
      %v286 = vunpack.c.h.b16 %v263
      %v287 = vunpack.c.l.b16 %v264
      %v288 = vunpack.c.h.b16 %v264
      %v289 = vpack.c.b16 %v273, %v273
      %v290 = vpack.c.b16 %v274, %v274
      %v291 = vpack.c.b16 %v275, %v275
      %v292 = vpack.c.b16 %v276, %v276
      %v293 = vpack.c.b16 %v277, %v277
      %v294 = vpack.c.b16 %v278, %v278
      %v295 = vpack.c.b16 %v279, %v279
      %v296 = vpack.c.b16 %v280, %v280
      %v297 = vpack.c.b16 %v281, %v281
      %v298 = vpack.c.b16 %v282, %v282
      %v299 = vpack.c.b16 %v283, %v283
      %v300 = vpack.c.b16 %v284, %v284
      %v301 = vpack.c.b16 %v285, %v285
      %v302 = vpack.c.b16 %v286, %v286
      %v303 = vpack.c.b16 %v287, %v287
      %v304 = vpack.c.b16 %v288, %v288
      %321 = vst [vmem:[%s177] sm:$0xf] %v289
      %322 = vst [vmem:[%s177 + $0x4] sm:$0xf] %v290
      %323 = vst [vmem:[%s177 + $0x8] sm:$0xf] %v291
      %324 = vst [vmem:[%s177 + $0xc] sm:$0xf] %v292
      %325 = vst [vmem:[%s177 + $0x10] sm:$0xf] %v293
      %326 = vst [vmem:[%s177 + $0x14] sm:$0xf] %v294
      %327 = vst [vmem:[%s177 + $0x18] sm:$0xf] %v295
      %328 = vst [vmem:[%s177 + $0x1c] sm:$0xf] %v296
      %329 = vst [vmem:[%s177 + $0x20] sm:$0xf] %v297
      %330 = vst [vmem:[%s177 + $0x24] sm:$0xf] %v298
      %331 = vst [vmem:[%s177 + $0x28] sm:$0xf] %v299
      %332 = vst [vmem:[%s177 + $0x2c] sm:$0xf] %v300
      %333 = vst [vmem:[%s177 + $0x30] sm:$0xf] %v301
      %334 = vst [vmem:[%s177 + $0x34] sm:$0xf] %v302
      %335 = vst [vmem:[%s177 + $0x38] sm:$0xf] %v303
      %336 = vst [vmem:[%s177 + $0x3c] sm:$0xf] %v304
      %s337 = smul.u32 8, %s14
      %p338 = scmp.lt.s32.totalorder %s337, 31
      %s339 = scalar_select %p338, %s337, 31
      %s340 = smul.addr %s339, 2
      %s341 = smul.addr %s340, 4
      %s342 = scalar_lea.vmem %s3, %s341
      // Predicated region
      $region33: #{conv_block_forward.5} parent=31 // pred_check
        %p343 = pneg %p100
      $region34: #{conv_block_forward.5} parent=31 // pred_check_branch
        %345 = sbr.rel (%p343) target = $region36
      $region35: #{conv_block_forward.5} parent=31 // pred_region
        %s346 = smul.u32 8, %s14
      $region36: #{conv_block_forward.5} parent=31 // pred_fallthru
        _
    $region32: #{conv_block_forward.5} parent=5 // pred_fallthru
      _
    %p347 = scmp.le.s32.totalorder 2, %s9
    // Predicated region
    $region37: #{conv_block_forward.5} parent=5 // pred_check
      %p348 = pneg %p347
    $region38: #{conv_block_forward.5} parent=5 // pred_check_branch
      %350 = sbr.rel (%p348) target = $region40
    $region39: #{conv_block_forward.5} parent=5 // pred_region
      %s351 = ssub.s32 %s9, 2
      // Predicated region
      $region41: #{conv_block_forward.5} parent=39 // pred_check
        %p352 = pneg %p106
      $region42: #{conv_block_forward.5} parent=39 // pred_check_branch
        %354 = sbr.rel (%p352) target = $region44
      $region43: #{conv_block_forward.5} parent=39 // pred_region
        %s355 = smul.u32 8, %s15
        %p356 = scmp.lt.s32.totalorder %s355, 31
        %s357 = scalar_select %p356, %s355, 31
        %s358 = smul.addr %s357, 2
        %s359 = smul.addr %s358, 4
        %s360 = scalar_lea.vmem %s3, %s359
      $region44: #{conv_block_forward.5} parent=39 // pred_fallthru
        _
    $region40: #{conv_block_forward.5} parent=5 // pred_fallthru
      _
  $region6: #{conv_block_forward.5} parent=0 // loop_footer
    %s13 = sadd.s32 1, %s9
  $region7: #{conv_block_forward.5} parent=0 // loop_footer_branch
    %8 = sbr.rel target = $region3
  $region8: #{conv_block_forward.5} parent=0 // loop_exit
    _

// kernel: conv_block_forward.7
$region0: #{conv_block_forward.7}
  #allocation0 [shape = 'u32[]', space=smem, size = 0x4, offset = 0x4, fixed_abs, tag = 'smem constant byte address 0x4 - core index']
  #allocation1 [shape = 'u32[144,128]{1,0:T(1,128)}', space=vmem, size = 0x12000, scoped, tag = 'internal scratch']
  %s0 = inlined_call_operand.vmem [shape: f32[32,18,128], index: 0, kind: input, shape index: {}]
  %s1 = inlined_call_operand.vmem [shape: f32[1,128], index: 1, kind: input, shape index: {}]
  %s2 = inlined_call_operand.vmem [shape: f32[1,128], index: 2, kind: input, shape index: {}]
  %s3 = inlined_call_operand.vmem [shape: f32[32,16,128], index: 3, kind: output, shape index: {}]
  %s4 = sld [smem:[#allocation0]]
  $region45: #{conv_block_forward.7} parent=0
    _
  %s6 = ssub.s32 1, %s4
  %s7 = scalar_select 0, %s6, %s4
  loop: start=0, step=1, limit=6
  $region2: #{conv_block_forward.7} parent=0 // loop_pre_header
    _
  $region3: #{conv_block_forward.7} parent=0 // loop_header
    %s9 = sphi 0, %s13
    %p10 = scmp.ge.s32.totalorder %s9, 6
    %s19 = sphi 0, %s21
    %s22 = sphi 0, %s19
    %s23 = sphi 0, %s22
    %s39 = sphi 0, %s23
    %s43 = sphi 0, %s43
    %s45 = sphi 0, %s43
    %s46 = sphi 0, %s45
    %s60 = sphi 0, %s46
    %s64 = sphi 0, %s64
    %s66 = sphi 0, %s64
    %s67 = sphi 0, %s66
    %s81 = sphi 0, %s67
    %s87 = sphi 0, %s89
    %s90 = sphi 0, %s87
    %s91 = sphi 0, %s90
    %s107 = sphi 0, %s91
  $region4: #{conv_block_forward.7} parent=0 // loop_header_branch
    %12 = sbr.rel (%p10) target = $region8
  $region5: #{conv_block_forward.7} parent=0 // loop_body
    %s14 = ssub.s32 %s9, 1
    %s15 = ssub.s32 %s9, 2
    %s16 = sadd.s32 %s9, 1
    %s17 = ssub.s32 %s9, %s16
    %p18 = scmp.eq.s32.totalorder %s17, 0
    %s20 = sadd.s32 %s19, 1
    %s21 = scalar_select %p18, %s19, %s20
    %p24 = pneg %p18
    %p25 = scmp.eq.s32.totalorder %s9, 3
    %p26 = por %p24, %p25
    %p27 = scmp.ne.s32.totalorder %s19, %s22
    %p28 = scmp.eq.s32.totalorder %s9, 0
    %p29 = por %p27, %p28
    %p30 = scmp.ne.s32.totalorder %s19, %s22
    %p31 = scmp.eq.s32.totalorder %s14, 3
    %p32 = por %p30, %p31
    %p33 = scmp.ne.s32.totalorder %s22, %s23
    %p34 = scmp.eq.s32.totalorder %s14, 0
    %p35 = por %p33, %p34
    %p36 = scmp.ne.s32.totalorder %s22, %s23
    %p37 = scmp.eq.s32.totalorder %s15, 3
    %p38 = por %p36, %p37
    %p40 = scmp.ne.s32.totalorder %s23, %s39
    %p41 = scmp.eq.s32.totalorder %s15, 0
    %p42 = por %p40, %p41
    %s44 = sadd.s32 %s43, 1
    %p47 = scmp.eq.s32.totalorder %s9, 3
    %p48 = scmp.ne.s32.totalorder %s43, %s45
    %p49 = scmp.eq.s32.totalorder %s9, 0
    %p50 = por %p48, %p49
    %p51 = scmp.ne.s32.totalorder %s43, %s45
    %p52 = scmp.eq.s32.totalorder %s14, 3
    %p53 = por %p51, %p52
    %p54 = scmp.ne.s32.totalorder %s45, %s46
    %p55 = scmp.eq.s32.totalorder %s14, 0
    %p56 = por %p54, %p55
    %p57 = scmp.ne.s32.totalorder %s45, %s46
    %p58 = scmp.eq.s32.totalorder %s15, 3
    %p59 = por %p57, %p58
    %p61 = scmp.ne.s32.totalorder %s46, %s60
    %p62 = scmp.eq.s32.totalorder %s15, 0
    %p63 = por %p61, %p62
    %s65 = sadd.s32 %s64, 1
    %p68 = scmp.eq.s32.totalorder %s9, 3
    %p69 = scmp.ne.s32.totalorder %s64, %s66
    %p70 = scmp.eq.s32.totalorder %s9, 0
    %p71 = por %p69, %p70
    %p72 = scmp.ne.s32.totalorder %s64, %s66
    %p73 = scmp.eq.s32.totalorder %s14, 3
    %p74 = por %p72, %p73
    %p75 = scmp.ne.s32.totalorder %s66, %s67
    %p76 = scmp.eq.s32.totalorder %s14, 0
    %p77 = por %p75, %p76
    %p78 = scmp.ne.s32.totalorder %s66, %s67
    %p79 = scmp.eq.s32.totalorder %s15, 3
    %p80 = por %p78, %p79
    %p82 = scmp.ne.s32.totalorder %s67, %s81
    %p83 = scmp.eq.s32.totalorder %s15, 0
    %p84 = por %p82, %p83
    %s85 = ssub.s32 %s9, %s16
    %p86 = scmp.eq.s32.totalorder %s85, 0
    %s88 = sadd.s32 %s87, 1
    %s89 = scalar_select %p86, %s87, %s88
    %p92 = pneg %p86
    %p93 = scmp.eq.s32.totalorder %s9, 3
    %p94 = por %p92, %p93
    %p95 = scmp.ne.s32.totalorder %s87, %s90
    %p96 = scmp.eq.s32.totalorder %s9, 0
    %p97 = por %p95, %p96
    %p98 = scmp.ne.s32.totalorder %s87, %s90
    %p99 = scmp.eq.s32.totalorder %s14, 3
    %p100 = por %p98, %p99
    %p101 = scmp.ne.s32.totalorder %s90, %s91
    %p102 = scmp.eq.s32.totalorder %s14, 0
    %p103 = por %p101, %p102
    %p104 = scmp.ne.s32.totalorder %s90, %s91
    %p105 = scmp.eq.s32.totalorder %s15, 3
    %p106 = por %p104, %p105
    %p108 = scmp.ne.s32.totalorder %s91, %s107
    %p109 = scmp.eq.s32.totalorder %s15, 0
    %p110 = por %p108, %p109
    %p111 = scmp.le.s32.totalorder 1, %s9
    %p112 = scmp.lt.s32.totalorder %s9, 5
    %p113 = pnand %p111, %p112
    %p114 = pneg %p113
    // Predicated region
    $region9: #{conv_block_forward.7} parent=5 // pred_check
      _
    $region10: #{conv_block_forward.7} parent=5 // pred_check_branch
      %116 = sbr.rel (%p113) target = $region12
    $region11: #{conv_block_forward.7} parent=5 // pred_region
      %s117 = ssub.s32 %s9, 1
      // Predicated region
      $region13: #{conv_block_forward.7} parent=11 // pred_check
        %p118 = pneg %p56
      $region14: #{conv_block_forward.7} parent=11 // pred_check_branch
        %120 = sbr.rel (%p118) target = $region16
      $region15: #{conv_block_forward.7} parent=11 // pred_region
        _
      $region16: #{conv_block_forward.7} parent=11 // pred_fallthru
        _
      // Predicated region
      $region17: #{conv_block_forward.7} parent=11 // pred_check
        %p121 = pneg %p77
      $region18: #{conv_block_forward.7} parent=11 // pred_check_branch
        %123 = sbr.rel (%p121) target = $region20
      $region19: #{conv_block_forward.7} parent=11 // pred_region
        _
      $region20: #{conv_block_forward.7} parent=11 // pred_fallthru
        _
    $region12: #{conv_block_forward.7} parent=5 // pred_fallthru
      _
    %p124 = scmp.lt.s32.totalorder %s9, 4
    // Predicated region
    $region21: #{conv_block_forward.7} parent=5 // pred_check
      %p125 = pneg %p124
    $region22: #{conv_block_forward.7} parent=5 // pred_check_branch
      %127 = sbr.rel (%p125) target = $region24
    $region23: #{conv_block_forward.7} parent=5 // pred_region
      // Predicated region
      $region25: #{conv_block_forward.7} parent=23 // pred_check
        %p128 = pneg %p29
      $region26: #{conv_block_forward.7} parent=23 // pred_check_branch
        %130 = sbr.rel (%p128) target = $region28
      $region27: #{conv_block_forward.7} parent=23 // pred_region
        %s131 = smul.u32 8, %s9
        %p132 = scmp.lt.s32.totalorder %s131, 31
        %s133 = scalar_select %p132, %s131, 31
        %s134 = smul.addr %s133, 3
        %s135 = smul.addr %s134, 8
        %s136 = scalar_lea.vmem %s0, %s135
        %s137 = smul.u32 8, %s9
      $region28: #{conv_block_forward.7} parent=23 // pred_fallthru
        _
    $region24: #{conv_block_forward.7} parent=5 // pred_fallthru
      _
    %p138 = scmp.le.s32.totalorder 1, %s9
    %p139 = scmp.lt.s32.totalorder %s9, 5
    %p140 = pnand %p138, %p139
    %p141 = pneg %p140
    // Predicated region
    $region29: #{conv_block_forward.7} parent=5 // pred_check
      _
    $region30: #{conv_block_forward.7} parent=5 // pred_check_branch
      %143 = sbr.rel (%p140) target = $region32
    $region31: #{conv_block_forward.7} parent=5 // pred_region
      %s144 = ssub.s32 %s9, 1
      %s145 = smul.u32 8, %s14
      %p146 = scmp.lt.s32.totalorder %s145, 31
      %s147 = scalar_select %p146, %s145, 31
      %s148 = smul.addr %s147, 3
      %s149 = smul.addr %s148, 8
      %s150 = scalar_lea.vmem %s0, %s149
      %p151 = pneg %p35
      %p152 = pneg %p32
      %p153 = pneg %p56
      %p154 = pneg %p53
      %p155 = pneg %p77
      %p156 = pneg %p74
      %p157 = pneg %p103
      %p158 = pneg %p100
      %s159 = smul.u32 8, %s14
      %p160 = scmp.lt.s32.totalorder %s159, 31
      %s161 = scalar_select %p160, %s159, 31
      %s162 = smul.addr %s161, 2
      %s163 = smul.addr %s162, 8
      %s164 = scalar_lea.vmem %s3, %s163
      %s165 = smul.u32 8, %s14
      %p166 = scmp.lt.s32.totalorder %s165, 31
      %s167 = scalar_select %p166, %s165, 31
      %s168 = smul.addr %s167, 3
      %s169 = smul.addr %s168, 8
      %s170 = scalar_lea.vmem %s0, %s169
      %s171 = smul.u32 8, %s14
      %s172 = smul.u32 8, %s14
      %p173 = scmp.lt.s32.totalorder %s172, 31
      %s174 = scalar_select %p173, %s172, 31
      %s175 = smul.addr %s174, 2
      %s176 = smul.addr %s175, 8
      %s177 = scalar_lea.vmem %s3, %s176
      %s178 = smul.u32 8, %s14
      %v179 = vld [vmem:[%s170] sm:$0xff]
      %v180 = vld [vmem:[%s170 + $0x8] sm:$0xff]
      %v181 = vld [vmem:[%s170 + $0x18] sm:$0xff]
      %v182 = vld [vmem:[%s170 + $0x20] sm:$0xff]
      %v183 = vld [vmem:[%s170 + $0x30] sm:$0xff]
      %v184 = vld [vmem:[%s170 + $0x38] sm:$0xff]
      %v185 = vld [vmem:[%s170 + $0x48] sm:$0xff]
      %v186 = vld [vmem:[%s170 + $0x50] sm:$0xff]
      %v187 = vld [vmem:[%s170 + $0x60] sm:$0xff]
      %v188 = vld [vmem:[%s170 + $0x68] sm:$0xff]
      %v189 = vld [vmem:[%s170 + $0x78] sm:$0xff]
      %v190 = vld [vmem:[%s170 + $0x80] sm:$0xff]
      %v191 = vld [vmem:[%s170 + $0x90] sm:$0xff]
      %v192 = vld [vmem:[%s170 + $0x98] sm:$0xff]
      %v193 = vld [vmem:[%s170 + $0xa8] sm:$0xff]
      %v194 = vld [vmem:[%s170 + $0xb0] sm:$0xff]
      %v195 = vld [vmem:[%s1] sm:$0x1]
      %v197 = vlaneseq
      %v198 = vshrl.u32 %v197, 7
      %v199 = vsub.s32 0, %v198
      %v200 = vrot.slane %v195, %v199
      %v202 = vmul.f32 %v179, %v200
      %v203 = vmul.f32 %v180, %v200
      %v204 = vmul.f32 %v181, %v200
      %v205 = vmul.f32 %v182, %v200
      %v206 = vmul.f32 %v183, %v200
      %v207 = vmul.f32 %v184, %v200
      %v208 = vmul.f32 %v185, %v200
      %v209 = vmul.f32 %v186, %v200
      %v210 = vmul.f32 %v187, %v200
      %v211 = vmul.f32 %v188, %v200
      %v212 = vmul.f32 %v189, %v200
      %v213 = vmul.f32 %v190, %v200
      %v214 = vmul.f32 %v191, %v200
      %v215 = vmul.f32 %v192, %v200
      %v216 = vmul.f32 %v193, %v200
      %v217 = vmul.f32 %v194, %v200
      %v218 = vld [vmem:[%s2] sm:$0x1]
      %v220 = vlaneseq
      %v221 = vshrl.u32 %v220, 7
      %v222 = vsub.s32 0, %v221
      %v223 = vrot.slane %v218, %v222
      %v225 = vadd.f32 %v202, %v223
      %v226 = vadd.f32 %v203, %v223
      %v227 = vadd.f32 %v204, %v223
      %v228 = vadd.f32 %v205, %v223
      %v229 = vadd.f32 %v206, %v223
      %v230 = vadd.f32 %v207, %v223
      %v231 = vadd.f32 %v208, %v223
      %v232 = vadd.f32 %v209, %v223
      %v233 = vadd.f32 %v210, %v223
      %v234 = vadd.f32 %v211, %v223
      %v235 = vadd.f32 %v212, %v223
      %v236 = vadd.f32 %v213, %v223
      %v237 = vadd.f32 %v214, %v223
      %v238 = vadd.f32 %v215, %v223
      %v239 = vadd.f32 %v216, %v223
      %v240 = vadd.f32 %v217, %v223
      %v241 = vmax.f32 %v225, 0.0
      %v242 = vmax.f32 %v226, 0.0
      %v243 = vmax.f32 %v227, 0.0
      %v244 = vmax.f32 %v228, 0.0
      %v245 = vmax.f32 %v229, 0.0
      %v246 = vmax.f32 %v230, 0.0
      %v247 = vmax.f32 %v231, 0.0
      %v248 = vmax.f32 %v232, 0.0
      %v249 = vmax.f32 %v233, 0.0
      %v250 = vmax.f32 %v234, 0.0
      %v251 = vmax.f32 %v235, 0.0
      %v252 = vmax.f32 %v236, 0.0
      %v253 = vmax.f32 %v237, 0.0
      %v254 = vmax.f32 %v238, 0.0
      %v255 = vmax.f32 %v239, 0.0
      %v256 = vmax.f32 %v240, 0.0
      %257 = vst [vmem:[%s177] sm:$0xff] %v241
      %258 = vst [vmem:[%s177 + $0x8] sm:$0xff] %v242
      %259 = vst [vmem:[%s177 + $0x10] sm:$0xff] %v243
      %260 = vst [vmem:[%s177 + $0x18] sm:$0xff] %v244
      %261 = vst [vmem:[%s177 + $0x20] sm:$0xff] %v245
      %262 = vst [vmem:[%s177 + $0x28] sm:$0xff] %v246
      %263 = vst [vmem:[%s177 + $0x30] sm:$0xff] %v247
      %264 = vst [vmem:[%s177 + $0x38] sm:$0xff] %v248
      %265 = vst [vmem:[%s177 + $0x40] sm:$0xff] %v249
      %266 = vst [vmem:[%s177 + $0x48] sm:$0xff] %v250
      %267 = vst [vmem:[%s177 + $0x50] sm:$0xff] %v251
      %268 = vst [vmem:[%s177 + $0x58] sm:$0xff] %v252
      %269 = vst [vmem:[%s177 + $0x60] sm:$0xff] %v253
      %270 = vst [vmem:[%s177 + $0x68] sm:$0xff] %v254
      %271 = vst [vmem:[%s177 + $0x70] sm:$0xff] %v255
      %272 = vst [vmem:[%s177 + $0x78] sm:$0xff] %v256
      %s273 = smul.u32 8, %s14
      %p274 = scmp.lt.s32.totalorder %s273, 31
      %s275 = scalar_select %p274, %s273, 31
      %s276 = smul.addr %s275, 2
      %s277 = smul.addr %s276, 8
      %s278 = scalar_lea.vmem %s3, %s277
      // Predicated region
      $region33: #{conv_block_forward.7} parent=31 // pred_check
        %p279 = pneg %p100
      $region34: #{conv_block_forward.7} parent=31 // pred_check_branch
        %281 = sbr.rel (%p279) target = $region36
      $region35: #{conv_block_forward.7} parent=31 // pred_region
        %s282 = smul.u32 8, %s14
      $region36: #{conv_block_forward.7} parent=31 // pred_fallthru
        _
    $region32: #{conv_block_forward.7} parent=5 // pred_fallthru
      _
    %p283 = scmp.le.s32.totalorder 2, %s9
    // Predicated region
    $region37: #{conv_block_forward.7} parent=5 // pred_check
      %p284 = pneg %p283
    $region38: #{conv_block_forward.7} parent=5 // pred_check_branch
      %286 = sbr.rel (%p284) target = $region40
    $region39: #{conv_block_forward.7} parent=5 // pred_region
      %s287 = ssub.s32 %s9, 2
      // Predicated region
      $region41: #{conv_block_forward.7} parent=39 // pred_check
        %p288 = pneg %p106
      $region42: #{conv_block_forward.7} parent=39 // pred_check_branch
        %290 = sbr.rel (%p288) target = $region44
      $region43: #{conv_block_forward.7} parent=39 // pred_region
        %s291 = smul.u32 8, %s15
        %p292 = scmp.lt.s32.totalorder %s291, 31
        %s293 = scalar_select %p292, %s291, 31
        %s294 = smul.addr %s293, 2
        %s295 = smul.addr %s294, 8
        %s296 = scalar_lea.vmem %s3, %s295
      $region44: #{conv_block_forward.7} parent=39 // pred_fallthru
        _
    $region40: #{conv_block_forward.7} parent=5 // pred_fallthru
      _
  $region6: #{conv_block_forward.7} parent=0 // loop_footer
    %s13 = sadd.s32 1, %s9
  $region7: #{conv_block_forward.7} parent=0 // loop_footer_branch
    %8 = sbr.rel target = $region3
  $region8: #{conv_block_forward.7} parent=0 // loop_exit
    _

// kernel: conv_block_forward.4
$region0: #{conv_block_forward.4}
  #allocation0 [shape = 'u32[]', space=smem, size = 0x4, offset = 0x4, fixed_abs, tag = 'smem constant byte address 0x4 - core index']
  #allocation1 [shape = 'u32[144,128]{1,0:T(1,128)}', space=vmem, size = 0x12000, scoped, tag = 'internal scratch']
  %s0 = inlined_call_operand.vmem [shape: bf16[2,342,4], index: 0, kind: input, shape index: {}]
  %s1 = inlined_call_operand.vmem [shape: bf16[9,4,128], index: 1, kind: input, shape index: {}]
  %s2 = inlined_call_operand.vmem [shape: f32[1,128], index: 2, kind: input, shape index: {}]
  %s3 = inlined_call_operand.vmem [shape: f32[288,1], index: 3, kind: input, shape index: {}]
  %s4 = inlined_call_operand.vmem [shape: f32[2,288,128], index: 4, kind: output, shape index: {0}]
  %s5 = inlined_call_operand.vmem [shape: f32[1,128], index: 5, kind: output, shape index: {1}]
  %s6 = inlined_call_operand.vmem [shape: f32[1,128], index: 6, kind: output, shape index: {2}]
  %7 = xla_tuple %s4, %s5, %s6
  %s8 = sld [smem:[#allocation0]]
  $region69: #{conv_block_forward.4} parent=0
    _
  %s10 = ssub.s32 1, %s8
  %s11 = scalar_select 0, %s10, %s8
  loop: start=0, step=1, limit=4
  $region2: #{conv_block_forward.4} parent=0 // loop_pre_header
    _
  $region3: #{conv_block_forward.4} parent=0 // loop_header
    %s13 = sphi 0, %s17
    %p14 = scmp.ge.s32.totalorder %s13, 4
    %s23 = sphi 0, %s25
    %s26 = sphi 0, %s23
    %s27 = sphi 0, %s26
    %s43 = sphi 0, %s27
    %s47 = sphi 0, %s47
    %s49 = sphi 0, %s47
    %s50 = sphi 0, %s49
    %s64 = sphi 0, %s50
    %s68 = sphi 0, %s68
    %s70 = sphi 0, %s68
    %s71 = sphi 0, %s70
    %s85 = sphi 0, %s71
    %s89 = sphi 0, %s89
    %s91 = sphi 0, %s89
    %s92 = sphi 0, %s91
    %s106 = sphi 0, %s92
    %s112 = sphi 0, %s114
    %s115 = sphi 0, %s112
    %s116 = sphi 0, %s115
    %s132 = sphi 0, %s116
    %s136 = sphi 0, %s136
    %s138 = sphi 0, %s136
    %s139 = sphi 0, %s138
    %s153 = sphi 0, %s139
    %s157 = sphi 0, %s157
    %s159 = sphi 0, %s157
    %s160 = sphi 0, %s159
    %s174 = sphi 0, %s160
  $region4: #{conv_block_forward.4} parent=0 // loop_header_branch
    %16 = sbr.rel (%p14) target = $region8
  $region5: #{conv_block_forward.4} parent=0 // loop_body
    %s18 = ssub.s32 %s13, 1
    %s19 = ssub.s32 %s13, 2
    %s20 = sadd.s32 %s13, 1
    %s21 = ssub.s32 %s13, %s20
    %p22 = scmp.eq.s32.totalorder %s21, 0
    %s24 = sadd.s32 %s23, 1
    %s25 = scalar_select %p22, %s23, %s24
    %p28 = pneg %p22
    %p29 = scmp.eq.s32.totalorder %s13, 1
    %p30 = por %p28, %p29
    %p31 = scmp.ne.s32.totalorder %s23, %s26
    %p32 = scmp.eq.s32.totalorder %s13, 0
    %p33 = por %p31, %p32
    %p34 = scmp.ne.s32.totalorder %s23, %s26
    %p35 = scmp.eq.s32.totalorder %s18, 1
    %p36 = por %p34, %p35
    %p37 = scmp.ne.s32.totalorder %s26, %s27
    %p38 = scmp.eq.s32.totalorder %s18, 0
    %p39 = por %p37, %p38
    %p40 = scmp.ne.s32.totalorder %s26, %s27
    %p41 = scmp.eq.s32.totalorder %s19, 1
    %p42 = por %p40, %p41
    %p44 = scmp.ne.s32.totalorder %s27, %s43
    %p45 = scmp.eq.s32.totalorder %s19, 0
    %p46 = por %p44, %p45
    %s48 = sadd.s32 %s47, 1
    %p51 = scmp.eq.s32.totalorder %s13, 1
    %p52 = scmp.ne.s32.totalorder %s47, %s49
    %p53 = scmp.eq.s32.totalorder %s13, 0
    %p54 = por %p52, %p53
    %p55 = scmp.ne.s32.totalorder %s47, %s49
    %p56 = scmp.eq.s32.totalorder %s18, 1
    %p57 = por %p55, %p56
    %p58 = scmp.ne.s32.totalorder %s49, %s50
    %p59 = scmp.eq.s32.totalorder %s18, 0
    %p60 = por %p58, %p59
    %p61 = scmp.ne.s32.totalorder %s49, %s50
    %p62 = scmp.eq.s32.totalorder %s19, 1
    %p63 = por %p61, %p62
    %p65 = scmp.ne.s32.totalorder %s50, %s64
    %p66 = scmp.eq.s32.totalorder %s19, 0
    %p67 = por %p65, %p66
    %s69 = sadd.s32 %s68, 1
    %p72 = scmp.eq.s32.totalorder %s13, 1
    %p73 = scmp.ne.s32.totalorder %s68, %s70
    %p74 = scmp.eq.s32.totalorder %s13, 0
    %p75 = por %p73, %p74
    %p76 = scmp.ne.s32.totalorder %s68, %s70
    %p77 = scmp.eq.s32.totalorder %s18, 1
    %p78 = por %p76, %p77
    %p79 = scmp.ne.s32.totalorder %s70, %s71
    %p80 = scmp.eq.s32.totalorder %s18, 0
    %p81 = por %p79, %p80
    %p82 = scmp.ne.s32.totalorder %s70, %s71
    %p83 = scmp.eq.s32.totalorder %s19, 1
    %p84 = por %p82, %p83
    %p86 = scmp.ne.s32.totalorder %s71, %s85
    %p87 = scmp.eq.s32.totalorder %s19, 0
    %p88 = por %p86, %p87
    %s90 = sadd.s32 %s89, 1
    %p93 = scmp.eq.s32.totalorder %s13, 1
    %p94 = scmp.ne.s32.totalorder %s89, %s91
    %p95 = scmp.eq.s32.totalorder %s13, 0
    %p96 = por %p94, %p95
    %p97 = scmp.ne.s32.totalorder %s89, %s91
    %p98 = scmp.eq.s32.totalorder %s18, 1
    %p99 = por %p97, %p98
    %p100 = scmp.ne.s32.totalorder %s91, %s92
    %p101 = scmp.eq.s32.totalorder %s18, 0
    %p102 = por %p100, %p101
    %p103 = scmp.ne.s32.totalorder %s91, %s92
    %p104 = scmp.eq.s32.totalorder %s19, 1
    %p105 = por %p103, %p104
    %p107 = scmp.ne.s32.totalorder %s92, %s106
    %p108 = scmp.eq.s32.totalorder %s19, 0
    %p109 = por %p107, %p108
    %s110 = ssub.s32 %s13, %s20
    %p111 = scmp.eq.s32.totalorder %s110, 0
    %s113 = sadd.s32 %s112, 1
    %s114 = scalar_select %p111, %s112, %s113
    %p117 = pneg %p111
    %p118 = scmp.eq.s32.totalorder %s13, 1
    %p119 = por %p117, %p118
    %p120 = scmp.ne.s32.totalorder %s112, %s115
    %p121 = scmp.eq.s32.totalorder %s13, 0
    %p122 = por %p120, %p121
    %p123 = scmp.ne.s32.totalorder %s112, %s115
    %p124 = scmp.eq.s32.totalorder %s18, 1
    %p125 = por %p123, %p124
    %p126 = scmp.ne.s32.totalorder %s115, %s116
    %p127 = scmp.eq.s32.totalorder %s18, 0
    %p128 = por %p126, %p127
    %p129 = scmp.ne.s32.totalorder %s115, %s116
    %p130 = scmp.eq.s32.totalorder %s19, 1
    %p131 = por %p129, %p130
    %p133 = scmp.ne.s32.totalorder %s116, %s132
    %p134 = scmp.eq.s32.totalorder %s19, 0
    %p135 = por %p133, %p134
    %s137 = sadd.s32 %s136, 1
    %p140 = scmp.eq.s32.totalorder %s13, 1
    %p141 = scmp.ne.s32.totalorder %s136, %s138
    %p142 = scmp.eq.s32.totalorder %s13, 0
    %p143 = por %p141, %p142
    %p144 = scmp.ne.s32.totalorder %s136, %s138
    %p145 = scmp.eq.s32.totalorder %s18, 1
    %p146 = por %p144, %p145
    %p147 = scmp.ne.s32.totalorder %s138, %s139
    %p148 = scmp.eq.s32.totalorder %s18, 0
    %p149 = por %p147, %p148
    %p150 = scmp.ne.s32.totalorder %s138, %s139
    %p151 = scmp.eq.s32.totalorder %s19, 1
    %p152 = por %p150, %p151
    %p154 = scmp.ne.s32.totalorder %s139, %s153
    %p155 = scmp.eq.s32.totalorder %s19, 0
    %p156 = por %p154, %p155
    %s158 = sadd.s32 %s157, 1
    %p161 = scmp.eq.s32.totalorder %s13, 1
    %p162 = scmp.ne.s32.totalorder %s157, %s159
    %p163 = scmp.eq.s32.totalorder %s13, 0
    %p164 = por %p162, %p163
    %p165 = scmp.ne.s32.totalorder %s157, %s159
    %p166 = scmp.eq.s32.totalorder %s18, 1
    %p167 = por %p165, %p166
    %p168 = scmp.ne.s32.totalorder %s159, %s160
    %p169 = scmp.eq.s32.totalorder %s18, 0
    %p170 = por %p168, %p169
    %p171 = scmp.ne.s32.totalorder %s159, %s160
    %p172 = scmp.eq.s32.totalorder %s19, 1
    %p173 = por %p171, %p172
    %p175 = scmp.ne.s32.totalorder %s160, %s174
    %p176 = scmp.eq.s32.totalorder %s19, 0
    %p177 = por %p175, %p176
    %p178 = scmp.le.s32.totalorder 1, %s13
    %p179 = scmp.lt.s32.totalorder %s13, 3
    %p180 = pnand %p178, %p179
    %p181 = pneg %p180
    // Predicated region
    $region9: #{conv_block_forward.4} parent=5 // pred_check
      _
    $region10: #{conv_block_forward.4} parent=5 // pred_check_branch
      %183 = sbr.rel (%p180) target = $region12
    $region11: #{conv_block_forward.4} parent=5 // pred_region
      %s184 = ssub.s32 %s13, 1
      // Predicated region
      $region13: #{conv_block_forward.4} parent=11 // pred_check
        %p185 = pneg %p60
      $region14: #{conv_block_forward.4} parent=11 // pred_check_branch
        %187 = sbr.rel (%p185) target = $region16
      $region15: #{conv_block_forward.4} parent=11 // pred_region
        _
      $region16: #{conv_block_forward.4} parent=11 // pred_fallthru
        _
      // Predicated region
      $region17: #{conv_block_forward.4} parent=11 // pred_check
        %p188 = pneg %p81
      $region18: #{conv_block_forward.4} parent=11 // pred_check_branch
        %190 = sbr.rel (%p188) target = $region20
      $region19: #{conv_block_forward.4} parent=11 // pred_region
        _
      $region20: #{conv_block_forward.4} parent=11 // pred_fallthru
        _
      // Predicated region
      $region21: #{conv_block_forward.4} parent=11 // pred_check
        %p191 = pneg %p102
      $region22: #{conv_block_forward.4} parent=11 // pred_check_branch
        %193 = sbr.rel (%p191) target = $region24
      $region23: #{conv_block_forward.4} parent=11 // pred_region
        _
      $region24: #{conv_block_forward.4} parent=11 // pred_fallthru
        _
    $region12: #{conv_block_forward.4} parent=5 // pred_fallthru
      _
    %p194 = scmp.lt.s32.totalorder %s13, 2
    // Predicated region
    $region25: #{conv_block_forward.4} parent=5 // pred_check
      %p195 = pneg %p194
    $region26: #{conv_block_forward.4} parent=5 // pred_check_branch
      %197 = sbr.rel (%p195) target = $region28
    $region27: #{conv_block_forward.4} parent=5 // pred_region
      // Predicated region
      $region29: #{conv_block_forward.4} parent=27 // pred_check
        %p198 = pneg %p33
      $region30: #{conv_block_forward.4} parent=27 // pred_check_branch
        %200 = sbr.rel (%p198) target = $region32
      $region31: #{conv_block_forward.4} parent=27 // pred_region
        %p201 = scmp.lt.s32.totalorder %s13, 1
        %s202 = scalar_select %p201, %s13, 1
        %s203 = smul.addr %s202, 43
        %s204 = smul.addr %s203, 4
        %s205 = scalar_lea.vmem %s0, %s204
      $region32: #{conv_block_forward.4} parent=27 // pred_fallthru
        _
    $region28: #{conv_block_forward.4} parent=5 // pred_fallthru
      _
    %p206 = scmp.le.s32.totalorder 1, %s13
    %p207 = scmp.lt.s32.totalorder %s13, 3
    %p208 = pnand %p206, %p207
    %p209 = pneg %p208
    // Predicated region
    $region33: #{conv_block_forward.4} parent=5 // pred_check
      _
    $region34: #{conv_block_forward.4} parent=5 // pred_check_branch
      %211 = sbr.rel (%p208) target = $region36
    $region35: #{conv_block_forward.4} parent=5 // pred_region
      %s212 = ssub.s32 %s13, 1
      %p213 = scmp.lt.s32.totalorder %s18, 1
      %s214 = scalar_select %p213, %s18, 1
      %s215 = smul.addr %s214, 43
      %s216 = smul.addr %s215, 4
      %s217 = scalar_lea.vmem %s0, %s216
      %p218 = pneg %p39
      %p219 = pneg %p36
      %p220 = pneg %p60
      %p221 = pneg %p57
      %p222 = pneg %p81
      %p223 = pneg %p78
      %p224 = pneg %p102
      %p225 = pneg %p99
      %p226 = pneg %p128
      %p227 = pneg %p125
      %p228 = scmp.lt.s32.totalorder %s18, 1
      %s229 = scalar_select %p228, %s18, 1
      %s230 = smul.addr %s229, 36
      %s231 = smul.addr %s230, 8
      %s232 = scalar_lea.vmem %s4, %s231
      %p233 = pneg %p149
      %p234 = pneg %p146
      %p235 = pneg %p170
      %p236 = pneg %p167
      %p237 = scmp.lt.s32.totalorder %s18, 1
      %s238 = scalar_select %p237, %s18, 1
      %s239 = smul.addr %s238, 43
      %s240 = smul.addr %s239, 4
      %s241 = scalar_lea.vmem %s0, %s240
      %p242 = scmp.lt.s32.totalorder %s18, 1
      %s243 = scalar_select %p242, %s18, 1
      %s244 = smul.addr %s243, 36
      %s245 = smul.addr %s244, 8
      %s246 = scalar_lea.vmem %s4, %s245
      %v248 = vld [vmem:[%s241] sm:$0xf]
      %v249 = vld [vmem:[%s241 + $0x4] sm:$0xf]
      %v250 = vld [vmem:[%s241 + $0x8] sm:$0xf]
      %v251 = vld [vmem:[%s241 + $0xc] sm:$0xf]
      %v252 = vld [vmem:[%s241 + $0x10] sm:$0xf]
      %v253 = vld [vmem:[%s241 + $0x14] sm:$0xf]
      %v254 = vld [vmem:[%s241 + $0x18] sm:$0xf]
      %v255 = vld [vmem:[%s241 + $0x1c] sm:$0xf]
      %v256 = vld [vmem:[%s241 + $0x20] sm:$0xf]
      %v257 = vld [vmem:[%s241 + $0x24] sm:$0xf]
      %v258 = vld [vmem:[%s241 + $0x28] sm:$0xf]
      %v259 = vld [vmem:[%s241 + $0x2c] sm:$0xf]
      %v260 = vld [vmem:[%s241 + $0x30] sm:$0xf]
      %v261 = vld [vmem:[%s241 + $0x34] sm:$0xf]
      %v262 = vld [vmem:[%s241 + $0x38] sm:$0xf]
      %v263 = vld [vmem:[%s241 + $0x3c] sm:$0xf]
      %v264 = vld [vmem:[%s241 + $0x40] sm:$0xf]
      %v265 = vld [vmem:[%s241 + $0x44] sm:$0xf]
      %v266 = vld [vmem:[%s241 + $0x48] sm:$0xf]
      %v267 = vld [vmem:[%s241 + $0x4c] sm:$0xf]
      %v268 = vld [vmem:[%s241 + $0x50] sm:$0xf]
      %v269 = vld [vmem:[%s241 + $0x54] sm:$0xf]
      %v270 = vld [vmem:[%s241 + $0x58] sm:$0xf]
      %v271 = vld [vmem:[%s241 + $0x5c] sm:$0xf]
      %v272 = vld [vmem:[%s241 + $0x60] sm:$0xf]
      %v273 = vld [vmem:[%s241 + $0x64] sm:$0xf]
      %v274 = vld [vmem:[%s241 + $0x68] sm:$0xf]
      %v275 = vld [vmem:[%s241 + $0x6c] sm:$0xf]
      %v276 = vld [vmem:[%s241 + $0x70] sm:$0xf]
      %v277 = vld [vmem:[%s241 + $0x74] sm:$0xf]
      %v278 = vld [vmem:[%s241 + $0x78] sm:$0xf]
      %v279 = vld [vmem:[%s241 + $0x7c] sm:$0xf]
      %v280 = vld [vmem:[%s241 + $0x80] sm:$0xf]
      %v281 = vld [vmem:[%s241 + $0x84] sm:$0xf]
      %v282 = vld [vmem:[%s241 + $0x88] sm:$0xf]
      %v283 = vld [vmem:[%s241 + $0x8c] sm:$0xf]
      %v284 = vld [vmem:[%s241 + $0x90] sm:$0xf]
      %v285 = vld [vmem:[%s241 + $0x94] sm:$0xf]
      %v286 = vld [vmem:[%s241 + $0x98] sm:$0xf]
      %v287 = vld [vmem:[%s241 + $0x9c] sm:$0xf]
      %v288 = vld [vmem:[%s241 + $0xa0] sm:$0xf]
      %v289 = vld [vmem:[%s1] sm:$0x3]
      %s290 = scalar_lea.vmem %s1, 2
      %v291 = vld [vmem:[%s290] sm:$0x3]
      %v329 = vunpack.c.l.b16 %v248
      %v330 = vunpack.c.l.b16 %v249
      %v331 = vunpack.c.l.b16 %v250
      %v332 = vunpack.c.l.b16 %v251
      %v333 = vunpack.c.l.b16 %v252
      %v334 = vunpack.c.l.b16 %v253
      %v335 = vunpack.c.l.b16 %v254
      %v336 = vunpack.c.l.b16 %v255
      %v337 = vunpack.c.l.b16 %v256
      %v338 = vunpack.c.l.b16 %v257
      %v339 = vunpack.c.l.b16 %v258
      %v340 = vunpack.c.l.b16 %v259
      %v341 = vunpack.c.l.b16 %v260
      %v342 = vunpack.c.l.b16 %v261
      %v343 = vunpack.c.l.b16 %v262
      %v344 = vunpack.c.l.b16 %v263
      %v345 = vunpack.c.l.b16 %v264
      %v346 = vunpack.c.l.b16 %v265
      %v347 = vunpack.c.l.b16 %v266
      %v348 = vunpack.c.l.b16 %v267
      %v349 = vunpack.c.l.b16 %v268
      %v350 = vunpack.c.l.b16 %v269
      %v351 = vunpack.c.l.b16 %v270
      %v352 = vunpack.c.l.b16 %v271
      %v353 = vunpack.c.l.b16 %v272
      %v354 = vunpack.c.l.b16 %v273
      %v355 = vunpack.c.l.b16 %v274
      %v356 = vunpack.c.l.b16 %v275
      %v357 = vunpack.c.l.b16 %v276
      %v358 = vunpack.c.l.b16 %v277
      %v359 = vunpack.c.l.b16 %v278
      %v360 = vunpack.c.l.b16 %v279
      %v361 = vunpack.c.l.b16 %v280
      %v362 = vunpack.c.l.b16 %v281
      %v363 = vunpack.c.l.b16 %v282
      %v364 = vunpack.c.l.b16 %v283
      %v365 = vunpack.c.l.b16 %v284
      %v366 = vpack.c.b16 %v330, %v329
      %v367 = vpack.c.b16 %v332, %v331
      %v368 = vpack.c.b16 %v334, %v333
      %v369 = vpack.c.b16 %v336, %v335
      %v370 = vpack.c.b16 %v338, %v337
      %v371 = vpack.c.b16 %v340, %v339
      %v372 = vpack.c.b16 %v342, %v341
      %v373 = vpack.c.b16 %v344, %v343
      %v374 = vpack.c.b16 %v346, %v345
      %v375 = vpack.c.b16 %v348, %v347
      %v376 = vpack.c.b16 %v350, %v349
      %v377 = vpack.c.b16 %v352, %v351
      %v378 = vpack.c.b16 %v354, %v353
      %v379 = vpack.c.b16 %v356, %v355
      %v380 = vpack.c.b16 %v358, %v357
      %v381 = vpack.c.b16 %v360, %v359
      %v382 = vpack.c.b16 %v362, %v361
      %v383 = vpack.c.b16 %v364, %v363
      %v384 = vpack.c.b16 %v365, %v365
      %vm385 = vsmask.f32 7424
      %v387 = vshrl.u32 %v366, 16
      %v389 = vshll.u32 %v366, 16
      %v391 = vrot.slane %v389, 1
      %v392 = vor.u32 %v387, %v391
      %v394 = vshll.u32 %v367, 16
      %v396 = vrot.slane %v394, 1
      %v397 = vsel %vm385, %v392, %v396
      %v398 = vshrl.u32 %v367, 16
      %v400 = vor.u32 %v398, %v396
      %v402 = vshll.u32 %v368, 16
      %v404 = vrot.slane %v402, 1
      %v405 = vsel %vm385, %v400, %v404
      %v406 = vshrl.u32 %v368, 16
      %v408 = vor.u32 %v406, %v404
      %v410 = vshll.u32 %v369, 16
      %v412 = vrot.slane %v410, 1
      %v413 = vsel %vm385, %v408, %v412
      %v414 = vshrl.u32 %v369, 16
      %v416 = vor.u32 %v414, %v412
      %v418 = vshll.u32 %v370, 16
      %v420 = vrot.slane %v418, 1
      %v421 = vsel %vm385, %v416, %v420
      %v422 = vshrl.u32 %v370, 16
      %v424 = vor.u32 %v422, %v420
      %v426 = vshll.u32 %v371, 16
      %v428 = vrot.slane %v426, 1
      %v429 = vsel %vm385, %v424, %v428
      %v430 = vshrl.u32 %v371, 16
      %v432 = vor.u32 %v430, %v428
      %v434 = vshll.u32 %v372, 16
      %v436 = vrot.slane %v434, 1
      %v437 = vsel %vm385, %v432, %v436
      %v438 = vshrl.u32 %v372, 16
      %v440 = vor.u32 %v438, %v436
      %v442 = vshll.u32 %v373, 16
      %v444 = vrot.slane %v442, 1
      %v445 = vsel %vm385, %v440, %v444
      %v446 = vshrl.u32 %v373, 16
      %v448 = vor.u32 %v446, %v444
      %v450 = vshll.u32 %v374, 16
      %v452 = vrot.slane %v450, 1
      %v453 = vsel %vm385, %v448, %v452
      %v454 = vshrl.u32 %v374, 16
      %v456 = vor.u32 %v454, %v452
      %v458 = vshll.u32 %v375, 16
      %v460 = vrot.slane %v458, 1
      %v461 = vsel %vm385, %v456, %v460
      %v462 = vshrl.u32 %v375, 16
      %v464 = vor.u32 %v462, %v460
      %v466 = vshll.u32 %v376, 16
      %v468 = vrot.slane %v466, 1
      %v469 = vsel %vm385, %v464, %v468
      %v470 = vshrl.u32 %v376, 16
      %v472 = vor.u32 %v470, %v468
      %v474 = vshll.u32 %v377, 16
      %v476 = vrot.slane %v474, 1
      %v477 = vsel %vm385, %v472, %v476
      %v478 = vshrl.u32 %v377, 16
      %v480 = vor.u32 %v478, %v476
      %v482 = vshll.u32 %v378, 16
      %v484 = vrot.slane %v482, 1
      %v485 = vsel %vm385, %v480, %v484
      %v486 = vshrl.u32 %v378, 16
      %v488 = vor.u32 %v486, %v484
      %v490 = vshll.u32 %v379, 16
      %v492 = vrot.slane %v490, 1
      %v493 = vsel %vm385, %v488, %v492
      %v494 = vshrl.u32 %v379, 16
      %v496 = vor.u32 %v494, %v492
      %v498 = vshll.u32 %v380, 16
      %v500 = vrot.slane %v498, 1
      %v501 = vsel %vm385, %v496, %v500
      %v502 = vshrl.u32 %v380, 16
      %v504 = vor.u32 %v502, %v500
      %v506 = vshll.u32 %v381, 16
      %v508 = vrot.slane %v506, 1
      %v509 = vsel %vm385, %v504, %v508
      %v510 = vshrl.u32 %v381, 16
      %v512 = vor.u32 %v510, %v508
      %v514 = vshll.u32 %v382, 16
      %v516 = vrot.slane %v514, 1
      %v517 = vsel %vm385, %v512, %v516
      %v518 = vshrl.u32 %v382, 16
      %v520 = vor.u32 %v518, %v516
      %v522 = vshll.u32 %v383, 16
      %v524 = vrot.slane %v522, 1
      %v525 = vsel %vm385, %v520, %v524
      %v526 = vshrl.u32 %v383, 16
      %v528 = vor.u32 %v526, %v524
      %v530 = vshll.u32 %v384, 16
      %v532 = vrot.slane %v530, 1
      %v533 = vsel %vm385, %v528, %v532
      %vm534 = vcmask 31744
      %v536 = vsel %vm534, %v397, 0
      %v539 = vsel %vm534, %v405, 0
      %v542 = vsel %vm534, %v413, 0
      %v545 = vsel %vm534, %v421, 0
      %v548 = vsel %vm534, %v429, 0
      %v551 = vsel %vm534, %v437, 0
      %v554 = vsel %vm534, %v445, 0
      %v557 = vsel %vm534, %v453, 0
      %v560 = vsel %vm534, %v461, 0
      %v563 = vsel %vm534, %v469, 0
      %v566 = vsel %vm534, %v477, 0
      %v569 = vsel %vm534, %v485, 0
      %v572 = vsel %vm534, %v493, 0
      %v575 = vsel %vm534, %v501, 0
      %v578 = vsel %vm534, %v509, 0
      %v581 = vsel %vm534, %v517, 0
      %v584 = vsel %vm534, %v525, 0
      %v587 = vsel %vm534, %v533, 0
      %vm589 = vcmask 1041408
      %v591 = vsel %vm589, %v291, 0
      %593 = vmatprep.subr.bf16.mxu0 0
      %594 = vmatpush1.bf16.msra.mxu0 %v591
      %595 = vmatprep.subr.bf16.mxu0 0
      %596 = vmatpush1.bf16.msra.mxu0 0
      %597 = vmatprep.subr.bf16.mxu0 0
      %598 = vmatpush1.bf16.msra.mxu0 0
      %599 = vmatprep.subr.bf16.mxu0 0
      %600 = vmatpush1.bf16.msra.mxu0 0
      %601 = vmatprep.subr.bf16.mxu0 0
      %602 = vmatpush1.bf16.msra.mxu0 0
      %603 = vmatprep.subr.bf16.mxu0 0
      %604 = vmatpush1.bf16.msra.mxu0 0
      %605 = vmatprep.subr.bf16.mxu0 0
      %606 = vmatpush1.bf16.msra.mxu0 0
      %607 = vmatprep.subr.bf16.mxu0 0
      %608 = vmatpush1.bf16.msra.mxu0 0
      %609 = vmatprep.subr.bf16.mxu0 0
      %610 = vmatpush1.bf16.msra.mxu0 0
      %611 = vmatprep.subr.bf16.mxu0 0
      %612 = vmatpush1.bf16.msra.mxu0 0
      %613 = vmatprep.subr.bf16.mxu0 0
      %614 = vmatpush1.bf16.msra.mxu0 0
      %615 = vmatprep.subr.bf16.mxu0 0
      %616 = vmatpush1.bf16.msra.mxu0 0
      %617 = vmatprep.subr.bf16.mxu0 0
      %618 = vmatpush1.bf16.msra.mxu0 0
      %619 = vmatprep.subr.bf16.mxu0 0
      %620 = vmatpush1.bf16.msra.mxu0 0
      %621 = vmatprep.subr.bf16.mxu0 0
      %622 = vmatpush1.bf16.msra.mxu0 0
      %623 = vmatprep.subr.bf16.mxu0 0
      %624 = vmatpush1.bf16.msra.mxu0 0
      %625 = vmatprep.mubr.bf16.mxu0 0
      %626 = vmatmul.mubr.bf16.gmra.mrb[0].mxu0 %v536
      %v627 = vpop.f32.mrb[0].mxu0
      %v628 = vadd.f32 0.0, %v627
      %v629 = vpop.f32.mrb[0].mxu0
      %v630 = vpop.f32.mrb[0].mxu0
      %v631 = vadd.f32 0.0, %v630
      %v632 = vpop.f32.mrb[0].mxu0
      %633 = vmatprep.mubr.bf16.mxu0 0
      %634 = vmatmul.mubr.bf16.gmra.mrb[0].mxu0 %v539
      %v635 = vpop.f32.mrb[0].mxu0
      %v636 = vadd.f32 0.0, %v635
      %v637 = vpop.f32.mrb[0].mxu0
      %v638 = vpop.f32.mrb[0].mxu0
      %v639 = vadd.f32 0.0, %v638
      %v640 = vpop.f32.mrb[0].mxu0
      %641 = vmatprep.mubr.bf16.mxu0 0
      %642 = vmatmul.mubr.bf16.gmra.mrb[0].mxu0 %v542
      %v643 = vpop.f32.mrb[0].mxu0
      %v644 = vadd.f32 0.0, %v643
      %v645 = vpop.f32.mrb[0].mxu0
      %v646 = vpop.f32.mrb[0].mxu0
      %v647 = vadd.f32 0.0, %v646
      %v648 = vpop.f32.mrb[0].mxu0
      %649 = vmatprep.mubr.bf16.mxu0 0
      %650 = vmatmul.mubr.bf16.gmra.mrb[0].mxu0 %v545
      %v651 = vpop.f32.mrb[0].mxu0
      %v652 = vadd.f32 0.0, %v651
      %v653 = vpop.f32.mrb[0].mxu0
      %v654 = vpop.f32.mrb[0].mxu0
      %v655 = vadd.f32 0.0, %v654
      %v656 = vpop.f32.mrb[0].mxu0
      %657 = vmatprep.mubr.bf16.mxu0 0
      %658 = vmatmul.mubr.bf16.gmra.mrb[0].mxu0 %v548
      %v659 = vpop.f32.mrb[0].mxu0
      %v660 = vadd.f32 0.0, %v659
      %v661 = vpop.f32.mrb[0].mxu0
      %v662 = vpop.f32.mrb[0].mxu0
      %v663 = vadd.f32 0.0, %v662
      %v664 = vpop.f32.mrb[0].mxu0
      %665 = vmatprep.mubr.bf16.mxu0 0
      %666 = vmatmul.mubr.bf16.gmra.mrb[0].mxu0 %v551
      %v667 = vpop.f32.mrb[0].mxu0
      %v668 = vadd.f32 0.0, %v667
      %v669 = vpop.f32.mrb[0].mxu0
      %v670 = vpop.f32.mrb[0].mxu0
      %v671 = vadd.f32 0.0, %v670
      %v672 = vpop.f32.mrb[0].mxu0
      %673 = vmatprep.mubr.bf16.mxu0 0
      %674 = vmatmul.mubr.bf16.gmra.mrb[0].mxu0 %v554
      %v675 = vpop.f32.mrb[0].mxu0
      %v676 = vadd.f32 0.0, %v675
      %v677 = vpop.f32.mrb[0].mxu0
      %v678 = vpop.f32.mrb[0].mxu0
      %v679 = vadd.f32 0.0, %v678
      %v680 = vpop.f32.mrb[0].mxu0
      %681 = vmatprep.mubr.bf16.mxu0 0
      %682 = vmatmul.mubr.bf16.gmra.mrb[0].mxu0 %v557
      %v683 = vpop.f32.mrb[0].mxu0
      %v684 = vadd.f32 0.0, %v683
      %v685 = vpop.f32.mrb[0].mxu0
      %v686 = vpop.f32.mrb[0].mxu0
      %v687 = vadd.f32 0.0, %v686
      %v688 = vpop.f32.mrb[0].mxu0
      %689 = vmatprep.mubr.bf16.mxu0 0
      %690 = vmatmul.mubr.bf16.gmra.mrb[0].mxu0 %v560
      %v691 = vpop.f32.mrb[0].mxu0
      %v692 = vadd.f32 0.0, %v691
      %v693 = vpop.f32.mrb[0].mxu0
      %v694 = vpop.f32.mrb[0].mxu0
      %v695 = vadd.f32 0.0, %v694
      %v696 = vpop.f32.mrb[0].mxu0
      %697 = vmatprep.mubr.bf16.mxu0 0
      %698 = vmatmul.mubr.bf16.gmra.mrb[0].mxu0 %v563
      %v699 = vpop.f32.mrb[0].mxu0
      %v700 = vadd.f32 0.0, %v699
      %v701 = vpop.f32.mrb[0].mxu0
      %v702 = vpop.f32.mrb[0].mxu0
      %v703 = vadd.f32 0.0, %v702
      %v704 = vpop.f32.mrb[0].mxu0
      %705 = vmatprep.mubr.bf16.mxu0 0
      %706 = vmatmul.mubr.bf16.gmra.mrb[0].mxu0 %v566
      %v707 = vpop.f32.mrb[0].mxu0
      %v708 = vadd.f32 0.0, %v707
      %v709 = vpop.f32.mrb[0].mxu0
      %v710 = vpop.f32.mrb[0].mxu0
      %v711 = vadd.f32 0.0, %v710
      %v712 = vpop.f32.mrb[0].mxu0
      %713 = vmatprep.mubr.bf16.mxu0 0
      %714 = vmatmul.mubr.bf16.gmra.mrb[0].mxu0 %v569
      %v715 = vpop.f32.mrb[0].mxu0
      %v716 = vadd.f32 0.0, %v715
      %v717 = vpop.f32.mrb[0].mxu0
      %v718 = vpop.f32.mrb[0].mxu0
      %v719 = vadd.f32 0.0, %v718
      %v720 = vpop.f32.mrb[0].mxu0
      %721 = vmatprep.mubr.bf16.mxu0 0
      %722 = vmatmul.mubr.bf16.gmra.mrb[0].mxu0 %v572
      %v723 = vpop.f32.mrb[0].mxu0
      %v724 = vadd.f32 0.0, %v723
      %v725 = vpop.f32.mrb[0].mxu0
      %v726 = vpop.f32.mrb[0].mxu0
      %v727 = vadd.f32 0.0, %v726
      %v728 = vpop.f32.mrb[0].mxu0
      %729 = vmatprep.mubr.bf16.mxu0 0
      %730 = vmatmul.mubr.bf16.gmra.mrb[0].mxu0 %v575
      %v731 = vpop.f32.mrb[0].mxu0
      %v732 = vadd.f32 0.0, %v731
      %v733 = vpop.f32.mrb[0].mxu0
      %v734 = vpop.f32.mrb[0].mxu0
      %v735 = vadd.f32 0.0, %v734
      %v736 = vpop.f32.mrb[0].mxu0
      %737 = vmatprep.mubr.bf16.mxu0 0
      %738 = vmatmul.mubr.bf16.gmra.mrb[0].mxu0 %v578
      %v739 = vpop.f32.mrb[0].mxu0
      %v740 = vadd.f32 0.0, %v739
      %v741 = vpop.f32.mrb[0].mxu0
      %v742 = vpop.f32.mrb[0].mxu0
      %v743 = vadd.f32 0.0, %v742
      %v744 = vpop.f32.mrb[0].mxu0
      %745 = vmatprep.mubr.bf16.mxu0 0
      %746 = vmatmul.mubr.bf16.gmra.mrb[0].mxu0 %v581
      %v747 = vpop.f32.mrb[0].mxu0
      %v748 = vadd.f32 0.0, %v747
      %v749 = vpop.f32.mrb[0].mxu0
      %v750 = vpop.f32.mrb[0].mxu0
      %v751 = vadd.f32 0.0, %v750
      %v752 = vpop.f32.mrb[0].mxu0
      %753 = vmatprep.mubr.bf16.mxu0 0
      %754 = vmatmul.mubr.bf16.gmra.mrb[0].mxu0 %v584
      %v755 = vpop.f32.mrb[0].mxu0
      %v756 = vadd.f32 0.0, %v755
      %v757 = vpop.f32.mrb[0].mxu0
      %v758 = vpop.f32.mrb[0].mxu0
      %v759 = vadd.f32 0.0, %v758
      %v760 = vpop.f32.mrb[0].mxu0
      %761 = vmatprep.mubr.bf16.mxu0 0
      %762 = vmatmul.mubr.bf16.gmra.mrb[0].mxu0 %v587
      %v763 = vpop.f32.mrb[0].mxu0
      %v764 = vadd.f32 0.0, %v763
      %v765 = vpop.f32.mrb[0].mxu0
      %v766 = vpop.f32.mrb[0].mxu0
      %v767 = vadd.f32 0.0, %v766
      %v768 = vpop.f32.mrb[0].mxu0
      %769 = vdwg.mxu0
      %v770 = vsel %vm534, %v366, 0
      %v772 = vsel %vm534, %v367, 0
      %v774 = vsel %vm534, %v368, 0
      %v776 = vsel %vm534, %v369, 0
      %v778 = vsel %vm534, %v370, 0
      %v780 = vsel %vm534, %v371, 0
      %v782 = vsel %vm534, %v372, 0
      %v784 = vsel %vm534, %v373, 0
      %v786 = vsel %vm534, %v374, 0
      %v788 = vsel %vm534, %v375, 0
      %v790 = vsel %vm534, %v376, 0
      %v792 = vsel %vm534, %v377, 0
      %v794 = vsel %vm534, %v378, 0
      %v796 = vsel %vm534, %v379, 0
      %v798 = vsel %vm534, %v380, 0
      %v800 = vsel %vm534, %v381, 0
      %v802 = vsel %vm534, %v382, 0
      %v804 = vsel %vm534, %v383, 0
      %v807 = vsel %vm589, %v289, 0
      %809 = vmatprep.subr.bf16.mxu0 0
      %810 = vmatpush1.bf16.msra.mxu0 %v807
      %811 = vmatprep.subr.bf16.mxu0 0
      %812 = vmatpush1.bf16.msra.mxu0 0
      %813 = vmatprep.subr.bf16.mxu0 0
      %814 = vmatpush1.bf16.msra.mxu0 0
      %815 = vmatprep.subr.bf16.mxu0 0
      %816 = vmatpush1.bf16.msra.mxu0 0
      %817 = vmatprep.subr.bf16.mxu0 0
      %818 = vmatpush1.bf16.msra.mxu0 0
      %819 = vmatprep.subr.bf16.mxu0 0
      %820 = vmatpush1.bf16.msra.mxu0 0
      %821 = vmatprep.subr.bf16.mxu0 0
      %822 = vmatpush1.bf16.msra.mxu0 0
      %823 = vmatprep.subr.bf16.mxu0 0
      %824 = vmatpush1.bf16.msra.mxu0 0
      %825 = vmatprep.subr.bf16.mxu0 0
      %826 = vmatpush1.bf16.msra.mxu0 0
      %827 = vmatprep.subr.bf16.mxu0 0
      %828 = vmatpush1.bf16.msra.mxu0 0
      %829 = vmatprep.subr.bf16.mxu0 0
      %830 = vmatpush1.bf16.msra.mxu0 0
      %831 = vmatprep.subr.bf16.mxu0 0
      %832 = vmatpush1.bf16.msra.mxu0 0
      %833 = vmatprep.subr.bf16.mxu0 0
      %834 = vmatpush1.bf16.msra.mxu0 0
      %835 = vmatprep.subr.bf16.mxu0 0
      %836 = vmatpush1.bf16.msra.mxu0 0
      %837 = vmatprep.subr.bf16.mxu0 0
      %838 = vmatpush1.bf16.msra.mxu0 0
      %839 = vmatprep.subr.bf16.mxu0 0
      %840 = vmatpush1.bf16.msra.mxu0 0
      %841 = vmatprep.mubr.bf16.mxu0 0
      %842 = vmatmul.mubr.bf16.gmra.mrb[0].mxu0 %v770
      %v843 = vpop.f32.mrb[0].mxu0
      %v844 = vadd.f32 %v628, %v843
      %v845 = vpop.f32.mrb[0].mxu0
      %v846 = vpop.f32.mrb[0].mxu0
      %v847 = vadd.f32 %v631, %v846
      %v848 = vpop.f32.mrb[0].mxu0
      %849 = vmatprep.mubr.bf16.mxu0 0
      %850 = vmatmul.mubr.bf16.gmra.mrb[0].mxu0 %v772
      %v851 = vpop.f32.mrb[0].mxu0
      %v852 = vadd.f32 %v636, %v851
      %v853 = vpop.f32.mrb[0].mxu0
      %v854 = vpop.f32.mrb[0].mxu0
      %v855 = vadd.f32 %v639, %v854
      %v856 = vpop.f32.mrb[0].mxu0
      %857 = vmatprep.mubr.bf16.mxu0 0
      %858 = vmatmul.mubr.bf16.gmra.mrb[0].mxu0 %v774
      %v859 = vpop.f32.mrb[0].mxu0
      %v860 = vadd.f32 %v644, %v859
      %v861 = vpop.f32.mrb[0].mxu0
      %v862 = vpop.f32.mrb[0].mxu0
      %v863 = vadd.f32 %v647, %v862
      %v864 = vpop.f32.mrb[0].mxu0
      %865 = vmatprep.mubr.bf16.mxu0 0
      %866 = vmatmul.mubr.bf16.gmra.mrb[0].mxu0 %v776
      %v867 = vpop.f32.mrb[0].mxu0
      %v868 = vadd.f32 %v652, %v867
      %v869 = vpop.f32.mrb[0].mxu0
      %v870 = vpop.f32.mrb[0].mxu0
      %v871 = vadd.f32 %v655, %v870
      %v872 = vpop.f32.mrb[0].mxu0
      %873 = vmatprep.mubr.bf16.mxu0 0
      %874 = vmatmul.mubr.bf16.gmra.mrb[0].mxu0 %v778
      %v875 = vpop.f32.mrb[0].mxu0
      %v876 = vadd.f32 %v660, %v875
      %v877 = vpop.f32.mrb[0].mxu0
      %v878 = vpop.f32.mrb[0].mxu0
      %v879 = vadd.f32 %v663, %v878
      %v880 = vpop.f32.mrb[0].mxu0
      %881 = vmatprep.mubr.bf16.mxu0 0
      %882 = vmatmul.mubr.bf16.gmra.mrb[0].mxu0 %v780
      %v883 = vpop.f32.mrb[0].mxu0
      %v884 = vadd.f32 %v668, %v883
      %v885 = vpop.f32.mrb[0].mxu0
      %v886 = vpop.f32.mrb[0].mxu0
      %v887 = vadd.f32 %v671, %v886
      %v888 = vpop.f32.mrb[0].mxu0
      %889 = vmatprep.mubr.bf16.mxu0 0
      %890 = vmatmul.mubr.bf16.gmra.mrb[0].mxu0 %v782
      %v891 = vpop.f32.mrb[0].mxu0
      %v892 = vadd.f32 %v676, %v891
      %v893 = vpop.f32.mrb[0].mxu0
      %v894 = vpop.f32.mrb[0].mxu0
      %v895 = vadd.f32 %v679, %v894
      %v896 = vpop.f32.mrb[0].mxu0
      %897 = vmatprep.mubr.bf16.mxu0 0
      %898 = vmatmul.mubr.bf16.gmra.mrb[0].mxu0 %v784
      %v899 = vpop.f32.mrb[0].mxu0
      %v900 = vadd.f32 %v684, %v899
      %v901 = vpop.f32.mrb[0].mxu0
      %v902 = vpop.f32.mrb[0].mxu0
      %v903 = vadd.f32 %v687, %v902
      %v904 = vpop.f32.mrb[0].mxu0
      %905 = vmatprep.mubr.bf16.mxu0 0
      %906 = vmatmul.mubr.bf16.gmra.mrb[0].mxu0 %v786
      %v907 = vpop.f32.mrb[0].mxu0
      %v908 = vadd.f32 %v692, %v907
      %v909 = vpop.f32.mrb[0].mxu0
      %v910 = vpop.f32.mrb[0].mxu0
      %v911 = vadd.f32 %v695, %v910
      %v912 = vpop.f32.mrb[0].mxu0
      %913 = vmatprep.mubr.bf16.mxu0 0
      %914 = vmatmul.mubr.bf16.gmra.mrb[0].mxu0 %v788
      %v915 = vpop.f32.mrb[0].mxu0
      %v916 = vadd.f32 %v700, %v915
      %v917 = vpop.f32.mrb[0].mxu0
      %v918 = vpop.f32.mrb[0].mxu0
      %v919 = vadd.f32 %v703, %v918
      %v920 = vpop.f32.mrb[0].mxu0
      %921 = vmatprep.mubr.bf16.mxu0 0
      %922 = vmatmul.mubr.bf16.gmra.mrb[0].mxu0 %v790
      %v923 = vpop.f32.mrb[0].mxu0
      %v924 = vadd.f32 %v708, %v923
      %v925 = vpop.f32.mrb[0].mxu0
      %v926 = vpop.f32.mrb[0].mxu0
      %v927 = vadd.f32 %v711, %v926
      %v928 = vpop.f32.mrb[0].mxu0
      %929 = vmatprep.mubr.bf16.mxu0 0
      %930 = vmatmul.mubr.bf16.gmra.mrb[0].mxu0 %v792
      %v931 = vpop.f32.mrb[0].mxu0
      %v932 = vadd.f32 %v716, %v931
      %v933 = vpop.f32.mrb[0].mxu0
      %v934 = vpop.f32.mrb[0].mxu0
      %v935 = vadd.f32 %v719, %v934
      %v936 = vpop.f32.mrb[0].mxu0
      %937 = vmatprep.mubr.bf16.mxu0 0
      %938 = vmatmul.mubr.bf16.gmra.mrb[0].mxu0 %v794
      %v939 = vpop.f32.mrb[0].mxu0
      %v940 = vadd.f32 %v724, %v939
      %v941 = vpop.f32.mrb[0].mxu0
      %v942 = vpop.f32.mrb[0].mxu0
      %v943 = vadd.f32 %v727, %v942
      %v944 = vpop.f32.mrb[0].mxu0
      %945 = vmatprep.mubr.bf16.mxu0 0
      %946 = vmatmul.mubr.bf16.gmra.mrb[0].mxu0 %v796
      %v947 = vpop.f32.mrb[0].mxu0
      %v948 = vadd.f32 %v732, %v947
      %v949 = vpop.f32.mrb[0].mxu0
      %v950 = vpop.f32.mrb[0].mxu0
      %v951 = vadd.f32 %v735, %v950
      %v952 = vpop.f32.mrb[0].mxu0
      %953 = vmatprep.mubr.bf16.mxu0 0
      %954 = vmatmul.mubr.bf16.gmra.mrb[0].mxu0 %v798
      %v955 = vpop.f32.mrb[0].mxu0
      %v956 = vadd.f32 %v740, %v955
      %v957 = vpop.f32.mrb[0].mxu0
      %v958 = vpop.f32.mrb[0].mxu0
      %v959 = vadd.f32 %v743, %v958
      %v960 = vpop.f32.mrb[0].mxu0
      %961 = vmatprep.mubr.bf16.mxu0 0
      %962 = vmatmul.mubr.bf16.gmra.mrb[0].mxu0 %v800
      %v963 = vpop.f32.mrb[0].mxu0
      %v964 = vadd.f32 %v748, %v963
      %v965 = vpop.f32.mrb[0].mxu0
      %v966 = vpop.f32.mrb[0].mxu0
      %v967 = vadd.f32 %v751, %v966
      %v968 = vpop.f32.mrb[0].mxu0
      %969 = vmatprep.mubr.bf16.mxu0 0
      %970 = vmatmul.mubr.bf16.gmra.mrb[0].mxu0 %v802
      %v971 = vpop.f32.mrb[0].mxu0
      %v972 = vadd.f32 %v756, %v971
      %v973 = vpop.f32.mrb[0].mxu0
      %v974 = vpop.f32.mrb[0].mxu0
      %v975 = vadd.f32 %v759, %v974
      %v976 = vpop.f32.mrb[0].mxu0
      %977 = vmatprep.mubr.bf16.mxu0 0
      %978 = vmatmul.mubr.bf16.gmra.mrb[0].mxu0 %v804
      %v979 = vpop.f32.mrb[0].mxu0
      %v980 = vadd.f32 %v764, %v979
      %v981 = vpop.f32.mrb[0].mxu0
      %v982 = vpop.f32.mrb[0].mxu0
      %v983 = vadd.f32 %v767, %v982
      %v984 = vpop.f32.mrb[0].mxu0
      %985 = vdwg.mxu0
      %s986 = scalar_lea.vmem %s1, 4
      %v987 = vld [vmem:[%s986] sm:$0x3]
      %vm988 = vcmask 1046528
      %v989 = vrot.slane %v366, 1
      %v990 = vrot.slane %v367, 1
      %v991 = vsel %vm988, %v989, %v990
      %v992 = vrot.slane %v368, 1
      %v993 = vsel %vm988, %v990, %v992
      %v994 = vrot.slane %v369, 1
      %v995 = vsel %vm988, %v992, %v994
      %v996 = vrot.slane %v370, 1
      %v997 = vsel %vm988, %v994, %v996
      %v998 = vrot.slane %v371, 1
      %v999 = vsel %vm988, %v996, %v998
      %v1000 = vrot.slane %v372, 1
      %v1001 = vsel %vm988, %v998, %v1000
      %v1002 = vrot.slane %v373, 1
      %v1003 = vsel %vm988, %v1000, %v1002
      %v1004 = vrot.slane %v374, 1
      %v1005 = vsel %vm988, %v1002, %v1004
      %v1006 = vrot.slane %v375, 1
      %v1007 = vsel %vm988, %v1004, %v1006
      %v1008 = vrot.slane %v376, 1
      %v1009 = vsel %vm988, %v1006, %v1008
      %v1010 = vrot.slane %v377, 1
      %v1011 = vsel %vm988, %v1008, %v1010
      %v1012 = vrot.slane %v378, 1
      %v1013 = vsel %vm988, %v1010, %v1012
      %v1014 = vrot.slane %v379, 1
      %v1015 = vsel %vm988, %v1012, %v1014
      %v1016 = vrot.slane %v380, 1
      %v1017 = vsel %vm988, %v1014, %v1016
      %v1018 = vrot.slane %v381, 1
      %v1019 = vsel %vm988, %v1016, %v1018
      %v1020 = vrot.slane %v382, 1
      %v1021 = vsel %vm988, %v1018, %v1020
      %v1022 = vrot.slane %v383, 1
      %v1023 = vsel %vm988, %v1020, %v1022
      %v1024 = vrot.slane %v384, 1
      %v1025 = vsel %vm988, %v1022, %v1024
      %v1027 = vsel %vm534, %v991, 0
      %v1030 = vsel %vm534, %v993, 0
      %v1033 = vsel %vm534, %v995, 0
      %v1036 = vsel %vm534, %v997, 0
      %v1039 = vsel %vm534, %v999, 0
      %v1042 = vsel %vm534, %v1001, 0
      %v1045 = vsel %vm534, %v1003, 0
      %v1048 = vsel %vm534, %v1005, 0
      %v1051 = vsel %vm534, %v1007, 0
      %v1054 = vsel %vm534, %v1009, 0
      %v1057 = vsel %vm534, %v1011, 0
      %v1060 = vsel %vm534, %v1013, 0
      %v1063 = vsel %vm534, %v1015, 0
      %v1066 = vsel %vm534, %v1017, 0
      %v1069 = vsel %vm534, %v1019, 0
      %v1072 = vsel %vm534, %v1021, 0
      %v1075 = vsel %vm534, %v1023, 0
      %v1078 = vsel %vm534, %v1025, 0
      %v1081 = vsel %vm589, %v987, 0
      %1083 = vmatprep.subr.bf16.mxu0 0
      %1084 = vmatpush1.bf16.msra.mxu0 %v1081
      %1085 = vmatprep.subr.bf16.mxu0 0
      %1086 = vmatpush1.bf16.msra.mxu0 0
      %1087 = vmatprep.subr.bf16.mxu0 0
      %1088 = vmatpush1.bf16.msra.mxu0 0
      %1089 = vmatprep.subr.bf16.mxu0 0
      %1090 = vmatpush1.bf16.msra.mxu0 0
      %1091 = vmatprep.subr.bf16.mxu0 0
      %1092 = vmatpush1.bf16.msra.mxu0 0
      %1093 = vmatprep.subr.bf16.mxu0 0
      %1094 = vmatpush1.bf16.msra.mxu0 0
      %1095 = vmatprep.subr.bf16.mxu0 0
      %1096 = vmatpush1.bf16.msra.mxu0 0
      %1097 = vmatprep.subr.bf16.mxu0 0
      %1098 = vmatpush1.bf16.msra.mxu0 0
      %1099 = vmatprep.subr.bf16.mxu0 0
      %1100 = vmatpush1.bf16.msra.mxu0 0
      %1101 = vmatprep.subr.bf16.mxu0 0
      %1102 = vmatpush1.bf16.msra.mxu0 0
      %1103 = vmatprep.subr.bf16.mxu0 0
      %1104 = vmatpush1.bf16.msra.mxu0 0
      %1105 = vmatprep.subr.bf16.mxu0 0
      %1106 = vmatpush1.bf16.msra.mxu0 0
      %1107 = vmatprep.subr.bf16.mxu0 0
      %1108 = vmatpush1.bf16.msra.mxu0 0
      %1109 = vmatprep.subr.bf16.mxu0 0
      %1110 = vmatpush1.bf16.msra.mxu0 0
      %1111 = vmatprep.subr.bf16.mxu0 0
      %1112 = vmatpush1.bf16.msra.mxu0 0
      %1113 = vmatprep.subr.bf16.mxu0 0
      %1114 = vmatpush1.bf16.msra.mxu0 0
      %1115 = vmatprep.mubr.bf16.mxu0 0
      %1116 = vmatmul.mubr.bf16.gmra.mrb[0].mxu0 %v1027
      %v1117 = vpop.f32.mrb[0].mxu0
      %v1118 = vadd.f32 0.0, %v1117
      %v1119 = vpop.f32.mrb[0].mxu0
      %v1120 = vpop.f32.mrb[0].mxu0
      %v1121 = vadd.f32 0.0, %v1120
      %v1122 = vpop.f32.mrb[0].mxu0
      %1123 = vmatprep.mubr.bf16.mxu0 0
      %1124 = vmatmul.mubr.bf16.gmra.mrb[0].mxu0 %v1030
      %v1125 = vpop.f32.mrb[0].mxu0
      %v1126 = vadd.f32 0.0, %v1125
      %v1127 = vpop.f32.mrb[0].mxu0
      %v1128 = vpop.f32.mrb[0].mxu0
      %v1129 = vadd.f32 0.0, %v1128
      %v1130 = vpop.f32.mrb[0].mxu0
      %1131 = vmatprep.mubr.bf16.mxu0 0
      %1132 = vmatmul.mubr.bf16.gmra.mrb[0].mxu0 %v1033
      %v1133 = vpop.f32.mrb[0].mxu0
      %v1134 = vadd.f32 0.0, %v1133
      %v1135 = vpop.f32.mrb[0].mxu0
      %v1136 = vpop.f32.mrb[0].mxu0
      %v1137 = vadd.f32 0.0, %v1136
      %v1138 = vpop.f32.mrb[0].mxu0
      %1139 = vmatprep.mubr.bf16.mxu0 0
      %1140 = vmatmul.mubr.bf16.gmra.mrb[0].mxu0 %v1036
      %v1141 = vpop.f32.mrb[0].mxu0
      %v1142 = vadd.f32 0.0, %v1141
      %v1143 = vpop.f32.mrb[0].mxu0
      %v1144 = vpop.f32.mrb[0].mxu0
      %v1145 = vadd.f32 0.0, %v1144
      %v1146 = vpop.f32.mrb[0].mxu0
      %1147 = vmatprep.mubr.bf16.mxu0 0
      %1148 = vmatmul.mubr.bf16.gmra.mrb[0].mxu0 %v1039
      %v1149 = vpop.f32.mrb[0].mxu0
      %v1150 = vadd.f32 0.0, %v1149
      %v1151 = vpop.f32.mrb[0].mxu0
      %v1152 = vpop.f32.mrb[0].mxu0
      %v1153 = vadd.f32 0.0, %v1152
      %v1154 = vpop.f32.mrb[0].mxu0
      %1155 = vmatprep.mubr.bf16.mxu0 0
      %1156 = vmatmul.mubr.bf16.gmra.mrb[0].mxu0 %v1042
      %v1157 = vpop.f32.mrb[0].mxu0
      %v1158 = vadd.f32 0.0, %v1157
      %v1159 = vpop.f32.mrb[0].mxu0
      %v1160 = vpop.f32.mrb[0].mxu0
      %v1161 = vadd.f32 0.0, %v1160
      %v1162 = vpop.f32.mrb[0].mxu0
      %1163 = vmatprep.mubr.bf16.mxu0 0
      %1164 = vmatmul.mubr.bf16.gmra.mrb[0].mxu0 %v1045
      %v1165 = vpop.f32.mrb[0].mxu0
      %v1166 = vadd.f32 0.0, %v1165
      %v1167 = vpop.f32.mrb[0].mxu0
      %v1168 = vpop.f32.mrb[0].mxu0
      %v1169 = vadd.f32 0.0, %v1168
      %v1170 = vpop.f32.mrb[0].mxu0
      %1171 = vmatprep.mubr.bf16.mxu0 0
      %1172 = vmatmul.mubr.bf16.gmra.mrb[0].mxu0 %v1048
      %v1173 = vpop.f32.mrb[0].mxu0
      %v1174 = vadd.f32 0.0, %v1173
      %v1175 = vpop.f32.mrb[0].mxu0
      %v1176 = vpop.f32.mrb[0].mxu0
      %v1177 = vadd.f32 0.0, %v1176
      %v1178 = vpop.f32.mrb[0].mxu0
      %1179 = vmatprep.mubr.bf16.mxu0 0
      %1180 = vmatmul.mubr.bf16.gmra.mrb[0].mxu0 %v1051
      %v1181 = vpop.f32.mrb[0].mxu0
      %v1182 = vadd.f32 0.0, %v1181
      %v1183 = vpop.f32.mrb[0].mxu0
      %v1184 = vpop.f32.mrb[0].mxu0
      %v1185 = vadd.f32 0.0, %v1184
      %v1186 = vpop.f32.mrb[0].mxu0
      %1187 = vmatprep.mubr.bf16.mxu0 0
      %1188 = vmatmul.mubr.bf16.gmra.mrb[0].mxu0 %v1054
      %v1189 = vpop.f32.mrb[0].mxu0
      %v1190 = vadd.f32 0.0, %v1189
      %v1191 = vpop.f32.mrb[0].mxu0
      %v1192 = vpop.f32.mrb[0].mxu0
      %v1193 = vadd.f32 0.0, %v1192
      %v1194 = vpop.f32.mrb[0].mxu0
      %1195 = vmatprep.mubr.bf16.mxu0 0
      %1196 = vmatmul.mubr.bf16.gmra.mrb[0].mxu0 %v1057
      %v1197 = vpop.f32.mrb[0].mxu0
      %v1198 = vadd.f32 0.0, %v1197
      %v1199 = vpop.f32.mrb[0].mxu0
      %v1200 = vpop.f32.mrb[0].mxu0
      %v1201 = vadd.f32 0.0, %v1200
      %v1202 = vpop.f32.mrb[0].mxu0
      %1203 = vmatprep.mubr.bf16.mxu0 0
      %1204 = vmatmul.mubr.bf16.gmra.mrb[0].mxu0 %v1060
      %v1205 = vpop.f32.mrb[0].mxu0
      %v1206 = vadd.f32 0.0, %v1205
      %v1207 = vpop.f32.mrb[0].mxu0
      %v1208 = vpop.f32.mrb[0].mxu0
      %v1209 = vadd.f32 0.0, %v1208
      %v1210 = vpop.f32.mrb[0].mxu0
      %1211 = vmatprep.mubr.bf16.mxu0 0
      %1212 = vmatmul.mubr.bf16.gmra.mrb[0].mxu0 %v1063
      %v1213 = vpop.f32.mrb[0].mxu0
      %v1214 = vadd.f32 0.0, %v1213
      %v1215 = vpop.f32.mrb[0].mxu0
      %v1216 = vpop.f32.mrb[0].mxu0
      %v1217 = vadd.f32 0.0, %v1216
      %v1218 = vpop.f32.mrb[0].mxu0
      %1219 = vmatprep.mubr.bf16.mxu0 0
      %1220 = vmatmul.mubr.bf16.gmra.mrb[0].mxu0 %v1066
      %v1221 = vpop.f32.mrb[0].mxu0
      %v1222 = vadd.f32 0.0, %v1221
      %v1223 = vpop.f32.mrb[0].mxu0
      %v1224 = vpop.f32.mrb[0].mxu0
      %v1225 = vadd.f32 0.0, %v1224
      %v1226 = vpop.f32.mrb[0].mxu0
      %1227 = vmatprep.mubr.bf16.mxu0 0
      %1228 = vmatmul.mubr.bf16.gmra.mrb[0].mxu0 %v1069
      %v1229 = vpop.f32.mrb[0].mxu0
      %v1230 = vadd.f32 0.0, %v1229
      %v1231 = vpop.f32.mrb[0].mxu0
      %v1232 = vpop.f32.mrb[0].mxu0
      %v1233 = vadd.f32 0.0, %v1232
      %v1234 = vpop.f32.mrb[0].mxu0
      %1235 = vmatprep.mubr.bf16.mxu0 0
      %1236 = vmatmul.mubr.bf16.gmra.mrb[0].mxu0 %v1072
      %v1237 = vpop.f32.mrb[0].mxu0
      %v1238 = vadd.f32 0.0, %v1237
      %v1239 = vpop.f32.mrb[0].mxu0
      %v1240 = vpop.f32.mrb[0].mxu0
      %v1241 = vadd.f32 0.0, %v1240
      %v1242 = vpop.f32.mrb[0].mxu0
      %1243 = vmatprep.mubr.bf16.mxu0 0
      %1244 = vmatmul.mubr.bf16.gmra.mrb[0].mxu0 %v1075
      %v1245 = vpop.f32.mrb[0].mxu0
      %v1246 = vadd.f32 0.0, %v1245
      %v1247 = vpop.f32.mrb[0].mxu0
      %v1248 = vpop.f32.mrb[0].mxu0
      %v1249 = vadd.f32 0.0, %v1248
      %v1250 = vpop.f32.mrb[0].mxu0
      %1251 = vmatprep.mubr.bf16.mxu0 0
      %1252 = vmatmul.mubr.bf16.gmra.mrb[0].mxu0 %v1078
      %v1253 = vpop.f32.mrb[0].mxu0
      %v1254 = vadd.f32 0.0, %v1253
      %v1255 = vpop.f32.mrb[0].mxu0
      %v1256 = vpop.f32.mrb[0].mxu0
      %v1257 = vadd.f32 0.0, %v1256
      %v1258 = vpop.f32.mrb[0].mxu0
      %1259 = vdwg.mxu0
      %v1260 = vadd.f32 %v844, %v1118
      %v1261 = vadd.f32 %v847, %v1121
      %v1262 = vadd.f32 %v852, %v1126
      %v1263 = vadd.f32 %v855, %v1129
      %v1264 = vadd.f32 %v860, %v1134
      %v1265 = vadd.f32 %v863, %v1137
      %v1266 = vadd.f32 %v868, %v1142
      %v1267 = vadd.f32 %v871, %v1145
      %v1268 = vadd.f32 %v876, %v1150
      %v1269 = vadd.f32 %v879, %v1153
      %v1270 = vadd.f32 %v884, %v1158
      %v1271 = vadd.f32 %v887, %v1161
      %v1272 = vadd.f32 %v892, %v1166
      %v1273 = vadd.f32 %v895, %v1169
      %v1274 = vadd.f32 %v900, %v1174
      %v1275 = vadd.f32 %v903, %v1177
      %v1276 = vadd.f32 %v908, %v1182
      %v1277 = vadd.f32 %v911, %v1185
      %v1278 = vadd.f32 %v916, %v1190
      %v1279 = vadd.f32 %v919, %v1193
      %v1280 = vadd.f32 %v924, %v1198
      %v1281 = vadd.f32 %v927, %v1201
      %v1282 = vadd.f32 %v932, %v1206
      %v1283 = vadd.f32 %v935, %v1209
      %v1284 = vadd.f32 %v940, %v1214
      %v1285 = vadd.f32 %v943, %v1217
      %v1286 = vadd.f32 %v948, %v1222
      %v1287 = vadd.f32 %v951, %v1225
      %v1288 = vadd.f32 %v956, %v1230
      %v1289 = vadd.f32 %v959, %v1233
      %v1290 = vadd.f32 %v964, %v1238
      %v1291 = vadd.f32 %v967, %v1241
      %v1292 = vadd.f32 %v972, %v1246
      %v1293 = vadd.f32 %v975, %v1249
      %v1294 = vadd.f32 %v980, %v1254
      %v1295 = vadd.f32 %v983, %v1257
      %s1296 = scalar_lea.vmem %s1, 6
      %v1297 = vld [vmem:[%s1296] sm:$0x3]
      %v1300 = vunpack.c.l.b16 %v285
      %v1301 = vunpack.c.l.b16 %v286
      %v1302 = vpack.c.b16 %v1300, %v365
      %v1303 = vpack.c.b16 %v1301, %v1301
      %v1304 = vrot.slane %v1302, 1
      %v1305 = vsel %vm988, %v1022, %v1304
      %v1306 = vrot.slane %v1303, 1
      %v1307 = vsel %vm988, %v1304, %v1306
      %v1309 = vsel %vm534, %v1305, 0
      %v1312 = vsel %vm534, %v1307, 0
      %v1315 = vsel %vm589, %v1297, 0
      %1317 = vmatprep.subr.bf16.mxu0 0
      %1318 = vmatpush1.bf16.msra.mxu0 %v1315
      %1319 = vmatprep.subr.bf16.mxu0 0
      %1320 = vmatpush1.bf16.msra.mxu0 0
      %1321 = vmatprep.subr.bf16.mxu0 0
      %1322 = vmatpush1.bf16.msra.mxu0 0
      %1323 = vmatprep.subr.bf16.mxu0 0
      %1324 = vmatpush1.bf16.msra.mxu0 0
      %1325 = vmatprep.subr.bf16.mxu0 0
      %1326 = vmatpush1.bf16.msra.mxu0 0
      %1327 = vmatprep.subr.bf16.mxu0 0
      %1328 = vmatpush1.bf16.msra.mxu0 0
      %1329 = vmatprep.subr.bf16.mxu0 0
      %1330 = vmatpush1.bf16.msra.mxu0 0
      %1331 = vmatprep.subr.bf16.mxu0 0
      %1332 = vmatpush1.bf16.msra.mxu0 0
      %1333 = vmatprep.subr.bf16.mxu0 0
      %1334 = vmatpush1.bf16.msra.mxu0 0
      %1335 = vmatprep.subr.bf16.mxu0 0
      %1336 = vmatpush1.bf16.msra.mxu0 0
      %1337 = vmatprep.subr.bf16.mxu0 0
      %1338 = vmatpush1.bf16.msra.mxu0 0
      %1339 = vmatprep.subr.bf16.mxu0 0
      %1340 = vmatpush1.bf16.msra.mxu0 0
      %1341 = vmatprep.subr.bf16.mxu0 0
      %1342 = vmatpush1.bf16.msra.mxu0 0
      %1343 = vmatprep.subr.bf16.mxu0 0
      %1344 = vmatpush1.bf16.msra.mxu0 0
      %1345 = vmatprep.subr.bf16.mxu0 0
      %1346 = vmatpush1.bf16.msra.mxu0 0
      %1347 = vmatprep.subr.bf16.mxu0 0
      %1348 = vmatpush1.bf16.msra.mxu0 0
      %1349 = vmatprep.mubr.bf16.mxu0 0
      %1350 = vmatmul.mubr.bf16.gmra.mrb[0].mxu0 %v1030
      %v1351 = vpop.f32.mrb[0].mxu0
      %v1352 = vadd.f32 0.0, %v1351
      %v1353 = vpop.f32.mrb[0].mxu0
      %v1354 = vpop.f32.mrb[0].mxu0
      %v1355 = vadd.f32 0.0, %v1354
      %v1356 = vpop.f32.mrb[0].mxu0
      %1357 = vmatprep.mubr.bf16.mxu0 0
      %1358 = vmatmul.mubr.bf16.gmra.mrb[0].mxu0 %v1033
      %v1359 = vpop.f32.mrb[0].mxu0
      %v1360 = vadd.f32 0.0, %v1359
      %v1361 = vpop.f32.mrb[0].mxu0
      %v1362 = vpop.f32.mrb[0].mxu0
      %v1363 = vadd.f32 0.0, %v1362
      %v1364 = vpop.f32.mrb[0].mxu0
      %1365 = vmatprep.mubr.bf16.mxu0 0
      %1366 = vmatmul.mubr.bf16.gmra.mrb[0].mxu0 %v1036
      %v1367 = vpop.f32.mrb[0].mxu0
      %v1368 = vadd.f32 0.0, %v1367
      %v1369 = vpop.f32.mrb[0].mxu0
      %v1370 = vpop.f32.mrb[0].mxu0
      %v1371 = vadd.f32 0.0, %v1370
      %v1372 = vpop.f32.mrb[0].mxu0
      %1373 = vmatprep.mubr.bf16.mxu0 0
      %1374 = vmatmul.mubr.bf16.gmra.mrb[0].mxu0 %v1039
      %v1375 = vpop.f32.mrb[0].mxu0
      %v1376 = vadd.f32 0.0, %v1375
      %v1377 = vpop.f32.mrb[0].mxu0
      %v1378 = vpop.f32.mrb[0].mxu0
      %v1379 = vadd.f32 0.0, %v1378
      %v1380 = vpop.f32.mrb[0].mxu0
      %1381 = vmatprep.mubr.bf16.mxu0 0
      %1382 = vmatmul.mubr.bf16.gmra.mrb[0].mxu0 %v1042
      %v1383 = vpop.f32.mrb[0].mxu0
      %v1384 = vadd.f32 0.0, %v1383
      %v1385 = vpop.f32.mrb[0].mxu0
      %v1386 = vpop.f32.mrb[0].mxu0
      %v1387 = vadd.f32 0.0, %v1386
      %v1388 = vpop.f32.mrb[0].mxu0
      %1389 = vmatprep.mubr.bf16.mxu0 0
      %1390 = vmatmul.mubr.bf16.gmra.mrb[0].mxu0 %v1045
      %v1391 = vpop.f32.mrb[0].mxu0
      %v1392 = vadd.f32 0.0, %v1391
      %v1393 = vpop.f32.mrb[0].mxu0
      %v1394 = vpop.f32.mrb[0].mxu0
      %v1395 = vadd.f32 0.0, %v1394
      %v1396 = vpop.f32.mrb[0].mxu0
      %1397 = vmatprep.mubr.bf16.mxu0 0
      %1398 = vmatmul.mubr.bf16.gmra.mrb[0].mxu0 %v1048
      %v1399 = vpop.f32.mrb[0].mxu0
      %v1400 = vadd.f32 0.0, %v1399
      %v1401 = vpop.f32.mrb[0].mxu0
      %v1402 = vpop.f32.mrb[0].mxu0
      %v1403 = vadd.f32 0.0, %v1402
      %v1404 = vpop.f32.mrb[0].mxu0
      %1405 = vmatprep.mubr.bf16.mxu0 0
      %1406 = vmatmul.mubr.bf16.gmra.mrb[0].mxu0 %v1051
      %v1407 = vpop.f32.mrb[0].mxu0
      %v1408 = vadd.f32 0.0, %v1407
      %v1409 = vpop.f32.mrb[0].mxu0
      %v1410 = vpop.f32.mrb[0].mxu0
      %v1411 = vadd.f32 0.0, %v1410
      %v1412 = vpop.f32.mrb[0].mxu0
      %1413 = vmatprep.mubr.bf16.mxu0 0
      %1414 = vmatmul.mubr.bf16.gmra.mrb[0].mxu0 %v1054
      %v1415 = vpop.f32.mrb[0].mxu0
      %v1416 = vadd.f32 0.0, %v1415
      %v1417 = vpop.f32.mrb[0].mxu0
      %v1418 = vpop.f32.mrb[0].mxu0
      %v1419 = vadd.f32 0.0, %v1418
      %v1420 = vpop.f32.mrb[0].mxu0
      %1421 = vmatprep.mubr.bf16.mxu0 0
      %1422 = vmatmul.mubr.bf16.gmra.mrb[0].mxu0 %v1057
      %v1423 = vpop.f32.mrb[0].mxu0
      %v1424 = vadd.f32 0.0, %v1423
      %v1425 = vpop.f32.mrb[0].mxu0
      %v1426 = vpop.f32.mrb[0].mxu0
      %v1427 = vadd.f32 0.0, %v1426
      %v1428 = vpop.f32.mrb[0].mxu0
      %1429 = vmatprep.mubr.bf16.mxu0 0
      %1430 = vmatmul.mubr.bf16.gmra.mrb[0].mxu0 %v1060
      %v1431 = vpop.f32.mrb[0].mxu0
      %v1432 = vadd.f32 0.0, %v1431
      %v1433 = vpop.f32.mrb[0].mxu0
      %v1434 = vpop.f32.mrb[0].mxu0
      %v1435 = vadd.f32 0.0, %v1434
      %v1436 = vpop.f32.mrb[0].mxu0
      %1437 = vmatprep.mubr.bf16.mxu0 0
      %1438 = vmatmul.mubr.bf16.gmra.mrb[0].mxu0 %v1063
      %v1439 = vpop.f32.mrb[0].mxu0
      %v1440 = vadd.f32 0.0, %v1439
      %v1441 = vpop.f32.mrb[0].mxu0
      %v1442 = vpop.f32.mrb[0].mxu0
      %v1443 = vadd.f32 0.0, %v1442
      %v1444 = vpop.f32.mrb[0].mxu0
      %1445 = vmatprep.mubr.bf16.mxu0 0
      %1446 = vmatmul.mubr.bf16.gmra.mrb[0].mxu0 %v1066
      %v1447 = vpop.f32.mrb[0].mxu0
      %v1448 = vadd.f32 0.0, %v1447
      %v1449 = vpop.f32.mrb[0].mxu0
      %v1450 = vpop.f32.mrb[0].mxu0
      %v1451 = vadd.f32 0.0, %v1450
      %v1452 = vpop.f32.mrb[0].mxu0
      %1453 = vmatprep.mubr.bf16.mxu0 0
      %1454 = vmatmul.mubr.bf16.gmra.mrb[0].mxu0 %v1069
      %v1455 = vpop.f32.mrb[0].mxu0
      %v1456 = vadd.f32 0.0, %v1455
      %v1457 = vpop.f32.mrb[0].mxu0
      %v1458 = vpop.f32.mrb[0].mxu0
      %v1459 = vadd.f32 0.0, %v1458
      %v1460 = vpop.f32.mrb[0].mxu0
      %1461 = vmatprep.mubr.bf16.mxu0 0
      %1462 = vmatmul.mubr.bf16.gmra.mrb[0].mxu0 %v1072
      %v1463 = vpop.f32.mrb[0].mxu0
      %v1464 = vadd.f32 0.0, %v1463
      %v1465 = vpop.f32.mrb[0].mxu0
      %v1466 = vpop.f32.mrb[0].mxu0
      %v1467 = vadd.f32 0.0, %v1466
      %v1468 = vpop.f32.mrb[0].mxu0
      %1469 = vmatprep.mubr.bf16.mxu0 0
      %1470 = vmatmul.mubr.bf16.gmra.mrb[0].mxu0 %v1075
      %v1471 = vpop.f32.mrb[0].mxu0
      %v1472 = vadd.f32 0.0, %v1471
      %v1473 = vpop.f32.mrb[0].mxu0
      %v1474 = vpop.f32.mrb[0].mxu0
      %v1475 = vadd.f32 0.0, %v1474
      %v1476 = vpop.f32.mrb[0].mxu0
      %1477 = vmatprep.mubr.bf16.mxu0 0
      %1478 = vmatmul.mubr.bf16.gmra.mrb[0].mxu0 %v1309
      %v1479 = vpop.f32.mrb[0].mxu0
      %v1480 = vadd.f32 0.0, %v1479
      %v1481 = vpop.f32.mrb[0].mxu0
      %v1482 = vpop.f32.mrb[0].mxu0
      %v1483 = vadd.f32 0.0, %v1482
      %v1484 = vpop.f32.mrb[0].mxu0
      %1485 = vmatprep.mubr.bf16.mxu0 0
      %1486 = vmatmul.mubr.bf16.gmra.mrb[0].mxu0 %v1312
      %v1487 = vpop.f32.mrb[0].mxu0
      %v1488 = vadd.f32 0.0, %v1487
      %v1489 = vpop.f32.mrb[0].mxu0
      %v1490 = vpop.f32.mrb[0].mxu0
      %v1491 = vadd.f32 0.0, %v1490
      %v1492 = vpop.f32.mrb[0].mxu0
      %1493 = vdwg.mxu0
      %v1494 = vadd.f32 %v1260, %v1352
      %v1495 = vadd.f32 %v1261, %v1355
      %v1496 = vadd.f32 %v1262, %v1360
      %v1497 = vadd.f32 %v1263, %v1363
      %v1498 = vadd.f32 %v1264, %v1368
      %v1499 = vadd.f32 %v1265, %v1371
      %v1500 = vadd.f32 %v1266, %v1376
      %v1501 = vadd.f32 %v1267, %v1379
      %v1502 = vadd.f32 %v1268, %v1384
      %v1503 = vadd.f32 %v1269, %v1387
      %v1504 = vadd.f32 %v1270, %v1392
      %v1505 = vadd.f32 %v1271, %v1395
      %v1506 = vadd.f32 %v1272, %v1400
      %v1507 = vadd.f32 %v1273, %v1403
      %v1508 = vadd.f32 %v1274, %v1408
      %v1509 = vadd.f32 %v1275, %v1411
      %v1510 = vadd.f32 %v1276, %v1416
      %v1511 = vadd.f32 %v1277, %v1419
      %v1512 = vadd.f32 %v1278, %v1424
      %v1513 = vadd.f32 %v1279, %v1427
      %v1514 = vadd.f32 %v1280, %v1432
      %v1515 = vadd.f32 %v1281, %v1435
      %v1516 = vadd.f32 %v1282, %v1440
      %v1517 = vadd.f32 %v1283, %v1443
      %v1518 = vadd.f32 %v1284, %v1448
      %v1519 = vadd.f32 %v1285, %v1451
      %v1520 = vadd.f32 %v1286, %v1456
      %v1521 = vadd.f32 %v1287, %v1459
      %v1522 = vadd.f32 %v1288, %v1464
      %v1523 = vadd.f32 %v1289, %v1467
      %v1524 = vadd.f32 %v1290, %v1472
      %v1525 = vadd.f32 %v1291, %v1475
      %v1526 = vadd.f32 %v1292, %v1480
      %v1527 = vadd.f32 %v1293, %v1483
      %v1528 = vadd.f32 %v1294, %v1488
      %v1529 = vadd.f32 %v1295, %v1491
      %s1530 = scalar_lea.vmem %s1, 8
      %v1531 = vld [vmem:[%s1530] sm:$0x3]
      %vm1532 = vsmask.f32 6400
      %v1533 = vrot.slane %v398, 1
      %v1534 = vrot.slane %v394, 2
      %v1535 = vor.u32 %v1533, %v1534
      %v1536 = vrot.slane %v406, 1
      %v1537 = vrot.slane %v402, 2
      %v1538 = vor.u32 %v1536, %v1537
      %v1539 = vsel %vm1532, %v1535, %v1538
      %v1540 = vrot.slane %v414, 1
      %v1541 = vrot.slane %v410, 2
      %v1542 = vor.u32 %v1540, %v1541
      %v1543 = vsel %vm1532, %v1538, %v1542
      %v1544 = vrot.slane %v422, 1
      %v1545 = vrot.slane %v418, 2
      %v1546 = vor.u32 %v1544, %v1545
      %v1547 = vsel %vm1532, %v1542, %v1546
      %v1548 = vrot.slane %v430, 1
      %v1549 = vrot.slane %v426, 2
      %v1550 = vor.u32 %v1548, %v1549
      %v1551 = vsel %vm1532, %v1546, %v1550
      %v1552 = vrot.slane %v438, 1
      %v1553 = vrot.slane %v434, 2
      %v1554 = vor.u32 %v1552, %v1553
      %v1555 = vsel %vm1532, %v1550, %v1554
      %v1556 = vrot.slane %v446, 1
      %v1557 = vrot.slane %v442, 2
      %v1558 = vor.u32 %v1556, %v1557
      %v1559 = vsel %vm1532, %v1554, %v1558
      %v1560 = vrot.slane %v454, 1
      %v1561 = vrot.slane %v450, 2
      %v1562 = vor.u32 %v1560, %v1561
      %v1563 = vsel %vm1532, %v1558, %v1562
      %v1564 = vrot.slane %v462, 1
      %v1565 = vrot.slane %v458, 2
      %v1566 = vor.u32 %v1564, %v1565
      %v1567 = vsel %vm1532, %v1562, %v1566
      %v1568 = vrot.slane %v470, 1
      %v1569 = vrot.slane %v466, 2
      %v1570 = vor.u32 %v1568, %v1569
      %v1571 = vsel %vm1532, %v1566, %v1570
      %v1572 = vrot.slane %v478, 1
      %v1573 = vrot.slane %v474, 2
      %v1574 = vor.u32 %v1572, %v1573
      %v1575 = vsel %vm1532, %v1570, %v1574
      %v1576 = vrot.slane %v486, 1
      %v1577 = vrot.slane %v482, 2
      %v1578 = vor.u32 %v1576, %v1577
      %v1579 = vsel %vm1532, %v1574, %v1578
      %v1580 = vrot.slane %v494, 1
      %v1581 = vrot.slane %v490, 2
      %v1582 = vor.u32 %v1580, %v1581
      %v1583 = vsel %vm1532, %v1578, %v1582
      %v1584 = vrot.slane %v502, 1
      %v1585 = vrot.slane %v498, 2
      %v1586 = vor.u32 %v1584, %v1585
      %v1587 = vsel %vm1532, %v1582, %v1586
      %v1588 = vrot.slane %v510, 1
      %v1589 = vrot.slane %v506, 2
      %v1590 = vor.u32 %v1588, %v1589
      %v1591 = vsel %vm1532, %v1586, %v1590
      %v1592 = vrot.slane %v518, 1
      %v1593 = vrot.slane %v514, 2
      %v1594 = vor.u32 %v1592, %v1593
      %v1595 = vsel %vm1532, %v1590, %v1594
      %v1596 = vrot.slane %v526, 1
      %v1597 = vrot.slane %v522, 2
      %v1598 = vor.u32 %v1596, %v1597
      %v1599 = vsel %vm1532, %v1594, %v1598
      %v1601 = vshrl.u32 %v1302, 16
      %v1603 = vrot.slane %v1601, 1
      %v1604 = vshll.u32 %v1302, 16
      %v1606 = vrot.slane %v1604, 2
      %v1607 = vor.u32 %v1603, %v1606
      %v1608 = vsel %vm1532, %v1598, %v1607
      %v1610 = vshrl.u32 %v1303, 16
      %v1612 = vrot.slane %v1610, 1
      %v1613 = vshll.u32 %v1303, 16
      %v1615 = vrot.slane %v1613, 2
      %v1616 = vor.u32 %v1612, %v1615
      %v1617 = vsel %vm1532, %v1607, %v1616
      %v1619 = vsel %vm534, %v1539, 0
      %v1622 = vsel %vm534, %v1543, 0
      %v1625 = vsel %vm534, %v1547, 0
      %v1628 = vsel %vm534, %v1551, 0
      %v1631 = vsel %vm534, %v1555, 0
      %v1634 = vsel %vm534, %v1559, 0
      %v1637 = vsel %vm534, %v1563, 0
      %v1640 = vsel %vm534, %v1567, 0
      %v1643 = vsel %vm534, %v1571, 0
      %v1646 = vsel %vm534, %v1575, 0
      %v1649 = vsel %vm534, %v1579, 0
      %v1652 = vsel %vm534, %v1583, 0
      %v1655 = vsel %vm534, %v1587, 0
      %v1658 = vsel %vm534, %v1591, 0
      %v1661 = vsel %vm534, %v1595, 0
      %v1664 = vsel %vm534, %v1599, 0
      %v1667 = vsel %vm534, %v1608, 0
      %v1670 = vsel %vm534, %v1617, 0
      %v1673 = vsel %vm589, %v1531, 0
      %1675 = vmatprep.subr.bf16.mxu0 0
      %1676 = vmatpush1.bf16.msra.mxu0 %v1673
      %1677 = vmatprep.subr.bf16.mxu0 0
      %1678 = vmatpush1.bf16.msra.mxu0 0
      %1679 = vmatprep.subr.bf16.mxu0 0
      %1680 = vmatpush1.bf16.msra.mxu0 0
      %1681 = vmatprep.subr.bf16.mxu0 0
      %1682 = vmatpush1.bf16.msra.mxu0 0
      %1683 = vmatprep.subr.bf16.mxu0 0
      %1684 = vmatpush1.bf16.msra.mxu0 0
      %1685 = vmatprep.subr.bf16.mxu0 0
      %1686 = vmatpush1.bf16.msra.mxu0 0
      %1687 = vmatprep.subr.bf16.mxu0 0
      %1688 = vmatpush1.bf16.msra.mxu0 0
      %1689 = vmatprep.subr.bf16.mxu0 0
      %1690 = vmatpush1.bf16.msra.mxu0 0
      %1691 = vmatprep.subr.bf16.mxu0 0
      %1692 = vmatpush1.bf16.msra.mxu0 0
      %1693 = vmatprep.subr.bf16.mxu0 0
      %1694 = vmatpush1.bf16.msra.mxu0 0
      %1695 = vmatprep.subr.bf16.mxu0 0
      %1696 = vmatpush1.bf16.msra.mxu0 0
      %1697 = vmatprep.subr.bf16.mxu0 0
      %1698 = vmatpush1.bf16.msra.mxu0 0
      %1699 = vmatprep.subr.bf16.mxu0 0
      %1700 = vmatpush1.bf16.msra.mxu0 0
      %1701 = vmatprep.subr.bf16.mxu0 0
      %1702 = vmatpush1.bf16.msra.mxu0 0
      %1703 = vmatprep.subr.bf16.mxu0 0
      %1704 = vmatpush1.bf16.msra.mxu0 0
      %1705 = vmatprep.subr.bf16.mxu0 0
      %1706 = vmatpush1.bf16.msra.mxu0 0
      %1707 = vmatprep.mubr.bf16.mxu0 0
      %1708 = vmatmul.mubr.bf16.gmra.mrb[0].mxu0 %v1619
      %v1709 = vpop.f32.mrb[0].mxu0
      %v1710 = vadd.f32 0.0, %v1709
      %v1711 = vpop.f32.mrb[0].mxu0
      %v1712 = vpop.f32.mrb[0].mxu0
      %v1713 = vadd.f32 0.0, %v1712
      %v1714 = vpop.f32.mrb[0].mxu0
      %1715 = vmatprep.mubr.bf16.mxu0 0
      %1716 = vmatmul.mubr.bf16.gmra.mrb[0].mxu0 %v1622
      %v1717 = vpop.f32.mrb[0].mxu0
      %v1718 = vadd.f32 0.0, %v1717
      %v1719 = vpop.f32.mrb[0].mxu0
      %v1720 = vpop.f32.mrb[0].mxu0
      %v1721 = vadd.f32 0.0, %v1720
      %v1722 = vpop.f32.mrb[0].mxu0
      %1723 = vmatprep.mubr.bf16.mxu0 0
      %1724 = vmatmul.mubr.bf16.gmra.mrb[0].mxu0 %v1625
      %v1725 = vpop.f32.mrb[0].mxu0
      %v1726 = vadd.f32 0.0, %v1725
      %v1727 = vpop.f32.mrb[0].mxu0
      %v1728 = vpop.f32.mrb[0].mxu0
      %v1729 = vadd.f32 0.0, %v1728
      %v1730 = vpop.f32.mrb[0].mxu0
      %1731 = vmatprep.mubr.bf16.mxu0 0
      %1732 = vmatmul.mubr.bf16.gmra.mrb[0].mxu0 %v1628
      %v1733 = vpop.f32.mrb[0].mxu0
      %v1734 = vadd.f32 0.0, %v1733
      %v1735 = vpop.f32.mrb[0].mxu0
      %v1736 = vpop.f32.mrb[0].mxu0
      %v1737 = vadd.f32 0.0, %v1736
      %v1738 = vpop.f32.mrb[0].mxu0
      %1739 = vmatprep.mubr.bf16.mxu0 0
      %1740 = vmatmul.mubr.bf16.gmra.mrb[0].mxu0 %v1631
      %v1741 = vpop.f32.mrb[0].mxu0
      %v1742 = vadd.f32 0.0, %v1741
      %v1743 = vpop.f32.mrb[0].mxu0
      %v1744 = vpop.f32.mrb[0].mxu0
      %v1745 = vadd.f32 0.0, %v1744
      %v1746 = vpop.f32.mrb[0].mxu0
      %1747 = vmatprep.mubr.bf16.mxu0 0
      %1748 = vmatmul.mubr.bf16.gmra.mrb[0].mxu0 %v1634
      %v1749 = vpop.f32.mrb[0].mxu0
      %v1750 = vadd.f32 0.0, %v1749
      %v1751 = vpop.f32.mrb[0].mxu0
      %v1752 = vpop.f32.mrb[0].mxu0
      %v1753 = vadd.f32 0.0, %v1752
      %v1754 = vpop.f32.mrb[0].mxu0
      %1755 = vmatprep.mubr.bf16.mxu0 0
      %1756 = vmatmul.mubr.bf16.gmra.mrb[0].mxu0 %v1637
      %v1757 = vpop.f32.mrb[0].mxu0
      %v1758 = vadd.f32 0.0, %v1757
      %v1759 = vpop.f32.mrb[0].mxu0
      %v1760 = vpop.f32.mrb[0].mxu0
      %v1761 = vadd.f32 0.0, %v1760
      %v1762 = vpop.f32.mrb[0].mxu0
      %1763 = vmatprep.mubr.bf16.mxu0 0
      %1764 = vmatmul.mubr.bf16.gmra.mrb[0].mxu0 %v1640
      %v1765 = vpop.f32.mrb[0].mxu0
      %v1766 = vadd.f32 0.0, %v1765
      %v1767 = vpop.f32.mrb[0].mxu0
      %v1768 = vpop.f32.mrb[0].mxu0
      %v1769 = vadd.f32 0.0, %v1768
      %v1770 = vpop.f32.mrb[0].mxu0
      %1771 = vmatprep.mubr.bf16.mxu0 0
      %1772 = vmatmul.mubr.bf16.gmra.mrb[0].mxu0 %v1643
      %v1773 = vpop.f32.mrb[0].mxu0
      %v1774 = vadd.f32 0.0, %v1773
      %v1775 = vpop.f32.mrb[0].mxu0
      %v1776 = vpop.f32.mrb[0].mxu0
      %v1777 = vadd.f32 0.0, %v1776
      %v1778 = vpop.f32.mrb[0].mxu0
      %1779 = vmatprep.mubr.bf16.mxu0 0
      %1780 = vmatmul.mubr.bf16.gmra.mrb[0].mxu0 %v1646
      %v1781 = vpop.f32.mrb[0].mxu0
      %v1782 = vadd.f32 0.0, %v1781
      %v1783 = vpop.f32.mrb[0].mxu0
      %v1784 = vpop.f32.mrb[0].mxu0
      %v1785 = vadd.f32 0.0, %v1784
      %v1786 = vpop.f32.mrb[0].mxu0
      %1787 = vmatprep.mubr.bf16.mxu0 0
      %1788 = vmatmul.mubr.bf16.gmra.mrb[0].mxu0 %v1649
      %v1789 = vpop.f32.mrb[0].mxu0
      %v1790 = vadd.f32 0.0, %v1789
      %v1791 = vpop.f32.mrb[0].mxu0
      %v1792 = vpop.f32.mrb[0].mxu0
      %v1793 = vadd.f32 0.0, %v1792
      %v1794 = vpop.f32.mrb[0].mxu0
      %1795 = vmatprep.mubr.bf16.mxu0 0
      %1796 = vmatmul.mubr.bf16.gmra.mrb[0].mxu0 %v1652
      %v1797 = vpop.f32.mrb[0].mxu0
      %v1798 = vadd.f32 0.0, %v1797
      %v1799 = vpop.f32.mrb[0].mxu0
      %v1800 = vpop.f32.mrb[0].mxu0
      %v1801 = vadd.f32 0.0, %v1800
      %v1802 = vpop.f32.mrb[0].mxu0
      %1803 = vmatprep.mubr.bf16.mxu0 0
      %1804 = vmatmul.mubr.bf16.gmra.mrb[0].mxu0 %v1655
      %v1805 = vpop.f32.mrb[0].mxu0
      %v1806 = vadd.f32 0.0, %v1805
      %v1807 = vpop.f32.mrb[0].mxu0
      %v1808 = vpop.f32.mrb[0].mxu0
      %v1809 = vadd.f32 0.0, %v1808
      %v1810 = vpop.f32.mrb[0].mxu0
      %1811 = vmatprep.mubr.bf16.mxu0 0
      %1812 = vmatmul.mubr.bf16.gmra.mrb[0].mxu0 %v1658
      %v1813 = vpop.f32.mrb[0].mxu0
      %v1814 = vadd.f32 0.0, %v1813
      %v1815 = vpop.f32.mrb[0].mxu0
      %v1816 = vpop.f32.mrb[0].mxu0
      %v1817 = vadd.f32 0.0, %v1816
      %v1818 = vpop.f32.mrb[0].mxu0
      %1819 = vmatprep.mubr.bf16.mxu0 0
      %1820 = vmatmul.mubr.bf16.gmra.mrb[0].mxu0 %v1661
      %v1821 = vpop.f32.mrb[0].mxu0
      %v1822 = vadd.f32 0.0, %v1821
      %v1823 = vpop.f32.mrb[0].mxu0
      %v1824 = vpop.f32.mrb[0].mxu0
      %v1825 = vadd.f32 0.0, %v1824
      %v1826 = vpop.f32.mrb[0].mxu0
      %1827 = vmatprep.mubr.bf16.mxu0 0
      %1828 = vmatmul.mubr.bf16.gmra.mrb[0].mxu0 %v1664
      %v1829 = vpop.f32.mrb[0].mxu0
      %v1830 = vadd.f32 0.0, %v1829
      %v1831 = vpop.f32.mrb[0].mxu0
      %v1832 = vpop.f32.mrb[0].mxu0
      %v1833 = vadd.f32 0.0, %v1832
      %v1834 = vpop.f32.mrb[0].mxu0
      %1835 = vmatprep.mubr.bf16.mxu0 0
      %1836 = vmatmul.mubr.bf16.gmra.mrb[0].mxu0 %v1667
      %v1837 = vpop.f32.mrb[0].mxu0
      %v1838 = vadd.f32 0.0, %v1837
      %v1839 = vpop.f32.mrb[0].mxu0
      %v1840 = vpop.f32.mrb[0].mxu0
      %v1841 = vadd.f32 0.0, %v1840
      %v1842 = vpop.f32.mrb[0].mxu0
      %1843 = vmatprep.mubr.bf16.mxu0 0
      %1844 = vmatmul.mubr.bf16.gmra.mrb[0].mxu0 %v1670
      %v1845 = vpop.f32.mrb[0].mxu0
      %v1846 = vadd.f32 0.0, %v1845
      %v1847 = vpop.f32.mrb[0].mxu0
      %v1848 = vpop.f32.mrb[0].mxu0
      %v1849 = vadd.f32 0.0, %v1848
      %v1850 = vpop.f32.mrb[0].mxu0
      %1851 = vdwg.mxu0
      %v1852 = vadd.f32 %v1494, %v1710
      %v1853 = vadd.f32 %v1495, %v1713
      %v1854 = vadd.f32 %v1496, %v1718
      %v1855 = vadd.f32 %v1497, %v1721
      %v1856 = vadd.f32 %v1498, %v1726
      %v1857 = vadd.f32 %v1499, %v1729
      %v1858 = vadd.f32 %v1500, %v1734
      %v1859 = vadd.f32 %v1501, %v1737
      %v1860 = vadd.f32 %v1502, %v1742
      %v1861 = vadd.f32 %v1503, %v1745
      %v1862 = vadd.f32 %v1504, %v1750
      %v1863 = vadd.f32 %v1505, %v1753
      %v1864 = vadd.f32 %v1506, %v1758
      %v1865 = vadd.f32 %v1507, %v1761
      %v1866 = vadd.f32 %v1508, %v1766
      %v1867 = vadd.f32 %v1509, %v1769
      %v1868 = vadd.f32 %v1510, %v1774
      %v1869 = vadd.f32 %v1511, %v1777
      %v1870 = vadd.f32 %v1512, %v1782
      %v1871 = vadd.f32 %v1513, %v1785
      %v1872 = vadd.f32 %v1514, %v1790
      %v1873 = vadd.f32 %v1515, %v1793
      %v1874 = vadd.f32 %v1516, %v1798
      %v1875 = vadd.f32 %v1517, %v1801
      %v1876 = vadd.f32 %v1518, %v1806
      %v1877 = vadd.f32 %v1519, %v1809
      %v1878 = vadd.f32 %v1520, %v1814
      %v1879 = vadd.f32 %v1521, %v1817
      %v1880 = vadd.f32 %v1522, %v1822
      %v1881 = vadd.f32 %v1523, %v1825
      %v1882 = vadd.f32 %v1524, %v1830
      %v1883 = vadd.f32 %v1525, %v1833
      %v1884 = vadd.f32 %v1526, %v1838
      %v1885 = vadd.f32 %v1527, %v1841
      %v1886 = vadd.f32 %v1528, %v1846
      %v1887 = vadd.f32 %v1529, %v1849
      %s1888 = scalar_lea.vmem %s1, 10
      %v1889 = vld [vmem:[%s1888] sm:$0x3]
      %vm1890 = vcmask 1045504
      %v1891 = vrot.slane %v367, 2
      %v1892 = vrot.slane %v368, 2
      %v1893 = vsel %vm1890, %v1891, %v1892
      %v1894 = vrot.slane %v369, 2
      %v1895 = vsel %vm1890, %v1892, %v1894
      %v1896 = vrot.slane %v370, 2
      %v1897 = vsel %vm1890, %v1894, %v1896
      %v1898 = vrot.slane %v371, 2
      %v1899 = vsel %vm1890, %v1896, %v1898
      %v1900 = vrot.slane %v372, 2
      %v1901 = vsel %vm1890, %v1898, %v1900
      %v1902 = vrot.slane %v373, 2
      %v1903 = vsel %vm1890, %v1900, %v1902
      %v1904 = vrot.slane %v374, 2
      %v1905 = vsel %vm1890, %v1902, %v1904
      %v1906 = vrot.slane %v375, 2
      %v1907 = vsel %vm1890, %v1904, %v1906
      %v1908 = vrot.slane %v376, 2
      %v1909 = vsel %vm1890, %v1906, %v1908
      %v1910 = vrot.slane %v377, 2
      %v1911 = vsel %vm1890, %v1908, %v1910
      %v1912 = vrot.slane %v378, 2
      %v1913 = vsel %vm1890, %v1910, %v1912
      %v1914 = vrot.slane %v379, 2
      %v1915 = vsel %vm1890, %v1912, %v1914
      %v1916 = vrot.slane %v380, 2
      %v1917 = vsel %vm1890, %v1914, %v1916
      %v1918 = vrot.slane %v381, 2
      %v1919 = vsel %vm1890, %v1916, %v1918
      %v1920 = vrot.slane %v382, 2
      %v1921 = vsel %vm1890, %v1918, %v1920
      %v1922 = vrot.slane %v383, 2
      %v1923 = vsel %vm1890, %v1920, %v1922
      %v1924 = vrot.slane %v1302, 2
      %v1925 = vsel %vm1890, %v1922, %v1924
      %v1926 = vrot.slane %v1303, 2
      %v1927 = vsel %vm1890, %v1924, %v1926
      %v1929 = vsel %vm534, %v1893, 0
      %v1932 = vsel %vm534, %v1895, 0
      %v1935 = vsel %vm534, %v1897, 0
      %v1938 = vsel %vm534, %v1899, 0
      %v1941 = vsel %vm534, %v1901, 0
      %v1944 = vsel %vm534, %v1903, 0
      %v1947 = vsel %vm534, %v1905, 0
      %v1950 = vsel %vm534, %v1907, 0
      %v1953 = vsel %vm534, %v1909, 0
      %v1956 = vsel %vm534, %v1911, 0
      %v1959 = vsel %vm534, %v1913, 0
      %v1962 = vsel %vm534, %v1915, 0
      %v1965 = vsel %vm534, %v1917, 0
      %v1968 = vsel %vm534, %v1919, 0
      %v1971 = vsel %vm534, %v1921, 0
      %v1974 = vsel %vm534, %v1923, 0
      %v1977 = vsel %vm534, %v1925, 0
      %v1980 = vsel %vm534, %v1927, 0
      %v1983 = vsel %vm589, %v1889, 0
      %1985 = vmatprep.subr.bf16.mxu0 0
      %1986 = vmatpush1.bf16.msra.mxu0 %v1983
      %1987 = vmatprep.subr.bf16.mxu0 0
      %1988 = vmatpush1.bf16.msra.mxu0 0
      %1989 = vmatprep.subr.bf16.mxu0 0
      %1990 = vmatpush1.bf16.msra.mxu0 0
      %1991 = vmatprep.subr.bf16.mxu0 0
      %1992 = vmatpush1.bf16.msra.mxu0 0
      %1993 = vmatprep.subr.bf16.mxu0 0
      %1994 = vmatpush1.bf16.msra.mxu0 0
      %1995 = vmatprep.subr.bf16.mxu0 0
      %1996 = vmatpush1.bf16.msra.mxu0 0
      %1997 = vmatprep.subr.bf16.mxu0 0
      %1998 = vmatpush1.bf16.msra.mxu0 0
      %1999 = vmatprep.subr.bf16.mxu0 0
      %2000 = vmatpush1.bf16.msra.mxu0 0
      %2001 = vmatprep.subr.bf16.mxu0 0
      %2002 = vmatpush1.bf16.msra.mxu0 0
      %2003 = vmatprep.subr.bf16.mxu0 0
      %2004 = vmatpush1.bf16.msra.mxu0 0
      %2005 = vmatprep.subr.bf16.mxu0 0
      %2006 = vmatpush1.bf16.msra.mxu0 0
      %2007 = vmatprep.subr.bf16.mxu0 0
      %2008 = vmatpush1.bf16.msra.mxu0 0
      %2009 = vmatprep.subr.bf16.mxu0 0
      %2010 = vmatpush1.bf16.msra.mxu0 0
      %2011 = vmatprep.subr.bf16.mxu0 0
      %2012 = vmatpush1.bf16.msra.mxu0 0
      %2013 = vmatprep.subr.bf16.mxu0 0
      %2014 = vmatpush1.bf16.msra.mxu0 0
      %2015 = vmatprep.subr.bf16.mxu0 0
      %2016 = vmatpush1.bf16.msra.mxu0 0
      %2017 = vmatprep.mubr.bf16.mxu0 0
      %2018 = vmatmul.mubr.bf16.gmra.mrb[0].mxu0 %v1929
      %v2019 = vpop.f32.mrb[0].mxu0
      %v2020 = vadd.f32 0.0, %v2019
      %v2021 = vpop.f32.mrb[0].mxu0
      %v2022 = vpop.f32.mrb[0].mxu0
      %v2023 = vadd.f32 0.0, %v2022
      %v2024 = vpop.f32.mrb[0].mxu0
      %2025 = vmatprep.mubr.bf16.mxu0 0
      %2026 = vmatmul.mubr.bf16.gmra.mrb[0].mxu0 %v1932
      %v2027 = vpop.f32.mrb[0].mxu0
      %v2028 = vadd.f32 0.0, %v2027
      %v2029 = vpop.f32.mrb[0].mxu0
      %v2030 = vpop.f32.mrb[0].mxu0
      %v2031 = vadd.f32 0.0, %v2030
      %v2032 = vpop.f32.mrb[0].mxu0
      %2033 = vmatprep.mubr.bf16.mxu0 0
      %2034 = vmatmul.mubr.bf16.gmra.mrb[0].mxu0 %v1935
      %v2035 = vpop.f32.mrb[0].mxu0
      %v2036 = vadd.f32 0.0, %v2035
      %v2037 = vpop.f32.mrb[0].mxu0
      %v2038 = vpop.f32.mrb[0].mxu0
      %v2039 = vadd.f32 0.0, %v2038
      %v2040 = vpop.f32.mrb[0].mxu0
      %2041 = vmatprep.mubr.bf16.mxu0 0
      %2042 = vmatmul.mubr.bf16.gmra.mrb[0].mxu0 %v1938
      %v2043 = vpop.f32.mrb[0].mxu0
      %v2044 = vadd.f32 0.0, %v2043
      %v2045 = vpop.f32.mrb[0].mxu0
      %v2046 = vpop.f32.mrb[0].mxu0
      %v2047 = vadd.f32 0.0, %v2046
      %v2048 = vpop.f32.mrb[0].mxu0
      %2049 = vmatprep.mubr.bf16.mxu0 0
      %2050 = vmatmul.mubr.bf16.gmra.mrb[0].mxu0 %v1941
      %v2051 = vpop.f32.mrb[0].mxu0
      %v2052 = vadd.f32 0.0, %v2051
      %v2053 = vpop.f32.mrb[0].mxu0
      %v2054 = vpop.f32.mrb[0].mxu0
      %v2055 = vadd.f32 0.0, %v2054
      %v2056 = vpop.f32.mrb[0].mxu0
      %2057 = vmatprep.mubr.bf16.mxu0 0
      %2058 = vmatmul.mubr.bf16.gmra.mrb[0].mxu0 %v1944
      %v2059 = vpop.f32.mrb[0].mxu0
      %v2060 = vadd.f32 0.0, %v2059
      %v2061 = vpop.f32.mrb[0].mxu0
      %v2062 = vpop.f32.mrb[0].mxu0
      %v2063 = vadd.f32 0.0, %v2062
      %v2064 = vpop.f32.mrb[0].mxu0
      %2065 = vmatprep.mubr.bf16.mxu0 0
      %2066 = vmatmul.mubr.bf16.gmra.mrb[0].mxu0 %v1947
      %v2067 = vpop.f32.mrb[0].mxu0
      %v2068 = vadd.f32 0.0, %v2067
      %v2069 = vpop.f32.mrb[0].mxu0
      %v2070 = vpop.f32.mrb[0].mxu0
      %v2071 = vadd.f32 0.0, %v2070
      %v2072 = vpop.f32.mrb[0].mxu0
      %2073 = vmatprep.mubr.bf16.mxu0 0
      %2074 = vmatmul.mubr.bf16.gmra.mrb[0].mxu0 %v1950
      %v2075 = vpop.f32.mrb[0].mxu0
      %v2076 = vadd.f32 0.0, %v2075
      %v2077 = vpop.f32.mrb[0].mxu0
      %v2078 = vpop.f32.mrb[0].mxu0
      %v2079 = vadd.f32 0.0, %v2078
      %v2080 = vpop.f32.mrb[0].mxu0
      %2081 = vmatprep.mubr.bf16.mxu0 0
      %2082 = vmatmul.mubr.bf16.gmra.mrb[0].mxu0 %v1953
      %v2083 = vpop.f32.mrb[0].mxu0
      %v2084 = vadd.f32 0.0, %v2083
      %v2085 = vpop.f32.mrb[0].mxu0
      %v2086 = vpop.f32.mrb[0].mxu0
      %v2087 = vadd.f32 0.0, %v2086
      %v2088 = vpop.f32.mrb[0].mxu0
      %2089 = vmatprep.mubr.bf16.mxu0 0
      %2090 = vmatmul.mubr.bf16.gmra.mrb[0].mxu0 %v1956
      %v2091 = vpop.f32.mrb[0].mxu0
      %v2092 = vadd.f32 0.0, %v2091
      %v2093 = vpop.f32.mrb[0].mxu0
      %v2094 = vpop.f32.mrb[0].mxu0
      %v2095 = vadd.f32 0.0, %v2094
      %v2096 = vpop.f32.mrb[0].mxu0
      %2097 = vmatprep.mubr.bf16.mxu0 0
      %2098 = vmatmul.mubr.bf16.gmra.mrb[0].mxu0 %v1959
      %v2099 = vpop.f32.mrb[0].mxu0
      %v2100 = vadd.f32 0.0, %v2099
      %v2101 = vpop.f32.mrb[0].mxu0
      %v2102 = vpop.f32.mrb[0].mxu0
      %v2103 = vadd.f32 0.0, %v2102
      %v2104 = vpop.f32.mrb[0].mxu0
      %2105 = vmatprep.mubr.bf16.mxu0 0
      %2106 = vmatmul.mubr.bf16.gmra.mrb[0].mxu0 %v1962
      %v2107 = vpop.f32.mrb[0].mxu0
      %v2108 = vadd.f32 0.0, %v2107
      %v2109 = vpop.f32.mrb[0].mxu0
      %v2110 = vpop.f32.mrb[0].mxu0
      %v2111 = vadd.f32 0.0, %v2110
      %v2112 = vpop.f32.mrb[0].mxu0
      %2113 = vmatprep.mubr.bf16.mxu0 0
      %2114 = vmatmul.mubr.bf16.gmra.mrb[0].mxu0 %v1965
      %v2115 = vpop.f32.mrb[0].mxu0
      %v2116 = vadd.f32 0.0, %v2115
      %v2117 = vpop.f32.mrb[0].mxu0
      %v2118 = vpop.f32.mrb[0].mxu0
      %v2119 = vadd.f32 0.0, %v2118
      %v2120 = vpop.f32.mrb[0].mxu0
      %2121 = vmatprep.mubr.bf16.mxu0 0
      %2122 = vmatmul.mubr.bf16.gmra.mrb[0].mxu0 %v1968
      %v2123 = vpop.f32.mrb[0].mxu0
      %v2124 = vadd.f32 0.0, %v2123
      %v2125 = vpop.f32.mrb[0].mxu0
      %v2126 = vpop.f32.mrb[0].mxu0
      %v2127 = vadd.f32 0.0, %v2126
      %v2128 = vpop.f32.mrb[0].mxu0
      %2129 = vmatprep.mubr.bf16.mxu0 0
      %2130 = vmatmul.mubr.bf16.gmra.mrb[0].mxu0 %v1971
      %v2131 = vpop.f32.mrb[0].mxu0
      %v2132 = vadd.f32 0.0, %v2131
      %v2133 = vpop.f32.mrb[0].mxu0
      %v2134 = vpop.f32.mrb[0].mxu0
      %v2135 = vadd.f32 0.0, %v2134
      %v2136 = vpop.f32.mrb[0].mxu0
      %2137 = vmatprep.mubr.bf16.mxu0 0
      %2138 = vmatmul.mubr.bf16.gmra.mrb[0].mxu0 %v1974
      %v2139 = vpop.f32.mrb[0].mxu0
      %v2140 = vadd.f32 0.0, %v2139
      %v2141 = vpop.f32.mrb[0].mxu0
      %v2142 = vpop.f32.mrb[0].mxu0
      %v2143 = vadd.f32 0.0, %v2142
      %v2144 = vpop.f32.mrb[0].mxu0
      %2145 = vmatprep.mubr.bf16.mxu0 0
      %2146 = vmatmul.mubr.bf16.gmra.mrb[0].mxu0 %v1977
      %v2147 = vpop.f32.mrb[0].mxu0
      %v2148 = vadd.f32 0.0, %v2147
      %v2149 = vpop.f32.mrb[0].mxu0
      %v2150 = vpop.f32.mrb[0].mxu0
      %v2151 = vadd.f32 0.0, %v2150
      %v2152 = vpop.f32.mrb[0].mxu0
      %2153 = vmatprep.mubr.bf16.mxu0 0
      %2154 = vmatmul.mubr.bf16.gmra.mrb[0].mxu0 %v1980
      %v2155 = vpop.f32.mrb[0].mxu0
      %v2156 = vadd.f32 0.0, %v2155
      %v2157 = vpop.f32.mrb[0].mxu0
      %v2158 = vpop.f32.mrb[0].mxu0
      %v2159 = vadd.f32 0.0, %v2158
      %v2160 = vpop.f32.mrb[0].mxu0
      %2161 = vdwg.mxu0
      %v2162 = vadd.f32 %v1852, %v2020
      %v2163 = vadd.f32 %v1853, %v2023
      %v2164 = vadd.f32 %v1854, %v2028
      %v2165 = vadd.f32 %v1855, %v2031
      %v2166 = vadd.f32 %v1856, %v2036
      %v2167 = vadd.f32 %v1857, %v2039
      %v2168 = vadd.f32 %v1858, %v2044
      %v2169 = vadd.f32 %v1859, %v2047
      %v2170 = vadd.f32 %v1860, %v2052
      %v2171 = vadd.f32 %v1861, %v2055
      %v2172 = vadd.f32 %v1862, %v2060
      %v2173 = vadd.f32 %v1863, %v2063
      %v2174 = vadd.f32 %v1864, %v2068
      %v2175 = vadd.f32 %v1865, %v2071
      %v2176 = vadd.f32 %v1866, %v2076
      %v2177 = vadd.f32 %v1867, %v2079
      %v2178 = vadd.f32 %v1868, %v2084
      %v2179 = vadd.f32 %v1869, %v2087
      %v2180 = vadd.f32 %v1870, %v2092
      %v2181 = vadd.f32 %v1871, %v2095
      %v2182 = vadd.f32 %v1872, %v2100
      %v2183 = vadd.f32 %v1873, %v2103
      %v2184 = vadd.f32 %v1874, %v2108
      %v2185 = vadd.f32 %v1875, %v2111
      %v2186 = vadd.f32 %v1876, %v2116
      %v2187 = vadd.f32 %v1877, %v2119
      %v2188 = vadd.f32 %v1878, %v2124
      %v2189 = vadd.f32 %v1879, %v2127
      %v2190 = vadd.f32 %v1880, %v2132
      %v2191 = vadd.f32 %v1881, %v2135
      %v2192 = vadd.f32 %v1882, %v2140
      %v2193 = vadd.f32 %v1883, %v2143
      %v2194 = vadd.f32 %v1884, %v2148
      %v2195 = vadd.f32 %v1885, %v2151
      %v2196 = vadd.f32 %v1886, %v2156
      %v2197 = vadd.f32 %v1887, %v2159
      %s2198 = scalar_lea.vmem %s1, 12
      %v2199 = vld [vmem:[%s2198] sm:$0x3]
      %v2202 = vunpack.c.l.b16 %v287
      %v2203 = vunpack.c.l.b16 %v288
      %v2204 = vpack.c.b16 %v2202, %v1301
      %v2205 = vpack.c.b16 %v2203, %v2203
      %v2206 = vrot.slane %v2204, 2
      %v2207 = vsel %vm1890, %v1924, %v2206
      %v2208 = vrot.slane %v2205, 2
      %v2209 = vsel %vm1890, %v2206, %v2208
      %v2211 = vsel %vm534, %v2207, 0
      %v2214 = vsel %vm534, %v2209, 0
      %v2217 = vsel %vm589, %v2199, 0
      %2219 = vmatprep.subr.bf16.mxu0 0
      %2220 = vmatpush1.bf16.msra.mxu0 %v2217
      %2221 = vmatprep.subr.bf16.mxu0 0
      %2222 = vmatpush1.bf16.msra.mxu0 0
      %2223 = vmatprep.subr.bf16.mxu0 0
      %2224 = vmatpush1.bf16.msra.mxu0 0
      %2225 = vmatprep.subr.bf16.mxu0 0
      %2226 = vmatpush1.bf16.msra.mxu0 0
      %2227 = vmatprep.subr.bf16.mxu0 0
      %2228 = vmatpush1.bf16.msra.mxu0 0
      %2229 = vmatprep.subr.bf16.mxu0 0
      %2230 = vmatpush1.bf16.msra.mxu0 0
      %2231 = vmatprep.subr.bf16.mxu0 0
      %2232 = vmatpush1.bf16.msra.mxu0 0
      %2233 = vmatprep.subr.bf16.mxu0 0
      %2234 = vmatpush1.bf16.msra.mxu0 0
      %2235 = vmatprep.subr.bf16.mxu0 0
      %2236 = vmatpush1.bf16.msra.mxu0 0
      %2237 = vmatprep.subr.bf16.mxu0 0
      %2238 = vmatpush1.bf16.msra.mxu0 0
      %2239 = vmatprep.subr.bf16.mxu0 0
      %2240 = vmatpush1.bf16.msra.mxu0 0
      %2241 = vmatprep.subr.bf16.mxu0 0
      %2242 = vmatpush1.bf16.msra.mxu0 0
      %2243 = vmatprep.subr.bf16.mxu0 0
      %2244 = vmatpush1.bf16.msra.mxu0 0
      %2245 = vmatprep.subr.bf16.mxu0 0
      %2246 = vmatpush1.bf16.msra.mxu0 0
      %2247 = vmatprep.subr.bf16.mxu0 0
      %2248 = vmatpush1.bf16.msra.mxu0 0
      %2249 = vmatprep.subr.bf16.mxu0 0
      %2250 = vmatpush1.bf16.msra.mxu0 0
      %2251 = vmatprep.mubr.bf16.mxu0 0
      %2252 = vmatmul.mubr.bf16.gmra.mrb[0].mxu0 %v1932
      %v2253 = vpop.f32.mrb[0].mxu0
      %v2254 = vadd.f32 0.0, %v2253
      %v2255 = vpop.f32.mrb[0].mxu0
      %v2256 = vpop.f32.mrb[0].mxu0
      %v2257 = vadd.f32 0.0, %v2256
      %v2258 = vpop.f32.mrb[0].mxu0
      %2259 = vmatprep.mubr.bf16.mxu0 0
      %2260 = vmatmul.mubr.bf16.gmra.mrb[0].mxu0 %v1935
      %v2261 = vpop.f32.mrb[0].mxu0
      %v2262 = vadd.f32 0.0, %v2261
      %v2263 = vpop.f32.mrb[0].mxu0
      %v2264 = vpop.f32.mrb[0].mxu0
      %v2265 = vadd.f32 0.0, %v2264
      %v2266 = vpop.f32.mrb[0].mxu0
      %2267 = vmatprep.mubr.bf16.mxu0 0
      %2268 = vmatmul.mubr.bf16.gmra.mrb[0].mxu0 %v1938
      %v2269 = vpop.f32.mrb[0].mxu0
      %v2270 = vadd.f32 0.0, %v2269
      %v2271 = vpop.f32.mrb[0].mxu0
      %v2272 = vpop.f32.mrb[0].mxu0
      %v2273 = vadd.f32 0.0, %v2272
      %v2274 = vpop.f32.mrb[0].mxu0
      %2275 = vmatprep.mubr.bf16.mxu0 0
      %2276 = vmatmul.mubr.bf16.gmra.mrb[0].mxu0 %v1941
      %v2277 = vpop.f32.mrb[0].mxu0
      %v2278 = vadd.f32 0.0, %v2277
      %v2279 = vpop.f32.mrb[0].mxu0
      %v2280 = vpop.f32.mrb[0].mxu0
      %v2281 = vadd.f32 0.0, %v2280
      %v2282 = vpop.f32.mrb[0].mxu0
      %2283 = vmatprep.mubr.bf16.mxu0 0
      %2284 = vmatmul.mubr.bf16.gmra.mrb[0].mxu0 %v1944
      %v2285 = vpop.f32.mrb[0].mxu0
      %v2286 = vadd.f32 0.0, %v2285
      %v2287 = vpop.f32.mrb[0].mxu0
      %v2288 = vpop.f32.mrb[0].mxu0
      %v2289 = vadd.f32 0.0, %v2288
      %v2290 = vpop.f32.mrb[0].mxu0
      %2291 = vmatprep.mubr.bf16.mxu0 0
      %2292 = vmatmul.mubr.bf16.gmra.mrb[0].mxu0 %v1947
      %v2293 = vpop.f32.mrb[0].mxu0
      %v2294 = vadd.f32 0.0, %v2293
      %v2295 = vpop.f32.mrb[0].mxu0
      %v2296 = vpop.f32.mrb[0].mxu0
      %v2297 = vadd.f32 0.0, %v2296
      %v2298 = vpop.f32.mrb[0].mxu0
      %2299 = vmatprep.mubr.bf16.mxu0 0
      %2300 = vmatmul.mubr.bf16.gmra.mrb[0].mxu0 %v1950
      %v2301 = vpop.f32.mrb[0].mxu0
      %v2302 = vadd.f32 0.0, %v2301
      %v2303 = vpop.f32.mrb[0].mxu0
      %v2304 = vpop.f32.mrb[0].mxu0
      %v2305 = vadd.f32 0.0, %v2304
      %v2306 = vpop.f32.mrb[0].mxu0
      %2307 = vmatprep.mubr.bf16.mxu0 0
      %2308 = vmatmul.mubr.bf16.gmra.mrb[0].mxu0 %v1953
      %v2309 = vpop.f32.mrb[0].mxu0
      %v2310 = vadd.f32 0.0, %v2309
      %v2311 = vpop.f32.mrb[0].mxu0
      %v2312 = vpop.f32.mrb[0].mxu0
      %v2313 = vadd.f32 0.0, %v2312
      %v2314 = vpop.f32.mrb[0].mxu0
      %2315 = vmatprep.mubr.bf16.mxu0 0
      %2316 = vmatmul.mubr.bf16.gmra.mrb[0].mxu0 %v1956
      %v2317 = vpop.f32.mrb[0].mxu0
      %v2318 = vadd.f32 0.0, %v2317
      %v2319 = vpop.f32.mrb[0].mxu0
      %v2320 = vpop.f32.mrb[0].mxu0
      %v2321 = vadd.f32 0.0, %v2320
      %v2322 = vpop.f32.mrb[0].mxu0
      %2323 = vmatprep.mubr.bf16.mxu0 0
      %2324 = vmatmul.mubr.bf16.gmra.mrb[0].mxu0 %v1959
      %v2325 = vpop.f32.mrb[0].mxu0
      %v2326 = vadd.f32 0.0, %v2325
      %v2327 = vpop.f32.mrb[0].mxu0
      %v2328 = vpop.f32.mrb[0].mxu0
      %v2329 = vadd.f32 0.0, %v2328
      %v2330 = vpop.f32.mrb[0].mxu0
      %2331 = vmatprep.mubr.bf16.mxu0 0
      %2332 = vmatmul.mubr.bf16.gmra.mrb[0].mxu0 %v1962
      %v2333 = vpop.f32.mrb[0].mxu0
      %v2334 = vadd.f32 0.0, %v2333
      %v2335 = vpop.f32.mrb[0].mxu0
      %v2336 = vpop.f32.mrb[0].mxu0
      %v2337 = vadd.f32 0.0, %v2336
      %v2338 = vpop.f32.mrb[0].mxu0
      %2339 = vmatprep.mubr.bf16.mxu0 0
      %2340 = vmatmul.mubr.bf16.gmra.mrb[0].mxu0 %v1965
      %v2341 = vpop.f32.mrb[0].mxu0
      %v2342 = vadd.f32 0.0, %v2341
      %v2343 = vpop.f32.mrb[0].mxu0
      %v2344 = vpop.f32.mrb[0].mxu0
      %v2345 = vadd.f32 0.0, %v2344
      %v2346 = vpop.f32.mrb[0].mxu0
      %2347 = vmatprep.mubr.bf16.mxu0 0
      %2348 = vmatmul.mubr.bf16.gmra.mrb[0].mxu0 %v1968
      %v2349 = vpop.f32.mrb[0].mxu0
      %v2350 = vadd.f32 0.0, %v2349
      %v2351 = vpop.f32.mrb[0].mxu0
      %v2352 = vpop.f32.mrb[0].mxu0
      %v2353 = vadd.f32 0.0, %v2352
      %v2354 = vpop.f32.mrb[0].mxu0
      %2355 = vmatprep.mubr.bf16.mxu0 0
      %2356 = vmatmul.mubr.bf16.gmra.mrb[0].mxu0 %v1971
      %v2357 = vpop.f32.mrb[0].mxu0
      %v2358 = vadd.f32 0.0, %v2357
      %v2359 = vpop.f32.mrb[0].mxu0
      %v2360 = vpop.f32.mrb[0].mxu0
      %v2361 = vadd.f32 0.0, %v2360
      %v2362 = vpop.f32.mrb[0].mxu0
      %2363 = vmatprep.mubr.bf16.mxu0 0
      %2364 = vmatmul.mubr.bf16.gmra.mrb[0].mxu0 %v1974
      %v2365 = vpop.f32.mrb[0].mxu0
      %v2366 = vadd.f32 0.0, %v2365
      %v2367 = vpop.f32.mrb[0].mxu0
      %v2368 = vpop.f32.mrb[0].mxu0
      %v2369 = vadd.f32 0.0, %v2368
      %v2370 = vpop.f32.mrb[0].mxu0
      %2371 = vmatprep.mubr.bf16.mxu0 0
      %2372 = vmatmul.mubr.bf16.gmra.mrb[0].mxu0 %v1977
      %v2373 = vpop.f32.mrb[0].mxu0
      %v2374 = vadd.f32 0.0, %v2373
      %v2375 = vpop.f32.mrb[0].mxu0
      %v2376 = vpop.f32.mrb[0].mxu0
      %v2377 = vadd.f32 0.0, %v2376
      %v2378 = vpop.f32.mrb[0].mxu0
      %2379 = vmatprep.mubr.bf16.mxu0 0
      %2380 = vmatmul.mubr.bf16.gmra.mrb[0].mxu0 %v2211
      %v2381 = vpop.f32.mrb[0].mxu0
      %v2382 = vadd.f32 0.0, %v2381
      %v2383 = vpop.f32.mrb[0].mxu0
      %v2384 = vpop.f32.mrb[0].mxu0
      %v2385 = vadd.f32 0.0, %v2384
      %v2386 = vpop.f32.mrb[0].mxu0
      %2387 = vmatprep.mubr.bf16.mxu0 0
      %2388 = vmatmul.mubr.bf16.gmra.mrb[0].mxu0 %v2214
      %v2389 = vpop.f32.mrb[0].mxu0
      %v2390 = vadd.f32 0.0, %v2389
      %v2391 = vpop.f32.mrb[0].mxu0
      %v2392 = vpop.f32.mrb[0].mxu0
      %v2393 = vadd.f32 0.0, %v2392
      %v2394 = vpop.f32.mrb[0].mxu0
      %2395 = vdwg.mxu0
      %v2396 = vadd.f32 %v2162, %v2254
      %v2397 = vadd.f32 %v2163, %v2257
      %v2398 = vadd.f32 %v2164, %v2262
      %v2399 = vadd.f32 %v2165, %v2265
      %v2400 = vadd.f32 %v2166, %v2270
      %v2401 = vadd.f32 %v2167, %v2273
      %v2402 = vadd.f32 %v2168, %v2278
      %v2403 = vadd.f32 %v2169, %v2281
      %v2404 = vadd.f32 %v2170, %v2286
      %v2405 = vadd.f32 %v2171, %v2289
      %v2406 = vadd.f32 %v2172, %v2294
      %v2407 = vadd.f32 %v2173, %v2297
      %v2408 = vadd.f32 %v2174, %v2302
      %v2409 = vadd.f32 %v2175, %v2305
      %v2410 = vadd.f32 %v2176, %v2310
      %v2411 = vadd.f32 %v2177, %v2313
      %v2412 = vadd.f32 %v2178, %v2318
      %v2413 = vadd.f32 %v2179, %v2321
      %v2414 = vadd.f32 %v2180, %v2326
      %v2415 = vadd.f32 %v2181, %v2329
      %v2416 = vadd.f32 %v2182, %v2334
      %v2417 = vadd.f32 %v2183, %v2337
      %v2418 = vadd.f32 %v2184, %v2342
      %v2419 = vadd.f32 %v2185, %v2345
      %v2420 = vadd.f32 %v2186, %v2350
      %v2421 = vadd.f32 %v2187, %v2353
      %v2422 = vadd.f32 %v2188, %v2358
      %v2423 = vadd.f32 %v2189, %v2361
      %v2424 = vadd.f32 %v2190, %v2366
      %v2425 = vadd.f32 %v2191, %v2369
      %v2426 = vadd.f32 %v2192, %v2374
      %v2427 = vadd.f32 %v2193, %v2377
      %v2428 = vadd.f32 %v2194, %v2382
      %v2429 = vadd.f32 %v2195, %v2385
      %v2430 = vadd.f32 %v2196, %v2390
      %v2431 = vadd.f32 %v2197, %v2393
      %s2432 = scalar_lea.vmem %s1, 14
      %v2433 = vld [vmem:[%s2432] sm:$0x3]
      %vm2434 = vsmask.f32 5376
      %v2435 = vrot.slane %v406, 2
      %v2436 = vrot.slane %v402, 3
      %v2437 = vor.u32 %v2435, %v2436
      %v2438 = vrot.slane %v414, 2
      %v2439 = vrot.slane %v410, 3
      %v2440 = vor.u32 %v2438, %v2439
      %v2441 = vsel %vm2434, %v2437, %v2440
      %v2442 = vrot.slane %v422, 2
      %v2443 = vrot.slane %v418, 3
      %v2444 = vor.u32 %v2442, %v2443
      %v2445 = vsel %vm2434, %v2440, %v2444
      %v2446 = vrot.slane %v430, 2
      %v2447 = vrot.slane %v426, 3
      %v2448 = vor.u32 %v2446, %v2447
      %v2449 = vsel %vm2434, %v2444, %v2448
      %v2450 = vrot.slane %v438, 2
      %v2451 = vrot.slane %v434, 3
      %v2452 = vor.u32 %v2450, %v2451
      %v2453 = vsel %vm2434, %v2448, %v2452
      %v2454 = vrot.slane %v446, 2
      %v2455 = vrot.slane %v442, 3
      %v2456 = vor.u32 %v2454, %v2455
      %v2457 = vsel %vm2434, %v2452, %v2456
      %v2458 = vrot.slane %v454, 2
      %v2459 = vrot.slane %v450, 3
      %v2460 = vor.u32 %v2458, %v2459
      %v2461 = vsel %vm2434, %v2456, %v2460
      %v2462 = vrot.slane %v462, 2
      %v2463 = vrot.slane %v458, 3
      %v2464 = vor.u32 %v2462, %v2463
      %v2465 = vsel %vm2434, %v2460, %v2464
      %v2466 = vrot.slane %v470, 2
      %v2467 = vrot.slane %v466, 3
      %v2468 = vor.u32 %v2466, %v2467
      %v2469 = vsel %vm2434, %v2464, %v2468
      %v2470 = vrot.slane %v478, 2
      %v2471 = vrot.slane %v474, 3
      %v2472 = vor.u32 %v2470, %v2471
      %v2473 = vsel %vm2434, %v2468, %v2472
      %v2474 = vrot.slane %v486, 2
      %v2475 = vrot.slane %v482, 3
      %v2476 = vor.u32 %v2474, %v2475
      %v2477 = vsel %vm2434, %v2472, %v2476
      %v2478 = vrot.slane %v494, 2
      %v2479 = vrot.slane %v490, 3
      %v2480 = vor.u32 %v2478, %v2479
      %v2481 = vsel %vm2434, %v2476, %v2480
      %v2482 = vrot.slane %v502, 2
      %v2483 = vrot.slane %v498, 3
      %v2484 = vor.u32 %v2482, %v2483
      %v2485 = vsel %vm2434, %v2480, %v2484
      %v2486 = vrot.slane %v510, 2
      %v2487 = vrot.slane %v506, 3
      %v2488 = vor.u32 %v2486, %v2487
      %v2489 = vsel %vm2434, %v2484, %v2488
      %v2490 = vrot.slane %v518, 2
      %v2491 = vrot.slane %v514, 3
      %v2492 = vor.u32 %v2490, %v2491
      %v2493 = vsel %vm2434, %v2488, %v2492
      %v2494 = vrot.slane %v526, 2
      %v2495 = vrot.slane %v522, 3
      %v2496 = vor.u32 %v2494, %v2495
      %v2497 = vsel %vm2434, %v2492, %v2496
      %v2498 = vrot.slane %v1601, 2
      %v2499 = vrot.slane %v1604, 3
      %v2500 = vor.u32 %v2498, %v2499
      %v2501 = vsel %vm2434, %v2496, %v2500
      %v2503 = vshrl.u32 %v2204, 16
      %v2505 = vrot.slane %v2503, 2
      %v2506 = vshll.u32 %v2204, 16
      %v2508 = vrot.slane %v2506, 3
      %v2509 = vor.u32 %v2505, %v2508
      %v2510 = vsel %vm2434, %v2500, %v2509
      %v2512 = vshrl.u32 %v2205, 16
      %v2514 = vrot.slane %v2512, 2
      %v2515 = vshll.u32 %v2205, 16
      %v2517 = vrot.slane %v2515, 3
      %v2518 = vor.u32 %v2514, %v2517
      %v2519 = vsel %vm2434, %v2509, %v2518
      %v2521 = vsel %vm534, %v2441, 0
      %v2524 = vsel %vm534, %v2445, 0
      %v2527 = vsel %vm534, %v2449, 0
      %v2530 = vsel %vm534, %v2453, 0
      %v2533 = vsel %vm534, %v2457, 0
      %v2536 = vsel %vm534, %v2461, 0
      %v2539 = vsel %vm534, %v2465, 0
      %v2542 = vsel %vm534, %v2469, 0
      %v2545 = vsel %vm534, %v2473, 0
      %v2548 = vsel %vm534, %v2477, 0
      %v2551 = vsel %vm534, %v2481, 0
      %v2554 = vsel %vm534, %v2485, 0
      %v2557 = vsel %vm534, %v2489, 0
      %v2560 = vsel %vm534, %v2493, 0
      %v2563 = vsel %vm534, %v2497, 0
      %v2566 = vsel %vm534, %v2501, 0
      %v2569 = vsel %vm534, %v2510, 0
      %v2572 = vsel %vm534, %v2519, 0
      %v2575 = vsel %vm589, %v2433, 0
      %2577 = vmatprep.subr.bf16.mxu0 0
      %2578 = vmatpush1.bf16.msra.mxu0 %v2575
      %2579 = vmatprep.subr.bf16.mxu0 0
      %2580 = vmatpush1.bf16.msra.mxu0 0
      %2581 = vmatprep.subr.bf16.mxu0 0
      %2582 = vmatpush1.bf16.msra.mxu0 0
      %2583 = vmatprep.subr.bf16.mxu0 0
      %2584 = vmatpush1.bf16.msra.mxu0 0
      %2585 = vmatprep.subr.bf16.mxu0 0
      %2586 = vmatpush1.bf16.msra.mxu0 0
      %2587 = vmatprep.subr.bf16.mxu0 0
      %2588 = vmatpush1.bf16.msra.mxu0 0
      %2589 = vmatprep.subr.bf16.mxu0 0
      %2590 = vmatpush1.bf16.msra.mxu0 0
      %2591 = vmatprep.subr.bf16.mxu0 0
      %2592 = vmatpush1.bf16.msra.mxu0 0
      %2593 = vmatprep.subr.bf16.mxu0 0
      %2594 = vmatpush1.bf16.msra.mxu0 0
      %2595 = vmatprep.subr.bf16.mxu0 0
      %2596 = vmatpush1.bf16.msra.mxu0 0
      %2597 = vmatprep.subr.bf16.mxu0 0
      %2598 = vmatpush1.bf16.msra.mxu0 0
      %2599 = vmatprep.subr.bf16.mxu0 0
      %2600 = vmatpush1.bf16.msra.mxu0 0
      %2601 = vmatprep.subr.bf16.mxu0 0
      %2602 = vmatpush1.bf16.msra.mxu0 0
      %2603 = vmatprep.subr.bf16.mxu0 0
      %2604 = vmatpush1.bf16.msra.mxu0 0
      %2605 = vmatprep.subr.bf16.mxu0 0
      %2606 = vmatpush1.bf16.msra.mxu0 0
      %2607 = vmatprep.subr.bf16.mxu0 0
      %2608 = vmatpush1.bf16.msra.mxu0 0
      %2609 = vmatprep.mubr.bf16.mxu0 0
      %2610 = vmatmul.mubr.bf16.gmra.mrb[0].mxu0 %v2521
      %v2611 = vpop.f32.mrb[0].mxu0
      %v2612 = vadd.f32 0.0, %v2611
      %v2613 = vpop.f32.mrb[0].mxu0
      %v2614 = vpop.f32.mrb[0].mxu0
      %v2615 = vadd.f32 0.0, %v2614
      %v2616 = vpop.f32.mrb[0].mxu0
      %2617 = vmatprep.mubr.bf16.mxu0 0
      %2618 = vmatmul.mubr.bf16.gmra.mrb[0].mxu0 %v2524
      %v2619 = vpop.f32.mrb[0].mxu0
      %v2620 = vadd.f32 0.0, %v2619
      %v2621 = vpop.f32.mrb[0].mxu0
      %v2622 = vpop.f32.mrb[0].mxu0
      %v2623 = vadd.f32 0.0, %v2622
      %v2624 = vpop.f32.mrb[0].mxu0
      %2625 = vmatprep.mubr.bf16.mxu0 0
      %2626 = vmatmul.mubr.bf16.gmra.mrb[0].mxu0 %v2527
      %v2627 = vpop.f32.mrb[0].mxu0
      %v2628 = vadd.f32 0.0, %v2627
      %v2629 = vpop.f32.mrb[0].mxu0
      %v2630 = vpop.f32.mrb[0].mxu0
      %v2631 = vadd.f32 0.0, %v2630
      %v2632 = vpop.f32.mrb[0].mxu0
      %2633 = vmatprep.mubr.bf16.mxu0 0
      %2634 = vmatmul.mubr.bf16.gmra.mrb[0].mxu0 %v2530
      %v2635 = vpop.f32.mrb[0].mxu0
      %v2636 = vadd.f32 0.0, %v2635
      %v2637 = vpop.f32.mrb[0].mxu0
      %v2638 = vpop.f32.mrb[0].mxu0
      %v2639 = vadd.f32 0.0, %v2638
      %v2640 = vpop.f32.mrb[0].mxu0
      %2641 = vmatprep.mubr.bf16.mxu0 0
      %2642 = vmatmul.mubr.bf16.gmra.mrb[0].mxu0 %v2533
      %v2643 = vpop.f32.mrb[0].mxu0
      %v2644 = vadd.f32 0.0, %v2643
      %v2645 = vpop.f32.mrb[0].mxu0
      %v2646 = vpop.f32.mrb[0].mxu0
      %v2647 = vadd.f32 0.0, %v2646
      %v2648 = vpop.f32.mrb[0].mxu0
      %2649 = vmatprep.mubr.bf16.mxu0 0
      %2650 = vmatmul.mubr.bf16.gmra.mrb[0].mxu0 %v2536
      %v2651 = vpop.f32.mrb[0].mxu0
      %v2652 = vadd.f32 0.0, %v2651
      %v2653 = vpop.f32.mrb[0].mxu0
      %v2654 = vpop.f32.mrb[0].mxu0
      %v2655 = vadd.f32 0.0, %v2654
      %v2656 = vpop.f32.mrb[0].mxu0
      %2657 = vmatprep.mubr.bf16.mxu0 0
      %2658 = vmatmul.mubr.bf16.gmra.mrb[0].mxu0 %v2539
      %v2659 = vpop.f32.mrb[0].mxu0
      %v2660 = vadd.f32 0.0, %v2659
      %v2661 = vpop.f32.mrb[0].mxu0
      %v2662 = vpop.f32.mrb[0].mxu0
      %v2663 = vadd.f32 0.0, %v2662
      %v2664 = vpop.f32.mrb[0].mxu0
      %2665 = vmatprep.mubr.bf16.mxu0 0
      %2666 = vmatmul.mubr.bf16.gmra.mrb[0].mxu0 %v2542
      %v2667 = vpop.f32.mrb[0].mxu0
      %v2668 = vadd.f32 0.0, %v2667
      %v2669 = vpop.f32.mrb[0].mxu0
      %v2670 = vpop.f32.mrb[0].mxu0
      %v2671 = vadd.f32 0.0, %v2670
      %v2672 = vpop.f32.mrb[0].mxu0
      %2673 = vmatprep.mubr.bf16.mxu0 0
      %2674 = vmatmul.mubr.bf16.gmra.mrb[0].mxu0 %v2545
      %v2675 = vpop.f32.mrb[0].mxu0
      %v2676 = vadd.f32 0.0, %v2675
      %v2677 = vpop.f32.mrb[0].mxu0
      %v2678 = vpop.f32.mrb[0].mxu0
      %v2679 = vadd.f32 0.0, %v2678
      %v2680 = vpop.f32.mrb[0].mxu0
      %2681 = vmatprep.mubr.bf16.mxu0 0
      %2682 = vmatmul.mubr.bf16.gmra.mrb[0].mxu0 %v2548
      %v2683 = vpop.f32.mrb[0].mxu0
      %v2684 = vadd.f32 0.0, %v2683
      %v2685 = vpop.f32.mrb[0].mxu0
      %v2686 = vpop.f32.mrb[0].mxu0
      %v2687 = vadd.f32 0.0, %v2686
      %v2688 = vpop.f32.mrb[0].mxu0
      %2689 = vmatprep.mubr.bf16.mxu0 0
      %2690 = vmatmul.mubr.bf16.gmra.mrb[0].mxu0 %v2551
      %v2691 = vpop.f32.mrb[0].mxu0
      %v2692 = vadd.f32 0.0, %v2691
      %v2693 = vpop.f32.mrb[0].mxu0
      %v2694 = vpop.f32.mrb[0].mxu0
      %v2695 = vadd.f32 0.0, %v2694
      %v2696 = vpop.f32.mrb[0].mxu0
      %2697 = vmatprep.mubr.bf16.mxu0 0
      %2698 = vmatmul.mubr.bf16.gmra.mrb[0].mxu0 %v2554
      %v2699 = vpop.f32.mrb[0].mxu0
      %v2700 = vadd.f32 0.0, %v2699
      %v2701 = vpop.f32.mrb[0].mxu0
      %v2702 = vpop.f32.mrb[0].mxu0
      %v2703 = vadd.f32 0.0, %v2702
      %v2704 = vpop.f32.mrb[0].mxu0
      %2705 = vmatprep.mubr.bf16.mxu0 0
      %2706 = vmatmul.mubr.bf16.gmra.mrb[0].mxu0 %v2557
      %v2707 = vpop.f32.mrb[0].mxu0
      %v2708 = vadd.f32 0.0, %v2707
      %v2709 = vpop.f32.mrb[0].mxu0
      %v2710 = vpop.f32.mrb[0].mxu0
      %v2711 = vadd.f32 0.0, %v2710
      %v2712 = vpop.f32.mrb[0].mxu0
      %2713 = vmatprep.mubr.bf16.mxu0 0
      %2714 = vmatmul.mubr.bf16.gmra.mrb[0].mxu0 %v2560
      %v2715 = vpop.f32.mrb[0].mxu0
      %v2716 = vadd.f32 0.0, %v2715
      %v2717 = vpop.f32.mrb[0].mxu0
      %v2718 = vpop.f32.mrb[0].mxu0
      %v2719 = vadd.f32 0.0, %v2718
      %v2720 = vpop.f32.mrb[0].mxu0
      %2721 = vmatprep.mubr.bf16.mxu0 0
      %2722 = vmatmul.mubr.bf16.gmra.mrb[0].mxu0 %v2563
      %v2723 = vpop.f32.mrb[0].mxu0
      %v2724 = vadd.f32 0.0, %v2723
      %v2725 = vpop.f32.mrb[0].mxu0
      %v2726 = vpop.f32.mrb[0].mxu0
      %v2727 = vadd.f32 0.0, %v2726
      %v2728 = vpop.f32.mrb[0].mxu0
      %2729 = vmatprep.mubr.bf16.mxu0 0
      %2730 = vmatmul.mubr.bf16.gmra.mrb[0].mxu0 %v2566
      %v2731 = vpop.f32.mrb[0].mxu0
      %v2732 = vadd.f32 0.0, %v2731
      %v2733 = vpop.f32.mrb[0].mxu0
      %v2734 = vpop.f32.mrb[0].mxu0
      %v2735 = vadd.f32 0.0, %v2734
      %v2736 = vpop.f32.mrb[0].mxu0
      %2737 = vmatprep.mubr.bf16.mxu0 0
      %2738 = vmatmul.mubr.bf16.gmra.mrb[0].mxu0 %v2569
      %v2739 = vpop.f32.mrb[0].mxu0
      %v2740 = vadd.f32 0.0, %v2739
      %v2741 = vpop.f32.mrb[0].mxu0
      %v2742 = vpop.f32.mrb[0].mxu0
      %v2743 = vadd.f32 0.0, %v2742
      %v2744 = vpop.f32.mrb[0].mxu0
      %2745 = vmatprep.mubr.bf16.mxu0 0
      %2746 = vmatmul.mubr.bf16.gmra.mrb[0].mxu0 %v2572
      %v2747 = vpop.f32.mrb[0].mxu0
      %v2748 = vadd.f32 0.0, %v2747
      %v2749 = vpop.f32.mrb[0].mxu0
      %v2750 = vpop.f32.mrb[0].mxu0
      %v2751 = vadd.f32 0.0, %v2750
      %v2752 = vpop.f32.mrb[0].mxu0
      %2753 = vdwg.mxu0
      %v2754 = vadd.f32 %v2396, %v2612
      %v2755 = vadd.f32 %v2397, %v2615
      %v2756 = vadd.f32 %v2398, %v2620
      %v2757 = vadd.f32 %v2399, %v2623
      %v2758 = vadd.f32 %v2400, %v2628
      %v2759 = vadd.f32 %v2401, %v2631
      %v2760 = vadd.f32 %v2402, %v2636
      %v2761 = vadd.f32 %v2403, %v2639
      %v2762 = vadd.f32 %v2404, %v2644
      %v2763 = vadd.f32 %v2405, %v2647
      %v2764 = vadd.f32 %v2406, %v2652
      %v2765 = vadd.f32 %v2407, %v2655
      %v2766 = vadd.f32 %v2408, %v2660
      %v2767 = vadd.f32 %v2409, %v2663
      %v2768 = vadd.f32 %v2410, %v2668
      %v2769 = vadd.f32 %v2411, %v2671
      %v2770 = vadd.f32 %v2412, %v2676
      %v2771 = vadd.f32 %v2413, %v2679
      %v2772 = vadd.f32 %v2414, %v2684
      %v2773 = vadd.f32 %v2415, %v2687
      %v2774 = vadd.f32 %v2416, %v2692
      %v2775 = vadd.f32 %v2417, %v2695
      %v2776 = vadd.f32 %v2418, %v2700
      %v2777 = vadd.f32 %v2419, %v2703
      %v2778 = vadd.f32 %v2420, %v2708
      %v2779 = vadd.f32 %v2421, %v2711
      %v2780 = vadd.f32 %v2422, %v2716
      %v2781 = vadd.f32 %v2423, %v2719
      %v2782 = vadd.f32 %v2424, %v2724
      %v2783 = vadd.f32 %v2425, %v2727
      %v2784 = vadd.f32 %v2426, %v2732
      %v2785 = vadd.f32 %v2427, %v2735
      %v2786 = vadd.f32 %v2428, %v2740
      %v2787 = vadd.f32 %v2429, %v2743
      %v2788 = vadd.f32 %v2430, %v2748
      %v2789 = vadd.f32 %v2431, %v2751
      %s2790 = scalar_lea.vmem %s1, 16
      %v2791 = vld [vmem:[%s2790] sm:$0x3]
      %vm2792 = vcmask 1044480
      %v2793 = vrot.slane %v368, 3
      %v2794 = vrot.slane %v369, 3
      %v2795 = vsel %vm2792, %v2793, %v2794
      %v2796 = vrot.slane %v370, 3
      %v2797 = vsel %vm2792, %v2794, %v2796
      %v2798 = vrot.slane %v371, 3
      %v2799 = vsel %vm2792, %v2796, %v2798
      %v2800 = vrot.slane %v372, 3
      %v2801 = vsel %vm2792, %v2798, %v2800
      %v2802 = vrot.slane %v373, 3
      %v2803 = vsel %vm2792, %v2800, %v2802
      %v2804 = vrot.slane %v374, 3
      %v2805 = vsel %vm2792, %v2802, %v2804
      %v2806 = vrot.slane %v375, 3
      %v2807 = vsel %vm2792, %v2804, %v2806
      %v2808 = vrot.slane %v376, 3
      %v2809 = vsel %vm2792, %v2806, %v2808
      %v2810 = vrot.slane %v377, 3
      %v2811 = vsel %vm2792, %v2808, %v2810
      %v2812 = vrot.slane %v378, 3
      %v2813 = vsel %vm2792, %v2810, %v2812
      %v2814 = vrot.slane %v379, 3
      %v2815 = vsel %vm2792, %v2812, %v2814
      %v2816 = vrot.slane %v380, 3
      %v2817 = vsel %vm2792, %v2814, %v2816
      %v2818 = vrot.slane %v381, 3
      %v2819 = vsel %vm2792, %v2816, %v2818
      %v2820 = vrot.slane %v382, 3
      %v2821 = vsel %vm2792, %v2818, %v2820
      %v2822 = vrot.slane %v383, 3
      %v2823 = vsel %vm2792, %v2820, %v2822
      %v2824 = vrot.slane %v1302, 3
      %v2825 = vsel %vm2792, %v2822, %v2824
      %v2826 = vrot.slane %v2204, 3
      %v2827 = vsel %vm2792, %v2824, %v2826
      %v2828 = vrot.slane %v2205, 3
      %v2829 = vsel %vm2792, %v2826, %v2828
      %v2831 = vsel %vm534, %v2795, 0
      %v2834 = vsel %vm534, %v2797, 0
      %v2837 = vsel %vm534, %v2799, 0
      %v2840 = vsel %vm534, %v2801, 0
      %v2843 = vsel %vm534, %v2803, 0
      %v2846 = vsel %vm534, %v2805, 0
      %v2849 = vsel %vm534, %v2807, 0
      %v2852 = vsel %vm534, %v2809, 0
      %v2855 = vsel %vm534, %v2811, 0
      %v2858 = vsel %vm534, %v2813, 0
      %v2861 = vsel %vm534, %v2815, 0
      %v2864 = vsel %vm534, %v2817, 0
      %v2867 = vsel %vm534, %v2819, 0
      %v2870 = vsel %vm534, %v2821, 0
      %v2873 = vsel %vm534, %v2823, 0
      %v2876 = vsel %vm534, %v2825, 0
      %v2879 = vsel %vm534, %v2827, 0
      %v2882 = vsel %vm534, %v2829, 0
      %v2885 = vsel %vm589, %v2791, 0
      %2887 = vmatprep.subr.bf16.mxu0 0
      %2888 = vmatpush1.bf16.msra.mxu0 %v2885
      %2889 = vmatprep.subr.bf16.mxu0 0
      %2890 = vmatpush1.bf16.msra.mxu0 0
      %2891 = vmatprep.subr.bf16.mxu0 0
      %2892 = vmatpush1.bf16.msra.mxu0 0
      %2893 = vmatprep.subr.bf16.mxu0 0
      %2894 = vmatpush1.bf16.msra.mxu0 0
      %2895 = vmatprep.subr.bf16.mxu0 0
      %2896 = vmatpush1.bf16.msra.mxu0 0
      %2897 = vmatprep.subr.bf16.mxu0 0
      %2898 = vmatpush1.bf16.msra.mxu0 0
      %2899 = vmatprep.subr.bf16.mxu0 0
      %2900 = vmatpush1.bf16.msra.mxu0 0
      %2901 = vmatprep.subr.bf16.mxu0 0
      %2902 = vmatpush1.bf16.msra.mxu0 0
      %2903 = vmatprep.subr.bf16.mxu0 0
      %2904 = vmatpush1.bf16.msra.mxu0 0
      %2905 = vmatprep.subr.bf16.mxu0 0
      %2906 = vmatpush1.bf16.msra.mxu0 0
      %2907 = vmatprep.subr.bf16.mxu0 0
      %2908 = vmatpush1.bf16.msra.mxu0 0
      %2909 = vmatprep.subr.bf16.mxu0 0
      %2910 = vmatpush1.bf16.msra.mxu0 0
      %2911 = vmatprep.subr.bf16.mxu0 0
      %2912 = vmatpush1.bf16.msra.mxu0 0
      %2913 = vmatprep.subr.bf16.mxu0 0
      %2914 = vmatpush1.bf16.msra.mxu0 0
      %2915 = vmatprep.subr.bf16.mxu0 0
      %2916 = vmatpush1.bf16.msra.mxu0 0
      %2917 = vmatprep.subr.bf16.mxu0 0
      %2918 = vmatpush1.bf16.msra.mxu0 0
      %2919 = vmatprep.mubr.bf16.mxu0 0
      %2920 = vmatmul.mubr.bf16.gmra.mrb[0].mxu0 %v2831
      %v2921 = vpop.f32.mrb[0].mxu0
      %v2922 = vadd.f32 0.0, %v2921
      %v2923 = vpop.f32.mrb[0].mxu0
      %v2924 = vpop.f32.mrb[0].mxu0
      %v2925 = vadd.f32 0.0, %v2924
      %v2926 = vpop.f32.mrb[0].mxu0
      %2927 = vmatprep.mubr.bf16.mxu0 0
      %2928 = vmatmul.mubr.bf16.gmra.mrb[0].mxu0 %v2834
      %v2929 = vpop.f32.mrb[0].mxu0
      %v2930 = vadd.f32 0.0, %v2929
      %v2931 = vpop.f32.mrb[0].mxu0
      %v2932 = vpop.f32.mrb[0].mxu0
      %v2933 = vadd.f32 0.0, %v2932
      %v2934 = vpop.f32.mrb[0].mxu0
      %2935 = vmatprep.mubr.bf16.mxu0 0
      %2936 = vmatmul.mubr.bf16.gmra.mrb[0].mxu0 %v2837
      %v2937 = vpop.f32.mrb[0].mxu0
      %v2938 = vadd.f32 0.0, %v2937
      %v2939 = vpop.f32.mrb[0].mxu0
      %v2940 = vpop.f32.mrb[0].mxu0
      %v2941 = vadd.f32 0.0, %v2940
      %v2942 = vpop.f32.mrb[0].mxu0
      %2943 = vmatprep.mubr.bf16.mxu0 0
      %2944 = vmatmul.mubr.bf16.gmra.mrb[0].mxu0 %v2840
      %v2945 = vpop.f32.mrb[0].mxu0
      %v2946 = vadd.f32 0.0, %v2945
      %v2947 = vpop.f32.mrb[0].mxu0
      %v2948 = vpop.f32.mrb[0].mxu0
      %v2949 = vadd.f32 0.0, %v2948
      %v2950 = vpop.f32.mrb[0].mxu0
      %2951 = vmatprep.mubr.bf16.mxu0 0
      %2952 = vmatmul.mubr.bf16.gmra.mrb[0].mxu0 %v2843
      %v2953 = vpop.f32.mrb[0].mxu0
      %v2954 = vadd.f32 0.0, %v2953
      %v2955 = vpop.f32.mrb[0].mxu0
      %v2956 = vpop.f32.mrb[0].mxu0
      %v2957 = vadd.f32 0.0, %v2956
      %v2958 = vpop.f32.mrb[0].mxu0
      %2959 = vmatprep.mubr.bf16.mxu0 0
      %2960 = vmatmul.mubr.bf16.gmra.mrb[0].mxu0 %v2846
      %v2961 = vpop.f32.mrb[0].mxu0
      %v2962 = vadd.f32 0.0, %v2961
      %v2963 = vpop.f32.mrb[0].mxu0
      %v2964 = vpop.f32.mrb[0].mxu0
      %v2965 = vadd.f32 0.0, %v2964
      %v2966 = vpop.f32.mrb[0].mxu0
      %2967 = vmatprep.mubr.bf16.mxu0 0
      %2968 = vmatmul.mubr.bf16.gmra.mrb[0].mxu0 %v2849
      %v2969 = vpop.f32.mrb[0].mxu0
      %v2970 = vadd.f32 0.0, %v2969
      %v2971 = vpop.f32.mrb[0].mxu0
      %v2972 = vpop.f32.mrb[0].mxu0
      %v2973 = vadd.f32 0.0, %v2972
      %v2974 = vpop.f32.mrb[0].mxu0
      %2975 = vmatprep.mubr.bf16.mxu0 0
      %2976 = vmatmul.mubr.bf16.gmra.mrb[0].mxu0 %v2852
      %v2977 = vpop.f32.mrb[0].mxu0
      %v2978 = vadd.f32 0.0, %v2977
      %v2979 = vpop.f32.mrb[0].mxu0
      %v2980 = vpop.f32.mrb[0].mxu0
      %v2981 = vadd.f32 0.0, %v2980
      %v2982 = vpop.f32.mrb[0].mxu0
      %2983 = vmatprep.mubr.bf16.mxu0 0
      %2984 = vmatmul.mubr.bf16.gmra.mrb[0].mxu0 %v2855
      %v2985 = vpop.f32.mrb[0].mxu0
      %v2986 = vadd.f32 0.0, %v2985
      %v2987 = vpop.f32.mrb[0].mxu0
      %v2988 = vpop.f32.mrb[0].mxu0
      %v2989 = vadd.f32 0.0, %v2988
      %v2990 = vpop.f32.mrb[0].mxu0
      %2991 = vmatprep.mubr.bf16.mxu0 0
      %2992 = vmatmul.mubr.bf16.gmra.mrb[0].mxu0 %v2858
      %v2993 = vpop.f32.mrb[0].mxu0
      %v2994 = vadd.f32 0.0, %v2993
      %v2995 = vpop.f32.mrb[0].mxu0
      %v2996 = vpop.f32.mrb[0].mxu0
      %v2997 = vadd.f32 0.0, %v2996
      %v2998 = vpop.f32.mrb[0].mxu0
      %2999 = vmatprep.mubr.bf16.mxu0 0
      %3000 = vmatmul.mubr.bf16.gmra.mrb[0].mxu0 %v2861
      %v3001 = vpop.f32.mrb[0].mxu0
      %v3002 = vadd.f32 0.0, %v3001
      %v3003 = vpop.f32.mrb[0].mxu0
      %v3004 = vpop.f32.mrb[0].mxu0
      %v3005 = vadd.f32 0.0, %v3004
      %v3006 = vpop.f32.mrb[0].mxu0
      %3007 = vmatprep.mubr.bf16.mxu0 0
      %3008 = vmatmul.mubr.bf16.gmra.mrb[0].mxu0 %v2864
      %v3009 = vpop.f32.mrb[0].mxu0
      %v3010 = vadd.f32 0.0, %v3009
      %v3011 = vpop.f32.mrb[0].mxu0
      %v3012 = vpop.f32.mrb[0].mxu0
      %v3013 = vadd.f32 0.0, %v3012
      %v3014 = vpop.f32.mrb[0].mxu0
      %3015 = vmatprep.mubr.bf16.mxu0 0
      %3016 = vmatmul.mubr.bf16.gmra.mrb[0].mxu0 %v2867
      %v3017 = vpop.f32.mrb[0].mxu0
      %v3018 = vadd.f32 0.0, %v3017
      %v3019 = vpop.f32.mrb[0].mxu0
      %v3020 = vpop.f32.mrb[0].mxu0
      %v3021 = vadd.f32 0.0, %v3020
      %v3022 = vpop.f32.mrb[0].mxu0
      %3023 = vmatprep.mubr.bf16.mxu0 0
      %3024 = vmatmul.mubr.bf16.gmra.mrb[0].mxu0 %v2870
      %v3025 = vpop.f32.mrb[0].mxu0
      %v3026 = vadd.f32 0.0, %v3025
      %v3027 = vpop.f32.mrb[0].mxu0
      %v3028 = vpop.f32.mrb[0].mxu0
      %v3029 = vadd.f32 0.0, %v3028
      %v3030 = vpop.f32.mrb[0].mxu0
      %3031 = vmatprep.mubr.bf16.mxu0 0
      %3032 = vmatmul.mubr.bf16.gmra.mrb[0].mxu0 %v2873
      %v3033 = vpop.f32.mrb[0].mxu0
      %v3034 = vadd.f32 0.0, %v3033
      %v3035 = vpop.f32.mrb[0].mxu0
      %v3036 = vpop.f32.mrb[0].mxu0
      %v3037 = vadd.f32 0.0, %v3036
      %v3038 = vpop.f32.mrb[0].mxu0
      %3039 = vmatprep.mubr.bf16.mxu0 0
      %3040 = vmatmul.mubr.bf16.gmra.mrb[0].mxu0 %v2876
      %v3041 = vpop.f32.mrb[0].mxu0
      %v3042 = vadd.f32 0.0, %v3041
      %v3043 = vpop.f32.mrb[0].mxu0
      %v3044 = vpop.f32.mrb[0].mxu0
      %v3045 = vadd.f32 0.0, %v3044
      %v3046 = vpop.f32.mrb[0].mxu0
      %3047 = vmatprep.mubr.bf16.mxu0 0
      %3048 = vmatmul.mubr.bf16.gmra.mrb[0].mxu0 %v2879
      %v3049 = vpop.f32.mrb[0].mxu0
      %v3050 = vadd.f32 0.0, %v3049
      %v3051 = vpop.f32.mrb[0].mxu0
      %v3052 = vpop.f32.mrb[0].mxu0
      %v3053 = vadd.f32 0.0, %v3052
      %v3054 = vpop.f32.mrb[0].mxu0
      %3055 = vmatprep.mubr.bf16.mxu0 0
      %3056 = vmatmul.mubr.bf16.gmra.mrb[0].mxu0 %v2882
      %v3057 = vpop.f32.mrb[0].mxu0
      %v3058 = vadd.f32 0.0, %v3057
      %v3059 = vpop.f32.mrb[0].mxu0
      %v3060 = vpop.f32.mrb[0].mxu0
      %v3061 = vadd.f32 0.0, %v3060
      %v3062 = vpop.f32.mrb[0].mxu0
      %3063 = vdwg.mxu0
      %v3064 = vadd.f32 %v2754, %v2922
      %v3065 = vadd.f32 %v2755, %v2925
      %v3066 = vadd.f32 %v2756, %v2930
      %v3067 = vadd.f32 %v2757, %v2933
      %v3068 = vadd.f32 %v2758, %v2938
      %v3069 = vadd.f32 %v2759, %v2941
      %v3070 = vadd.f32 %v2760, %v2946
      %v3071 = vadd.f32 %v2761, %v2949
      %v3072 = vadd.f32 %v2762, %v2954
      %v3073 = vadd.f32 %v2763, %v2957
      %v3074 = vadd.f32 %v2764, %v2962
      %v3075 = vadd.f32 %v2765, %v2965
      %v3076 = vadd.f32 %v2766, %v2970
      %v3077 = vadd.f32 %v2767, %v2973
      %v3078 = vadd.f32 %v2768, %v2978
      %v3079 = vadd.f32 %v2769, %v2981
      %v3080 = vadd.f32 %v2770, %v2986
      %v3081 = vadd.f32 %v2771, %v2989
      %v3082 = vadd.f32 %v2772, %v2994
      %v3083 = vadd.f32 %v2773, %v2997
      %v3084 = vadd.f32 %v2774, %v3002
      %v3085 = vadd.f32 %v2775, %v3005
      %v3086 = vadd.f32 %v2776, %v3010
      %v3087 = vadd.f32 %v2777, %v3013
      %v3088 = vadd.f32 %v2778, %v3018
      %v3089 = vadd.f32 %v2779, %v3021
      %v3090 = vadd.f32 %v2780, %v3026
      %v3091 = vadd.f32 %v2781, %v3029
      %v3092 = vadd.f32 %v2782, %v3034
      %v3093 = vadd.f32 %v2783, %v3037
      %v3094 = vadd.f32 %v2784, %v3042
      %v3095 = vadd.f32 %v2785, %v3045
      %v3096 = vadd.f32 %v2786, %v3050
      %v3097 = vadd.f32 %v2787, %v3053
      %v3098 = vadd.f32 %v2788, %v3058
      %v3099 = vadd.f32 %v2789, %v3061
      %v3100 = vld [vmem:[%s2] sm:$0x1]
      %v3102 = vlaneseq
      %v3103 = vshrl.u32 %v3102, 7
      %v3104 = vsub.s32 0, %v3103
      %v3105 = vrot.slane %v3100, %v3104
      %v3107 = vadd.f32 %v3064, %v3105
      %v3108 = vadd.f32 %v3065, %v3105
      %v3109 = vadd.f32 %v3066, %v3105
      %v3110 = vadd.f32 %v3067, %v3105
      %v3111 = vadd.f32 %v3068, %v3105
      %v3112 = vadd.f32 %v3069, %v3105
      %v3113 = vadd.f32 %v3070, %v3105
      %v3114 = vadd.f32 %v3071, %v3105
      %v3115 = vadd.f32 %v3072, %v3105
      %v3116 = vadd.f32 %v3073, %v3105
      %v3117 = vadd.f32 %v3074, %v3105
      %v3118 = vadd.f32 %v3075, %v3105
      %v3119 = vadd.f32 %v3076, %v3105
      %v3120 = vadd.f32 %v3077, %v3105
      %v3121 = vadd.f32 %v3078, %v3105
      %v3122 = vadd.f32 %v3079, %v3105
      %v3123 = vadd.f32 %v3080, %v3105
      %v3124 = vadd.f32 %v3081, %v3105
      %v3125 = vadd.f32 %v3082, %v3105
      %v3126 = vadd.f32 %v3083, %v3105
      %v3127 = vadd.f32 %v3084, %v3105
      %v3128 = vadd.f32 %v3085, %v3105
      %v3129 = vadd.f32 %v3086, %v3105
      %v3130 = vadd.f32 %v3087, %v3105
      %v3131 = vadd.f32 %v3088, %v3105
      %v3132 = vadd.f32 %v3089, %v3105
      %v3133 = vadd.f32 %v3090, %v3105
      %v3134 = vadd.f32 %v3091, %v3105
      %v3135 = vadd.f32 %v3092, %v3105
      %v3136 = vadd.f32 %v3093, %v3105
      %v3137 = vadd.f32 %v3094, %v3105
      %v3138 = vadd.f32 %v3095, %v3105
      %v3139 = vadd.f32 %v3096, %v3105
      %v3140 = vadd.f32 %v3097, %v3105
      %v3141 = vadd.f32 %v3098, %v3105
      %v3142 = vadd.f32 %v3099, %v3105
      %3143 = vst [vmem:[%s246] sm:$0xff] %v3107
      %3144 = vst [vmem:[%s246 + $0x8] sm:$0xff] %v3108
      %3145 = vst [vmem:[%s246 + $0x10] sm:$0xff] %v3109
      %3146 = vst [vmem:[%s246 + $0x18] sm:$0xff] %v3110
      %3147 = vst [vmem:[%s246 + $0x20] sm:$0xff] %v3111
      %3148 = vst [vmem:[%s246 + $0x28] sm:$0xff] %v3112
      %3149 = vst [vmem:[%s246 + $0x30] sm:$0xff] %v3113
      %3150 = vst [vmem:[%s246 + $0x38] sm:$0xff] %v3114
      %3151 = vst [vmem:[%s246 + $0x40] sm:$0xff] %v3115
      %3152 = vst [vmem:[%s246 + $0x48] sm:$0xff] %v3116
      %3153 = vst [vmem:[%s246 + $0x50] sm:$0xff] %v3117
      %3154 = vst [vmem:[%s246 + $0x58] sm:$0xff] %v3118
      %3155 = vst [vmem:[%s246 + $0x60] sm:$0xff] %v3119
      %3156 = vst [vmem:[%s246 + $0x68] sm:$0xff] %v3120
      %3157 = vst [vmem:[%s246 + $0x70] sm:$0xff] %v3121
      %3158 = vst [vmem:[%s246 + $0x78] sm:$0xff] %v3122
      %3159 = vst [vmem:[%s246 + $0x80] sm:$0xff] %v3123
      %3160 = vst [vmem:[%s246 + $0x88] sm:$0xff] %v3124
      %3161 = vst [vmem:[%s246 + $0x90] sm:$0xff] %v3125
      %3162 = vst [vmem:[%s246 + $0x98] sm:$0xff] %v3126
      %3163 = vst [vmem:[%s246 + $0xa0] sm:$0xff] %v3127
      %3164 = vst [vmem:[%s246 + $0xa8] sm:$0xff] %v3128
      %3165 = vst [vmem:[%s246 + $0xb0] sm:$0xff] %v3129
      %3166 = vst [vmem:[%s246 + $0xb8] sm:$0xff] %v3130
      %3167 = vst [vmem:[%s246 + $0xc0] sm:$0xff] %v3131
      %3168 = vst [vmem:[%s246 + $0xc8] sm:$0xff] %v3132
      %3169 = vst [vmem:[%s246 + $0xd0] sm:$0xff] %v3133
      %3170 = vst [vmem:[%s246 + $0xd8] sm:$0xff] %v3134
      %3171 = vst [vmem:[%s246 + $0xe0] sm:$0xff] %v3135
      %3172 = vst [vmem:[%s246 + $0xe8] sm:$0xff] %v3136
      %3173 = vst [vmem:[%s246 + $0xf0] sm:$0xff] %v3137
      %3174 = vst [vmem:[%s246 + $0xf8] sm:$0xff] %v3138
      %3175 = vst [vmem:[%s246 + $0x100] sm:$0xff] %v3139
      %3176 = vst [vmem:[%s246 + $0x108] sm:$0xff] %v3140
      %3177 = vst [vmem:[%s246 + $0x110] sm:$0xff] %v3141
      %3178 = vst [vmem:[%s246 + $0x118] sm:$0xff] %v3142
      %p3179 = scmp.eq.s32.totalorder %s18, 0
      // Predicated region
      $region37: #{conv_block_forward.4} parent=35 // pred_check
        %p3180 = pneg %p3179
      $region38: #{conv_block_forward.4} parent=35 // pred_check_branch
        %3182 = sbr.rel (%p3180) target = $region40
      $region39: #{conv_block_forward.4} parent=35 // pred_region
        %3183 = vst [vmem:[%s5] sm:$0x1] 0.0
        %3184 = vst [vmem:[%s6] sm:$0x1] 0.0
      $region40: #{conv_block_forward.4} parent=35 // pred_fallthru
        _
      %v3185 = vld [vmem:[%s3] sm:$0xff]
      %v3186 = vld [vmem:[%s3 + $0x8] sm:$0xff]
      %v3187 = vld [vmem:[%s3 + $0x10] sm:$0xff]
      %v3188 = vld [vmem:[%s3 + $0x18] sm:$0xff]
      %v3189 = vld [vmem:[%s3 + $0x20] sm:$0xff]
      %v3190 = vld [vmem:[%s3 + $0x28] sm:$0xff]
      %v3191 = vld [vmem:[%s3 + $0x30] sm:$0xff]
      %v3192 = vld [vmem:[%s3 + $0x38] sm:$0xff]
      %v3193 = vld [vmem:[%s3 + $0x40] sm:$0xff]
      %v3194 = vld [vmem:[%s3 + $0x48] sm:$0xff]
      %v3195 = vld [vmem:[%s3 + $0x50] sm:$0xff]
      %v3196 = vld [vmem:[%s3 + $0x58] sm:$0xff]
      %v3197 = vld [vmem:[%s3 + $0x60] sm:$0xff]
      %v3198 = vld [vmem:[%s3 + $0x68] sm:$0xff]
      %v3199 = vld [vmem:[%s3 + $0x70] sm:$0xff]
      %v3200 = vld [vmem:[%s3 + $0x78] sm:$0xff]
      %v3201 = vld [vmem:[%s3 + $0x80] sm:$0xff]
      %v3202 = vld [vmem:[%s3 + $0x88] sm:$0xff]
      %v3203 = vld [vmem:[%s3 + $0x90] sm:$0xff]
      %v3204 = vld [vmem:[%s3 + $0x98] sm:$0xff]
      %v3205 = vld [vmem:[%s3 + $0xa0] sm:$0xff]
      %v3206 = vld [vmem:[%s3 + $0xa8] sm:$0xff]
      %v3207 = vld [vmem:[%s3 + $0xb0] sm:$0xff]
      %v3208 = vld [vmem:[%s3 + $0xb8] sm:$0xff]
      %v3209 = vld [vmem:[%s3 + $0xc0] sm:$0xff]
      %v3210 = vld [vmem:[%s3 + $0xc8] sm:$0xff]
      %v3211 = vld [vmem:[%s3 + $0xd0] sm:$0xff]
      %v3212 = vld [vmem:[%s3 + $0xd8] sm:$0xff]
      %v3213 = vld [vmem:[%s3 + $0xe0] sm:$0xff]
      %v3214 = vld [vmem:[%s3 + $0xe8] sm:$0xff]
      %v3215 = vld [vmem:[%s3 + $0xf0] sm:$0xff]
      %v3216 = vld [vmem:[%s3 + $0xf8] sm:$0xff]
      %v3217 = vld [vmem:[%s3 + $0x100] sm:$0xff]
      %v3218 = vld [vmem:[%s3 + $0x108] sm:$0xff]
      %v3219 = vld [vmem:[%s3 + $0x110] sm:$0xff]
      %v3220 = vld [vmem:[%s3 + $0x118] sm:$0xff]
      %3222 = vset.pattern.permute.xlu0 0
      %3223 = vperm.xlu0 %3222, %v3185
      %v3224 = vpop.permute.xlu0 %3223
      %3227 = vset.pattern.permute.xlu0 0
      %3228 = vperm.xlu0 %3227, %v3186
      %v3229 = vpop.permute.xlu0 %3228
      %3232 = vset.pattern.permute.xlu0 0
      %3233 = vperm.xlu0 %3232, %v3187
      %v3234 = vpop.permute.xlu0 %3233
      %3237 = vset.pattern.permute.xlu0 0
      %3238 = vperm.xlu0 %3237, %v3188
      %v3239 = vpop.permute.xlu0 %3238
      %3242 = vset.pattern.permute.xlu0 0
      %3243 = vperm.xlu0 %3242, %v3189
      %v3244 = vpop.permute.xlu0 %3243
      %3247 = vset.pattern.permute.xlu0 0
      %3248 = vperm.xlu0 %3247, %v3190
      %v3249 = vpop.permute.xlu0 %3248
      %3252 = vset.pattern.permute.xlu0 0
      %3253 = vperm.xlu0 %3252, %v3191
      %v3254 = vpop.permute.xlu0 %3253
      %3257 = vset.pattern.permute.xlu0 0
      %3258 = vperm.xlu0 %3257, %v3192
      %v3259 = vpop.permute.xlu0 %3258
      %3262 = vset.pattern.permute.xlu0 0
      %3263 = vperm.xlu0 %3262, %v3193
      %v3264 = vpop.permute.xlu0 %3263
      %3267 = vset.pattern.permute.xlu0 0
      %3268 = vperm.xlu0 %3267, %v3194
      %v3269 = vpop.permute.xlu0 %3268
      %3272 = vset.pattern.permute.xlu0 0
      %3273 = vperm.xlu0 %3272, %v3195
      %v3274 = vpop.permute.xlu0 %3273
      %3277 = vset.pattern.permute.xlu0 0
      %3278 = vperm.xlu0 %3277, %v3196
      %v3279 = vpop.permute.xlu0 %3278
      %3282 = vset.pattern.permute.xlu0 0
      %3283 = vperm.xlu0 %3282, %v3197
      %v3284 = vpop.permute.xlu0 %3283
      %3287 = vset.pattern.permute.xlu0 0
      %3288 = vperm.xlu0 %3287, %v3198
      %v3289 = vpop.permute.xlu0 %3288
      %3292 = vset.pattern.permute.xlu0 0
      %3293 = vperm.xlu0 %3292, %v3199
      %v3294 = vpop.permute.xlu0 %3293
      %3297 = vset.pattern.permute.xlu0 0
      %3298 = vperm.xlu0 %3297, %v3200
      %v3299 = vpop.permute.xlu0 %3298
      %3302 = vset.pattern.permute.xlu0 0
      %3303 = vperm.xlu0 %3302, %v3201
      %v3304 = vpop.permute.xlu0 %3303
      %3307 = vset.pattern.permute.xlu0 0
      %3308 = vperm.xlu0 %3307, %v3202
      %v3309 = vpop.permute.xlu0 %3308
      %3312 = vset.pattern.permute.xlu0 0
      %3313 = vperm.xlu0 %3312, %v3203
      %v3314 = vpop.permute.xlu0 %3313
      %3317 = vset.pattern.permute.xlu0 0
      %3318 = vperm.xlu0 %3317, %v3204
      %v3319 = vpop.permute.xlu0 %3318
      %3322 = vset.pattern.permute.xlu0 0
      %3323 = vperm.xlu0 %3322, %v3205
      %v3324 = vpop.permute.xlu0 %3323
      %3327 = vset.pattern.permute.xlu0 0
      %3328 = vperm.xlu0 %3327, %v3206
      %v3329 = vpop.permute.xlu0 %3328
      %3332 = vset.pattern.permute.xlu0 0
      %3333 = vperm.xlu0 %3332, %v3207
      %v3334 = vpop.permute.xlu0 %3333
      %3337 = vset.pattern.permute.xlu0 0
      %3338 = vperm.xlu0 %3337, %v3208
      %v3339 = vpop.permute.xlu0 %3338
      %3342 = vset.pattern.permute.xlu0 0
      %3343 = vperm.xlu0 %3342, %v3209
      %v3344 = vpop.permute.xlu0 %3343
      %3347 = vset.pattern.permute.xlu0 0
      %3348 = vperm.xlu0 %3347, %v3210
      %v3349 = vpop.permute.xlu0 %3348
      %3352 = vset.pattern.permute.xlu0 0
      %3353 = vperm.xlu0 %3352, %v3211
      %v3354 = vpop.permute.xlu0 %3353
      %3357 = vset.pattern.permute.xlu0 0
      %3358 = vperm.xlu0 %3357, %v3212
      %v3359 = vpop.permute.xlu0 %3358
      %3362 = vset.pattern.permute.xlu0 0
      %3363 = vperm.xlu0 %3362, %v3213
      %v3364 = vpop.permute.xlu0 %3363
      %3367 = vset.pattern.permute.xlu0 0
      %3368 = vperm.xlu0 %3367, %v3214
      %v3369 = vpop.permute.xlu0 %3368
      %3372 = vset.pattern.permute.xlu0 0
      %3373 = vperm.xlu0 %3372, %v3215
      %v3374 = vpop.permute.xlu0 %3373
      %3377 = vset.pattern.permute.xlu0 0
      %3378 = vperm.xlu0 %3377, %v3216
      %v3379 = vpop.permute.xlu0 %3378
      %3382 = vset.pattern.permute.xlu0 0
      %3383 = vperm.xlu0 %3382, %v3217
      %v3384 = vpop.permute.xlu0 %3383
      %3387 = vset.pattern.permute.xlu0 0
      %3388 = vperm.xlu0 %3387, %v3218
      %v3389 = vpop.permute.xlu0 %3388
      %3392 = vset.pattern.permute.xlu0 0
      %3393 = vperm.xlu0 %3392, %v3219
      %v3394 = vpop.permute.xlu0 %3393
      %3397 = vset.pattern.permute.xlu0 0
      %3398 = vperm.xlu0 %3397, %v3220
      %v3399 = vpop.permute.xlu0 %3398
      %v3401 = vmul.f32 %v3107, %v3224
      %v3402 = vmul.f32 %v3108, %v3229
      %v3403 = vmul.f32 %v3109, %v3234
      %v3404 = vmul.f32 %v3110, %v3239
      %v3405 = vmul.f32 %v3111, %v3244
      %v3406 = vmul.f32 %v3112, %v3249
      %v3407 = vmul.f32 %v3113, %v3254
      %v3408 = vmul.f32 %v3114, %v3259
      %v3409 = vmul.f32 %v3115, %v3264
      %v3410 = vmul.f32 %v3116, %v3269
      %v3411 = vmul.f32 %v3117, %v3274
      %v3412 = vmul.f32 %v3118, %v3279
      %v3413 = vmul.f32 %v3119, %v3284
      %v3414 = vmul.f32 %v3120, %v3289
      %v3415 = vmul.f32 %v3121, %v3294
      %v3416 = vmul.f32 %v3122, %v3299
      %v3417 = vmul.f32 %v3123, %v3304
      %v3418 = vmul.f32 %v3124, %v3309
      %v3419 = vmul.f32 %v3125, %v3314
      %v3420 = vmul.f32 %v3126, %v3319
      %v3421 = vmul.f32 %v3127, %v3324
      %v3422 = vmul.f32 %v3128, %v3329
      %v3423 = vmul.f32 %v3129, %v3334
      %v3424 = vmul.f32 %v3130, %v3339
      %v3425 = vmul.f32 %v3131, %v3344
      %v3426 = vmul.f32 %v3132, %v3349
      %v3427 = vmul.f32 %v3133, %v3354
      %v3428 = vmul.f32 %v3134, %v3359
      %v3429 = vmul.f32 %v3135, %v3364
      %v3430 = vmul.f32 %v3136, %v3369
      %v3431 = vmul.f32 %v3137, %v3374
      %v3432 = vmul.f32 %v3138, %v3379
      %v3433 = vmul.f32 %v3139, %v3384
      %v3434 = vmul.f32 %v3140, %v3389
      %v3435 = vmul.f32 %v3141, %v3394
      %v3436 = vmul.f32 %v3142, %v3399
      %v3437 = vld [vmem:[%s5] sm:$0x1]
      %v3438 = vadd.f32 %v3401, %v3402
      %v3439 = vadd.f32 %v3438, %v3403
      %v3440 = vadd.f32 %v3439, %v3404
      %v3441 = vadd.f32 %v3440, %v3405
      %v3442 = vadd.f32 %v3441, %v3406
      %v3443 = vadd.f32 %v3442, %v3407
      %v3444 = vadd.f32 %v3443, %v3408
      %v3445 = vadd.f32 %v3444, %v3409
      %v3446 = vadd.f32 %v3445, %v3410
      %v3447 = vadd.f32 %v3446, %v3411
      %v3448 = vadd.f32 %v3447, %v3412
      %v3449 = vadd.f32 %v3448, %v3413
      %v3450 = vadd.f32 %v3449, %v3414
      %v3451 = vadd.f32 %v3450, %v3415
      %v3452 = vadd.f32 %v3451, %v3416
      %v3453 = vadd.f32 %v3452, %v3417
      %v3454 = vadd.f32 %v3453, %v3418
      %v3455 = vadd.f32 %v3454, %v3419
      %v3456 = vadd.f32 %v3455, %v3420
      %v3457 = vadd.f32 %v3456, %v3421
      %v3458 = vadd.f32 %v3457, %v3422
      %v3459 = vadd.f32 %v3458, %v3423
      %v3460 = vadd.f32 %v3459, %v3424
      %v3461 = vadd.f32 %v3460, %v3425
      %v3462 = vadd.f32 %v3461, %v3426
      %v3463 = vadd.f32 %v3462, %v3427
      %v3464 = vadd.f32 %v3463, %v3428
      %v3465 = vadd.f32 %v3464, %v3429
      %v3466 = vadd.f32 %v3465, %v3430
      %v3467 = vadd.f32 %v3466, %v3431
      %v3468 = vadd.f32 %v3467, %v3432
      %v3469 = vadd.f32 %v3468, %v3433
      %v3470 = vadd.f32 %v3469, %v3434
      %v3471 = vadd.f32 %v3470, %v3435
      %v3472 = vadd.f32 %v3471, %v3436
      %v3473 = vrot.slane %v3472, 4
      %v3474 = vadd.f32 %v3472, %v3473
      %v3475 = vrot.slane %v3474, 2
      %v3476 = vadd.f32 %v3474, %v3475
      %v3477 = vrot.slane %v3476, 1
      %v3478 = vadd.f32 %v3476, %v3477
      %v3479 = vadd.f32 %v3437, %v3478
      %3480 = vst [vmem:[%s5] sm:$0x1] %v3479
      %v3481 = vld [vmem:[%s6] sm:$0x1]
      %v3482 = vmul.f32 %v3401, %v3401
      %v3483 = vmul.f32 %v3402, %v3402
      %v3484 = vmul.f32 %v3403, %v3403
      %v3485 = vmul.f32 %v3404, %v3404
      %v3486 = vmul.f32 %v3405, %v3405
      %v3487 = vmul.f32 %v3406, %v3406
      %v3488 = vmul.f32 %v3407, %v3407
      %v3489 = vmul.f32 %v3408, %v3408
      %v3490 = vmul.f32 %v3409, %v3409
      %v3491 = vmul.f32 %v3410, %v3410
      %v3492 = vmul.f32 %v3411, %v3411
      %v3493 = vmul.f32 %v3412, %v3412
      %v3494 = vmul.f32 %v3413, %v3413
      %v3495 = vmul.f32 %v3414, %v3414
      %v3496 = vmul.f32 %v3415, %v3415
      %v3497 = vmul.f32 %v3416, %v3416
      %v3498 = vmul.f32 %v3417, %v3417
      %v3499 = vmul.f32 %v3418, %v3418
      %v3500 = vmul.f32 %v3419, %v3419
      %v3501 = vmul.f32 %v3420, %v3420
      %v3502 = vmul.f32 %v3421, %v3421
      %v3503 = vmul.f32 %v3422, %v3422
      %v3504 = vmul.f32 %v3423, %v3423
      %v3505 = vmul.f32 %v3424, %v3424
      %v3506 = vmul.f32 %v3425, %v3425
      %v3507 = vmul.f32 %v3426, %v3426
      %v3508 = vmul.f32 %v3427, %v3427
      %v3509 = vmul.f32 %v3428, %v3428
      %v3510 = vmul.f32 %v3429, %v3429
      %v3511 = vmul.f32 %v3430, %v3430
      %v3512 = vmul.f32 %v3431, %v3431
      %v3513 = vmul.f32 %v3432, %v3432
      %v3514 = vmul.f32 %v3433, %v3433
      %v3515 = vmul.f32 %v3434, %v3434
      %v3516 = vmul.f32 %v3435, %v3435
      %v3517 = vmul.f32 %v3436, %v3436
      %v3518 = vadd.f32 %v3482, %v3483
      %v3519 = vadd.f32 %v3518, %v3484
      %v3520 = vadd.f32 %v3519, %v3485
      %v3521 = vadd.f32 %v3520, %v3486
      %v3522 = vadd.f32 %v3521, %v3487
      %v3523 = vadd.f32 %v3522, %v3488
      %v3524 = vadd.f32 %v3523, %v3489
      %v3525 = vadd.f32 %v3524, %v3490
      %v3526 = vadd.f32 %v3525, %v3491
      %v3527 = vadd.f32 %v3526, %v3492
      %v3528 = vadd.f32 %v3527, %v3493
      %v3529 = vadd.f32 %v3528, %v3494
      %v3530 = vadd.f32 %v3529, %v3495
      %v3531 = vadd.f32 %v3530, %v3496
      %v3532 = vadd.f32 %v3531, %v3497
      %v3533 = vadd.f32 %v3532, %v3498
      %v3534 = vadd.f32 %v3533, %v3499
      %v3535 = vadd.f32 %v3534, %v3500
      %v3536 = vadd.f32 %v3535, %v3501
      %v3537 = vadd.f32 %v3536, %v3502
      %v3538 = vadd.f32 %v3537, %v3503
      %v3539 = vadd.f32 %v3538, %v3504
      %v3540 = vadd.f32 %v3539, %v3505
      %v3541 = vadd.f32 %v3540, %v3506
      %v3542 = vadd.f32 %v3541, %v3507
      %v3543 = vadd.f32 %v3542, %v3508
      %v3544 = vadd.f32 %v3543, %v3509
      %v3545 = vadd.f32 %v3544, %v3510
      %v3546 = vadd.f32 %v3545, %v3511
      %v3547 = vadd.f32 %v3546, %v3512
      %v3548 = vadd.f32 %v3547, %v3513
      %v3549 = vadd.f32 %v3548, %v3514
      %v3550 = vadd.f32 %v3549, %v3515
      %v3551 = vadd.f32 %v3550, %v3516
      %v3552 = vadd.f32 %v3551, %v3517
      %v3553 = vrot.slane %v3552, 4
      %v3554 = vadd.f32 %v3552, %v3553
      %v3555 = vrot.slane %v3554, 2
      %v3556 = vadd.f32 %v3554, %v3555
      %v3557 = vrot.slane %v3556, 1
      %v3558 = vadd.f32 %v3556, %v3557
      %v3559 = vadd.f32 %v3481, %v3558
      %3560 = vst [vmem:[%s6] sm:$0x1] %v3559
      %p3561 = scmp.lt.s32.totalorder %s18, 1
      %s3562 = scalar_select %p3561, %s18, 1
      %s3563 = smul.addr %s3562, 36
      %s3564 = smul.addr %s3563, 8
      %s3565 = scalar_lea.vmem %s4, %s3564
      // Predicated region
      $region41: #{conv_block_forward.4} parent=35 // pred_check
        %p3566 = pneg %p125
      $region42: #{conv_block_forward.4} parent=35 // pred_check_branch
        %3568 = sbr.rel (%p3566) target = $region44
      $region43: #{conv_block_forward.4} parent=35 // pred_region
        _
      $region44: #{conv_block_forward.4} parent=35 // pred_fallthru
        _
      // Predicated region
      $region45: #{conv_block_forward.4} parent=35 // pred_check
        %p3569 = pneg %p146
      $region46: #{conv_block_forward.4} parent=35 // pred_check_branch
        %3571 = sbr.rel (%p3569) target = $region48
      $region47: #{conv_block_forward.4} parent=35 // pred_region
        _
      $region48: #{conv_block_forward.4} parent=35 // pred_fallthru
        _
      // Predicated region
      $region49: #{conv_block_forward.4} parent=35 // pred_check
        %p3572 = pneg %p167
      $region50: #{conv_block_forward.4} parent=35 // pred_check_branch
        %3574 = sbr.rel (%p3572) target = $region52
      $region51: #{conv_block_forward.4} parent=35 // pred_region
        _
      $region52: #{conv_block_forward.4} parent=35 // pred_fallthru
        _
      // Predicated region
      $region53: #{conv_block_forward.4} parent=35 // pred_check
        %p3575 = pneg %p146
      $region54: #{conv_block_forward.4} parent=35 // pred_check_branch
        %3577 = sbr.rel (%p3575) target = $region56
      $region55: #{conv_block_forward.4} parent=35 // pred_region
        _
      $region56: #{conv_block_forward.4} parent=35 // pred_fallthru
        _
      // Predicated region
      $region57: #{conv_block_forward.4} parent=35 // pred_check
        %p3578 = pneg %p167
      $region58: #{conv_block_forward.4} parent=35 // pred_check_branch
        %3580 = sbr.rel (%p3578) target = $region60
      $region59: #{conv_block_forward.4} parent=35 // pred_region
        _
      $region60: #{conv_block_forward.4} parent=35 // pred_fallthru
        _
    $region36: #{conv_block_forward.4} parent=5 // pred_fallthru
      _
    %p3581 = scmp.le.s32.totalorder 2, %s13
    // Predicated region
    $region61: #{conv_block_forward.4} parent=5 // pred_check
      %p3582 = pneg %p3581
    $region62: #{conv_block_forward.4} parent=5 // pred_check_branch
      %3584 = sbr.rel (%p3582) target = $region64
    $region63: #{conv_block_forward.4} parent=5 // pred_region
      %s3585 = ssub.s32 %s13, 2
      // Predicated region
      $region65: #{conv_block_forward.4} parent=63 // pred_check
        %p3586 = pneg %p131
      $region66: #{conv_block_forward.4} parent=63 // pred_check_branch
        %3588 = sbr.rel (%p3586) target = $region68
      $region67: #{conv_block_forward.4} parent=63 // pred_region
        %p3589 = scmp.lt.s32.totalorder %s19, 1
        %s3590 = scalar_select %p3589, %s19, 1
        %s3591 = smul.addr %s3590, 36
        %s3592 = smul.addr %s3591, 8
        %s3593 = scalar_lea.vmem %s4, %s3592
      $region68: #{conv_block_forward.4} parent=63 // pred_fallthru
        _
    $region64: #{conv_block_forward.4} parent=5 // pred_fallthru
      _
  $region6: #{conv_block_forward.4} parent=0 // loop_footer
    %s17 = sadd.s32 1, %s13
  $region7: #{conv_block_forward.4} parent=0 // loop_footer_branch
    %12 = sbr.rel target = $region3
  $region8: #{conv_block_forward.4} parent=0 // loop_exit
    _

// kernel: conv_block_forward.6
$region0: #{conv_block_forward.6}
  #allocation0 [shape = 'u32[]', space=smem, size = 0x4, offset = 0x4, fixed_abs, tag = 'smem constant byte address 0x4 - core index']
  #allocation1 [shape = 'u32[144,128]{1,0:T(1,128)}', space=vmem, size = 0x12000, scoped, tag = 'internal scratch']
  %s0 = inlined_call_operand.vmem [shape: bf16[2,342,128], index: 0, kind: input, shape index: {}]
  %s1 = inlined_call_operand.vmem [shape: bf16[9,128,128], index: 1, kind: input, shape index: {}]
  %s2 = inlined_call_operand.vmem [shape: f32[1,128], index: 2, kind: input, shape index: {}]
  %s3 = inlined_call_operand.vmem [shape: f32[288,1], index: 3, kind: input, shape index: {}]
  %s4 = inlined_call_operand.vmem [shape: f32[2,288,128], index: 4, kind: output, shape index: {0}]
  %s5 = inlined_call_operand.vmem [shape: f32[1,128], index: 5, kind: output, shape index: {1}]
  %s6 = inlined_call_operand.vmem [shape: f32[1,128], index: 6, kind: output, shape index: {2}]
  %7 = xla_tuple %s4, %s5, %s6
  %s8 = sld [smem:[#allocation0]]
  $region69: #{conv_block_forward.6} parent=0
    _
  %s10 = ssub.s32 1, %s8
  %s11 = scalar_select 0, %s10, %s8
  loop: start=0, step=1, limit=4
  $region2: #{conv_block_forward.6} parent=0 // loop_pre_header
    _
  $region3: #{conv_block_forward.6} parent=0 // loop_header
    %s13 = sphi 0, %s17
    %p14 = scmp.ge.s32.totalorder %s13, 4
    %s23 = sphi 0, %s25
    %s26 = sphi 0, %s23
    %s27 = sphi 0, %s26
    %s43 = sphi 0, %s27
    %s47 = sphi 0, %s47
    %s49 = sphi 0, %s47
    %s50 = sphi 0, %s49
    %s64 = sphi 0, %s50
    %s68 = sphi 0, %s68
    %s70 = sphi 0, %s68
    %s71 = sphi 0, %s70
    %s85 = sphi 0, %s71
    %s89 = sphi 0, %s89
    %s91 = sphi 0, %s89
    %s92 = sphi 0, %s91
    %s106 = sphi 0, %s92
    %s112 = sphi 0, %s114
    %s115 = sphi 0, %s112
    %s116 = sphi 0, %s115
    %s132 = sphi 0, %s116
    %s136 = sphi 0, %s136
    %s138 = sphi 0, %s136
    %s139 = sphi 0, %s138
    %s153 = sphi 0, %s139
    %s157 = sphi 0, %s157
    %s159 = sphi 0, %s157
    %s160 = sphi 0, %s159
    %s174 = sphi 0, %s160
  $region4: #{conv_block_forward.6} parent=0 // loop_header_branch
    %16 = sbr.rel (%p14) target = $region8
  $region5: #{conv_block_forward.6} parent=0 // loop_body
    %s18 = ssub.s32 %s13, 1
    %s19 = ssub.s32 %s13, 2
    %s20 = sadd.s32 %s13, 1
    %s21 = ssub.s32 %s13, %s20
    %p22 = scmp.eq.s32.totalorder %s21, 0
    %s24 = sadd.s32 %s23, 1
    %s25 = scalar_select %p22, %s23, %s24
    %p28 = pneg %p22
    %p29 = scmp.eq.s32.totalorder %s13, 1
    %p30 = por %p28, %p29
    %p31 = scmp.ne.s32.totalorder %s23, %s26
    %p32 = scmp.eq.s32.totalorder %s13, 0
    %p33 = por %p31, %p32
    %p34 = scmp.ne.s32.totalorder %s23, %s26
    %p35 = scmp.eq.s32.totalorder %s18, 1
    %p36 = por %p34, %p35
    %p37 = scmp.ne.s32.totalorder %s26, %s27
    %p38 = scmp.eq.s32.totalorder %s18, 0
    %p39 = por %p37, %p38
    %p40 = scmp.ne.s32.totalorder %s26, %s27
    %p41 = scmp.eq.s32.totalorder %s19, 1
    %p42 = por %p40, %p41
    %p44 = scmp.ne.s32.totalorder %s27, %s43
    %p45 = scmp.eq.s32.totalorder %s19, 0
    %p46 = por %p44, %p45
    %s48 = sadd.s32 %s47, 1
    %p51 = scmp.eq.s32.totalorder %s13, 1
    %p52 = scmp.ne.s32.totalorder %s47, %s49
    %p53 = scmp.eq.s32.totalorder %s13, 0
    %p54 = por %p52, %p53
    %p55 = scmp.ne.s32.totalorder %s47, %s49
    %p56 = scmp.eq.s32.totalorder %s18, 1
    %p57 = por %p55, %p56
    %p58 = scmp.ne.s32.totalorder %s49, %s50
    %p59 = scmp.eq.s32.totalorder %s18, 0
    %p60 = por %p58, %p59
    %p61 = scmp.ne.s32.totalorder %s49, %s50
    %p62 = scmp.eq.s32.totalorder %s19, 1
    %p63 = por %p61, %p62
    %p65 = scmp.ne.s32.totalorder %s50, %s64
    %p66 = scmp.eq.s32.totalorder %s19, 0
    %p67 = por %p65, %p66
    %s69 = sadd.s32 %s68, 1
    %p72 = scmp.eq.s32.totalorder %s13, 1
    %p73 = scmp.ne.s32.totalorder %s68, %s70
    %p74 = scmp.eq.s32.totalorder %s13, 0
    %p75 = por %p73, %p74
    %p76 = scmp.ne.s32.totalorder %s68, %s70
    %p77 = scmp.eq.s32.totalorder %s18, 1
    %p78 = por %p76, %p77
    %p79 = scmp.ne.s32.totalorder %s70, %s71
    %p80 = scmp.eq.s32.totalorder %s18, 0
    %p81 = por %p79, %p80
    %p82 = scmp.ne.s32.totalorder %s70, %s71
    %p83 = scmp.eq.s32.totalorder %s19, 1
    %p84 = por %p82, %p83
    %p86 = scmp.ne.s32.totalorder %s71, %s85
    %p87 = scmp.eq.s32.totalorder %s19, 0
    %p88 = por %p86, %p87
    %s90 = sadd.s32 %s89, 1
    %p93 = scmp.eq.s32.totalorder %s13, 1
    %p94 = scmp.ne.s32.totalorder %s89, %s91
    %p95 = scmp.eq.s32.totalorder %s13, 0
    %p96 = por %p94, %p95
    %p97 = scmp.ne.s32.totalorder %s89, %s91
    %p98 = scmp.eq.s32.totalorder %s18, 1
    %p99 = por %p97, %p98
    %p100 = scmp.ne.s32.totalorder %s91, %s92
    %p101 = scmp.eq.s32.totalorder %s18, 0
    %p102 = por %p100, %p101
    %p103 = scmp.ne.s32.totalorder %s91, %s92
    %p104 = scmp.eq.s32.totalorder %s19, 1
    %p105 = por %p103, %p104
    %p107 = scmp.ne.s32.totalorder %s92, %s106
    %p108 = scmp.eq.s32.totalorder %s19, 0
    %p109 = por %p107, %p108
    %s110 = ssub.s32 %s13, %s20
    %p111 = scmp.eq.s32.totalorder %s110, 0
    %s113 = sadd.s32 %s112, 1
    %s114 = scalar_select %p111, %s112, %s113
    %p117 = pneg %p111
    %p118 = scmp.eq.s32.totalorder %s13, 1
    %p119 = por %p117, %p118
    %p120 = scmp.ne.s32.totalorder %s112, %s115
    %p121 = scmp.eq.s32.totalorder %s13, 0
    %p122 = por %p120, %p121
    %p123 = scmp.ne.s32.totalorder %s112, %s115
    %p124 = scmp.eq.s32.totalorder %s18, 1
    %p125 = por %p123, %p124
    %p126 = scmp.ne.s32.totalorder %s115, %s116
    %p127 = scmp.eq.s32.totalorder %s18, 0
    %p128 = por %p126, %p127
    %p129 = scmp.ne.s32.totalorder %s115, %s116
    %p130 = scmp.eq.s32.totalorder %s19, 1
    %p131 = por %p129, %p130
    %p133 = scmp.ne.s32.totalorder %s116, %s132
    %p134 = scmp.eq.s32.totalorder %s19, 0
    %p135 = por %p133, %p134
    %s137 = sadd.s32 %s136, 1
    %p140 = scmp.eq.s32.totalorder %s13, 1
    %p141 = scmp.ne.s32.totalorder %s136, %s138
    %p142 = scmp.eq.s32.totalorder %s13, 0
    %p143 = por %p141, %p142
    %p144 = scmp.ne.s32.totalorder %s136, %s138
    %p145 = scmp.eq.s32.totalorder %s18, 1
    %p146 = por %p144, %p145
    %p147 = scmp.ne.s32.totalorder %s138, %s139
    %p148 = scmp.eq.s32.totalorder %s18, 0
    %p149 = por %p147, %p148
    %p150 = scmp.ne.s32.totalorder %s138, %s139
    %p151 = scmp.eq.s32.totalorder %s19, 1
    %p152 = por %p150, %p151
    %p154 = scmp.ne.s32.totalorder %s139, %s153
    %p155 = scmp.eq.s32.totalorder %s19, 0
    %p156 = por %p154, %p155
    %s158 = sadd.s32 %s157, 1
    %p161 = scmp.eq.s32.totalorder %s13, 1
    %p162 = scmp.ne.s32.totalorder %s157, %s159
    %p163 = scmp.eq.s32.totalorder %s13, 0
    %p164 = por %p162, %p163
    %p165 = scmp.ne.s32.totalorder %s157, %s159
    %p166 = scmp.eq.s32.totalorder %s18, 1
    %p167 = por %p165, %p166
    %p168 = scmp.ne.s32.totalorder %s159, %s160
    %p169 = scmp.eq.s32.totalorder %s18, 0
    %p170 = por %p168, %p169
    %p171 = scmp.ne.s32.totalorder %s159, %s160
    %p172 = scmp.eq.s32.totalorder %s19, 1
    %p173 = por %p171, %p172
    %p175 = scmp.ne.s32.totalorder %s160, %s174
    %p176 = scmp.eq.s32.totalorder %s19, 0
    %p177 = por %p175, %p176
    %p178 = scmp.le.s32.totalorder 1, %s13
    %p179 = scmp.lt.s32.totalorder %s13, 3
    %p180 = pnand %p178, %p179
    %p181 = pneg %p180
    // Predicated region
    $region9: #{conv_block_forward.6} parent=5 // pred_check
      _
    $region10: #{conv_block_forward.6} parent=5 // pred_check_branch
      %183 = sbr.rel (%p180) target = $region12
    $region11: #{conv_block_forward.6} parent=5 // pred_region
      %s184 = ssub.s32 %s13, 1
      // Predicated region
      $region13: #{conv_block_forward.6} parent=11 // pred_check
        %p185 = pneg %p60
      $region14: #{conv_block_forward.6} parent=11 // pred_check_branch
        %187 = sbr.rel (%p185) target = $region16
      $region15: #{conv_block_forward.6} parent=11 // pred_region
        _
      $region16: #{conv_block_forward.6} parent=11 // pred_fallthru
        _
      // Predicated region
      $region17: #{conv_block_forward.6} parent=11 // pred_check
        %p188 = pneg %p81
      $region18: #{conv_block_forward.6} parent=11 // pred_check_branch
        %190 = sbr.rel (%p188) target = $region20
      $region19: #{conv_block_forward.6} parent=11 // pred_region
        _
      $region20: #{conv_block_forward.6} parent=11 // pred_fallthru
        _
      // Predicated region
      $region21: #{conv_block_forward.6} parent=11 // pred_check
        %p191 = pneg %p102
      $region22: #{conv_block_forward.6} parent=11 // pred_check_branch
        %193 = sbr.rel (%p191) target = $region24
      $region23: #{conv_block_forward.6} parent=11 // pred_region
        _
      $region24: #{conv_block_forward.6} parent=11 // pred_fallthru
        _
    $region12: #{conv_block_forward.6} parent=5 // pred_fallthru
      _
    %p194 = scmp.lt.s32.totalorder %s13, 2
    // Predicated region
    $region25: #{conv_block_forward.6} parent=5 // pred_check
      %p195 = pneg %p194
    $region26: #{conv_block_forward.6} parent=5 // pred_check_branch
      %197 = sbr.rel (%p195) target = $region28
    $region27: #{conv_block_forward.6} parent=5 // pred_region
      // Predicated region
      $region29: #{conv_block_forward.6} parent=27 // pred_check
        %p198 = pneg %p33
      $region30: #{conv_block_forward.6} parent=27 // pred_check_branch
        %200 = sbr.rel (%p198) target = $region32
      $region31: #{conv_block_forward.6} parent=27 // pred_region
        %p201 = scmp.lt.s32.totalorder %s13, 1
        %s202 = scalar_select %p201, %s13, 1
        %s203 = smul.addr %s202, 43
        %s204 = smul.addr %s203, 4
        %s205 = scalar_lea.vmem %s0, %s204
      $region32: #{conv_block_forward.6} parent=27 // pred_fallthru
        _
    $region28: #{conv_block_forward.6} parent=5 // pred_fallthru
      _
    %p206 = scmp.le.s32.totalorder 1, %s13
    %p207 = scmp.lt.s32.totalorder %s13, 3
    %p208 = pnand %p206, %p207
    %p209 = pneg %p208
    // Predicated region
    $region33: #{conv_block_forward.6} parent=5 // pred_check
      _
    $region34: #{conv_block_forward.6} parent=5 // pred_check_branch
      %211 = sbr.rel (%p208) target = $region36
    $region35: #{conv_block_forward.6} parent=5 // pred_region
      %s212 = ssub.s32 %s13, 1
      %p213 = scmp.lt.s32.totalorder %s18, 1
      %s214 = scalar_select %p213, %s18, 1
      %s215 = smul.addr %s214, 43
      %s216 = smul.addr %s215, 4
      %s217 = scalar_lea.vmem %s0, %s216
      %p218 = pneg %p39
      %p219 = pneg %p36
      %p220 = pneg %p60
      %p221 = pneg %p57
      %p222 = pneg %p81
      %p223 = pneg %p78
      %p224 = pneg %p102
      %p225 = pneg %p99
      %p226 = pneg %p128
      %p227 = pneg %p125
      %p228 = scmp.lt.s32.totalorder %s18, 1
      %s229 = scalar_select %p228, %s18, 1
      %s230 = smul.addr %s229, 36
      %s231 = smul.addr %s230, 8
      %s232 = scalar_lea.vmem %s4, %s231
      %p233 = pneg %p149
      %p234 = pneg %p146
      %p235 = pneg %p170
      %p236 = pneg %p167
      %p237 = scmp.lt.s32.totalorder %s18, 1
      %s238 = scalar_select %p237, %s18, 1
      %s239 = smul.addr %s238, 43
      %s240 = smul.addr %s239, 4
      %s241 = scalar_lea.vmem %s0, %s240
      %p242 = scmp.lt.s32.totalorder %s18, 1
      %s243 = scalar_select %p242, %s18, 1
      %s244 = smul.addr %s243, 36
      %s245 = smul.addr %s244, 8
      %s246 = scalar_lea.vmem %s4, %s245
      %v248 = vld [vmem:[%s241] sm:$0xf]
      %v249 = vld [vmem:[%s241 + $0x4] sm:$0xf]
      %v250 = vld [vmem:[%s241 + $0x8] sm:$0xf]
      %v251 = vld [vmem:[%s241 + $0xc] sm:$0xf]
      %v252 = vld [vmem:[%s241 + $0x10] sm:$0xf]
      %v253 = vld [vmem:[%s241 + $0x14] sm:$0xf]
      %v254 = vld [vmem:[%s241 + $0x18] sm:$0xf]
      %v255 = vld [vmem:[%s241 + $0x1c] sm:$0xf]
      %v256 = vld [vmem:[%s241 + $0x20] sm:$0xf]
      %v257 = vld [vmem:[%s241 + $0x24] sm:$0xf]
      %v258 = vld [vmem:[%s241 + $0x28] sm:$0xf]
      %v259 = vld [vmem:[%s241 + $0x2c] sm:$0xf]
      %v260 = vld [vmem:[%s241 + $0x30] sm:$0xf]
      %v261 = vld [vmem:[%s241 + $0x34] sm:$0xf]
      %v262 = vld [vmem:[%s241 + $0x38] sm:$0xf]
      %v263 = vld [vmem:[%s241 + $0x3c] sm:$0xf]
      %v264 = vld [vmem:[%s241 + $0x40] sm:$0xf]
      %v265 = vld [vmem:[%s241 + $0x44] sm:$0xf]
      %v266 = vld [vmem:[%s241 + $0x48] sm:$0xf]
      %v267 = vld [vmem:[%s241 + $0x4c] sm:$0xf]
      %v268 = vld [vmem:[%s241 + $0x50] sm:$0xf]
      %v269 = vld [vmem:[%s241 + $0x54] sm:$0xf]
      %v270 = vld [vmem:[%s241 + $0x58] sm:$0xf]
      %v271 = vld [vmem:[%s241 + $0x5c] sm:$0xf]
      %v272 = vld [vmem:[%s241 + $0x60] sm:$0xf]
      %v273 = vld [vmem:[%s241 + $0x64] sm:$0xf]
      %v274 = vld [vmem:[%s241 + $0x68] sm:$0xf]
      %v275 = vld [vmem:[%s241 + $0x6c] sm:$0xf]
      %v276 = vld [vmem:[%s241 + $0x70] sm:$0xf]
      %v277 = vld [vmem:[%s241 + $0x74] sm:$0xf]
      %v278 = vld [vmem:[%s241 + $0x78] sm:$0xf]
      %v279 = vld [vmem:[%s241 + $0x7c] sm:$0xf]
      %v280 = vld [vmem:[%s241 + $0x80] sm:$0xf]
      %v281 = vld [vmem:[%s241 + $0x84] sm:$0xf]
      %v282 = vld [vmem:[%s241 + $0x88] sm:$0xf]
      %v283 = vld [vmem:[%s241 + $0x8c] sm:$0xf]
      %v284 = vld [vmem:[%s241 + $0x90] sm:$0xf]
      %v285 = vld [vmem:[%s241 + $0x94] sm:$0xf]
      %v286 = vld [vmem:[%s241 + $0x98] sm:$0xf]
      %v287 = vld [vmem:[%s241 + $0x9c] sm:$0xf]
      %v288 = vld [vmem:[%s241 + $0xa0] sm:$0xf]
      %v289 = vld [vmem:[%s1] sm:$0xf]
      %v290 = vld [vmem:[%s1 + $0x4] sm:$0xf]
      %v291 = vld [vmem:[%s1 + $0x8] sm:$0xf]
      %v292 = vld [vmem:[%s1 + $0xc] sm:$0xf]
      %v293 = vld [vmem:[%s1 + $0x10] sm:$0xf]
      %v294 = vld [vmem:[%s1 + $0x14] sm:$0xf]
      %v295 = vld [vmem:[%s1 + $0x18] sm:$0xf]
      %v296 = vld [vmem:[%s1 + $0x1c] sm:$0xf]
      %v297 = vld [vmem:[%s1 + $0x20] sm:$0xf]
      %v298 = vld [vmem:[%s1 + $0x24] sm:$0xf]
      %v299 = vld [vmem:[%s1 + $0x28] sm:$0xf]
      %v300 = vld [vmem:[%s1 + $0x2c] sm:$0xf]
      %v301 = vld [vmem:[%s1 + $0x30] sm:$0xf]
      %v302 = vld [vmem:[%s1 + $0x34] sm:$0xf]
      %v303 = vld [vmem:[%s1 + $0x38] sm:$0xf]
      %v304 = vld [vmem:[%s1 + $0x3c] sm:$0xf]
      %s305 = scalar_lea.vmem %s1, 64
      %v306 = vld [vmem:[%s305] sm:$0xf]
      %v307 = vld [vmem:[%s305 + $0x4] sm:$0xf]
      %v308 = vld [vmem:[%s305 + $0x8] sm:$0xf]
      %v309 = vld [vmem:[%s305 + $0xc] sm:$0xf]
      %v310 = vld [vmem:[%s305 + $0x10] sm:$0xf]
      %v311 = vld [vmem:[%s305 + $0x14] sm:$0xf]
      %v312 = vld [vmem:[%s305 + $0x18] sm:$0xf]
      %v313 = vld [vmem:[%s305 + $0x1c] sm:$0xf]
      %v314 = vld [vmem:[%s305 + $0x20] sm:$0xf]
      %v315 = vld [vmem:[%s305 + $0x24] sm:$0xf]
      %v316 = vld [vmem:[%s305 + $0x28] sm:$0xf]
      %v317 = vld [vmem:[%s305 + $0x2c] sm:$0xf]
      %v318 = vld [vmem:[%s305 + $0x30] sm:$0xf]
      %v319 = vld [vmem:[%s305 + $0x34] sm:$0xf]
      %v320 = vld [vmem:[%s305 + $0x38] sm:$0xf]
      %v321 = vld [vmem:[%s305 + $0x3c] sm:$0xf]
      %v359 = vunpack.c.l.b16 %v248
      %v360 = vunpack.c.l.b16 %v249
      %v361 = vunpack.c.l.b16 %v250
      %v362 = vunpack.c.l.b16 %v251
      %v363 = vunpack.c.l.b16 %v252
      %v364 = vunpack.c.l.b16 %v253
      %v365 = vunpack.c.l.b16 %v254
      %v366 = vunpack.c.l.b16 %v255
      %v367 = vunpack.c.l.b16 %v256
      %v368 = vunpack.c.l.b16 %v257
      %v369 = vunpack.c.l.b16 %v258
      %v370 = vunpack.c.l.b16 %v259
      %v371 = vunpack.c.l.b16 %v260
      %v372 = vunpack.c.l.b16 %v261
      %v373 = vunpack.c.l.b16 %v262
      %v374 = vunpack.c.l.b16 %v263
      %v375 = vunpack.c.l.b16 %v264
      %v376 = vunpack.c.l.b16 %v265
      %v377 = vunpack.c.l.b16 %v266
      %v378 = vunpack.c.l.b16 %v267
      %v379 = vunpack.c.l.b16 %v268
      %v380 = vunpack.c.l.b16 %v269
      %v381 = vunpack.c.l.b16 %v270
      %v382 = vunpack.c.l.b16 %v271
      %v383 = vunpack.c.l.b16 %v272
      %v384 = vunpack.c.l.b16 %v273
      %v385 = vunpack.c.l.b16 %v274
      %v386 = vunpack.c.l.b16 %v275
      %v387 = vunpack.c.l.b16 %v276
      %v388 = vunpack.c.l.b16 %v277
      %v389 = vunpack.c.l.b16 %v278
      %v390 = vunpack.c.l.b16 %v279
      %v391 = vunpack.c.l.b16 %v280
      %v392 = vunpack.c.l.b16 %v281
      %v393 = vunpack.c.l.b16 %v282
      %v394 = vunpack.c.l.b16 %v283
      %v395 = vunpack.c.l.b16 %v284
      %v396 = vpack.c.b16 %v360, %v359
      %v397 = vpack.c.b16 %v362, %v361
      %v398 = vpack.c.b16 %v364, %v363
      %v399 = vpack.c.b16 %v366, %v365
      %v400 = vpack.c.b16 %v368, %v367
      %v401 = vpack.c.b16 %v370, %v369
      %v402 = vpack.c.b16 %v372, %v371
      %v403 = vpack.c.b16 %v374, %v373
      %v404 = vpack.c.b16 %v376, %v375
      %v405 = vpack.c.b16 %v378, %v377
      %v406 = vpack.c.b16 %v380, %v379
      %v407 = vpack.c.b16 %v382, %v381
      %v408 = vpack.c.b16 %v384, %v383
      %v409 = vpack.c.b16 %v386, %v385
      %v410 = vpack.c.b16 %v388, %v387
      %v411 = vpack.c.b16 %v390, %v389
      %v412 = vpack.c.b16 %v392, %v391
      %v413 = vpack.c.b16 %v394, %v393
      %v414 = vpack.c.b16 %v395, %v395
      %vm415 = vsmask.f32 7424
      %v417 = vshrl.u32 %v396, 16
      %v419 = vshll.u32 %v396, 16
      %v421 = vrot.slane %v419, 1
      %v422 = vor.u32 %v417, %v421
      %v424 = vshll.u32 %v397, 16
      %v426 = vrot.slane %v424, 1
      %v427 = vsel %vm415, %v422, %v426
      %v428 = vshrl.u32 %v397, 16
      %v430 = vor.u32 %v428, %v426
      %v432 = vshll.u32 %v398, 16
      %v434 = vrot.slane %v432, 1
      %v435 = vsel %vm415, %v430, %v434
      %v436 = vshrl.u32 %v398, 16
      %v438 = vor.u32 %v436, %v434
      %v440 = vshll.u32 %v399, 16
      %v442 = vrot.slane %v440, 1
      %v443 = vsel %vm415, %v438, %v442
      %v444 = vshrl.u32 %v399, 16
      %v446 = vor.u32 %v444, %v442
      %v448 = vshll.u32 %v400, 16
      %v450 = vrot.slane %v448, 1
      %v451 = vsel %vm415, %v446, %v450
      %v452 = vshrl.u32 %v400, 16
      %v454 = vor.u32 %v452, %v450
      %v456 = vshll.u32 %v401, 16
      %v458 = vrot.slane %v456, 1
      %v459 = vsel %vm415, %v454, %v458
      %v460 = vshrl.u32 %v401, 16
      %v462 = vor.u32 %v460, %v458
      %v464 = vshll.u32 %v402, 16
      %v466 = vrot.slane %v464, 1
      %v467 = vsel %vm415, %v462, %v466
      %v468 = vshrl.u32 %v402, 16
      %v470 = vor.u32 %v468, %v466
      %v472 = vshll.u32 %v403, 16
      %v474 = vrot.slane %v472, 1
      %v475 = vsel %vm415, %v470, %v474
      %v476 = vshrl.u32 %v403, 16
      %v478 = vor.u32 %v476, %v474
      %v480 = vshll.u32 %v404, 16
      %v482 = vrot.slane %v480, 1
      %v483 = vsel %vm415, %v478, %v482
      %v484 = vshrl.u32 %v404, 16
      %v486 = vor.u32 %v484, %v482
      %v488 = vshll.u32 %v405, 16
      %v490 = vrot.slane %v488, 1
      %v491 = vsel %vm415, %v486, %v490
      %v492 = vshrl.u32 %v405, 16
      %v494 = vor.u32 %v492, %v490
      %v496 = vshll.u32 %v406, 16
      %v498 = vrot.slane %v496, 1
      %v499 = vsel %vm415, %v494, %v498
      %v500 = vshrl.u32 %v406, 16
      %v502 = vor.u32 %v500, %v498
      %v504 = vshll.u32 %v407, 16
      %v506 = vrot.slane %v504, 1
      %v507 = vsel %vm415, %v502, %v506
      %v508 = vshrl.u32 %v407, 16
      %v510 = vor.u32 %v508, %v506
      %v512 = vshll.u32 %v408, 16
      %v514 = vrot.slane %v512, 1
      %v515 = vsel %vm415, %v510, %v514
      %v516 = vshrl.u32 %v408, 16
      %v518 = vor.u32 %v516, %v514
      %v520 = vshll.u32 %v409, 16
      %v522 = vrot.slane %v520, 1
      %v523 = vsel %vm415, %v518, %v522
      %v524 = vshrl.u32 %v409, 16
      %v526 = vor.u32 %v524, %v522
      %v528 = vshll.u32 %v410, 16
      %v530 = vrot.slane %v528, 1
      %v531 = vsel %vm415, %v526, %v530
      %v532 = vshrl.u32 %v410, 16
      %v534 = vor.u32 %v532, %v530
      %v536 = vshll.u32 %v411, 16
      %v538 = vrot.slane %v536, 1
      %v539 = vsel %vm415, %v534, %v538
      %v540 = vshrl.u32 %v411, 16
      %v542 = vor.u32 %v540, %v538
      %v544 = vshll.u32 %v412, 16
      %v546 = vrot.slane %v544, 1
      %v547 = vsel %vm415, %v542, %v546
      %v548 = vshrl.u32 %v412, 16
      %v550 = vor.u32 %v548, %v546
      %v552 = vshll.u32 %v413, 16
      %v554 = vrot.slane %v552, 1
      %v555 = vsel %vm415, %v550, %v554
      %v556 = vshrl.u32 %v413, 16
      %v558 = vor.u32 %v556, %v554
      %v560 = vshll.u32 %v414, 16
      %v562 = vrot.slane %v560, 1
      %v563 = vsel %vm415, %v558, %v562
      %v598 = vunpack.c.l.b16 %v306
      %v599 = vunpack.c.l.b16 %v307
      %v600 = vunpack.c.l.b16 %v308
      %v601 = vunpack.c.l.b16 %v309
      %v602 = vunpack.c.l.b16 %v310
      %v603 = vunpack.c.l.b16 %v311
      %v604 = vunpack.c.l.b16 %v312
      %v605 = vunpack.c.l.b16 %v313
      %v606 = vunpack.c.l.b16 %v314
      %v607 = vunpack.c.l.b16 %v315
      %v608 = vunpack.c.l.b16 %v316
      %v609 = vunpack.c.l.b16 %v317
      %v610 = vunpack.c.l.b16 %v318
      %v611 = vunpack.c.l.b16 %v319
      %v612 = vunpack.c.l.b16 %v320
      %v613 = vunpack.c.l.b16 %v321
      %v614 = vpack.c.b16 %v599, %v598
      %v615 = vpack.c.b16 %v601, %v600
      %v616 = vpack.c.b16 %v603, %v602
      %v617 = vpack.c.b16 %v605, %v604
      %v618 = vpack.c.b16 %v607, %v606
      %v619 = vpack.c.b16 %v609, %v608
      %v620 = vpack.c.b16 %v611, %v610
      %v621 = vpack.c.b16 %v613, %v612
      %630 = vmatprep.subr.bf16.mxu0 0
      %631 = vmatpush1.bf16.msra.mxu0 %v614
      %632 = vmatprep.subr.bf16.mxu0 0
      %633 = vmatpush1.bf16.msra.mxu0 %v615
      %634 = vmatprep.subr.bf16.mxu0 0
      %635 = vmatpush1.bf16.msra.mxu0 %v616
      %636 = vmatprep.subr.bf16.mxu0 0
      %637 = vmatpush1.bf16.msra.mxu0 %v617
      %638 = vmatprep.subr.bf16.mxu0 0
      %639 = vmatpush1.bf16.msra.mxu0 %v618
      %640 = vmatprep.subr.bf16.mxu0 0
      %641 = vmatpush1.bf16.msra.mxu0 %v619
      %642 = vmatprep.subr.bf16.mxu0 0
      %643 = vmatpush1.bf16.msra.mxu0 %v620
      %644 = vmatprep.subr.bf16.mxu0 0
      %645 = vmatpush1.bf16.msra.mxu0 %v621
      %646 = vmatprep.subr.bf16.mxu0 0
      %647 = vmatpush1.bf16.msra.mxu0 0
      %648 = vmatprep.subr.bf16.mxu0 0
      %649 = vmatpush1.bf16.msra.mxu0 0
      %650 = vmatprep.subr.bf16.mxu0 0
      %651 = vmatpush1.bf16.msra.mxu0 0
      %652 = vmatprep.subr.bf16.mxu0 0
      %653 = vmatpush1.bf16.msra.mxu0 0
      %654 = vmatprep.subr.bf16.mxu0 0
      %655 = vmatpush1.bf16.msra.mxu0 0
      %656 = vmatprep.subr.bf16.mxu0 0
      %657 = vmatpush1.bf16.msra.mxu0 0
      %658 = vmatprep.subr.bf16.mxu0 0
      %659 = vmatpush1.bf16.msra.mxu0 0
      %660 = vmatprep.subr.bf16.mxu0 0
      %661 = vmatpush1.bf16.msra.mxu0 0
      %662 = vmatprep.mubr.bf16.mxu0 0
      %663 = vmatmul.mubr.bf16.gmra.mrb[0].mxu0 %v427
      %v664 = vpop.f32.mrb[0].mxu0
      %v665 = vadd.f32 0.0, %v664
      %v666 = vpop.f32.mrb[0].mxu0
      %v667 = vpop.f32.mrb[0].mxu0
      %v668 = vadd.f32 0.0, %v667
      %v669 = vpop.f32.mrb[0].mxu0
      %670 = vmatprep.mubr.bf16.mxu0 0
      %671 = vmatmul.mubr.bf16.gmra.mrb[0].mxu0 %v435
      %v672 = vpop.f32.mrb[0].mxu0
      %v673 = vadd.f32 0.0, %v672
      %v674 = vpop.f32.mrb[0].mxu0
      %v675 = vpop.f32.mrb[0].mxu0
      %v676 = vadd.f32 0.0, %v675
      %v677 = vpop.f32.mrb[0].mxu0
      %678 = vmatprep.mubr.bf16.mxu0 0
      %679 = vmatmul.mubr.bf16.gmra.mrb[0].mxu0 %v443
      %v680 = vpop.f32.mrb[0].mxu0
      %v681 = vadd.f32 0.0, %v680
      %v682 = vpop.f32.mrb[0].mxu0
      %v683 = vpop.f32.mrb[0].mxu0
      %v684 = vadd.f32 0.0, %v683
      %v685 = vpop.f32.mrb[0].mxu0
      %686 = vmatprep.mubr.bf16.mxu0 0
      %687 = vmatmul.mubr.bf16.gmra.mrb[0].mxu0 %v451
      %v688 = vpop.f32.mrb[0].mxu0
      %v689 = vadd.f32 0.0, %v688
      %v690 = vpop.f32.mrb[0].mxu0
      %v691 = vpop.f32.mrb[0].mxu0
      %v692 = vadd.f32 0.0, %v691
      %v693 = vpop.f32.mrb[0].mxu0
      %694 = vmatprep.mubr.bf16.mxu0 0
      %695 = vmatmul.mubr.bf16.gmra.mrb[0].mxu0 %v459
      %v696 = vpop.f32.mrb[0].mxu0
      %v697 = vadd.f32 0.0, %v696
      %v698 = vpop.f32.mrb[0].mxu0
      %v699 = vpop.f32.mrb[0].mxu0
      %v700 = vadd.f32 0.0, %v699
      %v701 = vpop.f32.mrb[0].mxu0
      %702 = vmatprep.mubr.bf16.mxu0 0
      %703 = vmatmul.mubr.bf16.gmra.mrb[0].mxu0 %v467
      %v704 = vpop.f32.mrb[0].mxu0
      %v705 = vadd.f32 0.0, %v704
      %v706 = vpop.f32.mrb[0].mxu0
      %v707 = vpop.f32.mrb[0].mxu0
      %v708 = vadd.f32 0.0, %v707
      %v709 = vpop.f32.mrb[0].mxu0
      %710 = vmatprep.mubr.bf16.mxu0 0
      %711 = vmatmul.mubr.bf16.gmra.mrb[0].mxu0 %v475
      %v712 = vpop.f32.mrb[0].mxu0
      %v713 = vadd.f32 0.0, %v712
      %v714 = vpop.f32.mrb[0].mxu0
      %v715 = vpop.f32.mrb[0].mxu0
      %v716 = vadd.f32 0.0, %v715
      %v717 = vpop.f32.mrb[0].mxu0
      %718 = vmatprep.mubr.bf16.mxu0 0
      %719 = vmatmul.mubr.bf16.gmra.mrb[0].mxu0 %v483
      %v720 = vpop.f32.mrb[0].mxu0
      %v721 = vadd.f32 0.0, %v720
      %v722 = vpop.f32.mrb[0].mxu0
      %v723 = vpop.f32.mrb[0].mxu0
      %v724 = vadd.f32 0.0, %v723
      %v725 = vpop.f32.mrb[0].mxu0
      %726 = vmatprep.mubr.bf16.mxu0 0
      %727 = vmatmul.mubr.bf16.gmra.mrb[0].mxu0 %v491
      %v728 = vpop.f32.mrb[0].mxu0
      %v729 = vadd.f32 0.0, %v728
      %v730 = vpop.f32.mrb[0].mxu0
      %v731 = vpop.f32.mrb[0].mxu0
      %v732 = vadd.f32 0.0, %v731
      %v733 = vpop.f32.mrb[0].mxu0
      %734 = vmatprep.mubr.bf16.mxu0 0
      %735 = vmatmul.mubr.bf16.gmra.mrb[0].mxu0 %v499
      %v736 = vpop.f32.mrb[0].mxu0
      %v737 = vadd.f32 0.0, %v736
      %v738 = vpop.f32.mrb[0].mxu0
      %v739 = vpop.f32.mrb[0].mxu0
      %v740 = vadd.f32 0.0, %v739
      %v741 = vpop.f32.mrb[0].mxu0
      %742 = vmatprep.mubr.bf16.mxu0 0
      %743 = vmatmul.mubr.bf16.gmra.mrb[0].mxu0 %v507
      %v744 = vpop.f32.mrb[0].mxu0
      %v745 = vadd.f32 0.0, %v744
      %v746 = vpop.f32.mrb[0].mxu0
      %v747 = vpop.f32.mrb[0].mxu0
      %v748 = vadd.f32 0.0, %v747
      %v749 = vpop.f32.mrb[0].mxu0
      %750 = vmatprep.mubr.bf16.mxu0 0
      %751 = vmatmul.mubr.bf16.gmra.mrb[0].mxu0 %v515
      %v752 = vpop.f32.mrb[0].mxu0
      %v753 = vadd.f32 0.0, %v752
      %v754 = vpop.f32.mrb[0].mxu0
      %v755 = vpop.f32.mrb[0].mxu0
      %v756 = vadd.f32 0.0, %v755
      %v757 = vpop.f32.mrb[0].mxu0
      %758 = vmatprep.mubr.bf16.mxu0 0
      %759 = vmatmul.mubr.bf16.gmra.mrb[0].mxu0 %v523
      %v760 = vpop.f32.mrb[0].mxu0
      %v761 = vadd.f32 0.0, %v760
      %v762 = vpop.f32.mrb[0].mxu0
      %v763 = vpop.f32.mrb[0].mxu0
      %v764 = vadd.f32 0.0, %v763
      %v765 = vpop.f32.mrb[0].mxu0
      %766 = vmatprep.mubr.bf16.mxu0 0
      %767 = vmatmul.mubr.bf16.gmra.mrb[0].mxu0 %v531
      %v768 = vpop.f32.mrb[0].mxu0
      %v769 = vadd.f32 0.0, %v768
      %v770 = vpop.f32.mrb[0].mxu0
      %v771 = vpop.f32.mrb[0].mxu0
      %v772 = vadd.f32 0.0, %v771
      %v773 = vpop.f32.mrb[0].mxu0
      %774 = vmatprep.mubr.bf16.mxu0 0
      %775 = vmatmul.mubr.bf16.gmra.mrb[0].mxu0 %v539
      %v776 = vpop.f32.mrb[0].mxu0
      %v777 = vadd.f32 0.0, %v776
      %v778 = vpop.f32.mrb[0].mxu0
      %v779 = vpop.f32.mrb[0].mxu0
      %v780 = vadd.f32 0.0, %v779
      %v781 = vpop.f32.mrb[0].mxu0
      %782 = vmatprep.mubr.bf16.mxu0 0
      %783 = vmatmul.mubr.bf16.gmra.mrb[0].mxu0 %v547
      %v784 = vpop.f32.mrb[0].mxu0
      %v785 = vadd.f32 0.0, %v784
      %v786 = vpop.f32.mrb[0].mxu0
      %v787 = vpop.f32.mrb[0].mxu0
      %v788 = vadd.f32 0.0, %v787
      %v789 = vpop.f32.mrb[0].mxu0
      %790 = vmatprep.mubr.bf16.mxu0 0
      %791 = vmatmul.mubr.bf16.gmra.mrb[0].mxu0 %v555
      %v792 = vpop.f32.mrb[0].mxu0
      %v793 = vadd.f32 0.0, %v792
      %v794 = vpop.f32.mrb[0].mxu0
      %v795 = vpop.f32.mrb[0].mxu0
      %v796 = vadd.f32 0.0, %v795
      %v797 = vpop.f32.mrb[0].mxu0
      %798 = vmatprep.mubr.bf16.mxu0 0
      %799 = vmatmul.mubr.bf16.gmra.mrb[0].mxu0 %v563
      %v800 = vpop.f32.mrb[0].mxu0
      %v801 = vadd.f32 0.0, %v800
      %v802 = vpop.f32.mrb[0].mxu0
      %v803 = vpop.f32.mrb[0].mxu0
      %v804 = vadd.f32 0.0, %v803
      %v805 = vpop.f32.mrb[0].mxu0
      %806 = vdwg.mxu0
      %v841 = vunpack.c.l.b16 %v289
      %v842 = vunpack.c.l.b16 %v290
      %v843 = vunpack.c.l.b16 %v291
      %v844 = vunpack.c.l.b16 %v292
      %v845 = vunpack.c.l.b16 %v293
      %v846 = vunpack.c.l.b16 %v294
      %v847 = vunpack.c.l.b16 %v295
      %v848 = vunpack.c.l.b16 %v296
      %v849 = vunpack.c.l.b16 %v297
      %v850 = vunpack.c.l.b16 %v298
      %v851 = vunpack.c.l.b16 %v299
      %v852 = vunpack.c.l.b16 %v300
      %v853 = vunpack.c.l.b16 %v301
      %v854 = vunpack.c.l.b16 %v302
      %v855 = vunpack.c.l.b16 %v303
      %v856 = vunpack.c.l.b16 %v304
      %v857 = vpack.c.b16 %v842, %v841
      %v858 = vpack.c.b16 %v844, %v843
      %v859 = vpack.c.b16 %v846, %v845
      %v860 = vpack.c.b16 %v848, %v847
      %v861 = vpack.c.b16 %v850, %v849
      %v862 = vpack.c.b16 %v852, %v851
      %v863 = vpack.c.b16 %v854, %v853
      %v864 = vpack.c.b16 %v856, %v855
      %873 = vmatprep.subr.bf16.mxu0 0
      %874 = vmatpush1.bf16.msra.mxu0 %v857
      %875 = vmatprep.subr.bf16.mxu0 0
      %876 = vmatpush1.bf16.msra.mxu0 %v858
      %877 = vmatprep.subr.bf16.mxu0 0
      %878 = vmatpush1.bf16.msra.mxu0 %v859
      %879 = vmatprep.subr.bf16.mxu0 0
      %880 = vmatpush1.bf16.msra.mxu0 %v860
      %881 = vmatprep.subr.bf16.mxu0 0
      %882 = vmatpush1.bf16.msra.mxu0 %v861
      %883 = vmatprep.subr.bf16.mxu0 0
      %884 = vmatpush1.bf16.msra.mxu0 %v862
      %885 = vmatprep.subr.bf16.mxu0 0
      %886 = vmatpush1.bf16.msra.mxu0 %v863
      %887 = vmatprep.subr.bf16.mxu0 0
      %888 = vmatpush1.bf16.msra.mxu0 %v864
      %889 = vmatprep.subr.bf16.mxu0 0
      %890 = vmatpush1.bf16.msra.mxu0 0
      %891 = vmatprep.subr.bf16.mxu0 0
      %892 = vmatpush1.bf16.msra.mxu0 0
      %893 = vmatprep.subr.bf16.mxu0 0
      %894 = vmatpush1.bf16.msra.mxu0 0
      %895 = vmatprep.subr.bf16.mxu0 0
      %896 = vmatpush1.bf16.msra.mxu0 0
      %897 = vmatprep.subr.bf16.mxu0 0
      %898 = vmatpush1.bf16.msra.mxu0 0
      %899 = vmatprep.subr.bf16.mxu0 0
      %900 = vmatpush1.bf16.msra.mxu0 0
      %901 = vmatprep.subr.bf16.mxu0 0
      %902 = vmatpush1.bf16.msra.mxu0 0
      %903 = vmatprep.subr.bf16.mxu0 0
      %904 = vmatpush1.bf16.msra.mxu0 0
      %905 = vmatprep.mubr.bf16.mxu0 0
      %906 = vmatmul.mubr.bf16.gmra.mrb[0].mxu0 %v396
      %v907 = vpop.f32.mrb[0].mxu0
      %v908 = vadd.f32 %v665, %v907
      %v909 = vpop.f32.mrb[0].mxu0
      %v910 = vpop.f32.mrb[0].mxu0
      %v911 = vadd.f32 %v668, %v910
      %v912 = vpop.f32.mrb[0].mxu0
      %913 = vmatprep.mubr.bf16.mxu0 0
      %914 = vmatmul.mubr.bf16.gmra.mrb[0].mxu0 %v397
      %v915 = vpop.f32.mrb[0].mxu0
      %v916 = vadd.f32 %v673, %v915
      %v917 = vpop.f32.mrb[0].mxu0
      %v918 = vpop.f32.mrb[0].mxu0
      %v919 = vadd.f32 %v676, %v918
      %v920 = vpop.f32.mrb[0].mxu0
      %921 = vmatprep.mubr.bf16.mxu0 0
      %922 = vmatmul.mubr.bf16.gmra.mrb[0].mxu0 %v398
      %v923 = vpop.f32.mrb[0].mxu0
      %v924 = vadd.f32 %v681, %v923
      %v925 = vpop.f32.mrb[0].mxu0
      %v926 = vpop.f32.mrb[0].mxu0
      %v927 = vadd.f32 %v684, %v926
      %v928 = vpop.f32.mrb[0].mxu0
      %929 = vmatprep.mubr.bf16.mxu0 0
      %930 = vmatmul.mubr.bf16.gmra.mrb[0].mxu0 %v399
      %v931 = vpop.f32.mrb[0].mxu0
      %v932 = vadd.f32 %v689, %v931
      %v933 = vpop.f32.mrb[0].mxu0
      %v934 = vpop.f32.mrb[0].mxu0
      %v935 = vadd.f32 %v692, %v934
      %v936 = vpop.f32.mrb[0].mxu0
      %937 = vmatprep.mubr.bf16.mxu0 0
      %938 = vmatmul.mubr.bf16.gmra.mrb[0].mxu0 %v400
      %v939 = vpop.f32.mrb[0].mxu0
      %v940 = vadd.f32 %v697, %v939
      %v941 = vpop.f32.mrb[0].mxu0
      %v942 = vpop.f32.mrb[0].mxu0
      %v943 = vadd.f32 %v700, %v942
      %v944 = vpop.f32.mrb[0].mxu0
      %945 = vmatprep.mubr.bf16.mxu0 0
      %946 = vmatmul.mubr.bf16.gmra.mrb[0].mxu0 %v401
      %v947 = vpop.f32.mrb[0].mxu0
      %v948 = vadd.f32 %v705, %v947
      %v949 = vpop.f32.mrb[0].mxu0
      %v950 = vpop.f32.mrb[0].mxu0
      %v951 = vadd.f32 %v708, %v950
      %v952 = vpop.f32.mrb[0].mxu0
      %953 = vmatprep.mubr.bf16.mxu0 0
      %954 = vmatmul.mubr.bf16.gmra.mrb[0].mxu0 %v402
      %v955 = vpop.f32.mrb[0].mxu0
      %v956 = vadd.f32 %v713, %v955
      %v957 = vpop.f32.mrb[0].mxu0
      %v958 = vpop.f32.mrb[0].mxu0
      %v959 = vadd.f32 %v716, %v958
      %v960 = vpop.f32.mrb[0].mxu0
      %961 = vmatprep.mubr.bf16.mxu0 0
      %962 = vmatmul.mubr.bf16.gmra.mrb[0].mxu0 %v403
      %v963 = vpop.f32.mrb[0].mxu0
      %v964 = vadd.f32 %v721, %v963
      %v965 = vpop.f32.mrb[0].mxu0
      %v966 = vpop.f32.mrb[0].mxu0
      %v967 = vadd.f32 %v724, %v966
      %v968 = vpop.f32.mrb[0].mxu0
      %969 = vmatprep.mubr.bf16.mxu0 0
      %970 = vmatmul.mubr.bf16.gmra.mrb[0].mxu0 %v404
      %v971 = vpop.f32.mrb[0].mxu0
      %v972 = vadd.f32 %v729, %v971
      %v973 = vpop.f32.mrb[0].mxu0
      %v974 = vpop.f32.mrb[0].mxu0
      %v975 = vadd.f32 %v732, %v974
      %v976 = vpop.f32.mrb[0].mxu0
      %977 = vmatprep.mubr.bf16.mxu0 0
      %978 = vmatmul.mubr.bf16.gmra.mrb[0].mxu0 %v405
      %v979 = vpop.f32.mrb[0].mxu0
      %v980 = vadd.f32 %v737, %v979
      %v981 = vpop.f32.mrb[0].mxu0
      %v982 = vpop.f32.mrb[0].mxu0
      %v983 = vadd.f32 %v740, %v982
      %v984 = vpop.f32.mrb[0].mxu0
      %985 = vmatprep.mubr.bf16.mxu0 0
      %986 = vmatmul.mubr.bf16.gmra.mrb[0].mxu0 %v406
      %v987 = vpop.f32.mrb[0].mxu0
      %v988 = vadd.f32 %v745, %v987
      %v989 = vpop.f32.mrb[0].mxu0
      %v990 = vpop.f32.mrb[0].mxu0
      %v991 = vadd.f32 %v748, %v990
      %v992 = vpop.f32.mrb[0].mxu0
      %993 = vmatprep.mubr.bf16.mxu0 0
      %994 = vmatmul.mubr.bf16.gmra.mrb[0].mxu0 %v407
      %v995 = vpop.f32.mrb[0].mxu0
      %v996 = vadd.f32 %v753, %v995
      %v997 = vpop.f32.mrb[0].mxu0
      %v998 = vpop.f32.mrb[0].mxu0
      %v999 = vadd.f32 %v756, %v998
      %v1000 = vpop.f32.mrb[0].mxu0
      %1001 = vmatprep.mubr.bf16.mxu0 0
      %1002 = vmatmul.mubr.bf16.gmra.mrb[0].mxu0 %v408
      %v1003 = vpop.f32.mrb[0].mxu0
      %v1004 = vadd.f32 %v761, %v1003
      %v1005 = vpop.f32.mrb[0].mxu0
      %v1006 = vpop.f32.mrb[0].mxu0
      %v1007 = vadd.f32 %v764, %v1006
      %v1008 = vpop.f32.mrb[0].mxu0
      %1009 = vmatprep.mubr.bf16.mxu0 0
      %1010 = vmatmul.mubr.bf16.gmra.mrb[0].mxu0 %v409
      %v1011 = vpop.f32.mrb[0].mxu0
      %v1012 = vadd.f32 %v769, %v1011
      %v1013 = vpop.f32.mrb[0].mxu0
      %v1014 = vpop.f32.mrb[0].mxu0
      %v1015 = vadd.f32 %v772, %v1014
      %v1016 = vpop.f32.mrb[0].mxu0
      %1017 = vmatprep.mubr.bf16.mxu0 0
      %1018 = vmatmul.mubr.bf16.gmra.mrb[0].mxu0 %v410
      %v1019 = vpop.f32.mrb[0].mxu0
      %v1020 = vadd.f32 %v777, %v1019
      %v1021 = vpop.f32.mrb[0].mxu0
      %v1022 = vpop.f32.mrb[0].mxu0
      %v1023 = vadd.f32 %v780, %v1022
      %v1024 = vpop.f32.mrb[0].mxu0
      %1025 = vmatprep.mubr.bf16.mxu0 0
      %1026 = vmatmul.mubr.bf16.gmra.mrb[0].mxu0 %v411
      %v1027 = vpop.f32.mrb[0].mxu0
      %v1028 = vadd.f32 %v785, %v1027
      %v1029 = vpop.f32.mrb[0].mxu0
      %v1030 = vpop.f32.mrb[0].mxu0
      %v1031 = vadd.f32 %v788, %v1030
      %v1032 = vpop.f32.mrb[0].mxu0
      %1033 = vmatprep.mubr.bf16.mxu0 0
      %1034 = vmatmul.mubr.bf16.gmra.mrb[0].mxu0 %v412
      %v1035 = vpop.f32.mrb[0].mxu0
      %v1036 = vadd.f32 %v793, %v1035
      %v1037 = vpop.f32.mrb[0].mxu0
      %v1038 = vpop.f32.mrb[0].mxu0
      %v1039 = vadd.f32 %v796, %v1038
      %v1040 = vpop.f32.mrb[0].mxu0
      %1041 = vmatprep.mubr.bf16.mxu0 0
      %1042 = vmatmul.mubr.bf16.gmra.mrb[0].mxu0 %v413
      %v1043 = vpop.f32.mrb[0].mxu0
      %v1044 = vadd.f32 %v801, %v1043
      %v1045 = vpop.f32.mrb[0].mxu0
      %v1046 = vpop.f32.mrb[0].mxu0
      %v1047 = vadd.f32 %v804, %v1046
      %v1048 = vpop.f32.mrb[0].mxu0
      %1049 = vdwg.mxu0
      %s1050 = scalar_lea.vmem %s1, 128
      %v1051 = vld [vmem:[%s1050] sm:$0xf]
      %v1052 = vld [vmem:[%s1050 + $0x4] sm:$0xf]
      %v1053 = vld [vmem:[%s1050 + $0x8] sm:$0xf]
      %v1054 = vld [vmem:[%s1050 + $0xc] sm:$0xf]
      %v1055 = vld [vmem:[%s1050 + $0x10] sm:$0xf]
      %v1056 = vld [vmem:[%s1050 + $0x14] sm:$0xf]
      %v1057 = vld [vmem:[%s1050 + $0x18] sm:$0xf]
      %v1058 = vld [vmem:[%s1050 + $0x1c] sm:$0xf]
      %v1059 = vld [vmem:[%s1050 + $0x20] sm:$0xf]
      %v1060 = vld [vmem:[%s1050 + $0x24] sm:$0xf]
      %v1061 = vld [vmem:[%s1050 + $0x28] sm:$0xf]
      %v1062 = vld [vmem:[%s1050 + $0x2c] sm:$0xf]
      %v1063 = vld [vmem:[%s1050 + $0x30] sm:$0xf]
      %v1064 = vld [vmem:[%s1050 + $0x34] sm:$0xf]
      %v1065 = vld [vmem:[%s1050 + $0x38] sm:$0xf]
      %v1066 = vld [vmem:[%s1050 + $0x3c] sm:$0xf]
      %vm1067 = vcmask 1046528
      %v1068 = vrot.slane %v396, 1
      %v1069 = vrot.slane %v397, 1
      %v1070 = vsel %vm1067, %v1068, %v1069
      %v1071 = vrot.slane %v398, 1
      %v1072 = vsel %vm1067, %v1069, %v1071
      %v1073 = vrot.slane %v399, 1
      %v1074 = vsel %vm1067, %v1071, %v1073
      %v1075 = vrot.slane %v400, 1
      %v1076 = vsel %vm1067, %v1073, %v1075
      %v1077 = vrot.slane %v401, 1
      %v1078 = vsel %vm1067, %v1075, %v1077
      %v1079 = vrot.slane %v402, 1
      %v1080 = vsel %vm1067, %v1077, %v1079
      %v1081 = vrot.slane %v403, 1
      %v1082 = vsel %vm1067, %v1079, %v1081
      %v1083 = vrot.slane %v404, 1
      %v1084 = vsel %vm1067, %v1081, %v1083
      %v1085 = vrot.slane %v405, 1
      %v1086 = vsel %vm1067, %v1083, %v1085
      %v1087 = vrot.slane %v406, 1
      %v1088 = vsel %vm1067, %v1085, %v1087
      %v1089 = vrot.slane %v407, 1
      %v1090 = vsel %vm1067, %v1087, %v1089
      %v1091 = vrot.slane %v408, 1
      %v1092 = vsel %vm1067, %v1089, %v1091
      %v1093 = vrot.slane %v409, 1
      %v1094 = vsel %vm1067, %v1091, %v1093
      %v1095 = vrot.slane %v410, 1
      %v1096 = vsel %vm1067, %v1093, %v1095
      %v1097 = vrot.slane %v411, 1
      %v1098 = vsel %vm1067, %v1095, %v1097
      %v1099 = vrot.slane %v412, 1
      %v1100 = vsel %vm1067, %v1097, %v1099
      %v1101 = vrot.slane %v413, 1
      %v1102 = vsel %vm1067, %v1099, %v1101
      %v1103 = vrot.slane %v414, 1
      %v1104 = vsel %vm1067, %v1101, %v1103
      %v1139 = vunpack.c.l.b16 %v1051
      %v1140 = vunpack.c.l.b16 %v1052
      %v1141 = vunpack.c.l.b16 %v1053
      %v1142 = vunpack.c.l.b16 %v1054
      %v1143 = vunpack.c.l.b16 %v1055
      %v1144 = vunpack.c.l.b16 %v1056
      %v1145 = vunpack.c.l.b16 %v1057
      %v1146 = vunpack.c.l.b16 %v1058
      %v1147 = vunpack.c.l.b16 %v1059
      %v1148 = vunpack.c.l.b16 %v1060
      %v1149 = vunpack.c.l.b16 %v1061
      %v1150 = vunpack.c.l.b16 %v1062
      %v1151 = vunpack.c.l.b16 %v1063
      %v1152 = vunpack.c.l.b16 %v1064
      %v1153 = vunpack.c.l.b16 %v1065
      %v1154 = vunpack.c.l.b16 %v1066
      %v1155 = vpack.c.b16 %v1140, %v1139
      %v1156 = vpack.c.b16 %v1142, %v1141
      %v1157 = vpack.c.b16 %v1144, %v1143
      %v1158 = vpack.c.b16 %v1146, %v1145
      %v1159 = vpack.c.b16 %v1148, %v1147
      %v1160 = vpack.c.b16 %v1150, %v1149
      %v1161 = vpack.c.b16 %v1152, %v1151
      %v1162 = vpack.c.b16 %v1154, %v1153
      %1171 = vmatprep.subr.bf16.mxu0 0
      %1172 = vmatpush1.bf16.msra.mxu0 %v1155
      %1173 = vmatprep.subr.bf16.mxu0 0
      %1174 = vmatpush1.bf16.msra.mxu0 %v1156
      %1175 = vmatprep.subr.bf16.mxu0 0
      %1176 = vmatpush1.bf16.msra.mxu0 %v1157
      %1177 = vmatprep.subr.bf16.mxu0 0
      %1178 = vmatpush1.bf16.msra.mxu0 %v1158
      %1179 = vmatprep.subr.bf16.mxu0 0
      %1180 = vmatpush1.bf16.msra.mxu0 %v1159
      %1181 = vmatprep.subr.bf16.mxu0 0
      %1182 = vmatpush1.bf16.msra.mxu0 %v1160
      %1183 = vmatprep.subr.bf16.mxu0 0
      %1184 = vmatpush1.bf16.msra.mxu0 %v1161
      %1185 = vmatprep.subr.bf16.mxu0 0
      %1186 = vmatpush1.bf16.msra.mxu0 %v1162
      %1187 = vmatprep.subr.bf16.mxu0 0
      %1188 = vmatpush1.bf16.msra.mxu0 0
      %1189 = vmatprep.subr.bf16.mxu0 0
      %1190 = vmatpush1.bf16.msra.mxu0 0
      %1191 = vmatprep.subr.bf16.mxu0 0
      %1192 = vmatpush1.bf16.msra.mxu0 0
      %1193 = vmatprep.subr.bf16.mxu0 0
      %1194 = vmatpush1.bf16.msra.mxu0 0
      %1195 = vmatprep.subr.bf16.mxu0 0
      %1196 = vmatpush1.bf16.msra.mxu0 0
      %1197 = vmatprep.subr.bf16.mxu0 0
      %1198 = vmatpush1.bf16.msra.mxu0 0
      %1199 = vmatprep.subr.bf16.mxu0 0
      %1200 = vmatpush1.bf16.msra.mxu0 0
      %1201 = vmatprep.subr.bf16.mxu0 0
      %1202 = vmatpush1.bf16.msra.mxu0 0
      %1203 = vmatprep.mubr.bf16.mxu0 0
      %1204 = vmatmul.mubr.bf16.gmra.mrb[0].mxu0 %v1070
      %v1205 = vpop.f32.mrb[0].mxu0
      %v1206 = vadd.f32 0.0, %v1205
      %v1207 = vpop.f32.mrb[0].mxu0
      %v1208 = vpop.f32.mrb[0].mxu0
      %v1209 = vadd.f32 0.0, %v1208
      %v1210 = vpop.f32.mrb[0].mxu0
      %1211 = vmatprep.mubr.bf16.mxu0 0
      %1212 = vmatmul.mubr.bf16.gmra.mrb[0].mxu0 %v1072
      %v1213 = vpop.f32.mrb[0].mxu0
      %v1214 = vadd.f32 0.0, %v1213
      %v1215 = vpop.f32.mrb[0].mxu0
      %v1216 = vpop.f32.mrb[0].mxu0
      %v1217 = vadd.f32 0.0, %v1216
      %v1218 = vpop.f32.mrb[0].mxu0
      %1219 = vmatprep.mubr.bf16.mxu0 0
      %1220 = vmatmul.mubr.bf16.gmra.mrb[0].mxu0 %v1074
      %v1221 = vpop.f32.mrb[0].mxu0
      %v1222 = vadd.f32 0.0, %v1221
      %v1223 = vpop.f32.mrb[0].mxu0
      %v1224 = vpop.f32.mrb[0].mxu0
      %v1225 = vadd.f32 0.0, %v1224
      %v1226 = vpop.f32.mrb[0].mxu0
      %1227 = vmatprep.mubr.bf16.mxu0 0
      %1228 = vmatmul.mubr.bf16.gmra.mrb[0].mxu0 %v1076
      %v1229 = vpop.f32.mrb[0].mxu0
      %v1230 = vadd.f32 0.0, %v1229
      %v1231 = vpop.f32.mrb[0].mxu0
      %v1232 = vpop.f32.mrb[0].mxu0
      %v1233 = vadd.f32 0.0, %v1232
      %v1234 = vpop.f32.mrb[0].mxu0
      %1235 = vmatprep.mubr.bf16.mxu0 0
      %1236 = vmatmul.mubr.bf16.gmra.mrb[0].mxu0 %v1078
      %v1237 = vpop.f32.mrb[0].mxu0
      %v1238 = vadd.f32 0.0, %v1237
      %v1239 = vpop.f32.mrb[0].mxu0
      %v1240 = vpop.f32.mrb[0].mxu0
      %v1241 = vadd.f32 0.0, %v1240
      %v1242 = vpop.f32.mrb[0].mxu0
      %1243 = vmatprep.mubr.bf16.mxu0 0
      %1244 = vmatmul.mubr.bf16.gmra.mrb[0].mxu0 %v1080
      %v1245 = vpop.f32.mrb[0].mxu0
      %v1246 = vadd.f32 0.0, %v1245
      %v1247 = vpop.f32.mrb[0].mxu0
      %v1248 = vpop.f32.mrb[0].mxu0
      %v1249 = vadd.f32 0.0, %v1248
      %v1250 = vpop.f32.mrb[0].mxu0
      %1251 = vmatprep.mubr.bf16.mxu0 0
      %1252 = vmatmul.mubr.bf16.gmra.mrb[0].mxu0 %v1082
      %v1253 = vpop.f32.mrb[0].mxu0
      %v1254 = vadd.f32 0.0, %v1253
      %v1255 = vpop.f32.mrb[0].mxu0
      %v1256 = vpop.f32.mrb[0].mxu0
      %v1257 = vadd.f32 0.0, %v1256
      %v1258 = vpop.f32.mrb[0].mxu0
      %1259 = vmatprep.mubr.bf16.mxu0 0
      %1260 = vmatmul.mubr.bf16.gmra.mrb[0].mxu0 %v1084
      %v1261 = vpop.f32.mrb[0].mxu0
      %v1262 = vadd.f32 0.0, %v1261
      %v1263 = vpop.f32.mrb[0].mxu0
      %v1264 = vpop.f32.mrb[0].mxu0
      %v1265 = vadd.f32 0.0, %v1264
      %v1266 = vpop.f32.mrb[0].mxu0
      %1267 = vmatprep.mubr.bf16.mxu0 0
      %1268 = vmatmul.mubr.bf16.gmra.mrb[0].mxu0 %v1086
      %v1269 = vpop.f32.mrb[0].mxu0
      %v1270 = vadd.f32 0.0, %v1269
      %v1271 = vpop.f32.mrb[0].mxu0
      %v1272 = vpop.f32.mrb[0].mxu0
      %v1273 = vadd.f32 0.0, %v1272
      %v1274 = vpop.f32.mrb[0].mxu0
      %1275 = vmatprep.mubr.bf16.mxu0 0
      %1276 = vmatmul.mubr.bf16.gmra.mrb[0].mxu0 %v1088
      %v1277 = vpop.f32.mrb[0].mxu0
      %v1278 = vadd.f32 0.0, %v1277
      %v1279 = vpop.f32.mrb[0].mxu0
      %v1280 = vpop.f32.mrb[0].mxu0
      %v1281 = vadd.f32 0.0, %v1280
      %v1282 = vpop.f32.mrb[0].mxu0
      %1283 = vmatprep.mubr.bf16.mxu0 0
      %1284 = vmatmul.mubr.bf16.gmra.mrb[0].mxu0 %v1090
      %v1285 = vpop.f32.mrb[0].mxu0
      %v1286 = vadd.f32 0.0, %v1285
      %v1287 = vpop.f32.mrb[0].mxu0
      %v1288 = vpop.f32.mrb[0].mxu0
      %v1289 = vadd.f32 0.0, %v1288
      %v1290 = vpop.f32.mrb[0].mxu0
      %1291 = vmatprep.mubr.bf16.mxu0 0
      %1292 = vmatmul.mubr.bf16.gmra.mrb[0].mxu0 %v1092
      %v1293 = vpop.f32.mrb[0].mxu0
      %v1294 = vadd.f32 0.0, %v1293
      %v1295 = vpop.f32.mrb[0].mxu0
      %v1296 = vpop.f32.mrb[0].mxu0
      %v1297 = vadd.f32 0.0, %v1296
      %v1298 = vpop.f32.mrb[0].mxu0
      %1299 = vmatprep.mubr.bf16.mxu0 0
      %1300 = vmatmul.mubr.bf16.gmra.mrb[0].mxu0 %v1094
      %v1301 = vpop.f32.mrb[0].mxu0
      %v1302 = vadd.f32 0.0, %v1301
      %v1303 = vpop.f32.mrb[0].mxu0
      %v1304 = vpop.f32.mrb[0].mxu0
      %v1305 = vadd.f32 0.0, %v1304
      %v1306 = vpop.f32.mrb[0].mxu0
      %1307 = vmatprep.mubr.bf16.mxu0 0
      %1308 = vmatmul.mubr.bf16.gmra.mrb[0].mxu0 %v1096
      %v1309 = vpop.f32.mrb[0].mxu0
      %v1310 = vadd.f32 0.0, %v1309
      %v1311 = vpop.f32.mrb[0].mxu0
      %v1312 = vpop.f32.mrb[0].mxu0
      %v1313 = vadd.f32 0.0, %v1312
      %v1314 = vpop.f32.mrb[0].mxu0
      %1315 = vmatprep.mubr.bf16.mxu0 0
      %1316 = vmatmul.mubr.bf16.gmra.mrb[0].mxu0 %v1098
      %v1317 = vpop.f32.mrb[0].mxu0
      %v1318 = vadd.f32 0.0, %v1317
      %v1319 = vpop.f32.mrb[0].mxu0
      %v1320 = vpop.f32.mrb[0].mxu0
      %v1321 = vadd.f32 0.0, %v1320
      %v1322 = vpop.f32.mrb[0].mxu0
      %1323 = vmatprep.mubr.bf16.mxu0 0
      %1324 = vmatmul.mubr.bf16.gmra.mrb[0].mxu0 %v1100
      %v1325 = vpop.f32.mrb[0].mxu0
      %v1326 = vadd.f32 0.0, %v1325
      %v1327 = vpop.f32.mrb[0].mxu0
      %v1328 = vpop.f32.mrb[0].mxu0
      %v1329 = vadd.f32 0.0, %v1328
      %v1330 = vpop.f32.mrb[0].mxu0
      %1331 = vmatprep.mubr.bf16.mxu0 0
      %1332 = vmatmul.mubr.bf16.gmra.mrb[0].mxu0 %v1102
      %v1333 = vpop.f32.mrb[0].mxu0
      %v1334 = vadd.f32 0.0, %v1333
      %v1335 = vpop.f32.mrb[0].mxu0
      %v1336 = vpop.f32.mrb[0].mxu0
      %v1337 = vadd.f32 0.0, %v1336
      %v1338 = vpop.f32.mrb[0].mxu0
      %1339 = vmatprep.mubr.bf16.mxu0 0
      %1340 = vmatmul.mubr.bf16.gmra.mrb[0].mxu0 %v1104
      %v1341 = vpop.f32.mrb[0].mxu0
      %v1342 = vadd.f32 0.0, %v1341
      %v1343 = vpop.f32.mrb[0].mxu0
      %v1344 = vpop.f32.mrb[0].mxu0
      %v1345 = vadd.f32 0.0, %v1344
      %v1346 = vpop.f32.mrb[0].mxu0
      %1347 = vdwg.mxu0
      %v1348 = vadd.f32 %v908, %v1206
      %v1349 = vadd.f32 %v911, %v1209
      %v1350 = vadd.f32 %v916, %v1214
      %v1351 = vadd.f32 %v919, %v1217
      %v1352 = vadd.f32 %v924, %v1222
      %v1353 = vadd.f32 %v927, %v1225
      %v1354 = vadd.f32 %v932, %v1230
      %v1355 = vadd.f32 %v935, %v1233
      %v1356 = vadd.f32 %v940, %v1238
      %v1357 = vadd.f32 %v943, %v1241
      %v1358 = vadd.f32 %v948, %v1246
      %v1359 = vadd.f32 %v951, %v1249
      %v1360 = vadd.f32 %v956, %v1254
      %v1361 = vadd.f32 %v959, %v1257
      %v1362 = vadd.f32 %v964, %v1262
      %v1363 = vadd.f32 %v967, %v1265
      %v1364 = vadd.f32 %v972, %v1270
      %v1365 = vadd.f32 %v975, %v1273
      %v1366 = vadd.f32 %v980, %v1278
      %v1367 = vadd.f32 %v983, %v1281
      %v1368 = vadd.f32 %v988, %v1286
      %v1369 = vadd.f32 %v991, %v1289
      %v1370 = vadd.f32 %v996, %v1294
      %v1371 = vadd.f32 %v999, %v1297
      %v1372 = vadd.f32 %v1004, %v1302
      %v1373 = vadd.f32 %v1007, %v1305
      %v1374 = vadd.f32 %v1012, %v1310
      %v1375 = vadd.f32 %v1015, %v1313
      %v1376 = vadd.f32 %v1020, %v1318
      %v1377 = vadd.f32 %v1023, %v1321
      %v1378 = vadd.f32 %v1028, %v1326
      %v1379 = vadd.f32 %v1031, %v1329
      %v1380 = vadd.f32 %v1036, %v1334
      %v1381 = vadd.f32 %v1039, %v1337
      %v1382 = vadd.f32 %v1044, %v1342
      %v1383 = vadd.f32 %v1047, %v1345
      %s1384 = scalar_lea.vmem %s1, 192
      %v1385 = vld [vmem:[%s1384] sm:$0xf]
      %v1386 = vld [vmem:[%s1384 + $0x4] sm:$0xf]
      %v1387 = vld [vmem:[%s1384 + $0x8] sm:$0xf]
      %v1388 = vld [vmem:[%s1384 + $0xc] sm:$0xf]
      %v1389 = vld [vmem:[%s1384 + $0x10] sm:$0xf]
      %v1390 = vld [vmem:[%s1384 + $0x14] sm:$0xf]
      %v1391 = vld [vmem:[%s1384 + $0x18] sm:$0xf]
      %v1392 = vld [vmem:[%s1384 + $0x1c] sm:$0xf]
      %v1393 = vld [vmem:[%s1384 + $0x20] sm:$0xf]
      %v1394 = vld [vmem:[%s1384 + $0x24] sm:$0xf]
      %v1395 = vld [vmem:[%s1384 + $0x28] sm:$0xf]
      %v1396 = vld [vmem:[%s1384 + $0x2c] sm:$0xf]
      %v1397 = vld [vmem:[%s1384 + $0x30] sm:$0xf]
      %v1398 = vld [vmem:[%s1384 + $0x34] sm:$0xf]
      %v1399 = vld [vmem:[%s1384 + $0x38] sm:$0xf]
      %v1400 = vld [vmem:[%s1384 + $0x3c] sm:$0xf]
      %v1403 = vunpack.c.l.b16 %v285
      %v1404 = vunpack.c.l.b16 %v286
      %v1405 = vpack.c.b16 %v1403, %v395
      %v1406 = vpack.c.b16 %v1404, %v1404
      %v1407 = vrot.slane %v1405, 1
      %v1408 = vsel %vm1067, %v1101, %v1407
      %v1409 = vrot.slane %v1406, 1
      %v1410 = vsel %vm1067, %v1407, %v1409
      %v1429 = vunpack.c.l.b16 %v1385
      %v1430 = vunpack.c.l.b16 %v1386
      %v1431 = vunpack.c.l.b16 %v1387
      %v1432 = vunpack.c.l.b16 %v1388
      %v1433 = vunpack.c.l.b16 %v1389
      %v1434 = vunpack.c.l.b16 %v1390
      %v1435 = vunpack.c.l.b16 %v1391
      %v1436 = vunpack.c.l.b16 %v1392
      %v1437 = vunpack.c.l.b16 %v1393
      %v1438 = vunpack.c.l.b16 %v1394
      %v1439 = vunpack.c.l.b16 %v1395
      %v1440 = vunpack.c.l.b16 %v1396
      %v1441 = vunpack.c.l.b16 %v1397
      %v1442 = vunpack.c.l.b16 %v1398
      %v1443 = vunpack.c.l.b16 %v1399
      %v1444 = vunpack.c.l.b16 %v1400
      %v1445 = vpack.c.b16 %v1430, %v1429
      %v1446 = vpack.c.b16 %v1432, %v1431
      %v1447 = vpack.c.b16 %v1434, %v1433
      %v1448 = vpack.c.b16 %v1436, %v1435
      %v1449 = vpack.c.b16 %v1438, %v1437
      %v1450 = vpack.c.b16 %v1440, %v1439
      %v1451 = vpack.c.b16 %v1442, %v1441
      %v1452 = vpack.c.b16 %v1444, %v1443
      %1461 = vmatprep.subr.bf16.mxu0 0
      %1462 = vmatpush1.bf16.msra.mxu0 %v1445
      %1463 = vmatprep.subr.bf16.mxu0 0
      %1464 = vmatpush1.bf16.msra.mxu0 %v1446
      %1465 = vmatprep.subr.bf16.mxu0 0
      %1466 = vmatpush1.bf16.msra.mxu0 %v1447
      %1467 = vmatprep.subr.bf16.mxu0 0
      %1468 = vmatpush1.bf16.msra.mxu0 %v1448
      %1469 = vmatprep.subr.bf16.mxu0 0
      %1470 = vmatpush1.bf16.msra.mxu0 %v1449
      %1471 = vmatprep.subr.bf16.mxu0 0
      %1472 = vmatpush1.bf16.msra.mxu0 %v1450
      %1473 = vmatprep.subr.bf16.mxu0 0
      %1474 = vmatpush1.bf16.msra.mxu0 %v1451
      %1475 = vmatprep.subr.bf16.mxu0 0
      %1476 = vmatpush1.bf16.msra.mxu0 %v1452
      %1477 = vmatprep.subr.bf16.mxu0 0
      %1478 = vmatpush1.bf16.msra.mxu0 0
      %1479 = vmatprep.subr.bf16.mxu0 0
      %1480 = vmatpush1.bf16.msra.mxu0 0
      %1481 = vmatprep.subr.bf16.mxu0 0
      %1482 = vmatpush1.bf16.msra.mxu0 0
      %1483 = vmatprep.subr.bf16.mxu0 0
      %1484 = vmatpush1.bf16.msra.mxu0 0
      %1485 = vmatprep.subr.bf16.mxu0 0
      %1486 = vmatpush1.bf16.msra.mxu0 0
      %1487 = vmatprep.subr.bf16.mxu0 0
      %1488 = vmatpush1.bf16.msra.mxu0 0
      %1489 = vmatprep.subr.bf16.mxu0 0
      %1490 = vmatpush1.bf16.msra.mxu0 0
      %1491 = vmatprep.subr.bf16.mxu0 0
      %1492 = vmatpush1.bf16.msra.mxu0 0
      %1493 = vmatprep.mubr.bf16.mxu0 0
      %1494 = vmatmul.mubr.bf16.gmra.mrb[0].mxu0 %v1072
      %v1495 = vpop.f32.mrb[0].mxu0
      %v1496 = vadd.f32 0.0, %v1495
      %v1497 = vpop.f32.mrb[0].mxu0
      %v1498 = vpop.f32.mrb[0].mxu0
      %v1499 = vadd.f32 0.0, %v1498
      %v1500 = vpop.f32.mrb[0].mxu0
      %1501 = vmatprep.mubr.bf16.mxu0 0
      %1502 = vmatmul.mubr.bf16.gmra.mrb[0].mxu0 %v1074
      %v1503 = vpop.f32.mrb[0].mxu0
      %v1504 = vadd.f32 0.0, %v1503
      %v1505 = vpop.f32.mrb[0].mxu0
      %v1506 = vpop.f32.mrb[0].mxu0
      %v1507 = vadd.f32 0.0, %v1506
      %v1508 = vpop.f32.mrb[0].mxu0
      %1509 = vmatprep.mubr.bf16.mxu0 0
      %1510 = vmatmul.mubr.bf16.gmra.mrb[0].mxu0 %v1076
      %v1511 = vpop.f32.mrb[0].mxu0
      %v1512 = vadd.f32 0.0, %v1511
      %v1513 = vpop.f32.mrb[0].mxu0
      %v1514 = vpop.f32.mrb[0].mxu0
      %v1515 = vadd.f32 0.0, %v1514
      %v1516 = vpop.f32.mrb[0].mxu0
      %1517 = vmatprep.mubr.bf16.mxu0 0
      %1518 = vmatmul.mubr.bf16.gmra.mrb[0].mxu0 %v1078
      %v1519 = vpop.f32.mrb[0].mxu0
      %v1520 = vadd.f32 0.0, %v1519
      %v1521 = vpop.f32.mrb[0].mxu0
      %v1522 = vpop.f32.mrb[0].mxu0
      %v1523 = vadd.f32 0.0, %v1522
      %v1524 = vpop.f32.mrb[0].mxu0
      %1525 = vmatprep.mubr.bf16.mxu0 0
      %1526 = vmatmul.mubr.bf16.gmra.mrb[0].mxu0 %v1080
      %v1527 = vpop.f32.mrb[0].mxu0
      %v1528 = vadd.f32 0.0, %v1527
      %v1529 = vpop.f32.mrb[0].mxu0
      %v1530 = vpop.f32.mrb[0].mxu0
      %v1531 = vadd.f32 0.0, %v1530
      %v1532 = vpop.f32.mrb[0].mxu0
      %1533 = vmatprep.mubr.bf16.mxu0 0
      %1534 = vmatmul.mubr.bf16.gmra.mrb[0].mxu0 %v1082
      %v1535 = vpop.f32.mrb[0].mxu0
      %v1536 = vadd.f32 0.0, %v1535
      %v1537 = vpop.f32.mrb[0].mxu0
      %v1538 = vpop.f32.mrb[0].mxu0
      %v1539 = vadd.f32 0.0, %v1538
      %v1540 = vpop.f32.mrb[0].mxu0
      %1541 = vmatprep.mubr.bf16.mxu0 0
      %1542 = vmatmul.mubr.bf16.gmra.mrb[0].mxu0 %v1084
      %v1543 = vpop.f32.mrb[0].mxu0
      %v1544 = vadd.f32 0.0, %v1543
      %v1545 = vpop.f32.mrb[0].mxu0
      %v1546 = vpop.f32.mrb[0].mxu0
      %v1547 = vadd.f32 0.0, %v1546
      %v1548 = vpop.f32.mrb[0].mxu0
      %1549 = vmatprep.mubr.bf16.mxu0 0
      %1550 = vmatmul.mubr.bf16.gmra.mrb[0].mxu0 %v1086
      %v1551 = vpop.f32.mrb[0].mxu0
      %v1552 = vadd.f32 0.0, %v1551
      %v1553 = vpop.f32.mrb[0].mxu0
      %v1554 = vpop.f32.mrb[0].mxu0
      %v1555 = vadd.f32 0.0, %v1554
      %v1556 = vpop.f32.mrb[0].mxu0
      %1557 = vmatprep.mubr.bf16.mxu0 0
      %1558 = vmatmul.mubr.bf16.gmra.mrb[0].mxu0 %v1088
      %v1559 = vpop.f32.mrb[0].mxu0
      %v1560 = vadd.f32 0.0, %v1559
      %v1561 = vpop.f32.mrb[0].mxu0
      %v1562 = vpop.f32.mrb[0].mxu0
      %v1563 = vadd.f32 0.0, %v1562
      %v1564 = vpop.f32.mrb[0].mxu0
      %1565 = vmatprep.mubr.bf16.mxu0 0
      %1566 = vmatmul.mubr.bf16.gmra.mrb[0].mxu0 %v1090
      %v1567 = vpop.f32.mrb[0].mxu0
      %v1568 = vadd.f32 0.0, %v1567
      %v1569 = vpop.f32.mrb[0].mxu0
      %v1570 = vpop.f32.mrb[0].mxu0
      %v1571 = vadd.f32 0.0, %v1570
      %v1572 = vpop.f32.mrb[0].mxu0
      %1573 = vmatprep.mubr.bf16.mxu0 0
      %1574 = vmatmul.mubr.bf16.gmra.mrb[0].mxu0 %v1092
      %v1575 = vpop.f32.mrb[0].mxu0
      %v1576 = vadd.f32 0.0, %v1575
      %v1577 = vpop.f32.mrb[0].mxu0
      %v1578 = vpop.f32.mrb[0].mxu0
      %v1579 = vadd.f32 0.0, %v1578
      %v1580 = vpop.f32.mrb[0].mxu0
      %1581 = vmatprep.mubr.bf16.mxu0 0
      %1582 = vmatmul.mubr.bf16.gmra.mrb[0].mxu0 %v1094
      %v1583 = vpop.f32.mrb[0].mxu0
      %v1584 = vadd.f32 0.0, %v1583
      %v1585 = vpop.f32.mrb[0].mxu0
      %v1586 = vpop.f32.mrb[0].mxu0
      %v1587 = vadd.f32 0.0, %v1586
      %v1588 = vpop.f32.mrb[0].mxu0
      %1589 = vmatprep.mubr.bf16.mxu0 0
      %1590 = vmatmul.mubr.bf16.gmra.mrb[0].mxu0 %v1096
      %v1591 = vpop.f32.mrb[0].mxu0
      %v1592 = vadd.f32 0.0, %v1591
      %v1593 = vpop.f32.mrb[0].mxu0
      %v1594 = vpop.f32.mrb[0].mxu0
      %v1595 = vadd.f32 0.0, %v1594
      %v1596 = vpop.f32.mrb[0].mxu0
      %1597 = vmatprep.mubr.bf16.mxu0 0
      %1598 = vmatmul.mubr.bf16.gmra.mrb[0].mxu0 %v1098
      %v1599 = vpop.f32.mrb[0].mxu0
      %v1600 = vadd.f32 0.0, %v1599
      %v1601 = vpop.f32.mrb[0].mxu0
      %v1602 = vpop.f32.mrb[0].mxu0
      %v1603 = vadd.f32 0.0, %v1602
      %v1604 = vpop.f32.mrb[0].mxu0
      %1605 = vmatprep.mubr.bf16.mxu0 0
      %1606 = vmatmul.mubr.bf16.gmra.mrb[0].mxu0 %v1100
      %v1607 = vpop.f32.mrb[0].mxu0
      %v1608 = vadd.f32 0.0, %v1607
      %v1609 = vpop.f32.mrb[0].mxu0
      %v1610 = vpop.f32.mrb[0].mxu0
      %v1611 = vadd.f32 0.0, %v1610
      %v1612 = vpop.f32.mrb[0].mxu0
      %1613 = vmatprep.mubr.bf16.mxu0 0
      %1614 = vmatmul.mubr.bf16.gmra.mrb[0].mxu0 %v1102
      %v1615 = vpop.f32.mrb[0].mxu0
      %v1616 = vadd.f32 0.0, %v1615
      %v1617 = vpop.f32.mrb[0].mxu0
      %v1618 = vpop.f32.mrb[0].mxu0
      %v1619 = vadd.f32 0.0, %v1618
      %v1620 = vpop.f32.mrb[0].mxu0
      %1621 = vmatprep.mubr.bf16.mxu0 0
      %1622 = vmatmul.mubr.bf16.gmra.mrb[0].mxu0 %v1408
      %v1623 = vpop.f32.mrb[0].mxu0
      %v1624 = vadd.f32 0.0, %v1623
      %v1625 = vpop.f32.mrb[0].mxu0
      %v1626 = vpop.f32.mrb[0].mxu0
      %v1627 = vadd.f32 0.0, %v1626
      %v1628 = vpop.f32.mrb[0].mxu0
      %1629 = vmatprep.mubr.bf16.mxu0 0
      %1630 = vmatmul.mubr.bf16.gmra.mrb[0].mxu0 %v1410
      %v1631 = vpop.f32.mrb[0].mxu0
      %v1632 = vadd.f32 0.0, %v1631
      %v1633 = vpop.f32.mrb[0].mxu0
      %v1634 = vpop.f32.mrb[0].mxu0
      %v1635 = vadd.f32 0.0, %v1634
      %v1636 = vpop.f32.mrb[0].mxu0
      %1637 = vdwg.mxu0
      %v1638 = vadd.f32 %v1348, %v1496
      %v1639 = vadd.f32 %v1349, %v1499
      %v1640 = vadd.f32 %v1350, %v1504
      %v1641 = vadd.f32 %v1351, %v1507
      %v1642 = vadd.f32 %v1352, %v1512
      %v1643 = vadd.f32 %v1353, %v1515
      %v1644 = vadd.f32 %v1354, %v1520
      %v1645 = vadd.f32 %v1355, %v1523
      %v1646 = vadd.f32 %v1356, %v1528
      %v1647 = vadd.f32 %v1357, %v1531
      %v1648 = vadd.f32 %v1358, %v1536
      %v1649 = vadd.f32 %v1359, %v1539
      %v1650 = vadd.f32 %v1360, %v1544
      %v1651 = vadd.f32 %v1361, %v1547
      %v1652 = vadd.f32 %v1362, %v1552
      %v1653 = vadd.f32 %v1363, %v1555
      %v1654 = vadd.f32 %v1364, %v1560
      %v1655 = vadd.f32 %v1365, %v1563
      %v1656 = vadd.f32 %v1366, %v1568
      %v1657 = vadd.f32 %v1367, %v1571
      %v1658 = vadd.f32 %v1368, %v1576
      %v1659 = vadd.f32 %v1369, %v1579
      %v1660 = vadd.f32 %v1370, %v1584
      %v1661 = vadd.f32 %v1371, %v1587
      %v1662 = vadd.f32 %v1372, %v1592
      %v1663 = vadd.f32 %v1373, %v1595
      %v1664 = vadd.f32 %v1374, %v1600
      %v1665 = vadd.f32 %v1375, %v1603
      %v1666 = vadd.f32 %v1376, %v1608
      %v1667 = vadd.f32 %v1377, %v1611
      %v1668 = vadd.f32 %v1378, %v1616
      %v1669 = vadd.f32 %v1379, %v1619
      %v1670 = vadd.f32 %v1380, %v1624
      %v1671 = vadd.f32 %v1381, %v1627
      %v1672 = vadd.f32 %v1382, %v1632
      %v1673 = vadd.f32 %v1383, %v1635
      %s1674 = scalar_lea.vmem %s1, 256
      %v1675 = vld [vmem:[%s1674] sm:$0xf]
      %v1676 = vld [vmem:[%s1674 + $0x4] sm:$0xf]
      %v1677 = vld [vmem:[%s1674 + $0x8] sm:$0xf]
      %v1678 = vld [vmem:[%s1674 + $0xc] sm:$0xf]
      %v1679 = vld [vmem:[%s1674 + $0x10] sm:$0xf]
      %v1680 = vld [vmem:[%s1674 + $0x14] sm:$0xf]
      %v1681 = vld [vmem:[%s1674 + $0x18] sm:$0xf]
      %v1682 = vld [vmem:[%s1674 + $0x1c] sm:$0xf]
      %v1683 = vld [vmem:[%s1674 + $0x20] sm:$0xf]
      %v1684 = vld [vmem:[%s1674 + $0x24] sm:$0xf]
      %v1685 = vld [vmem:[%s1674 + $0x28] sm:$0xf]
      %v1686 = vld [vmem:[%s1674 + $0x2c] sm:$0xf]
      %v1687 = vld [vmem:[%s1674 + $0x30] sm:$0xf]
      %v1688 = vld [vmem:[%s1674 + $0x34] sm:$0xf]
      %v1689 = vld [vmem:[%s1674 + $0x38] sm:$0xf]
      %v1690 = vld [vmem:[%s1674 + $0x3c] sm:$0xf]
      %vm1691 = vsmask.f32 6400
      %v1692 = vrot.slane %v428, 1
      %v1693 = vrot.slane %v424, 2
      %v1694 = vor.u32 %v1692, %v1693
      %v1695 = vrot.slane %v436, 1
      %v1696 = vrot.slane %v432, 2
      %v1697 = vor.u32 %v1695, %v1696
      %v1698 = vsel %vm1691, %v1694, %v1697
      %v1699 = vrot.slane %v444, 1
      %v1700 = vrot.slane %v440, 2
      %v1701 = vor.u32 %v1699, %v1700
      %v1702 = vsel %vm1691, %v1697, %v1701
      %v1703 = vrot.slane %v452, 1
      %v1704 = vrot.slane %v448, 2
      %v1705 = vor.u32 %v1703, %v1704
      %v1706 = vsel %vm1691, %v1701, %v1705
      %v1707 = vrot.slane %v460, 1
      %v1708 = vrot.slane %v456, 2
      %v1709 = vor.u32 %v1707, %v1708
      %v1710 = vsel %vm1691, %v1705, %v1709
      %v1711 = vrot.slane %v468, 1
      %v1712 = vrot.slane %v464, 2
      %v1713 = vor.u32 %v1711, %v1712
      %v1714 = vsel %vm1691, %v1709, %v1713
      %v1715 = vrot.slane %v476, 1
      %v1716 = vrot.slane %v472, 2
      %v1717 = vor.u32 %v1715, %v1716
      %v1718 = vsel %vm1691, %v1713, %v1717
      %v1719 = vrot.slane %v484, 1
      %v1720 = vrot.slane %v480, 2
      %v1721 = vor.u32 %v1719, %v1720
      %v1722 = vsel %vm1691, %v1717, %v1721
      %v1723 = vrot.slane %v492, 1
      %v1724 = vrot.slane %v488, 2
      %v1725 = vor.u32 %v1723, %v1724
      %v1726 = vsel %vm1691, %v1721, %v1725
      %v1727 = vrot.slane %v500, 1
      %v1728 = vrot.slane %v496, 2
      %v1729 = vor.u32 %v1727, %v1728
      %v1730 = vsel %vm1691, %v1725, %v1729
      %v1731 = vrot.slane %v508, 1
      %v1732 = vrot.slane %v504, 2
      %v1733 = vor.u32 %v1731, %v1732
      %v1734 = vsel %vm1691, %v1729, %v1733
      %v1735 = vrot.slane %v516, 1
      %v1736 = vrot.slane %v512, 2
      %v1737 = vor.u32 %v1735, %v1736
      %v1738 = vsel %vm1691, %v1733, %v1737
      %v1739 = vrot.slane %v524, 1
      %v1740 = vrot.slane %v520, 2
      %v1741 = vor.u32 %v1739, %v1740
      %v1742 = vsel %vm1691, %v1737, %v1741
      %v1743 = vrot.slane %v532, 1
      %v1744 = vrot.slane %v528, 2
      %v1745 = vor.u32 %v1743, %v1744
      %v1746 = vsel %vm1691, %v1741, %v1745
      %v1747 = vrot.slane %v540, 1
      %v1748 = vrot.slane %v536, 2
      %v1749 = vor.u32 %v1747, %v1748
      %v1750 = vsel %vm1691, %v1745, %v1749
      %v1751 = vrot.slane %v548, 1
      %v1752 = vrot.slane %v544, 2
      %v1753 = vor.u32 %v1751, %v1752
      %v1754 = vsel %vm1691, %v1749, %v1753
      %v1755 = vrot.slane %v556, 1
      %v1756 = vrot.slane %v552, 2
      %v1757 = vor.u32 %v1755, %v1756
      %v1758 = vsel %vm1691, %v1753, %v1757
      %v1760 = vshrl.u32 %v1405, 16
      %v1762 = vrot.slane %v1760, 1
      %v1763 = vshll.u32 %v1405, 16
      %v1765 = vrot.slane %v1763, 2
      %v1766 = vor.u32 %v1762, %v1765
      %v1767 = vsel %vm1691, %v1757, %v1766
      %v1769 = vshrl.u32 %v1406, 16
      %v1771 = vrot.slane %v1769, 1
      %v1772 = vshll.u32 %v1406, 16
      %v1774 = vrot.slane %v1772, 2
      %v1775 = vor.u32 %v1771, %v1774
      %v1776 = vsel %vm1691, %v1766, %v1775
      %v1811 = vunpack.c.l.b16 %v1675
      %v1812 = vunpack.c.l.b16 %v1676
      %v1813 = vunpack.c.l.b16 %v1677
      %v1814 = vunpack.c.l.b16 %v1678
      %v1815 = vunpack.c.l.b16 %v1679
      %v1816 = vunpack.c.l.b16 %v1680
      %v1817 = vunpack.c.l.b16 %v1681
      %v1818 = vunpack.c.l.b16 %v1682
      %v1819 = vunpack.c.l.b16 %v1683
      %v1820 = vunpack.c.l.b16 %v1684
      %v1821 = vunpack.c.l.b16 %v1685
      %v1822 = vunpack.c.l.b16 %v1686
      %v1823 = vunpack.c.l.b16 %v1687
      %v1824 = vunpack.c.l.b16 %v1688
      %v1825 = vunpack.c.l.b16 %v1689
      %v1826 = vunpack.c.l.b16 %v1690
      %v1827 = vpack.c.b16 %v1812, %v1811
      %v1828 = vpack.c.b16 %v1814, %v1813
      %v1829 = vpack.c.b16 %v1816, %v1815
      %v1830 = vpack.c.b16 %v1818, %v1817
      %v1831 = vpack.c.b16 %v1820, %v1819
      %v1832 = vpack.c.b16 %v1822, %v1821
      %v1833 = vpack.c.b16 %v1824, %v1823
      %v1834 = vpack.c.b16 %v1826, %v1825
      %1843 = vmatprep.subr.bf16.mxu0 0
      %1844 = vmatpush1.bf16.msra.mxu0 %v1827
      %1845 = vmatprep.subr.bf16.mxu0 0
      %1846 = vmatpush1.bf16.msra.mxu0 %v1828
      %1847 = vmatprep.subr.bf16.mxu0 0
      %1848 = vmatpush1.bf16.msra.mxu0 %v1829
      %1849 = vmatprep.subr.bf16.mxu0 0
      %1850 = vmatpush1.bf16.msra.mxu0 %v1830
      %1851 = vmatprep.subr.bf16.mxu0 0
      %1852 = vmatpush1.bf16.msra.mxu0 %v1831
      %1853 = vmatprep.subr.bf16.mxu0 0
      %1854 = vmatpush1.bf16.msra.mxu0 %v1832
      %1855 = vmatprep.subr.bf16.mxu0 0
      %1856 = vmatpush1.bf16.msra.mxu0 %v1833
      %1857 = vmatprep.subr.bf16.mxu0 0
      %1858 = vmatpush1.bf16.msra.mxu0 %v1834
      %1859 = vmatprep.subr.bf16.mxu0 0
      %1860 = vmatpush1.bf16.msra.mxu0 0
      %1861 = vmatprep.subr.bf16.mxu0 0
      %1862 = vmatpush1.bf16.msra.mxu0 0
      %1863 = vmatprep.subr.bf16.mxu0 0
      %1864 = vmatpush1.bf16.msra.mxu0 0
      %1865 = vmatprep.subr.bf16.mxu0 0
      %1866 = vmatpush1.bf16.msra.mxu0 0
      %1867 = vmatprep.subr.bf16.mxu0 0
      %1868 = vmatpush1.bf16.msra.mxu0 0
      %1869 = vmatprep.subr.bf16.mxu0 0
      %1870 = vmatpush1.bf16.msra.mxu0 0
      %1871 = vmatprep.subr.bf16.mxu0 0
      %1872 = vmatpush1.bf16.msra.mxu0 0
      %1873 = vmatprep.subr.bf16.mxu0 0
      %1874 = vmatpush1.bf16.msra.mxu0 0
      %1875 = vmatprep.mubr.bf16.mxu0 0
      %1876 = vmatmul.mubr.bf16.gmra.mrb[0].mxu0 %v1698
      %v1877 = vpop.f32.mrb[0].mxu0
      %v1878 = vadd.f32 0.0, %v1877
      %v1879 = vpop.f32.mrb[0].mxu0
      %v1880 = vpop.f32.mrb[0].mxu0
      %v1881 = vadd.f32 0.0, %v1880
      %v1882 = vpop.f32.mrb[0].mxu0
      %1883 = vmatprep.mubr.bf16.mxu0 0
      %1884 = vmatmul.mubr.bf16.gmra.mrb[0].mxu0 %v1702
      %v1885 = vpop.f32.mrb[0].mxu0
      %v1886 = vadd.f32 0.0, %v1885
      %v1887 = vpop.f32.mrb[0].mxu0
      %v1888 = vpop.f32.mrb[0].mxu0
      %v1889 = vadd.f32 0.0, %v1888
      %v1890 = vpop.f32.mrb[0].mxu0
      %1891 = vmatprep.mubr.bf16.mxu0 0
      %1892 = vmatmul.mubr.bf16.gmra.mrb[0].mxu0 %v1706
      %v1893 = vpop.f32.mrb[0].mxu0
      %v1894 = vadd.f32 0.0, %v1893
      %v1895 = vpop.f32.mrb[0].mxu0
      %v1896 = vpop.f32.mrb[0].mxu0
      %v1897 = vadd.f32 0.0, %v1896
      %v1898 = vpop.f32.mrb[0].mxu0
      %1899 = vmatprep.mubr.bf16.mxu0 0
      %1900 = vmatmul.mubr.bf16.gmra.mrb[0].mxu0 %v1710
      %v1901 = vpop.f32.mrb[0].mxu0
      %v1902 = vadd.f32 0.0, %v1901
      %v1903 = vpop.f32.mrb[0].mxu0
      %v1904 = vpop.f32.mrb[0].mxu0
      %v1905 = vadd.f32 0.0, %v1904
      %v1906 = vpop.f32.mrb[0].mxu0
      %1907 = vmatprep.mubr.bf16.mxu0 0
      %1908 = vmatmul.mubr.bf16.gmra.mrb[0].mxu0 %v1714
      %v1909 = vpop.f32.mrb[0].mxu0
      %v1910 = vadd.f32 0.0, %v1909
      %v1911 = vpop.f32.mrb[0].mxu0
      %v1912 = vpop.f32.mrb[0].mxu0
      %v1913 = vadd.f32 0.0, %v1912
      %v1914 = vpop.f32.mrb[0].mxu0
      %1915 = vmatprep.mubr.bf16.mxu0 0
      %1916 = vmatmul.mubr.bf16.gmra.mrb[0].mxu0 %v1718
      %v1917 = vpop.f32.mrb[0].mxu0
      %v1918 = vadd.f32 0.0, %v1917
      %v1919 = vpop.f32.mrb[0].mxu0
      %v1920 = vpop.f32.mrb[0].mxu0
      %v1921 = vadd.f32 0.0, %v1920
      %v1922 = vpop.f32.mrb[0].mxu0
      %1923 = vmatprep.mubr.bf16.mxu0 0
      %1924 = vmatmul.mubr.bf16.gmra.mrb[0].mxu0 %v1722
      %v1925 = vpop.f32.mrb[0].mxu0
      %v1926 = vadd.f32 0.0, %v1925
      %v1927 = vpop.f32.mrb[0].mxu0
      %v1928 = vpop.f32.mrb[0].mxu0
      %v1929 = vadd.f32 0.0, %v1928
      %v1930 = vpop.f32.mrb[0].mxu0
      %1931 = vmatprep.mubr.bf16.mxu0 0
      %1932 = vmatmul.mubr.bf16.gmra.mrb[0].mxu0 %v1726
      %v1933 = vpop.f32.mrb[0].mxu0
      %v1934 = vadd.f32 0.0, %v1933
      %v1935 = vpop.f32.mrb[0].mxu0
      %v1936 = vpop.f32.mrb[0].mxu0
      %v1937 = vadd.f32 0.0, %v1936
      %v1938 = vpop.f32.mrb[0].mxu0
      %1939 = vmatprep.mubr.bf16.mxu0 0
      %1940 = vmatmul.mubr.bf16.gmra.mrb[0].mxu0 %v1730
      %v1941 = vpop.f32.mrb[0].mxu0
      %v1942 = vadd.f32 0.0, %v1941
      %v1943 = vpop.f32.mrb[0].mxu0
      %v1944 = vpop.f32.mrb[0].mxu0
      %v1945 = vadd.f32 0.0, %v1944
      %v1946 = vpop.f32.mrb[0].mxu0
      %1947 = vmatprep.mubr.bf16.mxu0 0
      %1948 = vmatmul.mubr.bf16.gmra.mrb[0].mxu0 %v1734
      %v1949 = vpop.f32.mrb[0].mxu0
      %v1950 = vadd.f32 0.0, %v1949
      %v1951 = vpop.f32.mrb[0].mxu0
      %v1952 = vpop.f32.mrb[0].mxu0
      %v1953 = vadd.f32 0.0, %v1952
      %v1954 = vpop.f32.mrb[0].mxu0
      %1955 = vmatprep.mubr.bf16.mxu0 0
      %1956 = vmatmul.mubr.bf16.gmra.mrb[0].mxu0 %v1738
      %v1957 = vpop.f32.mrb[0].mxu0
      %v1958 = vadd.f32 0.0, %v1957
      %v1959 = vpop.f32.mrb[0].mxu0
      %v1960 = vpop.f32.mrb[0].mxu0
      %v1961 = vadd.f32 0.0, %v1960
      %v1962 = vpop.f32.mrb[0].mxu0
      %1963 = vmatprep.mubr.bf16.mxu0 0
      %1964 = vmatmul.mubr.bf16.gmra.mrb[0].mxu0 %v1742
      %v1965 = vpop.f32.mrb[0].mxu0
      %v1966 = vadd.f32 0.0, %v1965
      %v1967 = vpop.f32.mrb[0].mxu0
      %v1968 = vpop.f32.mrb[0].mxu0
      %v1969 = vadd.f32 0.0, %v1968
      %v1970 = vpop.f32.mrb[0].mxu0
      %1971 = vmatprep.mubr.bf16.mxu0 0
      %1972 = vmatmul.mubr.bf16.gmra.mrb[0].mxu0 %v1746
      %v1973 = vpop.f32.mrb[0].mxu0
      %v1974 = vadd.f32 0.0, %v1973
      %v1975 = vpop.f32.mrb[0].mxu0
      %v1976 = vpop.f32.mrb[0].mxu0
      %v1977 = vadd.f32 0.0, %v1976
      %v1978 = vpop.f32.mrb[0].mxu0
      %1979 = vmatprep.mubr.bf16.mxu0 0
      %1980 = vmatmul.mubr.bf16.gmra.mrb[0].mxu0 %v1750
      %v1981 = vpop.f32.mrb[0].mxu0
      %v1982 = vadd.f32 0.0, %v1981
      %v1983 = vpop.f32.mrb[0].mxu0
      %v1984 = vpop.f32.mrb[0].mxu0
      %v1985 = vadd.f32 0.0, %v1984
      %v1986 = vpop.f32.mrb[0].mxu0
      %1987 = vmatprep.mubr.bf16.mxu0 0
      %1988 = vmatmul.mubr.bf16.gmra.mrb[0].mxu0 %v1754
      %v1989 = vpop.f32.mrb[0].mxu0
      %v1990 = vadd.f32 0.0, %v1989
      %v1991 = vpop.f32.mrb[0].mxu0
      %v1992 = vpop.f32.mrb[0].mxu0
      %v1993 = vadd.f32 0.0, %v1992
      %v1994 = vpop.f32.mrb[0].mxu0
      %1995 = vmatprep.mubr.bf16.mxu0 0
      %1996 = vmatmul.mubr.bf16.gmra.mrb[0].mxu0 %v1758
      %v1997 = vpop.f32.mrb[0].mxu0
      %v1998 = vadd.f32 0.0, %v1997
      %v1999 = vpop.f32.mrb[0].mxu0
      %v2000 = vpop.f32.mrb[0].mxu0
      %v2001 = vadd.f32 0.0, %v2000
      %v2002 = vpop.f32.mrb[0].mxu0
      %2003 = vmatprep.mubr.bf16.mxu0 0
      %2004 = vmatmul.mubr.bf16.gmra.mrb[0].mxu0 %v1767
      %v2005 = vpop.f32.mrb[0].mxu0
      %v2006 = vadd.f32 0.0, %v2005
      %v2007 = vpop.f32.mrb[0].mxu0
      %v2008 = vpop.f32.mrb[0].mxu0
      %v2009 = vadd.f32 0.0, %v2008
      %v2010 = vpop.f32.mrb[0].mxu0
      %2011 = vmatprep.mubr.bf16.mxu0 0
      %2012 = vmatmul.mubr.bf16.gmra.mrb[0].mxu0 %v1776
      %v2013 = vpop.f32.mrb[0].mxu0
      %v2014 = vadd.f32 0.0, %v2013
      %v2015 = vpop.f32.mrb[0].mxu0
      %v2016 = vpop.f32.mrb[0].mxu0
      %v2017 = vadd.f32 0.0, %v2016
      %v2018 = vpop.f32.mrb[0].mxu0
      %2019 = vdwg.mxu0
      %v2020 = vadd.f32 %v1638, %v1878
      %v2021 = vadd.f32 %v1639, %v1881
      %v2022 = vadd.f32 %v1640, %v1886
      %v2023 = vadd.f32 %v1641, %v1889
      %v2024 = vadd.f32 %v1642, %v1894
      %v2025 = vadd.f32 %v1643, %v1897
      %v2026 = vadd.f32 %v1644, %v1902
      %v2027 = vadd.f32 %v1645, %v1905
      %v2028 = vadd.f32 %v1646, %v1910
      %v2029 = vadd.f32 %v1647, %v1913
      %v2030 = vadd.f32 %v1648, %v1918
      %v2031 = vadd.f32 %v1649, %v1921
      %v2032 = vadd.f32 %v1650, %v1926
      %v2033 = vadd.f32 %v1651, %v1929
      %v2034 = vadd.f32 %v1652, %v1934
      %v2035 = vadd.f32 %v1653, %v1937
      %v2036 = vadd.f32 %v1654, %v1942
      %v2037 = vadd.f32 %v1655, %v1945
      %v2038 = vadd.f32 %v1656, %v1950
      %v2039 = vadd.f32 %v1657, %v1953
      %v2040 = vadd.f32 %v1658, %v1958
      %v2041 = vadd.f32 %v1659, %v1961
      %v2042 = vadd.f32 %v1660, %v1966
      %v2043 = vadd.f32 %v1661, %v1969
      %v2044 = vadd.f32 %v1662, %v1974
      %v2045 = vadd.f32 %v1663, %v1977
      %v2046 = vadd.f32 %v1664, %v1982
      %v2047 = vadd.f32 %v1665, %v1985
      %v2048 = vadd.f32 %v1666, %v1990
      %v2049 = vadd.f32 %v1667, %v1993
      %v2050 = vadd.f32 %v1668, %v1998
      %v2051 = vadd.f32 %v1669, %v2001
      %v2052 = vadd.f32 %v1670, %v2006
      %v2053 = vadd.f32 %v1671, %v2009
      %v2054 = vadd.f32 %v1672, %v2014
      %v2055 = vadd.f32 %v1673, %v2017
      %s2056 = scalar_lea.vmem %s1, 320
      %v2057 = vld [vmem:[%s2056] sm:$0xf]
      %v2058 = vld [vmem:[%s2056 + $0x4] sm:$0xf]
      %v2059 = vld [vmem:[%s2056 + $0x8] sm:$0xf]
      %v2060 = vld [vmem:[%s2056 + $0xc] sm:$0xf]
      %v2061 = vld [vmem:[%s2056 + $0x10] sm:$0xf]
      %v2062 = vld [vmem:[%s2056 + $0x14] sm:$0xf]
      %v2063 = vld [vmem:[%s2056 + $0x18] sm:$0xf]
      %v2064 = vld [vmem:[%s2056 + $0x1c] sm:$0xf]
      %v2065 = vld [vmem:[%s2056 + $0x20] sm:$0xf]
      %v2066 = vld [vmem:[%s2056 + $0x24] sm:$0xf]
      %v2067 = vld [vmem:[%s2056 + $0x28] sm:$0xf]
      %v2068 = vld [vmem:[%s2056 + $0x2c] sm:$0xf]
      %v2069 = vld [vmem:[%s2056 + $0x30] sm:$0xf]
      %v2070 = vld [vmem:[%s2056 + $0x34] sm:$0xf]
      %v2071 = vld [vmem:[%s2056 + $0x38] sm:$0xf]
      %v2072 = vld [vmem:[%s2056 + $0x3c] sm:$0xf]
      %vm2073 = vcmask 1045504
      %v2074 = vrot.slane %v397, 2
      %v2075 = vrot.slane %v398, 2
      %v2076 = vsel %vm2073, %v2074, %v2075
      %v2077 = vrot.slane %v399, 2
      %v2078 = vsel %vm2073, %v2075, %v2077
      %v2079 = vrot.slane %v400, 2
      %v2080 = vsel %vm2073, %v2077, %v2079
      %v2081 = vrot.slane %v401, 2
      %v2082 = vsel %vm2073, %v2079, %v2081
      %v2083 = vrot.slane %v402, 2
      %v2084 = vsel %vm2073, %v2081, %v2083
      %v2085 = vrot.slane %v403, 2
      %v2086 = vsel %vm2073, %v2083, %v2085
      %v2087 = vrot.slane %v404, 2
      %v2088 = vsel %vm2073, %v2085, %v2087
      %v2089 = vrot.slane %v405, 2
      %v2090 = vsel %vm2073, %v2087, %v2089
      %v2091 = vrot.slane %v406, 2
      %v2092 = vsel %vm2073, %v2089, %v2091
      %v2093 = vrot.slane %v407, 2
      %v2094 = vsel %vm2073, %v2091, %v2093
      %v2095 = vrot.slane %v408, 2
      %v2096 = vsel %vm2073, %v2093, %v2095
      %v2097 = vrot.slane %v409, 2
      %v2098 = vsel %vm2073, %v2095, %v2097
      %v2099 = vrot.slane %v410, 2
      %v2100 = vsel %vm2073, %v2097, %v2099
      %v2101 = vrot.slane %v411, 2
      %v2102 = vsel %vm2073, %v2099, %v2101
      %v2103 = vrot.slane %v412, 2
      %v2104 = vsel %vm2073, %v2101, %v2103
      %v2105 = vrot.slane %v413, 2
      %v2106 = vsel %vm2073, %v2103, %v2105
      %v2107 = vrot.slane %v1405, 2
      %v2108 = vsel %vm2073, %v2105, %v2107
      %v2109 = vrot.slane %v1406, 2
      %v2110 = vsel %vm2073, %v2107, %v2109
      %v2145 = vunpack.c.l.b16 %v2057
      %v2146 = vunpack.c.l.b16 %v2058
      %v2147 = vunpack.c.l.b16 %v2059
      %v2148 = vunpack.c.l.b16 %v2060
      %v2149 = vunpack.c.l.b16 %v2061
      %v2150 = vunpack.c.l.b16 %v2062
      %v2151 = vunpack.c.l.b16 %v2063
      %v2152 = vunpack.c.l.b16 %v2064
      %v2153 = vunpack.c.l.b16 %v2065
      %v2154 = vunpack.c.l.b16 %v2066
      %v2155 = vunpack.c.l.b16 %v2067
      %v2156 = vunpack.c.l.b16 %v2068
      %v2157 = vunpack.c.l.b16 %v2069
      %v2158 = vunpack.c.l.b16 %v2070
      %v2159 = vunpack.c.l.b16 %v2071
      %v2160 = vunpack.c.l.b16 %v2072
      %v2161 = vpack.c.b16 %v2146, %v2145
      %v2162 = vpack.c.b16 %v2148, %v2147
      %v2163 = vpack.c.b16 %v2150, %v2149
      %v2164 = vpack.c.b16 %v2152, %v2151
      %v2165 = vpack.c.b16 %v2154, %v2153
      %v2166 = vpack.c.b16 %v2156, %v2155
      %v2167 = vpack.c.b16 %v2158, %v2157
      %v2168 = vpack.c.b16 %v2160, %v2159
      %2177 = vmatprep.subr.bf16.mxu0 0
      %2178 = vmatpush1.bf16.msra.mxu0 %v2161
      %2179 = vmatprep.subr.bf16.mxu0 0
      %2180 = vmatpush1.bf16.msra.mxu0 %v2162
      %2181 = vmatprep.subr.bf16.mxu0 0
      %2182 = vmatpush1.bf16.msra.mxu0 %v2163
      %2183 = vmatprep.subr.bf16.mxu0 0
      %2184 = vmatpush1.bf16.msra.mxu0 %v2164
      %2185 = vmatprep.subr.bf16.mxu0 0
      %2186 = vmatpush1.bf16.msra.mxu0 %v2165
      %2187 = vmatprep.subr.bf16.mxu0 0
      %2188 = vmatpush1.bf16.msra.mxu0 %v2166
      %2189 = vmatprep.subr.bf16.mxu0 0
      %2190 = vmatpush1.bf16.msra.mxu0 %v2167
      %2191 = vmatprep.subr.bf16.mxu0 0
      %2192 = vmatpush1.bf16.msra.mxu0 %v2168
      %2193 = vmatprep.subr.bf16.mxu0 0
      %2194 = vmatpush1.bf16.msra.mxu0 0
      %2195 = vmatprep.subr.bf16.mxu0 0
      %2196 = vmatpush1.bf16.msra.mxu0 0
      %2197 = vmatprep.subr.bf16.mxu0 0
      %2198 = vmatpush1.bf16.msra.mxu0 0
      %2199 = vmatprep.subr.bf16.mxu0 0
      %2200 = vmatpush1.bf16.msra.mxu0 0
      %2201 = vmatprep.subr.bf16.mxu0 0
      %2202 = vmatpush1.bf16.msra.mxu0 0
      %2203 = vmatprep.subr.bf16.mxu0 0
      %2204 = vmatpush1.bf16.msra.mxu0 0
      %2205 = vmatprep.subr.bf16.mxu0 0
      %2206 = vmatpush1.bf16.msra.mxu0 0
      %2207 = vmatprep.subr.bf16.mxu0 0
      %2208 = vmatpush1.bf16.msra.mxu0 0
      %2209 = vmatprep.mubr.bf16.mxu0 0
      %2210 = vmatmul.mubr.bf16.gmra.mrb[0].mxu0 %v2076
      %v2211 = vpop.f32.mrb[0].mxu0
      %v2212 = vadd.f32 0.0, %v2211
      %v2213 = vpop.f32.mrb[0].mxu0
      %v2214 = vpop.f32.mrb[0].mxu0
      %v2215 = vadd.f32 0.0, %v2214
      %v2216 = vpop.f32.mrb[0].mxu0
      %2217 = vmatprep.mubr.bf16.mxu0 0
      %2218 = vmatmul.mubr.bf16.gmra.mrb[0].mxu0 %v2078
      %v2219 = vpop.f32.mrb[0].mxu0
      %v2220 = vadd.f32 0.0, %v2219
      %v2221 = vpop.f32.mrb[0].mxu0
      %v2222 = vpop.f32.mrb[0].mxu0
      %v2223 = vadd.f32 0.0, %v2222
      %v2224 = vpop.f32.mrb[0].mxu0
      %2225 = vmatprep.mubr.bf16.mxu0 0
      %2226 = vmatmul.mubr.bf16.gmra.mrb[0].mxu0 %v2080
      %v2227 = vpop.f32.mrb[0].mxu0
      %v2228 = vadd.f32 0.0, %v2227
      %v2229 = vpop.f32.mrb[0].mxu0
      %v2230 = vpop.f32.mrb[0].mxu0
      %v2231 = vadd.f32 0.0, %v2230
      %v2232 = vpop.f32.mrb[0].mxu0
      %2233 = vmatprep.mubr.bf16.mxu0 0
      %2234 = vmatmul.mubr.bf16.gmra.mrb[0].mxu0 %v2082
      %v2235 = vpop.f32.mrb[0].mxu0
      %v2236 = vadd.f32 0.0, %v2235
      %v2237 = vpop.f32.mrb[0].mxu0
      %v2238 = vpop.f32.mrb[0].mxu0
      %v2239 = vadd.f32 0.0, %v2238
      %v2240 = vpop.f32.mrb[0].mxu0
      %2241 = vmatprep.mubr.bf16.mxu0 0
      %2242 = vmatmul.mubr.bf16.gmra.mrb[0].mxu0 %v2084
      %v2243 = vpop.f32.mrb[0].mxu0
      %v2244 = vadd.f32 0.0, %v2243
      %v2245 = vpop.f32.mrb[0].mxu0
      %v2246 = vpop.f32.mrb[0].mxu0
      %v2247 = vadd.f32 0.0, %v2246
      %v2248 = vpop.f32.mrb[0].mxu0
      %2249 = vmatprep.mubr.bf16.mxu0 0
      %2250 = vmatmul.mubr.bf16.gmra.mrb[0].mxu0 %v2086
      %v2251 = vpop.f32.mrb[0].mxu0
      %v2252 = vadd.f32 0.0, %v2251
      %v2253 = vpop.f32.mrb[0].mxu0
      %v2254 = vpop.f32.mrb[0].mxu0
      %v2255 = vadd.f32 0.0, %v2254
      %v2256 = vpop.f32.mrb[0].mxu0
      %2257 = vmatprep.mubr.bf16.mxu0 0
      %2258 = vmatmul.mubr.bf16.gmra.mrb[0].mxu0 %v2088
      %v2259 = vpop.f32.mrb[0].mxu0
      %v2260 = vadd.f32 0.0, %v2259
      %v2261 = vpop.f32.mrb[0].mxu0
      %v2262 = vpop.f32.mrb[0].mxu0
      %v2263 = vadd.f32 0.0, %v2262
      %v2264 = vpop.f32.mrb[0].mxu0
      %2265 = vmatprep.mubr.bf16.mxu0 0
      %2266 = vmatmul.mubr.bf16.gmra.mrb[0].mxu0 %v2090
      %v2267 = vpop.f32.mrb[0].mxu0
      %v2268 = vadd.f32 0.0, %v2267
      %v2269 = vpop.f32.mrb[0].mxu0
      %v2270 = vpop.f32.mrb[0].mxu0
      %v2271 = vadd.f32 0.0, %v2270
      %v2272 = vpop.f32.mrb[0].mxu0
      %2273 = vmatprep.mubr.bf16.mxu0 0
      %2274 = vmatmul.mubr.bf16.gmra.mrb[0].mxu0 %v2092
      %v2275 = vpop.f32.mrb[0].mxu0
      %v2276 = vadd.f32 0.0, %v2275
      %v2277 = vpop.f32.mrb[0].mxu0
      %v2278 = vpop.f32.mrb[0].mxu0
      %v2279 = vadd.f32 0.0, %v2278
      %v2280 = vpop.f32.mrb[0].mxu0
      %2281 = vmatprep.mubr.bf16.mxu0 0
      %2282 = vmatmul.mubr.bf16.gmra.mrb[0].mxu0 %v2094
      %v2283 = vpop.f32.mrb[0].mxu0
      %v2284 = vadd.f32 0.0, %v2283
      %v2285 = vpop.f32.mrb[0].mxu0
      %v2286 = vpop.f32.mrb[0].mxu0
      %v2287 = vadd.f32 0.0, %v2286
      %v2288 = vpop.f32.mrb[0].mxu0
      %2289 = vmatprep.mubr.bf16.mxu0 0
      %2290 = vmatmul.mubr.bf16.gmra.mrb[0].mxu0 %v2096
      %v2291 = vpop.f32.mrb[0].mxu0
      %v2292 = vadd.f32 0.0, %v2291
      %v2293 = vpop.f32.mrb[0].mxu0
      %v2294 = vpop.f32.mrb[0].mxu0
      %v2295 = vadd.f32 0.0, %v2294
      %v2296 = vpop.f32.mrb[0].mxu0
      %2297 = vmatprep.mubr.bf16.mxu0 0
      %2298 = vmatmul.mubr.bf16.gmra.mrb[0].mxu0 %v2098
      %v2299 = vpop.f32.mrb[0].mxu0
      %v2300 = vadd.f32 0.0, %v2299
      %v2301 = vpop.f32.mrb[0].mxu0
      %v2302 = vpop.f32.mrb[0].mxu0
      %v2303 = vadd.f32 0.0, %v2302
      %v2304 = vpop.f32.mrb[0].mxu0
      %2305 = vmatprep.mubr.bf16.mxu0 0
      %2306 = vmatmul.mubr.bf16.gmra.mrb[0].mxu0 %v2100
      %v2307 = vpop.f32.mrb[0].mxu0
      %v2308 = vadd.f32 0.0, %v2307
      %v2309 = vpop.f32.mrb[0].mxu0
      %v2310 = vpop.f32.mrb[0].mxu0
      %v2311 = vadd.f32 0.0, %v2310
      %v2312 = vpop.f32.mrb[0].mxu0
      %2313 = vmatprep.mubr.bf16.mxu0 0
      %2314 = vmatmul.mubr.bf16.gmra.mrb[0].mxu0 %v2102
      %v2315 = vpop.f32.mrb[0].mxu0
      %v2316 = vadd.f32 0.0, %v2315
      %v2317 = vpop.f32.mrb[0].mxu0
      %v2318 = vpop.f32.mrb[0].mxu0
      %v2319 = vadd.f32 0.0, %v2318
      %v2320 = vpop.f32.mrb[0].mxu0
      %2321 = vmatprep.mubr.bf16.mxu0 0
      %2322 = vmatmul.mubr.bf16.gmra.mrb[0].mxu0 %v2104
      %v2323 = vpop.f32.mrb[0].mxu0
      %v2324 = vadd.f32 0.0, %v2323
      %v2325 = vpop.f32.mrb[0].mxu0
      %v2326 = vpop.f32.mrb[0].mxu0
      %v2327 = vadd.f32 0.0, %v2326
      %v2328 = vpop.f32.mrb[0].mxu0
      %2329 = vmatprep.mubr.bf16.mxu0 0
      %2330 = vmatmul.mubr.bf16.gmra.mrb[0].mxu0 %v2106
      %v2331 = vpop.f32.mrb[0].mxu0
      %v2332 = vadd.f32 0.0, %v2331
      %v2333 = vpop.f32.mrb[0].mxu0
      %v2334 = vpop.f32.mrb[0].mxu0
      %v2335 = vadd.f32 0.0, %v2334
      %v2336 = vpop.f32.mrb[0].mxu0
      %2337 = vmatprep.mubr.bf16.mxu0 0
      %2338 = vmatmul.mubr.bf16.gmra.mrb[0].mxu0 %v2108
      %v2339 = vpop.f32.mrb[0].mxu0
      %v2340 = vadd.f32 0.0, %v2339
      %v2341 = vpop.f32.mrb[0].mxu0
      %v2342 = vpop.f32.mrb[0].mxu0
      %v2343 = vadd.f32 0.0, %v2342
      %v2344 = vpop.f32.mrb[0].mxu0
      %2345 = vmatprep.mubr.bf16.mxu0 0
      %2346 = vmatmul.mubr.bf16.gmra.mrb[0].mxu0 %v2110
      %v2347 = vpop.f32.mrb[0].mxu0
      %v2348 = vadd.f32 0.0, %v2347
      %v2349 = vpop.f32.mrb[0].mxu0
      %v2350 = vpop.f32.mrb[0].mxu0
      %v2351 = vadd.f32 0.0, %v2350
      %v2352 = vpop.f32.mrb[0].mxu0
      %2353 = vdwg.mxu0
      %v2354 = vadd.f32 %v2020, %v2212
      %v2355 = vadd.f32 %v2021, %v2215
      %v2356 = vadd.f32 %v2022, %v2220
      %v2357 = vadd.f32 %v2023, %v2223
      %v2358 = vadd.f32 %v2024, %v2228
      %v2359 = vadd.f32 %v2025, %v2231
      %v2360 = vadd.f32 %v2026, %v2236
      %v2361 = vadd.f32 %v2027, %v2239
      %v2362 = vadd.f32 %v2028, %v2244
      %v2363 = vadd.f32 %v2029, %v2247
      %v2364 = vadd.f32 %v2030, %v2252
      %v2365 = vadd.f32 %v2031, %v2255
      %v2366 = vadd.f32 %v2032, %v2260
      %v2367 = vadd.f32 %v2033, %v2263
      %v2368 = vadd.f32 %v2034, %v2268
      %v2369 = vadd.f32 %v2035, %v2271
      %v2370 = vadd.f32 %v2036, %v2276
      %v2371 = vadd.f32 %v2037, %v2279
      %v2372 = vadd.f32 %v2038, %v2284
      %v2373 = vadd.f32 %v2039, %v2287
      %v2374 = vadd.f32 %v2040, %v2292
      %v2375 = vadd.f32 %v2041, %v2295
      %v2376 = vadd.f32 %v2042, %v2300
      %v2377 = vadd.f32 %v2043, %v2303
      %v2378 = vadd.f32 %v2044, %v2308
      %v2379 = vadd.f32 %v2045, %v2311
      %v2380 = vadd.f32 %v2046, %v2316
      %v2381 = vadd.f32 %v2047, %v2319
      %v2382 = vadd.f32 %v2048, %v2324
      %v2383 = vadd.f32 %v2049, %v2327
      %v2384 = vadd.f32 %v2050, %v2332
      %v2385 = vadd.f32 %v2051, %v2335
      %v2386 = vadd.f32 %v2052, %v2340
      %v2387 = vadd.f32 %v2053, %v2343
      %v2388 = vadd.f32 %v2054, %v2348
      %v2389 = vadd.f32 %v2055, %v2351
      %s2390 = scalar_lea.vmem %s1, 384
      %v2391 = vld [vmem:[%s2390] sm:$0xf]
      %v2392 = vld [vmem:[%s2390 + $0x4] sm:$0xf]
      %v2393 = vld [vmem:[%s2390 + $0x8] sm:$0xf]
      %v2394 = vld [vmem:[%s2390 + $0xc] sm:$0xf]
      %v2395 = vld [vmem:[%s2390 + $0x10] sm:$0xf]
      %v2396 = vld [vmem:[%s2390 + $0x14] sm:$0xf]
      %v2397 = vld [vmem:[%s2390 + $0x18] sm:$0xf]
      %v2398 = vld [vmem:[%s2390 + $0x1c] sm:$0xf]
      %v2399 = vld [vmem:[%s2390 + $0x20] sm:$0xf]
      %v2400 = vld [vmem:[%s2390 + $0x24] sm:$0xf]
      %v2401 = vld [vmem:[%s2390 + $0x28] sm:$0xf]
      %v2402 = vld [vmem:[%s2390 + $0x2c] sm:$0xf]
      %v2403 = vld [vmem:[%s2390 + $0x30] sm:$0xf]
      %v2404 = vld [vmem:[%s2390 + $0x34] sm:$0xf]
      %v2405 = vld [vmem:[%s2390 + $0x38] sm:$0xf]
      %v2406 = vld [vmem:[%s2390 + $0x3c] sm:$0xf]
      %v2409 = vunpack.c.l.b16 %v287
      %v2410 = vunpack.c.l.b16 %v288
      %v2411 = vpack.c.b16 %v2409, %v1404
      %v2412 = vpack.c.b16 %v2410, %v2410
      %v2413 = vrot.slane %v2411, 2
      %v2414 = vsel %vm2073, %v2107, %v2413
      %v2415 = vrot.slane %v2412, 2
      %v2416 = vsel %vm2073, %v2413, %v2415
      %v2435 = vunpack.c.l.b16 %v2391
      %v2436 = vunpack.c.l.b16 %v2392
      %v2437 = vunpack.c.l.b16 %v2393
      %v2438 = vunpack.c.l.b16 %v2394
      %v2439 = vunpack.c.l.b16 %v2395
      %v2440 = vunpack.c.l.b16 %v2396
      %v2441 = vunpack.c.l.b16 %v2397
      %v2442 = vunpack.c.l.b16 %v2398
      %v2443 = vunpack.c.l.b16 %v2399
      %v2444 = vunpack.c.l.b16 %v2400
      %v2445 = vunpack.c.l.b16 %v2401
      %v2446 = vunpack.c.l.b16 %v2402
      %v2447 = vunpack.c.l.b16 %v2403
      %v2448 = vunpack.c.l.b16 %v2404
      %v2449 = vunpack.c.l.b16 %v2405
      %v2450 = vunpack.c.l.b16 %v2406
      %v2451 = vpack.c.b16 %v2436, %v2435
      %v2452 = vpack.c.b16 %v2438, %v2437
      %v2453 = vpack.c.b16 %v2440, %v2439
      %v2454 = vpack.c.b16 %v2442, %v2441
      %v2455 = vpack.c.b16 %v2444, %v2443
      %v2456 = vpack.c.b16 %v2446, %v2445
      %v2457 = vpack.c.b16 %v2448, %v2447
      %v2458 = vpack.c.b16 %v2450, %v2449
      %2467 = vmatprep.subr.bf16.mxu0 0
      %2468 = vmatpush1.bf16.msra.mxu0 %v2451
      %2469 = vmatprep.subr.bf16.mxu0 0
      %2470 = vmatpush1.bf16.msra.mxu0 %v2452
      %2471 = vmatprep.subr.bf16.mxu0 0
      %2472 = vmatpush1.bf16.msra.mxu0 %v2453
      %2473 = vmatprep.subr.bf16.mxu0 0
      %2474 = vmatpush1.bf16.msra.mxu0 %v2454
      %2475 = vmatprep.subr.bf16.mxu0 0
      %2476 = vmatpush1.bf16.msra.mxu0 %v2455
      %2477 = vmatprep.subr.bf16.mxu0 0
      %2478 = vmatpush1.bf16.msra.mxu0 %v2456
      %2479 = vmatprep.subr.bf16.mxu0 0
      %2480 = vmatpush1.bf16.msra.mxu0 %v2457
      %2481 = vmatprep.subr.bf16.mxu0 0
      %2482 = vmatpush1.bf16.msra.mxu0 %v2458
      %2483 = vmatprep.subr.bf16.mxu0 0
      %2484 = vmatpush1.bf16.msra.mxu0 0
      %2485 = vmatprep.subr.bf16.mxu0 0
      %2486 = vmatpush1.bf16.msra.mxu0 0
      %2487 = vmatprep.subr.bf16.mxu0 0
      %2488 = vmatpush1.bf16.msra.mxu0 0
      %2489 = vmatprep.subr.bf16.mxu0 0
      %2490 = vmatpush1.bf16.msra.mxu0 0
      %2491 = vmatprep.subr.bf16.mxu0 0
      %2492 = vmatpush1.bf16.msra.mxu0 0
      %2493 = vmatprep.subr.bf16.mxu0 0
      %2494 = vmatpush1.bf16.msra.mxu0 0
      %2495 = vmatprep.subr.bf16.mxu0 0
      %2496 = vmatpush1.bf16.msra.mxu0 0
      %2497 = vmatprep.subr.bf16.mxu0 0
      %2498 = vmatpush1.bf16.msra.mxu0 0
      %2499 = vmatprep.mubr.bf16.mxu0 0
      %2500 = vmatmul.mubr.bf16.gmra.mrb[0].mxu0 %v2078
      %v2501 = vpop.f32.mrb[0].mxu0
      %v2502 = vadd.f32 0.0, %v2501
      %v2503 = vpop.f32.mrb[0].mxu0
      %v2504 = vpop.f32.mrb[0].mxu0
      %v2505 = vadd.f32 0.0, %v2504
      %v2506 = vpop.f32.mrb[0].mxu0
      %2507 = vmatprep.mubr.bf16.mxu0 0
      %2508 = vmatmul.mubr.bf16.gmra.mrb[0].mxu0 %v2080
      %v2509 = vpop.f32.mrb[0].mxu0
      %v2510 = vadd.f32 0.0, %v2509
      %v2511 = vpop.f32.mrb[0].mxu0
      %v2512 = vpop.f32.mrb[0].mxu0
      %v2513 = vadd.f32 0.0, %v2512
      %v2514 = vpop.f32.mrb[0].mxu0
      %2515 = vmatprep.mubr.bf16.mxu0 0
      %2516 = vmatmul.mubr.bf16.gmra.mrb[0].mxu0 %v2082
      %v2517 = vpop.f32.mrb[0].mxu0
      %v2518 = vadd.f32 0.0, %v2517
      %v2519 = vpop.f32.mrb[0].mxu0
      %v2520 = vpop.f32.mrb[0].mxu0
      %v2521 = vadd.f32 0.0, %v2520
      %v2522 = vpop.f32.mrb[0].mxu0
      %2523 = vmatprep.mubr.bf16.mxu0 0
      %2524 = vmatmul.mubr.bf16.gmra.mrb[0].mxu0 %v2084
      %v2525 = vpop.f32.mrb[0].mxu0
      %v2526 = vadd.f32 0.0, %v2525
      %v2527 = vpop.f32.mrb[0].mxu0
      %v2528 = vpop.f32.mrb[0].mxu0
      %v2529 = vadd.f32 0.0, %v2528
      %v2530 = vpop.f32.mrb[0].mxu0
      %2531 = vmatprep.mubr.bf16.mxu0 0
      %2532 = vmatmul.mubr.bf16.gmra.mrb[0].mxu0 %v2086
      %v2533 = vpop.f32.mrb[0].mxu0
      %v2534 = vadd.f32 0.0, %v2533
      %v2535 = vpop.f32.mrb[0].mxu0
      %v2536 = vpop.f32.mrb[0].mxu0
      %v2537 = vadd.f32 0.0, %v2536
      %v2538 = vpop.f32.mrb[0].mxu0
      %2539 = vmatprep.mubr.bf16.mxu0 0
      %2540 = vmatmul.mubr.bf16.gmra.mrb[0].mxu0 %v2088
      %v2541 = vpop.f32.mrb[0].mxu0
      %v2542 = vadd.f32 0.0, %v2541
      %v2543 = vpop.f32.mrb[0].mxu0
      %v2544 = vpop.f32.mrb[0].mxu0
      %v2545 = vadd.f32 0.0, %v2544
      %v2546 = vpop.f32.mrb[0].mxu0
      %2547 = vmatprep.mubr.bf16.mxu0 0
      %2548 = vmatmul.mubr.bf16.gmra.mrb[0].mxu0 %v2090
      %v2549 = vpop.f32.mrb[0].mxu0
      %v2550 = vadd.f32 0.0, %v2549
      %v2551 = vpop.f32.mrb[0].mxu0
      %v2552 = vpop.f32.mrb[0].mxu0
      %v2553 = vadd.f32 0.0, %v2552
      %v2554 = vpop.f32.mrb[0].mxu0
      %2555 = vmatprep.mubr.bf16.mxu0 0
      %2556 = vmatmul.mubr.bf16.gmra.mrb[0].mxu0 %v2092
      %v2557 = vpop.f32.mrb[0].mxu0
      %v2558 = vadd.f32 0.0, %v2557
      %v2559 = vpop.f32.mrb[0].mxu0
      %v2560 = vpop.f32.mrb[0].mxu0
      %v2561 = vadd.f32 0.0, %v2560
      %v2562 = vpop.f32.mrb[0].mxu0
      %2563 = vmatprep.mubr.bf16.mxu0 0
      %2564 = vmatmul.mubr.bf16.gmra.mrb[0].mxu0 %v2094
      %v2565 = vpop.f32.mrb[0].mxu0
      %v2566 = vadd.f32 0.0, %v2565
      %v2567 = vpop.f32.mrb[0].mxu0
      %v2568 = vpop.f32.mrb[0].mxu0
      %v2569 = vadd.f32 0.0, %v2568
      %v2570 = vpop.f32.mrb[0].mxu0
      %2571 = vmatprep.mubr.bf16.mxu0 0
      %2572 = vmatmul.mubr.bf16.gmra.mrb[0].mxu0 %v2096
      %v2573 = vpop.f32.mrb[0].mxu0
      %v2574 = vadd.f32 0.0, %v2573
      %v2575 = vpop.f32.mrb[0].mxu0
      %v2576 = vpop.f32.mrb[0].mxu0
      %v2577 = vadd.f32 0.0, %v2576
      %v2578 = vpop.f32.mrb[0].mxu0
      %2579 = vmatprep.mubr.bf16.mxu0 0
      %2580 = vmatmul.mubr.bf16.gmra.mrb[0].mxu0 %v2098
      %v2581 = vpop.f32.mrb[0].mxu0
      %v2582 = vadd.f32 0.0, %v2581
      %v2583 = vpop.f32.mrb[0].mxu0
      %v2584 = vpop.f32.mrb[0].mxu0
      %v2585 = vadd.f32 0.0, %v2584
      %v2586 = vpop.f32.mrb[0].mxu0
      %2587 = vmatprep.mubr.bf16.mxu0 0
      %2588 = vmatmul.mubr.bf16.gmra.mrb[0].mxu0 %v2100
      %v2589 = vpop.f32.mrb[0].mxu0
      %v2590 = vadd.f32 0.0, %v2589
      %v2591 = vpop.f32.mrb[0].mxu0
      %v2592 = vpop.f32.mrb[0].mxu0
      %v2593 = vadd.f32 0.0, %v2592
      %v2594 = vpop.f32.mrb[0].mxu0
      %2595 = vmatprep.mubr.bf16.mxu0 0
      %2596 = vmatmul.mubr.bf16.gmra.mrb[0].mxu0 %v2102
      %v2597 = vpop.f32.mrb[0].mxu0
      %v2598 = vadd.f32 0.0, %v2597
      %v2599 = vpop.f32.mrb[0].mxu0
      %v2600 = vpop.f32.mrb[0].mxu0
      %v2601 = vadd.f32 0.0, %v2600
      %v2602 = vpop.f32.mrb[0].mxu0
      %2603 = vmatprep.mubr.bf16.mxu0 0
      %2604 = vmatmul.mubr.bf16.gmra.mrb[0].mxu0 %v2104
      %v2605 = vpop.f32.mrb[0].mxu0
      %v2606 = vadd.f32 0.0, %v2605
      %v2607 = vpop.f32.mrb[0].mxu0
      %v2608 = vpop.f32.mrb[0].mxu0
      %v2609 = vadd.f32 0.0, %v2608
      %v2610 = vpop.f32.mrb[0].mxu0
      %2611 = vmatprep.mubr.bf16.mxu0 0
      %2612 = vmatmul.mubr.bf16.gmra.mrb[0].mxu0 %v2106
      %v2613 = vpop.f32.mrb[0].mxu0
      %v2614 = vadd.f32 0.0, %v2613
      %v2615 = vpop.f32.mrb[0].mxu0
      %v2616 = vpop.f32.mrb[0].mxu0
      %v2617 = vadd.f32 0.0, %v2616
      %v2618 = vpop.f32.mrb[0].mxu0
      %2619 = vmatprep.mubr.bf16.mxu0 0
      %2620 = vmatmul.mubr.bf16.gmra.mrb[0].mxu0 %v2108
      %v2621 = vpop.f32.mrb[0].mxu0
      %v2622 = vadd.f32 0.0, %v2621
      %v2623 = vpop.f32.mrb[0].mxu0
      %v2624 = vpop.f32.mrb[0].mxu0
      %v2625 = vadd.f32 0.0, %v2624
      %v2626 = vpop.f32.mrb[0].mxu0
      %2627 = vmatprep.mubr.bf16.mxu0 0
      %2628 = vmatmul.mubr.bf16.gmra.mrb[0].mxu0 %v2414
      %v2629 = vpop.f32.mrb[0].mxu0
      %v2630 = vadd.f32 0.0, %v2629
      %v2631 = vpop.f32.mrb[0].mxu0
      %v2632 = vpop.f32.mrb[0].mxu0
      %v2633 = vadd.f32 0.0, %v2632
      %v2634 = vpop.f32.mrb[0].mxu0
      %2635 = vmatprep.mubr.bf16.mxu0 0
      %2636 = vmatmul.mubr.bf16.gmra.mrb[0].mxu0 %v2416
      %v2637 = vpop.f32.mrb[0].mxu0
      %v2638 = vadd.f32 0.0, %v2637
      %v2639 = vpop.f32.mrb[0].mxu0
      %v2640 = vpop.f32.mrb[0].mxu0
      %v2641 = vadd.f32 0.0, %v2640
      %v2642 = vpop.f32.mrb[0].mxu0
      %2643 = vdwg.mxu0
      %v2644 = vadd.f32 %v2354, %v2502
      %v2645 = vadd.f32 %v2355, %v2505
      %v2646 = vadd.f32 %v2356, %v2510
      %v2647 = vadd.f32 %v2357, %v2513
      %v2648 = vadd.f32 %v2358, %v2518
      %v2649 = vadd.f32 %v2359, %v2521
      %v2650 = vadd.f32 %v2360, %v2526
      %v2651 = vadd.f32 %v2361, %v2529
      %v2652 = vadd.f32 %v2362, %v2534
      %v2653 = vadd.f32 %v2363, %v2537
      %v2654 = vadd.f32 %v2364, %v2542
      %v2655 = vadd.f32 %v2365, %v2545
      %v2656 = vadd.f32 %v2366, %v2550
      %v2657 = vadd.f32 %v2367, %v2553
      %v2658 = vadd.f32 %v2368, %v2558
      %v2659 = vadd.f32 %v2369, %v2561
      %v2660 = vadd.f32 %v2370, %v2566
      %v2661 = vadd.f32 %v2371, %v2569
      %v2662 = vadd.f32 %v2372, %v2574
      %v2663 = vadd.f32 %v2373, %v2577
      %v2664 = vadd.f32 %v2374, %v2582
      %v2665 = vadd.f32 %v2375, %v2585
      %v2666 = vadd.f32 %v2376, %v2590
      %v2667 = vadd.f32 %v2377, %v2593
      %v2668 = vadd.f32 %v2378, %v2598
      %v2669 = vadd.f32 %v2379, %v2601
      %v2670 = vadd.f32 %v2380, %v2606
      %v2671 = vadd.f32 %v2381, %v2609
      %v2672 = vadd.f32 %v2382, %v2614
      %v2673 = vadd.f32 %v2383, %v2617
      %v2674 = vadd.f32 %v2384, %v2622
      %v2675 = vadd.f32 %v2385, %v2625
      %v2676 = vadd.f32 %v2386, %v2630
      %v2677 = vadd.f32 %v2387, %v2633
      %v2678 = vadd.f32 %v2388, %v2638
      %v2679 = vadd.f32 %v2389, %v2641
      %s2680 = scalar_lea.vmem %s1, 448
      %v2681 = vld [vmem:[%s2680] sm:$0xf]
      %v2682 = vld [vmem:[%s2680 + $0x4] sm:$0xf]
      %v2683 = vld [vmem:[%s2680 + $0x8] sm:$0xf]
      %v2684 = vld [vmem:[%s2680 + $0xc] sm:$0xf]
      %v2685 = vld [vmem:[%s2680 + $0x10] sm:$0xf]
      %v2686 = vld [vmem:[%s2680 + $0x14] sm:$0xf]
      %v2687 = vld [vmem:[%s2680 + $0x18] sm:$0xf]
      %v2688 = vld [vmem:[%s2680 + $0x1c] sm:$0xf]
      %v2689 = vld [vmem:[%s2680 + $0x20] sm:$0xf]
      %v2690 = vld [vmem:[%s2680 + $0x24] sm:$0xf]
      %v2691 = vld [vmem:[%s2680 + $0x28] sm:$0xf]
      %v2692 = vld [vmem:[%s2680 + $0x2c] sm:$0xf]
      %v2693 = vld [vmem:[%s2680 + $0x30] sm:$0xf]
      %v2694 = vld [vmem:[%s2680 + $0x34] sm:$0xf]
      %v2695 = vld [vmem:[%s2680 + $0x38] sm:$0xf]
      %v2696 = vld [vmem:[%s2680 + $0x3c] sm:$0xf]
      %vm2697 = vsmask.f32 5376
      %v2698 = vrot.slane %v436, 2
      %v2699 = vrot.slane %v432, 3
      %v2700 = vor.u32 %v2698, %v2699
      %v2701 = vrot.slane %v444, 2
      %v2702 = vrot.slane %v440, 3
      %v2703 = vor.u32 %v2701, %v2702
      %v2704 = vsel %vm2697, %v2700, %v2703
      %v2705 = vrot.slane %v452, 2
      %v2706 = vrot.slane %v448, 3
      %v2707 = vor.u32 %v2705, %v2706
      %v2708 = vsel %vm2697, %v2703, %v2707
      %v2709 = vrot.slane %v460, 2
      %v2710 = vrot.slane %v456, 3
      %v2711 = vor.u32 %v2709, %v2710
      %v2712 = vsel %vm2697, %v2707, %v2711
      %v2713 = vrot.slane %v468, 2
      %v2714 = vrot.slane %v464, 3
      %v2715 = vor.u32 %v2713, %v2714
      %v2716 = vsel %vm2697, %v2711, %v2715
      %v2717 = vrot.slane %v476, 2
      %v2718 = vrot.slane %v472, 3
      %v2719 = vor.u32 %v2717, %v2718
      %v2720 = vsel %vm2697, %v2715, %v2719
      %v2721 = vrot.slane %v484, 2
      %v2722 = vrot.slane %v480, 3
      %v2723 = vor.u32 %v2721, %v2722
      %v2724 = vsel %vm2697, %v2719, %v2723
      %v2725 = vrot.slane %v492, 2
      %v2726 = vrot.slane %v488, 3
      %v2727 = vor.u32 %v2725, %v2726
      %v2728 = vsel %vm2697, %v2723, %v2727
      %v2729 = vrot.slane %v500, 2
      %v2730 = vrot.slane %v496, 3
      %v2731 = vor.u32 %v2729, %v2730
      %v2732 = vsel %vm2697, %v2727, %v2731
      %v2733 = vrot.slane %v508, 2
      %v2734 = vrot.slane %v504, 3
      %v2735 = vor.u32 %v2733, %v2734
      %v2736 = vsel %vm2697, %v2731, %v2735
      %v2737 = vrot.slane %v516, 2
      %v2738 = vrot.slane %v512, 3
      %v2739 = vor.u32 %v2737, %v2738
      %v2740 = vsel %vm2697, %v2735, %v2739
      %v2741 = vrot.slane %v524, 2
      %v2742 = vrot.slane %v520, 3
      %v2743 = vor.u32 %v2741, %v2742
      %v2744 = vsel %vm2697, %v2739, %v2743
      %v2745 = vrot.slane %v532, 2
      %v2746 = vrot.slane %v528, 3
      %v2747 = vor.u32 %v2745, %v2746
      %v2748 = vsel %vm2697, %v2743, %v2747
      %v2749 = vrot.slane %v540, 2
      %v2750 = vrot.slane %v536, 3
      %v2751 = vor.u32 %v2749, %v2750
      %v2752 = vsel %vm2697, %v2747, %v2751
      %v2753 = vrot.slane %v548, 2
      %v2754 = vrot.slane %v544, 3
      %v2755 = vor.u32 %v2753, %v2754
      %v2756 = vsel %vm2697, %v2751, %v2755
      %v2757 = vrot.slane %v556, 2
      %v2758 = vrot.slane %v552, 3
      %v2759 = vor.u32 %v2757, %v2758
      %v2760 = vsel %vm2697, %v2755, %v2759
      %v2761 = vrot.slane %v1760, 2
      %v2762 = vrot.slane %v1763, 3
      %v2763 = vor.u32 %v2761, %v2762
      %v2764 = vsel %vm2697, %v2759, %v2763
      %v2766 = vshrl.u32 %v2411, 16
      %v2768 = vrot.slane %v2766, 2
      %v2769 = vshll.u32 %v2411, 16
      %v2771 = vrot.slane %v2769, 3
      %v2772 = vor.u32 %v2768, %v2771
      %v2773 = vsel %vm2697, %v2763, %v2772
      %v2775 = vshrl.u32 %v2412, 16
      %v2777 = vrot.slane %v2775, 2
      %v2778 = vshll.u32 %v2412, 16
      %v2780 = vrot.slane %v2778, 3
      %v2781 = vor.u32 %v2777, %v2780
      %v2782 = vsel %vm2697, %v2772, %v2781
      %v2817 = vunpack.c.l.b16 %v2681
      %v2818 = vunpack.c.l.b16 %v2682
      %v2819 = vunpack.c.l.b16 %v2683
      %v2820 = vunpack.c.l.b16 %v2684
      %v2821 = vunpack.c.l.b16 %v2685
      %v2822 = vunpack.c.l.b16 %v2686
      %v2823 = vunpack.c.l.b16 %v2687
      %v2824 = vunpack.c.l.b16 %v2688
      %v2825 = vunpack.c.l.b16 %v2689
      %v2826 = vunpack.c.l.b16 %v2690
      %v2827 = vunpack.c.l.b16 %v2691
      %v2828 = vunpack.c.l.b16 %v2692
      %v2829 = vunpack.c.l.b16 %v2693
      %v2830 = vunpack.c.l.b16 %v2694
      %v2831 = vunpack.c.l.b16 %v2695
      %v2832 = vunpack.c.l.b16 %v2696
      %v2833 = vpack.c.b16 %v2818, %v2817
      %v2834 = vpack.c.b16 %v2820, %v2819
      %v2835 = vpack.c.b16 %v2822, %v2821
      %v2836 = vpack.c.b16 %v2824, %v2823
      %v2837 = vpack.c.b16 %v2826, %v2825
      %v2838 = vpack.c.b16 %v2828, %v2827
      %v2839 = vpack.c.b16 %v2830, %v2829
      %v2840 = vpack.c.b16 %v2832, %v2831
      %2849 = vmatprep.subr.bf16.mxu0 0
      %2850 = vmatpush1.bf16.msra.mxu0 %v2833
      %2851 = vmatprep.subr.bf16.mxu0 0
      %2852 = vmatpush1.bf16.msra.mxu0 %v2834
      %2853 = vmatprep.subr.bf16.mxu0 0
      %2854 = vmatpush1.bf16.msra.mxu0 %v2835
      %2855 = vmatprep.subr.bf16.mxu0 0
      %2856 = vmatpush1.bf16.msra.mxu0 %v2836
      %2857 = vmatprep.subr.bf16.mxu0 0
      %2858 = vmatpush1.bf16.msra.mxu0 %v2837
      %2859 = vmatprep.subr.bf16.mxu0 0
      %2860 = vmatpush1.bf16.msra.mxu0 %v2838
      %2861 = vmatprep.subr.bf16.mxu0 0
      %2862 = vmatpush1.bf16.msra.mxu0 %v2839
      %2863 = vmatprep.subr.bf16.mxu0 0
      %2864 = vmatpush1.bf16.msra.mxu0 %v2840
      %2865 = vmatprep.subr.bf16.mxu0 0
      %2866 = vmatpush1.bf16.msra.mxu0 0
      %2867 = vmatprep.subr.bf16.mxu0 0
      %2868 = vmatpush1.bf16.msra.mxu0 0
      %2869 = vmatprep.subr.bf16.mxu0 0
      %2870 = vmatpush1.bf16.msra.mxu0 0
      %2871 = vmatprep.subr.bf16.mxu0 0
      %2872 = vmatpush1.bf16.msra.mxu0 0
      %2873 = vmatprep.subr.bf16.mxu0 0
      %2874 = vmatpush1.bf16.msra.mxu0 0
      %2875 = vmatprep.subr.bf16.mxu0 0
      %2876 = vmatpush1.bf16.msra.mxu0 0
      %2877 = vmatprep.subr.bf16.mxu0 0
      %2878 = vmatpush1.bf16.msra.mxu0 0
      %2879 = vmatprep.subr.bf16.mxu0 0
      %2880 = vmatpush1.bf16.msra.mxu0 0
      %2881 = vmatprep.mubr.bf16.mxu0 0
      %2882 = vmatmul.mubr.bf16.gmra.mrb[0].mxu0 %v2704
      %v2883 = vpop.f32.mrb[0].mxu0
      %v2884 = vadd.f32 0.0, %v2883
      %v2885 = vpop.f32.mrb[0].mxu0
      %v2886 = vpop.f32.mrb[0].mxu0
      %v2887 = vadd.f32 0.0, %v2886
      %v2888 = vpop.f32.mrb[0].mxu0
      %2889 = vmatprep.mubr.bf16.mxu0 0
      %2890 = vmatmul.mubr.bf16.gmra.mrb[0].mxu0 %v2708
      %v2891 = vpop.f32.mrb[0].mxu0
      %v2892 = vadd.f32 0.0, %v2891
      %v2893 = vpop.f32.mrb[0].mxu0
      %v2894 = vpop.f32.mrb[0].mxu0
      %v2895 = vadd.f32 0.0, %v2894
      %v2896 = vpop.f32.mrb[0].mxu0
      %2897 = vmatprep.mubr.bf16.mxu0 0
      %2898 = vmatmul.mubr.bf16.gmra.mrb[0].mxu0 %v2712
      %v2899 = vpop.f32.mrb[0].mxu0
      %v2900 = vadd.f32 0.0, %v2899
      %v2901 = vpop.f32.mrb[0].mxu0
      %v2902 = vpop.f32.mrb[0].mxu0
      %v2903 = vadd.f32 0.0, %v2902
      %v2904 = vpop.f32.mrb[0].mxu0
      %2905 = vmatprep.mubr.bf16.mxu0 0
      %2906 = vmatmul.mubr.bf16.gmra.mrb[0].mxu0 %v2716
      %v2907 = vpop.f32.mrb[0].mxu0
      %v2908 = vadd.f32 0.0, %v2907
      %v2909 = vpop.f32.mrb[0].mxu0
      %v2910 = vpop.f32.mrb[0].mxu0
      %v2911 = vadd.f32 0.0, %v2910
      %v2912 = vpop.f32.mrb[0].mxu0
      %2913 = vmatprep.mubr.bf16.mxu0 0
      %2914 = vmatmul.mubr.bf16.gmra.mrb[0].mxu0 %v2720
      %v2915 = vpop.f32.mrb[0].mxu0
      %v2916 = vadd.f32 0.0, %v2915
      %v2917 = vpop.f32.mrb[0].mxu0
      %v2918 = vpop.f32.mrb[0].mxu0
      %v2919 = vadd.f32 0.0, %v2918
      %v2920 = vpop.f32.mrb[0].mxu0
      %2921 = vmatprep.mubr.bf16.mxu0 0
      %2922 = vmatmul.mubr.bf16.gmra.mrb[0].mxu0 %v2724
      %v2923 = vpop.f32.mrb[0].mxu0
      %v2924 = vadd.f32 0.0, %v2923
      %v2925 = vpop.f32.mrb[0].mxu0
      %v2926 = vpop.f32.mrb[0].mxu0
      %v2927 = vadd.f32 0.0, %v2926
      %v2928 = vpop.f32.mrb[0].mxu0
      %2929 = vmatprep.mubr.bf16.mxu0 0
      %2930 = vmatmul.mubr.bf16.gmra.mrb[0].mxu0 %v2728
      %v2931 = vpop.f32.mrb[0].mxu0
      %v2932 = vadd.f32 0.0, %v2931
      %v2933 = vpop.f32.mrb[0].mxu0
      %v2934 = vpop.f32.mrb[0].mxu0
      %v2935 = vadd.f32 0.0, %v2934
      %v2936 = vpop.f32.mrb[0].mxu0
      %2937 = vmatprep.mubr.bf16.mxu0 0
      %2938 = vmatmul.mubr.bf16.gmra.mrb[0].mxu0 %v2732
      %v2939 = vpop.f32.mrb[0].mxu0
      %v2940 = vadd.f32 0.0, %v2939
      %v2941 = vpop.f32.mrb[0].mxu0
      %v2942 = vpop.f32.mrb[0].mxu0
      %v2943 = vadd.f32 0.0, %v2942
      %v2944 = vpop.f32.mrb[0].mxu0
      %2945 = vmatprep.mubr.bf16.mxu0 0
      %2946 = vmatmul.mubr.bf16.gmra.mrb[0].mxu0 %v2736
      %v2947 = vpop.f32.mrb[0].mxu0
      %v2948 = vadd.f32 0.0, %v2947
      %v2949 = vpop.f32.mrb[0].mxu0
      %v2950 = vpop.f32.mrb[0].mxu0
      %v2951 = vadd.f32 0.0, %v2950
      %v2952 = vpop.f32.mrb[0].mxu0
      %2953 = vmatprep.mubr.bf16.mxu0 0
      %2954 = vmatmul.mubr.bf16.gmra.mrb[0].mxu0 %v2740
      %v2955 = vpop.f32.mrb[0].mxu0
      %v2956 = vadd.f32 0.0, %v2955
      %v2957 = vpop.f32.mrb[0].mxu0
      %v2958 = vpop.f32.mrb[0].mxu0
      %v2959 = vadd.f32 0.0, %v2958
      %v2960 = vpop.f32.mrb[0].mxu0
      %2961 = vmatprep.mubr.bf16.mxu0 0
      %2962 = vmatmul.mubr.bf16.gmra.mrb[0].mxu0 %v2744
      %v2963 = vpop.f32.mrb[0].mxu0
      %v2964 = vadd.f32 0.0, %v2963
      %v2965 = vpop.f32.mrb[0].mxu0
      %v2966 = vpop.f32.mrb[0].mxu0
      %v2967 = vadd.f32 0.0, %v2966
      %v2968 = vpop.f32.mrb[0].mxu0
      %2969 = vmatprep.mubr.bf16.mxu0 0
      %2970 = vmatmul.mubr.bf16.gmra.mrb[0].mxu0 %v2748
      %v2971 = vpop.f32.mrb[0].mxu0
      %v2972 = vadd.f32 0.0, %v2971
      %v2973 = vpop.f32.mrb[0].mxu0
      %v2974 = vpop.f32.mrb[0].mxu0
      %v2975 = vadd.f32 0.0, %v2974
      %v2976 = vpop.f32.mrb[0].mxu0
      %2977 = vmatprep.mubr.bf16.mxu0 0
      %2978 = vmatmul.mubr.bf16.gmra.mrb[0].mxu0 %v2752
      %v2979 = vpop.f32.mrb[0].mxu0
      %v2980 = vadd.f32 0.0, %v2979
      %v2981 = vpop.f32.mrb[0].mxu0
      %v2982 = vpop.f32.mrb[0].mxu0
      %v2983 = vadd.f32 0.0, %v2982
      %v2984 = vpop.f32.mrb[0].mxu0
      %2985 = vmatprep.mubr.bf16.mxu0 0
      %2986 = vmatmul.mubr.bf16.gmra.mrb[0].mxu0 %v2756
      %v2987 = vpop.f32.mrb[0].mxu0
      %v2988 = vadd.f32 0.0, %v2987
      %v2989 = vpop.f32.mrb[0].mxu0
      %v2990 = vpop.f32.mrb[0].mxu0
      %v2991 = vadd.f32 0.0, %v2990
      %v2992 = vpop.f32.mrb[0].mxu0
      %2993 = vmatprep.mubr.bf16.mxu0 0
      %2994 = vmatmul.mubr.bf16.gmra.mrb[0].mxu0 %v2760
      %v2995 = vpop.f32.mrb[0].mxu0
      %v2996 = vadd.f32 0.0, %v2995
      %v2997 = vpop.f32.mrb[0].mxu0
      %v2998 = vpop.f32.mrb[0].mxu0
      %v2999 = vadd.f32 0.0, %v2998
      %v3000 = vpop.f32.mrb[0].mxu0
      %3001 = vmatprep.mubr.bf16.mxu0 0
      %3002 = vmatmul.mubr.bf16.gmra.mrb[0].mxu0 %v2764
      %v3003 = vpop.f32.mrb[0].mxu0
      %v3004 = vadd.f32 0.0, %v3003
      %v3005 = vpop.f32.mrb[0].mxu0
      %v3006 = vpop.f32.mrb[0].mxu0
      %v3007 = vadd.f32 0.0, %v3006
      %v3008 = vpop.f32.mrb[0].mxu0
      %3009 = vmatprep.mubr.bf16.mxu0 0
      %3010 = vmatmul.mubr.bf16.gmra.mrb[0].mxu0 %v2773
      %v3011 = vpop.f32.mrb[0].mxu0
      %v3012 = vadd.f32 0.0, %v3011
      %v3013 = vpop.f32.mrb[0].mxu0
      %v3014 = vpop.f32.mrb[0].mxu0
      %v3015 = vadd.f32 0.0, %v3014
      %v3016 = vpop.f32.mrb[0].mxu0
      %3017 = vmatprep.mubr.bf16.mxu0 0
      %3018 = vmatmul.mubr.bf16.gmra.mrb[0].mxu0 %v2782
      %v3019 = vpop.f32.mrb[0].mxu0
      %v3020 = vadd.f32 0.0, %v3019
      %v3021 = vpop.f32.mrb[0].mxu0
      %v3022 = vpop.f32.mrb[0].mxu0
      %v3023 = vadd.f32 0.0, %v3022
      %v3024 = vpop.f32.mrb[0].mxu0
      %3025 = vdwg.mxu0
      %v3026 = vadd.f32 %v2644, %v2884
      %v3027 = vadd.f32 %v2645, %v2887
      %v3028 = vadd.f32 %v2646, %v2892
      %v3029 = vadd.f32 %v2647, %v2895
      %v3030 = vadd.f32 %v2648, %v2900
      %v3031 = vadd.f32 %v2649, %v2903
      %v3032 = vadd.f32 %v2650, %v2908
      %v3033 = vadd.f32 %v2651, %v2911
      %v3034 = vadd.f32 %v2652, %v2916
      %v3035 = vadd.f32 %v2653, %v2919
      %v3036 = vadd.f32 %v2654, %v2924
      %v3037 = vadd.f32 %v2655, %v2927
      %v3038 = vadd.f32 %v2656, %v2932
      %v3039 = vadd.f32 %v2657, %v2935
      %v3040 = vadd.f32 %v2658, %v2940
      %v3041 = vadd.f32 %v2659, %v2943
      %v3042 = vadd.f32 %v2660, %v2948
      %v3043 = vadd.f32 %v2661, %v2951
      %v3044 = vadd.f32 %v2662, %v2956
      %v3045 = vadd.f32 %v2663, %v2959
      %v3046 = vadd.f32 %v2664, %v2964
      %v3047 = vadd.f32 %v2665, %v2967
      %v3048 = vadd.f32 %v2666, %v2972
      %v3049 = vadd.f32 %v2667, %v2975
      %v3050 = vadd.f32 %v2668, %v2980
      %v3051 = vadd.f32 %v2669, %v2983
      %v3052 = vadd.f32 %v2670, %v2988
      %v3053 = vadd.f32 %v2671, %v2991
      %v3054 = vadd.f32 %v2672, %v2996
      %v3055 = vadd.f32 %v2673, %v2999
      %v3056 = vadd.f32 %v2674, %v3004
      %v3057 = vadd.f32 %v2675, %v3007
      %v3058 = vadd.f32 %v2676, %v3012
      %v3059 = vadd.f32 %v2677, %v3015
      %v3060 = vadd.f32 %v2678, %v3020
      %v3061 = vadd.f32 %v2679, %v3023
      %s3062 = scalar_lea.vmem %s1, 512
      %v3063 = vld [vmem:[%s3062] sm:$0xf]
      %v3064 = vld [vmem:[%s3062 + $0x4] sm:$0xf]
      %v3065 = vld [vmem:[%s3062 + $0x8] sm:$0xf]
      %v3066 = vld [vmem:[%s3062 + $0xc] sm:$0xf]
      %v3067 = vld [vmem:[%s3062 + $0x10] sm:$0xf]
      %v3068 = vld [vmem:[%s3062 + $0x14] sm:$0xf]
      %v3069 = vld [vmem:[%s3062 + $0x18] sm:$0xf]
      %v3070 = vld [vmem:[%s3062 + $0x1c] sm:$0xf]
      %v3071 = vld [vmem:[%s3062 + $0x20] sm:$0xf]
      %v3072 = vld [vmem:[%s3062 + $0x24] sm:$0xf]
      %v3073 = vld [vmem:[%s3062 + $0x28] sm:$0xf]
      %v3074 = vld [vmem:[%s3062 + $0x2c] sm:$0xf]
      %v3075 = vld [vmem:[%s3062 + $0x30] sm:$0xf]
      %v3076 = vld [vmem:[%s3062 + $0x34] sm:$0xf]
      %v3077 = vld [vmem:[%s3062 + $0x38] sm:$0xf]
      %v3078 = vld [vmem:[%s3062 + $0x3c] sm:$0xf]
      %vm3079 = vcmask 1044480
      %v3080 = vrot.slane %v398, 3
      %v3081 = vrot.slane %v399, 3
      %v3082 = vsel %vm3079, %v3080, %v3081
      %v3083 = vrot.slane %v400, 3
      %v3084 = vsel %vm3079, %v3081, %v3083
      %v3085 = vrot.slane %v401, 3
      %v3086 = vsel %vm3079, %v3083, %v3085
      %v3087 = vrot.slane %v402, 3
      %v3088 = vsel %vm3079, %v3085, %v3087
      %v3089 = vrot.slane %v403, 3
      %v3090 = vsel %vm3079, %v3087, %v3089
      %v3091 = vrot.slane %v404, 3
      %v3092 = vsel %vm3079, %v3089, %v3091
      %v3093 = vrot.slane %v405, 3
      %v3094 = vsel %vm3079, %v3091, %v3093
      %v3095 = vrot.slane %v406, 3
      %v3096 = vsel %vm3079, %v3093, %v3095
      %v3097 = vrot.slane %v407, 3
      %v3098 = vsel %vm3079, %v3095, %v3097
      %v3099 = vrot.slane %v408, 3
      %v3100 = vsel %vm3079, %v3097, %v3099
      %v3101 = vrot.slane %v409, 3
      %v3102 = vsel %vm3079, %v3099, %v3101
      %v3103 = vrot.slane %v410, 3
      %v3104 = vsel %vm3079, %v3101, %v3103
      %v3105 = vrot.slane %v411, 3
      %v3106 = vsel %vm3079, %v3103, %v3105
      %v3107 = vrot.slane %v412, 3
      %v3108 = vsel %vm3079, %v3105, %v3107
      %v3109 = vrot.slane %v413, 3
      %v3110 = vsel %vm3079, %v3107, %v3109
      %v3111 = vrot.slane %v1405, 3
      %v3112 = vsel %vm3079, %v3109, %v3111
      %v3113 = vrot.slane %v2411, 3
      %v3114 = vsel %vm3079, %v3111, %v3113
      %v3115 = vrot.slane %v2412, 3
      %v3116 = vsel %vm3079, %v3113, %v3115
      %v3151 = vunpack.c.l.b16 %v3063
      %v3152 = vunpack.c.l.b16 %v3064
      %v3153 = vunpack.c.l.b16 %v3065
      %v3154 = vunpack.c.l.b16 %v3066
      %v3155 = vunpack.c.l.b16 %v3067
      %v3156 = vunpack.c.l.b16 %v3068
      %v3157 = vunpack.c.l.b16 %v3069
      %v3158 = vunpack.c.l.b16 %v3070
      %v3159 = vunpack.c.l.b16 %v3071
      %v3160 = vunpack.c.l.b16 %v3072
      %v3161 = vunpack.c.l.b16 %v3073
      %v3162 = vunpack.c.l.b16 %v3074
      %v3163 = vunpack.c.l.b16 %v3075
      %v3164 = vunpack.c.l.b16 %v3076
      %v3165 = vunpack.c.l.b16 %v3077
      %v3166 = vunpack.c.l.b16 %v3078
      %v3167 = vpack.c.b16 %v3152, %v3151
      %v3168 = vpack.c.b16 %v3154, %v3153
      %v3169 = vpack.c.b16 %v3156, %v3155
      %v3170 = vpack.c.b16 %v3158, %v3157
      %v3171 = vpack.c.b16 %v3160, %v3159
      %v3172 = vpack.c.b16 %v3162, %v3161
      %v3173 = vpack.c.b16 %v3164, %v3163
      %v3174 = vpack.c.b16 %v3166, %v3165
      %3183 = vmatprep.subr.bf16.mxu0 0
      %3184 = vmatpush1.bf16.msra.mxu0 %v3167
      %3185 = vmatprep.subr.bf16.mxu0 0
      %3186 = vmatpush1.bf16.msra.mxu0 %v3168
      %3187 = vmatprep.subr.bf16.mxu0 0
      %3188 = vmatpush1.bf16.msra.mxu0 %v3169
      %3189 = vmatprep.subr.bf16.mxu0 0
      %3190 = vmatpush1.bf16.msra.mxu0 %v3170
      %3191 = vmatprep.subr.bf16.mxu0 0
      %3192 = vmatpush1.bf16.msra.mxu0 %v3171
      %3193 = vmatprep.subr.bf16.mxu0 0
      %3194 = vmatpush1.bf16.msra.mxu0 %v3172
      %3195 = vmatprep.subr.bf16.mxu0 0
      %3196 = vmatpush1.bf16.msra.mxu0 %v3173
      %3197 = vmatprep.subr.bf16.mxu0 0
      %3198 = vmatpush1.bf16.msra.mxu0 %v3174
      %3199 = vmatprep.subr.bf16.mxu0 0
      %3200 = vmatpush1.bf16.msra.mxu0 0
      %3201 = vmatprep.subr.bf16.mxu0 0
      %3202 = vmatpush1.bf16.msra.mxu0 0
      %3203 = vmatprep.subr.bf16.mxu0 0
      %3204 = vmatpush1.bf16.msra.mxu0 0
      %3205 = vmatprep.subr.bf16.mxu0 0
      %3206 = vmatpush1.bf16.msra.mxu0 0
      %3207 = vmatprep.subr.bf16.mxu0 0
      %3208 = vmatpush1.bf16.msra.mxu0 0
      %3209 = vmatprep.subr.bf16.mxu0 0
      %3210 = vmatpush1.bf16.msra.mxu0 0
      %3211 = vmatprep.subr.bf16.mxu0 0
      %3212 = vmatpush1.bf16.msra.mxu0 0
      %3213 = vmatprep.subr.bf16.mxu0 0
      %3214 = vmatpush1.bf16.msra.mxu0 0
      %3215 = vmatprep.mubr.bf16.mxu0 0
      %3216 = vmatmul.mubr.bf16.gmra.mrb[0].mxu0 %v3082
      %v3217 = vpop.f32.mrb[0].mxu0
      %v3218 = vadd.f32 0.0, %v3217
      %v3219 = vpop.f32.mrb[0].mxu0
      %v3220 = vpop.f32.mrb[0].mxu0
      %v3221 = vadd.f32 0.0, %v3220
      %v3222 = vpop.f32.mrb[0].mxu0
      %3223 = vmatprep.mubr.bf16.mxu0 0
      %3224 = vmatmul.mubr.bf16.gmra.mrb[0].mxu0 %v3084
      %v3225 = vpop.f32.mrb[0].mxu0
      %v3226 = vadd.f32 0.0, %v3225
      %v3227 = vpop.f32.mrb[0].mxu0
      %v3228 = vpop.f32.mrb[0].mxu0
      %v3229 = vadd.f32 0.0, %v3228
      %v3230 = vpop.f32.mrb[0].mxu0
      %3231 = vmatprep.mubr.bf16.mxu0 0
      %3232 = vmatmul.mubr.bf16.gmra.mrb[0].mxu0 %v3086
      %v3233 = vpop.f32.mrb[0].mxu0
      %v3234 = vadd.f32 0.0, %v3233
      %v3235 = vpop.f32.mrb[0].mxu0
      %v3236 = vpop.f32.mrb[0].mxu0
      %v3237 = vadd.f32 0.0, %v3236
      %v3238 = vpop.f32.mrb[0].mxu0
      %3239 = vmatprep.mubr.bf16.mxu0 0
      %3240 = vmatmul.mubr.bf16.gmra.mrb[0].mxu0 %v3088
      %v3241 = vpop.f32.mrb[0].mxu0
      %v3242 = vadd.f32 0.0, %v3241
      %v3243 = vpop.f32.mrb[0].mxu0
      %v3244 = vpop.f32.mrb[0].mxu0
      %v3245 = vadd.f32 0.0, %v3244
      %v3246 = vpop.f32.mrb[0].mxu0
      %3247 = vmatprep.mubr.bf16.mxu0 0
      %3248 = vmatmul.mubr.bf16.gmra.mrb[0].mxu0 %v3090
      %v3249 = vpop.f32.mrb[0].mxu0
      %v3250 = vadd.f32 0.0, %v3249
      %v3251 = vpop.f32.mrb[0].mxu0
      %v3252 = vpop.f32.mrb[0].mxu0
      %v3253 = vadd.f32 0.0, %v3252
      %v3254 = vpop.f32.mrb[0].mxu0
      %3255 = vmatprep.mubr.bf16.mxu0 0
      %3256 = vmatmul.mubr.bf16.gmra.mrb[0].mxu0 %v3092
      %v3257 = vpop.f32.mrb[0].mxu0
      %v3258 = vadd.f32 0.0, %v3257
      %v3259 = vpop.f32.mrb[0].mxu0
      %v3260 = vpop.f32.mrb[0].mxu0
      %v3261 = vadd.f32 0.0, %v3260
      %v3262 = vpop.f32.mrb[0].mxu0
      %3263 = vmatprep.mubr.bf16.mxu0 0
      %3264 = vmatmul.mubr.bf16.gmra.mrb[0].mxu0 %v3094
      %v3265 = vpop.f32.mrb[0].mxu0
      %v3266 = vadd.f32 0.0, %v3265
      %v3267 = vpop.f32.mrb[0].mxu0
      %v3268 = vpop.f32.mrb[0].mxu0
      %v3269 = vadd.f32 0.0, %v3268
      %v3270 = vpop.f32.mrb[0].mxu0
      %3271 = vmatprep.mubr.bf16.mxu0 0
      %3272 = vmatmul.mubr.bf16.gmra.mrb[0].mxu0 %v3096
      %v3273 = vpop.f32.mrb[0].mxu0
      %v3274 = vadd.f32 0.0, %v3273
      %v3275 = vpop.f32.mrb[0].mxu0
      %v3276 = vpop.f32.mrb[0].mxu0
      %v3277 = vadd.f32 0.0, %v3276
      %v3278 = vpop.f32.mrb[0].mxu0
      %3279 = vmatprep.mubr.bf16.mxu0 0
      %3280 = vmatmul.mubr.bf16.gmra.mrb[0].mxu0 %v3098
      %v3281 = vpop.f32.mrb[0].mxu0
      %v3282 = vadd.f32 0.0, %v3281
      %v3283 = vpop.f32.mrb[0].mxu0
      %v3284 = vpop.f32.mrb[0].mxu0
      %v3285 = vadd.f32 0.0, %v3284
      %v3286 = vpop.f32.mrb[0].mxu0
      %3287 = vmatprep.mubr.bf16.mxu0 0
      %3288 = vmatmul.mubr.bf16.gmra.mrb[0].mxu0 %v3100
      %v3289 = vpop.f32.mrb[0].mxu0
      %v3290 = vadd.f32 0.0, %v3289
      %v3291 = vpop.f32.mrb[0].mxu0
      %v3292 = vpop.f32.mrb[0].mxu0
      %v3293 = vadd.f32 0.0, %v3292
      %v3294 = vpop.f32.mrb[0].mxu0
      %3295 = vmatprep.mubr.bf16.mxu0 0
      %3296 = vmatmul.mubr.bf16.gmra.mrb[0].mxu0 %v3102
      %v3297 = vpop.f32.mrb[0].mxu0
      %v3298 = vadd.f32 0.0, %v3297
      %v3299 = vpop.f32.mrb[0].mxu0
      %v3300 = vpop.f32.mrb[0].mxu0
      %v3301 = vadd.f32 0.0, %v3300
      %v3302 = vpop.f32.mrb[0].mxu0
      %3303 = vmatprep.mubr.bf16.mxu0 0
      %3304 = vmatmul.mubr.bf16.gmra.mrb[0].mxu0 %v3104
      %v3305 = vpop.f32.mrb[0].mxu0
      %v3306 = vadd.f32 0.0, %v3305
      %v3307 = vpop.f32.mrb[0].mxu0
      %v3308 = vpop.f32.mrb[0].mxu0
      %v3309 = vadd.f32 0.0, %v3308
      %v3310 = vpop.f32.mrb[0].mxu0
      %3311 = vmatprep.mubr.bf16.mxu0 0
      %3312 = vmatmul.mubr.bf16.gmra.mrb[0].mxu0 %v3106
      %v3313 = vpop.f32.mrb[0].mxu0
      %v3314 = vadd.f32 0.0, %v3313
      %v3315 = vpop.f32.mrb[0].mxu0
      %v3316 = vpop.f32.mrb[0].mxu0
      %v3317 = vadd.f32 0.0, %v3316
      %v3318 = vpop.f32.mrb[0].mxu0
      %3319 = vmatprep.mubr.bf16.mxu0 0
      %3320 = vmatmul.mubr.bf16.gmra.mrb[0].mxu0 %v3108
      %v3321 = vpop.f32.mrb[0].mxu0
      %v3322 = vadd.f32 0.0, %v3321
      %v3323 = vpop.f32.mrb[0].mxu0
      %v3324 = vpop.f32.mrb[0].mxu0
      %v3325 = vadd.f32 0.0, %v3324
      %v3326 = vpop.f32.mrb[0].mxu0
      %3327 = vmatprep.mubr.bf16.mxu0 0
      %3328 = vmatmul.mubr.bf16.gmra.mrb[0].mxu0 %v3110
      %v3329 = vpop.f32.mrb[0].mxu0
      %v3330 = vadd.f32 0.0, %v3329
      %v3331 = vpop.f32.mrb[0].mxu0
      %v3332 = vpop.f32.mrb[0].mxu0
      %v3333 = vadd.f32 0.0, %v3332
      %v3334 = vpop.f32.mrb[0].mxu0
      %3335 = vmatprep.mubr.bf16.mxu0 0
      %3336 = vmatmul.mubr.bf16.gmra.mrb[0].mxu0 %v3112
      %v3337 = vpop.f32.mrb[0].mxu0
      %v3338 = vadd.f32 0.0, %v3337
      %v3339 = vpop.f32.mrb[0].mxu0
      %v3340 = vpop.f32.mrb[0].mxu0
      %v3341 = vadd.f32 0.0, %v3340
      %v3342 = vpop.f32.mrb[0].mxu0
      %3343 = vmatprep.mubr.bf16.mxu0 0
      %3344 = vmatmul.mubr.bf16.gmra.mrb[0].mxu0 %v3114
      %v3345 = vpop.f32.mrb[0].mxu0
      %v3346 = vadd.f32 0.0, %v3345
      %v3347 = vpop.f32.mrb[0].mxu0
      %v3348 = vpop.f32.mrb[0].mxu0
      %v3349 = vadd.f32 0.0, %v3348
      %v3350 = vpop.f32.mrb[0].mxu0
      %3351 = vmatprep.mubr.bf16.mxu0 0
      %3352 = vmatmul.mubr.bf16.gmra.mrb[0].mxu0 %v3116
      %v3353 = vpop.f32.mrb[0].mxu0
      %v3354 = vadd.f32 0.0, %v3353
      %v3355 = vpop.f32.mrb[0].mxu0
      %v3356 = vpop.f32.mrb[0].mxu0
      %v3357 = vadd.f32 0.0, %v3356
      %v3358 = vpop.f32.mrb[0].mxu0
      %3359 = vdwg.mxu0
      %v3360 = vadd.f32 %v3026, %v3218
      %v3361 = vadd.f32 %v3027, %v3221
      %v3362 = vadd.f32 %v3028, %v3226
      %v3363 = vadd.f32 %v3029, %v3229
      %v3364 = vadd.f32 %v3030, %v3234
      %v3365 = vadd.f32 %v3031, %v3237
      %v3366 = vadd.f32 %v3032, %v3242
      %v3367 = vadd.f32 %v3033, %v3245
      %v3368 = vadd.f32 %v3034, %v3250
      %v3369 = vadd.f32 %v3035, %v3253
      %v3370 = vadd.f32 %v3036, %v3258
      %v3371 = vadd.f32 %v3037, %v3261
      %v3372 = vadd.f32 %v3038, %v3266
      %v3373 = vadd.f32 %v3039, %v3269
      %v3374 = vadd.f32 %v3040, %v3274
      %v3375 = vadd.f32 %v3041, %v3277
      %v3376 = vadd.f32 %v3042, %v3282
      %v3377 = vadd.f32 %v3043, %v3285
      %v3378 = vadd.f32 %v3044, %v3290
      %v3379 = vadd.f32 %v3045, %v3293
      %v3380 = vadd.f32 %v3046, %v3298
      %v3381 = vadd.f32 %v3047, %v3301
      %v3382 = vadd.f32 %v3048, %v3306
      %v3383 = vadd.f32 %v3049, %v3309
      %v3384 = vadd.f32 %v3050, %v3314
      %v3385 = vadd.f32 %v3051, %v3317
      %v3386 = vadd.f32 %v3052, %v3322
      %v3387 = vadd.f32 %v3053, %v3325
      %v3388 = vadd.f32 %v3054, %v3330
      %v3389 = vadd.f32 %v3055, %v3333
      %v3390 = vadd.f32 %v3056, %v3338
      %v3391 = vadd.f32 %v3057, %v3341
      %v3392 = vadd.f32 %v3058, %v3346
      %v3393 = vadd.f32 %v3059, %v3349
      %v3394 = vadd.f32 %v3060, %v3354
      %v3395 = vadd.f32 %v3061, %v3357
      %v3396 = vld [vmem:[%s2] sm:$0x1]
      %v3398 = vlaneseq
      %v3399 = vshrl.u32 %v3398, 7
      %v3400 = vsub.s32 0, %v3399
      %v3401 = vrot.slane %v3396, %v3400
      %v3403 = vadd.f32 %v3360, %v3401
      %v3404 = vadd.f32 %v3361, %v3401
      %v3405 = vadd.f32 %v3362, %v3401
      %v3406 = vadd.f32 %v3363, %v3401
      %v3407 = vadd.f32 %v3364, %v3401
      %v3408 = vadd.f32 %v3365, %v3401
      %v3409 = vadd.f32 %v3366, %v3401
      %v3410 = vadd.f32 %v3367, %v3401
      %v3411 = vadd.f32 %v3368, %v3401
      %v3412 = vadd.f32 %v3369, %v3401
      %v3413 = vadd.f32 %v3370, %v3401
      %v3414 = vadd.f32 %v3371, %v3401
      %v3415 = vadd.f32 %v3372, %v3401
      %v3416 = vadd.f32 %v3373, %v3401
      %v3417 = vadd.f32 %v3374, %v3401
      %v3418 = vadd.f32 %v3375, %v3401
      %v3419 = vadd.f32 %v3376, %v3401
      %v3420 = vadd.f32 %v3377, %v3401
      %v3421 = vadd.f32 %v3378, %v3401
      %v3422 = vadd.f32 %v3379, %v3401
      %v3423 = vadd.f32 %v3380, %v3401
      %v3424 = vadd.f32 %v3381, %v3401
      %v3425 = vadd.f32 %v3382, %v3401
      %v3426 = vadd.f32 %v3383, %v3401
      %v3427 = vadd.f32 %v3384, %v3401
      %v3428 = vadd.f32 %v3385, %v3401
      %v3429 = vadd.f32 %v3386, %v3401
      %v3430 = vadd.f32 %v3387, %v3401
      %v3431 = vadd.f32 %v3388, %v3401
      %v3432 = vadd.f32 %v3389, %v3401
      %v3433 = vadd.f32 %v3390, %v3401
      %v3434 = vadd.f32 %v3391, %v3401
      %v3435 = vadd.f32 %v3392, %v3401
      %v3436 = vadd.f32 %v3393, %v3401
      %v3437 = vadd.f32 %v3394, %v3401
      %v3438 = vadd.f32 %v3395, %v3401
      %3439 = vst [vmem:[%s246] sm:$0xff] %v3403
      %3440 = vst [vmem:[%s246 + $0x8] sm:$0xff] %v3404
      %3441 = vst [vmem:[%s246 + $0x10] sm:$0xff] %v3405
      %3442 = vst [vmem:[%s246 + $0x18] sm:$0xff] %v3406
      %3443 = vst [vmem:[%s246 + $0x20] sm:$0xff] %v3407
      %3444 = vst [vmem:[%s246 + $0x28] sm:$0xff] %v3408
      %3445 = vst [vmem:[%s246 + $0x30] sm:$0xff] %v3409
      %3446 = vst [vmem:[%s246 + $0x38] sm:$0xff] %v3410
      %3447 = vst [vmem:[%s246 + $0x40] sm:$0xff] %v3411
      %3448 = vst [vmem:[%s246 + $0x48] sm:$0xff] %v3412
      %3449 = vst [vmem:[%s246 + $0x50] sm:$0xff] %v3413
      %3450 = vst [vmem:[%s246 + $0x58] sm:$0xff] %v3414
      %3451 = vst [vmem:[%s246 + $0x60] sm:$0xff] %v3415
      %3452 = vst [vmem:[%s246 + $0x68] sm:$0xff] %v3416
      %3453 = vst [vmem:[%s246 + $0x70] sm:$0xff] %v3417
      %3454 = vst [vmem:[%s246 + $0x78] sm:$0xff] %v3418
      %3455 = vst [vmem:[%s246 + $0x80] sm:$0xff] %v3419
      %3456 = vst [vmem:[%s246 + $0x88] sm:$0xff] %v3420
      %3457 = vst [vmem:[%s246 + $0x90] sm:$0xff] %v3421
      %3458 = vst [vmem:[%s246 + $0x98] sm:$0xff] %v3422
      %3459 = vst [vmem:[%s246 + $0xa0] sm:$0xff] %v3423
      %3460 = vst [vmem:[%s246 + $0xa8] sm:$0xff] %v3424
      %3461 = vst [vmem:[%s246 + $0xb0] sm:$0xff] %v3425
      %3462 = vst [vmem:[%s246 + $0xb8] sm:$0xff] %v3426
      %3463 = vst [vmem:[%s246 + $0xc0] sm:$0xff] %v3427
      %3464 = vst [vmem:[%s246 + $0xc8] sm:$0xff] %v3428
      %3465 = vst [vmem:[%s246 + $0xd0] sm:$0xff] %v3429
      %3466 = vst [vmem:[%s246 + $0xd8] sm:$0xff] %v3430
      %3467 = vst [vmem:[%s246 + $0xe0] sm:$0xff] %v3431
      %3468 = vst [vmem:[%s246 + $0xe8] sm:$0xff] %v3432
      %3469 = vst [vmem:[%s246 + $0xf0] sm:$0xff] %v3433
      %3470 = vst [vmem:[%s246 + $0xf8] sm:$0xff] %v3434
      %3471 = vst [vmem:[%s246 + $0x100] sm:$0xff] %v3435
      %3472 = vst [vmem:[%s246 + $0x108] sm:$0xff] %v3436
      %3473 = vst [vmem:[%s246 + $0x110] sm:$0xff] %v3437
      %3474 = vst [vmem:[%s246 + $0x118] sm:$0xff] %v3438
      %p3475 = scmp.eq.s32.totalorder %s18, 0
      // Predicated region
      $region37: #{conv_block_forward.6} parent=35 // pred_check
        %p3476 = pneg %p3475
      $region38: #{conv_block_forward.6} parent=35 // pred_check_branch
        %3478 = sbr.rel (%p3476) target = $region40
      $region39: #{conv_block_forward.6} parent=35 // pred_region
        %3479 = vst [vmem:[%s5] sm:$0x1] 0.0
        %3480 = vst [vmem:[%s6] sm:$0x1] 0.0
      $region40: #{conv_block_forward.6} parent=35 // pred_fallthru
        _
      %v3481 = vld [vmem:[%s3] sm:$0xff]
      %v3482 = vld [vmem:[%s3 + $0x8] sm:$0xff]
      %v3483 = vld [vmem:[%s3 + $0x10] sm:$0xff]
      %v3484 = vld [vmem:[%s3 + $0x18] sm:$0xff]
      %v3485 = vld [vmem:[%s3 + $0x20] sm:$0xff]
      %v3486 = vld [vmem:[%s3 + $0x28] sm:$0xff]
      %v3487 = vld [vmem:[%s3 + $0x30] sm:$0xff]
      %v3488 = vld [vmem:[%s3 + $0x38] sm:$0xff]
      %v3489 = vld [vmem:[%s3 + $0x40] sm:$0xff]
      %v3490 = vld [vmem:[%s3 + $0x48] sm:$0xff]
      %v3491 = vld [vmem:[%s3 + $0x50] sm:$0xff]
      %v3492 = vld [vmem:[%s3 + $0x58] sm:$0xff]
      %v3493 = vld [vmem:[%s3 + $0x60] sm:$0xff]
      %v3494 = vld [vmem:[%s3 + $0x68] sm:$0xff]
      %v3495 = vld [vmem:[%s3 + $0x70] sm:$0xff]
      %v3496 = vld [vmem:[%s3 + $0x78] sm:$0xff]
      %v3497 = vld [vmem:[%s3 + $0x80] sm:$0xff]
      %v3498 = vld [vmem:[%s3 + $0x88] sm:$0xff]
      %v3499 = vld [vmem:[%s3 + $0x90] sm:$0xff]
      %v3500 = vld [vmem:[%s3 + $0x98] sm:$0xff]
      %v3501 = vld [vmem:[%s3 + $0xa0] sm:$0xff]
      %v3502 = vld [vmem:[%s3 + $0xa8] sm:$0xff]
      %v3503 = vld [vmem:[%s3 + $0xb0] sm:$0xff]
      %v3504 = vld [vmem:[%s3 + $0xb8] sm:$0xff]
      %v3505 = vld [vmem:[%s3 + $0xc0] sm:$0xff]
      %v3506 = vld [vmem:[%s3 + $0xc8] sm:$0xff]
      %v3507 = vld [vmem:[%s3 + $0xd0] sm:$0xff]
      %v3508 = vld [vmem:[%s3 + $0xd8] sm:$0xff]
      %v3509 = vld [vmem:[%s3 + $0xe0] sm:$0xff]
      %v3510 = vld [vmem:[%s3 + $0xe8] sm:$0xff]
      %v3511 = vld [vmem:[%s3 + $0xf0] sm:$0xff]
      %v3512 = vld [vmem:[%s3 + $0xf8] sm:$0xff]
      %v3513 = vld [vmem:[%s3 + $0x100] sm:$0xff]
      %v3514 = vld [vmem:[%s3 + $0x108] sm:$0xff]
      %v3515 = vld [vmem:[%s3 + $0x110] sm:$0xff]
      %v3516 = vld [vmem:[%s3 + $0x118] sm:$0xff]
      %3518 = vset.pattern.permute.xlu0 0
      %3519 = vperm.xlu0 %3518, %v3481
      %v3520 = vpop.permute.xlu0 %3519
      %3523 = vset.pattern.permute.xlu0 0
      %3524 = vperm.xlu0 %3523, %v3482
      %v3525 = vpop.permute.xlu0 %3524
      %3528 = vset.pattern.permute.xlu0 0
      %3529 = vperm.xlu0 %3528, %v3483
      %v3530 = vpop.permute.xlu0 %3529
      %3533 = vset.pattern.permute.xlu0 0
      %3534 = vperm.xlu0 %3533, %v3484
      %v3535 = vpop.permute.xlu0 %3534
      %3538 = vset.pattern.permute.xlu0 0
      %3539 = vperm.xlu0 %3538, %v3485
      %v3540 = vpop.permute.xlu0 %3539
      %3543 = vset.pattern.permute.xlu0 0
      %3544 = vperm.xlu0 %3543, %v3486
      %v3545 = vpop.permute.xlu0 %3544
      %3548 = vset.pattern.permute.xlu0 0
      %3549 = vperm.xlu0 %3548, %v3487
      %v3550 = vpop.permute.xlu0 %3549
      %3553 = vset.pattern.permute.xlu0 0
      %3554 = vperm.xlu0 %3553, %v3488
      %v3555 = vpop.permute.xlu0 %3554
      %3558 = vset.pattern.permute.xlu0 0
      %3559 = vperm.xlu0 %3558, %v3489
      %v3560 = vpop.permute.xlu0 %3559
      %3563 = vset.pattern.permute.xlu0 0
      %3564 = vperm.xlu0 %3563, %v3490
      %v3565 = vpop.permute.xlu0 %3564
      %3568 = vset.pattern.permute.xlu0 0
      %3569 = vperm.xlu0 %3568, %v3491
      %v3570 = vpop.permute.xlu0 %3569
      %3573 = vset.pattern.permute.xlu0 0
      %3574 = vperm.xlu0 %3573, %v3492
      %v3575 = vpop.permute.xlu0 %3574
      %3578 = vset.pattern.permute.xlu0 0
      %3579 = vperm.xlu0 %3578, %v3493
      %v3580 = vpop.permute.xlu0 %3579
      %3583 = vset.pattern.permute.xlu0 0
      %3584 = vperm.xlu0 %3583, %v3494
      %v3585 = vpop.permute.xlu0 %3584
      %3588 = vset.pattern.permute.xlu0 0
      %3589 = vperm.xlu0 %3588, %v3495
      %v3590 = vpop.permute.xlu0 %3589
      %3593 = vset.pattern.permute.xlu0 0
      %3594 = vperm.xlu0 %3593, %v3496
      %v3595 = vpop.permute.xlu0 %3594
      %3598 = vset.pattern.permute.xlu0 0
      %3599 = vperm.xlu0 %3598, %v3497
      %v3600 = vpop.permute.xlu0 %3599
      %3603 = vset.pattern.permute.xlu0 0
      %3604 = vperm.xlu0 %3603, %v3498
      %v3605 = vpop.permute.xlu0 %3604
      %3608 = vset.pattern.permute.xlu0 0
      %3609 = vperm.xlu0 %3608, %v3499
      %v3610 = vpop.permute.xlu0 %3609
      %3613 = vset.pattern.permute.xlu0 0
      %3614 = vperm.xlu0 %3613, %v3500
      %v3615 = vpop.permute.xlu0 %3614
      %3618 = vset.pattern.permute.xlu0 0
      %3619 = vperm.xlu0 %3618, %v3501
      %v3620 = vpop.permute.xlu0 %3619
      %3623 = vset.pattern.permute.xlu0 0
      %3624 = vperm.xlu0 %3623, %v3502
      %v3625 = vpop.permute.xlu0 %3624
      %3628 = vset.pattern.permute.xlu0 0
      %3629 = vperm.xlu0 %3628, %v3503
      %v3630 = vpop.permute.xlu0 %3629
      %3633 = vset.pattern.permute.xlu0 0
      %3634 = vperm.xlu0 %3633, %v3504
      %v3635 = vpop.permute.xlu0 %3634
      %3638 = vset.pattern.permute.xlu0 0
      %3639 = vperm.xlu0 %3638, %v3505
      %v3640 = vpop.permute.xlu0 %3639
      %3643 = vset.pattern.permute.xlu0 0
      %3644 = vperm.xlu0 %3643, %v3506
      %v3645 = vpop.permute.xlu0 %3644
      %3648 = vset.pattern.permute.xlu0 0
      %3649 = vperm.xlu0 %3648, %v3507
      %v3650 = vpop.permute.xlu0 %3649
      %3653 = vset.pattern.permute.xlu0 0
      %3654 = vperm.xlu0 %3653, %v3508
      %v3655 = vpop.permute.xlu0 %3654
      %3658 = vset.pattern.permute.xlu0 0
      %3659 = vperm.xlu0 %3658, %v3509
      %v3660 = vpop.permute.xlu0 %3659
      %3663 = vset.pattern.permute.xlu0 0
      %3664 = vperm.xlu0 %3663, %v3510
      %v3665 = vpop.permute.xlu0 %3664
      %3668 = vset.pattern.permute.xlu0 0
      %3669 = vperm.xlu0 %3668, %v3511
      %v3670 = vpop.permute.xlu0 %3669
      %3673 = vset.pattern.permute.xlu0 0
      %3674 = vperm.xlu0 %3673, %v3512
      %v3675 = vpop.permute.xlu0 %3674
      %3678 = vset.pattern.permute.xlu0 0
      %3679 = vperm.xlu0 %3678, %v3513
      %v3680 = vpop.permute.xlu0 %3679
      %3683 = vset.pattern.permute.xlu0 0
      %3684 = vperm.xlu0 %3683, %v3514
      %v3685 = vpop.permute.xlu0 %3684
      %3688 = vset.pattern.permute.xlu0 0
      %3689 = vperm.xlu0 %3688, %v3515
      %v3690 = vpop.permute.xlu0 %3689
      %3693 = vset.pattern.permute.xlu0 0
      %3694 = vperm.xlu0 %3693, %v3516
      %v3695 = vpop.permute.xlu0 %3694
      %v3697 = vmul.f32 %v3403, %v3520
      %v3698 = vmul.f32 %v3404, %v3525
      %v3699 = vmul.f32 %v3405, %v3530
      %v3700 = vmul.f32 %v3406, %v3535
      %v3701 = vmul.f32 %v3407, %v3540
      %v3702 = vmul.f32 %v3408, %v3545
      %v3703 = vmul.f32 %v3409, %v3550
      %v3704 = vmul.f32 %v3410, %v3555
      %v3705 = vmul.f32 %v3411, %v3560
      %v3706 = vmul.f32 %v3412, %v3565
      %v3707 = vmul.f32 %v3413, %v3570
      %v3708 = vmul.f32 %v3414, %v3575
      %v3709 = vmul.f32 %v3415, %v3580
      %v3710 = vmul.f32 %v3416, %v3585
      %v3711 = vmul.f32 %v3417, %v3590
      %v3712 = vmul.f32 %v3418, %v3595
      %v3713 = vmul.f32 %v3419, %v3600
      %v3714 = vmul.f32 %v3420, %v3605
      %v3715 = vmul.f32 %v3421, %v3610
      %v3716 = vmul.f32 %v3422, %v3615
      %v3717 = vmul.f32 %v3423, %v3620
      %v3718 = vmul.f32 %v3424, %v3625
      %v3719 = vmul.f32 %v3425, %v3630
      %v3720 = vmul.f32 %v3426, %v3635
      %v3721 = vmul.f32 %v3427, %v3640
      %v3722 = vmul.f32 %v3428, %v3645
      %v3723 = vmul.f32 %v3429, %v3650
      %v3724 = vmul.f32 %v3430, %v3655
      %v3725 = vmul.f32 %v3431, %v3660
      %v3726 = vmul.f32 %v3432, %v3665
      %v3727 = vmul.f32 %v3433, %v3670
      %v3728 = vmul.f32 %v3434, %v3675
      %v3729 = vmul.f32 %v3435, %v3680
      %v3730 = vmul.f32 %v3436, %v3685
      %v3731 = vmul.f32 %v3437, %v3690
      %v3732 = vmul.f32 %v3438, %v3695
      %v3733 = vld [vmem:[%s5] sm:$0x1]
      %v3734 = vadd.f32 %v3697, %v3698
      %v3735 = vadd.f32 %v3734, %v3699
      %v3736 = vadd.f32 %v3735, %v3700
      %v3737 = vadd.f32 %v3736, %v3701
      %v3738 = vadd.f32 %v3737, %v3702
      %v3739 = vadd.f32 %v3738, %v3703
      %v3740 = vadd.f32 %v3739, %v3704
      %v3741 = vadd.f32 %v3740, %v3705
      %v3742 = vadd.f32 %v3741, %v3706
      %v3743 = vadd.f32 %v3742, %v3707
      %v3744 = vadd.f32 %v3743, %v3708
      %v3745 = vadd.f32 %v3744, %v3709
      %v3746 = vadd.f32 %v3745, %v3710
      %v3747 = vadd.f32 %v3746, %v3711
      %v3748 = vadd.f32 %v3747, %v3712
      %v3749 = vadd.f32 %v3748, %v3713
      %v3750 = vadd.f32 %v3749, %v3714
      %v3751 = vadd.f32 %v3750, %v3715
      %v3752 = vadd.f32 %v3751, %v3716
      %v3753 = vadd.f32 %v3752, %v3717
      %v3754 = vadd.f32 %v3753, %v3718
      %v3755 = vadd.f32 %v3754, %v3719
      %v3756 = vadd.f32 %v3755, %v3720
      %v3757 = vadd.f32 %v3756, %v3721
      %v3758 = vadd.f32 %v3757, %v3722
      %v3759 = vadd.f32 %v3758, %v3723
      %v3760 = vadd.f32 %v3759, %v3724
      %v3761 = vadd.f32 %v3760, %v3725
      %v3762 = vadd.f32 %v3761, %v3726
      %v3763 = vadd.f32 %v3762, %v3727
      %v3764 = vadd.f32 %v3763, %v3728
      %v3765 = vadd.f32 %v3764, %v3729
      %v3766 = vadd.f32 %v3765, %v3730
      %v3767 = vadd.f32 %v3766, %v3731
      %v3768 = vadd.f32 %v3767, %v3732
      %v3769 = vrot.slane %v3768, 4
      %v3770 = vadd.f32 %v3768, %v3769
      %v3771 = vrot.slane %v3770, 2
      %v3772 = vadd.f32 %v3770, %v3771
      %v3773 = vrot.slane %v3772, 1
      %v3774 = vadd.f32 %v3772, %v3773
      %v3775 = vadd.f32 %v3733, %v3774
      %3776 = vst [vmem:[%s5] sm:$0x1] %v3775
      %v3777 = vld [vmem:[%s6] sm:$0x1]
      %v3778 = vmul.f32 %v3697, %v3697
      %v3779 = vmul.f32 %v3698, %v3698
      %v3780 = vmul.f32 %v3699, %v3699
      %v3781 = vmul.f32 %v3700, %v3700
      %v3782 = vmul.f32 %v3701, %v3701
      %v3783 = vmul.f32 %v3702, %v3702
      %v3784 = vmul.f32 %v3703, %v3703
      %v3785 = vmul.f32 %v3704, %v3704
      %v3786 = vmul.f32 %v3705, %v3705
      %v3787 = vmul.f32 %v3706, %v3706
      %v3788 = vmul.f32 %v3707, %v3707
      %v3789 = vmul.f32 %v3708, %v3708
      %v3790 = vmul.f32 %v3709, %v3709
      %v3791 = vmul.f32 %v3710, %v3710
      %v3792 = vmul.f32 %v3711, %v3711
      %v3793 = vmul.f32 %v3712, %v3712
      %v3794 = vmul.f32 %v3713, %v3713
      %v3795 = vmul.f32 %v3714, %v3714
      %v3796 = vmul.f32 %v3715, %v3715
      %v3797 = vmul.f32 %v3716, %v3716
      %v3798 = vmul.f32 %v3717, %v3717
      %v3799 = vmul.f32 %v3718, %v3718
      %v3800 = vmul.f32 %v3719, %v3719
      %v3801 = vmul.f32 %v3720, %v3720
      %v3802 = vmul.f32 %v3721, %v3721
      %v3803 = vmul.f32 %v3722, %v3722
      %v3804 = vmul.f32 %v3723, %v3723
      %v3805 = vmul.f32 %v3724, %v3724
      %v3806 = vmul.f32 %v3725, %v3725
      %v3807 = vmul.f32 %v3726, %v3726
      %v3808 = vmul.f32 %v3727, %v3727
      %v3809 = vmul.f32 %v3728, %v3728
      %v3810 = vmul.f32 %v3729, %v3729
      %v3811 = vmul.f32 %v3730, %v3730
      %v3812 = vmul.f32 %v3731, %v3731
      %v3813 = vmul.f32 %v3732, %v3732
      %v3814 = vadd.f32 %v3778, %v3779
      %v3815 = vadd.f32 %v3814, %v3780
      %v3816 = vadd.f32 %v3815, %v3781
      %v3817 = vadd.f32 %v3816, %v3782
      %v3818 = vadd.f32 %v3817, %v3783
      %v3819 = vadd.f32 %v3818, %v3784
      %v3820 = vadd.f32 %v3819, %v3785
      %v3821 = vadd.f32 %v3820, %v3786
      %v3822 = vadd.f32 %v3821, %v3787
      %v3823 = vadd.f32 %v3822, %v3788
      %v3824 = vadd.f32 %v3823, %v3789
      %v3825 = vadd.f32 %v3824, %v3790
      %v3826 = vadd.f32 %v3825, %v3791
      %v3827 = vadd.f32 %v3826, %v3792
      %v3828 = vadd.f32 %v3827, %v3793
      %v3829 = vadd.f32 %v3828, %v3794
      %v3830 = vadd.f32 %v3829, %v3795
      %v3831 = vadd.f32 %v3830, %v3796
      %v3832 = vadd.f32 %v3831, %v3797
      %v3833 = vadd.f32 %v3832, %v3798
      %v3834 = vadd.f32 %v3833, %v3799
      %v3835 = vadd.f32 %v3834, %v3800
      %v3836 = vadd.f32 %v3835, %v3801
      %v3837 = vadd.f32 %v3836, %v3802
      %v3838 = vadd.f32 %v3837, %v3803
      %v3839 = vadd.f32 %v3838, %v3804
      %v3840 = vadd.f32 %v3839, %v3805
      %v3841 = vadd.f32 %v3840, %v3806
      %v3842 = vadd.f32 %v3841, %v3807
      %v3843 = vadd.f32 %v3842, %v3808
      %v3844 = vadd.f32 %v3843, %v3809
      %v3845 = vadd.f32 %v3844, %v3810
      %v3846 = vadd.f32 %v3845, %v3811
      %v3847 = vadd.f32 %v3846, %v3812
      %v3848 = vadd.f32 %v3847, %v3813
      %v3849 = vrot.slane %v3848, 4
      %v3850 = vadd.f32 %v3848, %v3849
      %v3851 = vrot.slane %v3850, 2
      %v3852 = vadd.f32 %v3850, %v3851
      %v3853 = vrot.slane %v3852, 1
      %v3854 = vadd.f32 %v3852, %v3853
      %v3855 = vadd.f32 %v3777, %v3854
      %3856 = vst [vmem:[%s6] sm:$0x1] %v3855
      %p3857 = scmp.lt.s32.totalorder %s18, 1
      %s3858 = scalar_select %p3857, %s18, 1
      %s3859 = smul.addr %s3858, 36
      %s3860 = smul.addr %s3859, 8
      %s3861 = scalar_lea.vmem %s4, %s3860
      // Predicated region
      $region41: #{conv_block_forward.6} parent=35 // pred_check
        %p3862 = pneg %p125
      $region42: #{conv_block_forward.6} parent=35 // pred_check_branch
        %3864 = sbr.rel (%p3862) target = $region44
      $region43: #{conv_block_forward.6} parent=35 // pred_region
        _
      $region44: #{conv_block_forward.6} parent=35 // pred_fallthru
        _
      // Predicated region
      $region45: #{conv_block_forward.6} parent=35 // pred_check
        %p3865 = pneg %p146
      $region46: #{conv_block_forward.6} parent=35 // pred_check_branch
        %3867 = sbr.rel (%p3865) target = $region48
      $region47: #{conv_block_forward.6} parent=35 // pred_region
        _
      $region48: #{conv_block_forward.6} parent=35 // pred_fallthru
        _
      // Predicated region
      $region49: #{conv_block_forward.6} parent=35 // pred_check
        %p3868 = pneg %p167
      $region50: #{conv_block_forward.6} parent=35 // pred_check_branch
        %3870 = sbr.rel (%p3868) target = $region52
      $region51: #{conv_block_forward.6} parent=35 // pred_region
        _
      $region52: #{conv_block_forward.6} parent=35 // pred_fallthru
        _
      // Predicated region
      $region53: #{conv_block_forward.6} parent=35 // pred_check
        %p3871 = pneg %p146
      $region54: #{conv_block_forward.6} parent=35 // pred_check_branch
        %3873 = sbr.rel (%p3871) target = $region56
      $region55: #{conv_block_forward.6} parent=35 // pred_region
        _
      $region56: #{conv_block_forward.6} parent=35 // pred_fallthru
        _
      // Predicated region
      $region57: #{conv_block_forward.6} parent=35 // pred_check
        %p3874 = pneg %p167
      $region58: #{conv_block_forward.6} parent=35 // pred_check_branch
        %3876 = sbr.rel (%p3874) target = $region60
      $region59: #{conv_block_forward.6} parent=35 // pred_region
        _
      $region60: #{conv_block_forward.6} parent=35 // pred_fallthru
        _
    $region36: #{conv_block_forward.6} parent=5 // pred_fallthru
      _
    %p3877 = scmp.le.s32.totalorder 2, %s13
    // Predicated region
    $region61: #{conv_block_forward.6} parent=5 // pred_check
      %p3878 = pneg %p3877
    $region62: #{conv_block_forward.6} parent=5 // pred_check_branch
      %3880 = sbr.rel (%p3878) target = $region64
    $region63: #{conv_block_forward.6} parent=5 // pred_region
      %s3881 = ssub.s32 %s13, 2
      // Predicated region
      $region65: #{conv_block_forward.6} parent=63 // pred_check
        %p3882 = pneg %p131
      $region66: #{conv_block_forward.6} parent=63 // pred_check_branch
        %3884 = sbr.rel (%p3882) target = $region68
      $region67: #{conv_block_forward.6} parent=63 // pred_region
        %p3885 = scmp.lt.s32.totalorder %s19, 1
        %s3886 = scalar_select %p3885, %s19, 1
        %s3887 = smul.addr %s3886, 36
        %s3888 = smul.addr %s3887, 8
        %s3889 = scalar_lea.vmem %s4, %s3888
      $region68: #{conv_block_forward.6} parent=63 // pred_fallthru
        _
    $region64: #{conv_block_forward.6} parent=5 // pred_fallthru
      _
  $region6: #{conv_block_forward.6} parent=0 // loop_footer
    %s17 = sadd.s32 1, %s13
  $region7: #{conv_block_forward.6} parent=0 // loop_footer_branch
    %12 = sbr.rel target = $region3
  $region8: #{conv_block_forward.6} parent=0 // loop_exit
    _

</llo_original>
